<compile_context>
chip_gen: v7x
topology: tpu7x:2x2x1
jax: 0.10.0
libtpu: 0.0.40
codegen_flags: <defaults>
</compile_context>

<pallas_src>
import math
import numpy as np
import jax
import jax.numpy as jnp
from jax import lax
from jax.experimental import pallas as pl
from jax.experimental.pallas import tpu as pltpu

# ----------------------------- config ----------------------------------------
N = 2                 # batch
IMG_C = 3             # img_channels
TMP_C = 32            # tmp_channels
OUT_C = 32            # out_channels
H = W = 16            # resolution
HO, WO = H // 2, W // 2
C4 = 4 * TMP_C        # 128: four spatial phases packed into the lane axis
M_ROWS = N * HO * WO  # 128: whole batch folded into the matmul M dimension

SQRT2 = math.sqrt(2.0)       # lrelu def_gain
SQRT_HALF = math.sqrt(0.5)   # resnet branch gain
LRELU_ALPHA = 0.2

_F = np.array([1.0, 3.0, 3.0, 1.0], dtype=np.float64)
F1 = (_F / _F.sum()).astype(np.float32)   # upfirdn2d.setup_filter([1,3,3,1])


def _lrelu(x):
    return jnp.where(x >= 0, x, LRELU_ALPHA * x)


# ----------------------------- fused kernel -----------------------------------
# Packing: phase p = 2*(y%2) + (x%2); packed row r = n*HO*WO + i*WO + j,
# lane = p*32 + c, i.e. packed[r, p*32+c] = full[n, 2i+p//2, 2j+p%2, c].
# A 3x3 (pad-1) conv tap (dr,dc) on packed data reads row r + (dr-1)*WO + (dc-1);
# rows whose (i,j) would leave [0,HO)x[0,WO) are masked to zero, which is exactly
# the full-resolution zero padding and also keeps images in the folded batch
# from reading each other (roll wrap-around rows are always masked).
def block_kernel(img_ref, wrgb_ref, brgb_ref, w0_ref, b0_ref, wsk_ref,
                 wk1_ref, b1_ref, o_ref):
    f32, bf16 = jnp.float32, jnp.bfloat16
    m = img_ref.shape[0]                                      # M_ROWS (static)

    # per-row packed spatial coordinates (constant across lanes)
    ridx = lax.broadcasted_iota(jnp.int32, (m, C4), 0)
    col = jnp.bitwise_and(ridx, WO - 1)                       # j  (WO = 8)
    row = jnp.bitwise_and(jnp.right_shift(ridx, 3), HO - 1)   # i  (HO = 8)

    def tap_chain(x_f32, w_ref, ncols):
        """sum_t mask_t(roll(x, off_t)) @ w_ref[t]  -> (m, ncols) f32."""
        acc = jnp.zeros((m, ncols), f32)
        for dr in range(3):
            for dc in range(3):
                di, dj = dr - 1, dc - 1
                off = di * WO + dj
                lhs = x_f32 if off == 0 else pltpu.roll(x_f32, (-off) % m, axis=0)
                cond = None
                if di < 0:
                    cond = row >= -di
                if di > 0:
                    cond = row < HO - di
                if dj < 0:
                    c2 = col >= -dj
                    cond = c2 if cond is None else jnp.logical_and(cond, c2)
                if dj > 0:
                    c2 = col < WO - dj
                    cond = c2 if cond is None else jnp.logical_and(cond, c2)
                if cond is not None:
                    lhs = jnp.where(cond, lhs, 0.0)
                acc = acc + jnp.dot(lhs.astype(bf16), w_ref[3 * dr + dc],
                                    preferred_element_type=f32)
        return acc

    # ---- fromrgb: 1x1 conv + bias + lrelu*sqrt(2)  (block-diag packed weight)
    z = jnp.dot(img_ref[...], wrgb_ref[...], preferred_element_type=f32)
    x0 = _lrelu(z + brgb_ref[...]) * SQRT2                    # (m, 128) f32

    # ---- conv0: 3x3, pad 1 (9 phase-packed taps)
    x1 = _lrelu(tap_chain(x0, w0_ref, C4) + b0_ref[...]) * SQRT2

    # ---- resnet skip: blur([1,3,3,1]) + down2 + 1x1, gain sqrt(.5) folded in
    skip = tap_chain(x0, wsk_ref, OUT_C)                      # (m, 32) f32

    # ---- conv1: 3x3 down=2 with blur folded to 6x6 -> 9 packed taps;
    #      act gain sqrt(2)*sqrt(0.5) = 1
    y1 = _lrelu(tap_chain(x1, wk1_ref, OUT_C) + b1_ref[...])

    # lane-dense output block: channels in lanes [0,32), lanes [32,128) zero
    o_ref[...] = jnp.zeros(o_ref.shape, o_ref.dtype)
    o_ref[:, :OUT_C] = (skip + y1).astype(o_ref.dtype)


# ------------------------------- wrapper --------------------------------------
def discriminator_block_forward(img_nchw, p):
    """DiscriminatorBlock(in_channels=0, architecture='resnet').forward(None, img)."""
    # NCHW -> NHWC, pad channels 3 -> 32, space-to-depth pack to (M_ROWS, 128)
    img = jnp.transpose(img_nchw, (0, 2, 3, 1)).astype(jnp.float32)
    img = jnp.pad(img, ((0, 0), (0, 0), (0, 0), (0, TMP_C - IMG_C)))
    img_pk = img.reshape(N, HO, 2, WO, 2, TMP_C).transpose(0, 1, 3, 2, 4, 5)
    img_pk = img_pk.reshape(M_ROWS, C4).astype(jnp.bfloat16)

    out = pl.pallas_call(
        block_kernel,
        out_shape=jax.ShapeDtypeStruct((M_ROWS, C4), jnp.float32),
        # whole batch folded into M => a single grid step here; with larger
        # batches on v7x, shrink the batch tile so this axis shards across TCs.
        grid=(1,),
        in_specs=[
            pl.BlockSpec((M_ROWS, C4), lambda n: (n, 0)),        # packed img
            pl.BlockSpec((C4, C4), lambda n: (0, 0)),            # fromrgb W
            pl.BlockSpec((1, C4), lambda n: (0, 0)),             # fromrgb b
            pl.BlockSpec((9, C4, C4), lambda n: (0, 0, 0)),      # conv0 taps
            pl.BlockSpec((1, C4), lambda n: (0, 0)),             # conv0 b
            pl.BlockSpec((9, C4, OUT_C), lambda n: (0, 0, 0)),   # skip taps
            pl.BlockSpec((9, C4, OUT_C), lambda n: (0, 0, 0)),   # conv1 taps
            pl.BlockSpec((1, OUT_C), lambda n: (0, 0)),          # conv1 b
        ],
        out_specs=pl.BlockSpec((M_ROWS, C4), lambda n: (n, 0)),
        compiler_params=pltpu.CompilerParams(dimension_semantics=("parallel",)),
    )(img_pk, p["wrgb_pk"], p["brgb_row"], p["w0_pk"], p["b0_row"],
      p["wsk_pk"], p["wk1_pk"], p["b1_row"])

    out = out[:, :OUT_C].reshape(N, HO, WO, OUT_C)
    return jnp.transpose(out, (0, 3, 1, 2)), None                # NCHW, img=None


# --------------------------- parameter setup ----------------------------------
def init_params(key):
    k1, k2, k3, k4 = jax.random.split(key, 4)
    # torch.randn-equivalent raw weights (torch OIHW layout); torch.zeros biases
    w_rgb = jax.random.normal(k1, (TMP_C, IMG_C, 1, 1), jnp.float32)
    w_conv0 = jax.random.normal(k2, (TMP_C, TMP_C, 3, 3), jnp.float32)
    w_conv1 = jax.random.normal(k3, (OUT_C, TMP_C, 3, 3), jnp.float32)
    w_skip = jax.random.normal(k4, (OUT_C, TMP_C, 1, 1), jnp.float32)
    b_rgb = jnp.zeros((TMP_C,), jnp.float32)
    b0 = jnp.zeros((TMP_C,), jnp.float32)
    b1 = jnp.zeros((OUT_C,), jnp.float32)

    wg_rgb = 1.0 / math.sqrt(IMG_C * 1 * 1)
    wg_c = 1.0 / math.sqrt(TMP_C * 3 * 3)
    wg_skip = 1.0 / math.sqrt(TMP_C * 1 * 1)

    # (ky, kx, ci, co) layouts with weight gains folded in
    W0 = np.transpose(np.asarray(w_conv0) * wg_c, (2, 3, 1, 0))
    W1 = np.transpose(np.asarray(w_conv1) * wg_c, (2, 3, 1, 0))
    Wrgb = np.asarray(w_rgb)[:, :, 0, 0].T * wg_rgb                  # (3, 32)
    Wsk = np.asarray(w_skip)[:, :, 0, 0].T * wg_skip                 # (32, 32)

    # fold the [1,3,3,1] blur into conv1 -> 6x6 stride-2 kernel K1[t,u,ci,co]
    K1 = np.zeros((6, 6, TMP_C, OUT_C), np.float32)
    for ky in range(3):
        for kx in range(3):
            for a in range(4):
                for b in range(4):
                    K1[ky + a, kx + b] += F1[a] * F1[b] * W1[ky, kx]

    # fromrgb: block-diagonal packed weight (128, 128); input lane = p*32 + c
    Wrgb_pk = np.zeros((C4, C4), np.float32)
    for ph in range(4):
        Wrgb_pk[ph * TMP_C:ph * TMP_C + IMG_C,
                ph * TMP_C:(ph + 1) * TMP_C] = Wrgb

    # conv0 / skip packed taps over phase-packed x0 (tap t = 3*dr + dc):
    #   W0_pk[t, p*32+ci, q*32+co] = W0[ky,kx,ci,co], ky=2dr+pr-qr-1, kx=2dc+pc-qc-1
    #   Wsk_pk[t, p*32+ci, co]     = F1[c']*F1[d']*sqrt(.5)*Wsk[ci,co],
    #                                c'=2dr+pr-1, d'=2dc+pc-1
    W0_pk = np.zeros((9, C4, C4), np.float32)
    Wsk_pk = np.zeros((9, C4, OUT_C), np.float32)
    for dr in range(3):
        for dc in range(3):
            t = 3 * dr + dc
            for ph in range(4):
                pr, pc = ph // 2, ph % 2
                for q in range(4):
                    qr, qc = q // 2, q % 2
                    ky = 2 * dr + pr - qr - 1
                    kx = 2 * dc + pc - qc - 1
                    if 0 <= ky < 3 and 0 <= kx < 3:
                        W0_pk[t, ph * TMP_C:(ph + 1) * TMP_C,
                              q * TMP_C:(q + 1) * TMP_C] = W0[ky, kx]
                c_ = 2 * dr + pr - 1
                d_ = 2 * dc + pc - 1
                if 0 <= c_ < 4 and 0 <= d_ < 4:
                    Wsk_pk[t, ph * TMP_C:(ph + 1) * TMP_C, :] = (
                        float(F1[c_] * F1[d_]) * SQRT_HALF * Wsk)

    # conv1 (blur folded) packed taps: Wk1[t, p*32+ci, co] = K1[2dt+pt, 2du+pu]
    Wk1_pk = np.zeros((9, C4, OUT_C), np.float32)
    for dt in range(3):
        for du in range(3):
            for ph in range(4):
                pt, pu = ph // 2, ph % 2
                Wk1_pk[3 * dt + du, ph * TMP_C:(ph + 1) * TMP_C, :] = (
                    K1[2 * dt + pt, 2 * du + pu])

    return dict(
        # raw (torch-layout) weights for the pure-JAX reference
        w_rgb=w_rgb, w_conv0=w_conv0, w_conv1=w_conv1, w_skip=w_skip,
        b_rgb=b_rgb, b0=b0, b1=b1,
        # kernel-side packed weights (bf16 for the MXU) and f32 bias rows
        wrgb_pk=jnp.asarray(Wrgb_pk).astype(jnp.bfloat16),
        w0_pk=jnp.asarray(W0_pk).astype(jnp.bfloat16),
        wsk_pk=jnp.asarray(Wsk_pk).astype(jnp.bfloat16),
        wk1_pk=jnp.asarray(Wk1_pk).astype(jnp.bfloat16),
        brgb_row=jnp.tile(b_rgb, 4).reshape(1, C4),
        b0_row=jnp.tile(b0, 4).reshape(1, C4),
        b1_row=b1.reshape(1, OUT_C),
    )


# ----------------------- pure-JAX reference (NCHW, mirrors torch) -------------
def reference_forward(img_nchw, p):
    dn = ('NCHW', 'OIHW', 'NCHW')
    f2 = jnp.asarray(np.outer(F1, F1))
    fdw = jnp.tile(f2[None, None], (TMP_C, 1, 1, 1))            # depthwise blur

    # fromrgb
    x = lax.conv_general_dilated(img_nchw, p["w_rgb"] * (1.0 / math.sqrt(IMG_C)),
                                 (1, 1), 'VALID', dimension_numbers=dn)
    x = _lrelu(x + p["b_rgb"][None, :, None, None]) * SQRT2
    x0 = x
    # skip: pad1 -> depthwise blur stride 2 -> 1x1 conv -> *sqrt(0.5)
    xp = jnp.pad(x0, ((0, 0), (0, 0), (1, 1), (1, 1)))
    yb = lax.conv_general_dilated(xp, fdw, (2, 2), 'VALID', dimension_numbers=dn,
                                  feature_group_count=TMP_C)
    y = lax.conv_general_dilated(yb, p["w_skip"] * (1.0 / math.sqrt(TMP_C)),
                                 (1, 1), 'VALID', dimension_numbers=dn) * SQRT_HALF
    # conv0
    x = lax.conv_general_dilated(x0, p["w_conv0"] * (1.0 / math.sqrt(TMP_C * 9)),
                                 (1, 1), [(1, 1), (1, 1)], dimension_numbers=dn)
    x = _lrelu(x + p["b0"][None, :, None, None]) * SQRT2
    # conv1: pad2 -> depthwise blur -> 3x3 stride-2 conv -> bias -> lrelu (gain 1)
    xp = jnp.pad(x, ((0, 0), (0, 0), (2, 2), (2, 2)))
    yb = lax.conv_general_dilated(xp, fdw, (1, 1), 'VALID', dimension_numbers=dn,
                                  feature_group_count=TMP_C)
    x = lax.conv_general_dilated(yb, p["w_conv1"] * (1.0 / math.sqrt(TMP_C * 9)),
                                 (2, 2), 'VALID', dimension_numbers=dn)
    x = _lrelu(x + p["b1"][None, :, None, None])
    return y + x


# ----------------------------------- main --------------------------------------
if __name__ == "__main__":
    key = jax.random.PRNGKey(0)
    kp, kx = jax.random.split(key)
    params = init_params(kp)
    img = jax.random.normal(kx, (N, IMG_C, H, W), jnp.float32)   # x is None (in_channels=0)

    fwd = jax.jit(discriminator_block_forward)
    out, img_out = fwd(img, params)
    out = jax.block_until_ready(out)
    assert out.shape == (N, OUT_C, HO, WO) and out.dtype == jnp.float32
    assert img_out is None   # architecture == 'resnet' -> img output is None

    ref = jax.block_until_ready(reference_forward(img, params))
    # loose tolerance: kernel matmuls use bf16 operands (f32 accumulation)
    np.testing.assert_allclose(np.asarray(out), np.asarray(ref), rtol=5e-2, atol=5e-2)

    print("KERNEL_OK")
</pallas_src>

<mosaic_0001>
module attributes {stable_mosaic.version = 11 : i64} {
  func.func @block_kernel(%arg0: i32, %arg1: memref<128x128xbf16, #tpu.memory_space<vmem>>, %arg2: memref<128x128xbf16, #tpu.memory_space<vmem>>, %arg3: memref<1x128xf32, #tpu.memory_space<vmem>>, %arg4: memref<9x128x128xbf16, #tpu.memory_space<vmem>>, %arg5: memref<1x128xf32, #tpu.memory_space<vmem>>, %arg6: memref<9x128x32xbf16, #tpu.memory_space<vmem>>, %arg7: memref<9x128x32xbf16, #tpu.memory_space<vmem>>, %arg8: memref<1x32xf32, #tpu.memory_space<vmem>>, %arg9: memref<128x128xf32, #tpu.memory_space<vmem>>) attributes {dimension_semantics = [#tpu.dimension_semantics<parallel>], iteration_bounds = array<i64: 1>, scalar_prefetch = 0 : i64, scratch_operands = 0 : i64, tpu.core_type = #tpu.core_type<tc>, window_params = [{transform_indices = @transform_0, window_bounds = array<i64: 128, 128>}, {pipeline_mode = #tpu.pipeline_mode<synchronous>, transform_indices = @transform_1, window_bounds = array<i64: 128, 128>}, {pipeline_mode = #tpu.pipeline_mode<synchronous>, transform_indices = @transform_2, window_bounds = array<i64: 1, 128>}, {pipeline_mode = #tpu.pipeline_mode<synchronous>, transform_indices = @transform_3, window_bounds = array<i64: 9, 128, 128>}, {pipeline_mode = #tpu.pipeline_mode<synchronous>, transform_indices = @transform_4, window_bounds = array<i64: 1, 128>}, {pipeline_mode = #tpu.pipeline_mode<synchronous>, transform_indices = @transform_5, window_bounds = array<i64: 9, 128, 32>}, {pipeline_mode = #tpu.pipeline_mode<synchronous>, transform_indices = @transform_6, window_bounds = array<i64: 9, 128, 32>}, {pipeline_mode = #tpu.pipeline_mode<synchronous>, transform_indices = @transform_7, window_bounds = array<i64: 1, 32>}, {transform_indices = @transform_8, window_bounds = array<i64: 128, 128>}]} {
    %0 = tpu.iota {dimensions = array<i32: 0>} : vector<128x128xi32>
    %c7_i32 = arith.constant 7 : i32
    %1 = vector.broadcast %c7_i32 : i32 to vector<128x128xi32>
    %2 = arith.andi %0, %1 : vector<128x128xi32>
    %c3_i32 = arith.constant 3 : i32
    %3 = vector.broadcast %c3_i32 : i32 to vector<128x128xi32>
    %4 = arith.shrsi %0, %3 : vector<128x128xi32>
    %c7_i32_0 = arith.constant 7 : i32
    %5 = vector.broadcast %c7_i32_0 : i32 to vector<128x128xi32>
    %6 = arith.andi %4, %5 : vector<128x128xi32>
    %c0 = arith.constant 0 : index
    %c0_1 = arith.constant 0 : index
    %7 = vector.load %arg1[%c0, %c0_1] : memref<128x128xbf16, #tpu.memory_space<vmem>>, vector<128x128xbf16>
    %c0_2 = arith.constant 0 : index
    %c0_3 = arith.constant 0 : index
    %8 = vector.load %arg2[%c0_2, %c0_3] : memref<128x128xbf16, #tpu.memory_space<vmem>>, vector<128x128xbf16>
    %cst = arith.constant dense<0.000000e+00> : vector<128x128xf32>
    %9 = tpu.matmul %7, %8, %cst {dimension_numbers = #tpu.dot_dimension_numbers<[1], [0], [0], [1], [0, 0, 1, 1], [], []>} : vector<128x128xbf16>, vector<128x128xbf16>, vector<128x128xf32> -> vector<128x128xf32>
    %c0_4 = arith.constant 0 : index
    %c0_5 = arith.constant 0 : index
    %10 = vector.load %arg3[%c0_4, %c0_5] : memref<1x128xf32, #tpu.memory_space<vmem>>, vector<1x128xf32>
    %11 = vector.broadcast %10 : vector<1x128xf32> to vector<128x128xf32>
    %12 = arith.addf %9, %11 : vector<128x128xf32>
    %cst_6 = arith.constant 0.000000e+00 : f32
    %13 = vector.broadcast %cst_6 : f32 to vector<128x128xf32>
    %14 = arith.cmpf oge, %12, %13 : vector<128x128xf32>
    %cst_7 = arith.constant 2.000000e-01 : f32
    %15 = vector.broadcast %cst_7 : f32 to vector<128x128xf32>
    %16 = arith.mulf %15, %12 : vector<128x128xf32>
    %17 = arith.select %14, %12, %16 : vector<128x128xi1>, vector<128x128xf32>
    %cst_8 = arith.constant 1.41421354 : f32
    %18 = vector.broadcast %cst_8 : f32 to vector<128x128xf32>
    %19 = arith.mulf %17, %18 : vector<128x128xf32>
    %cst_9 = arith.constant 0.000000e+00 : f32
    %20 = vector.broadcast %cst_9 : f32 to vector<128x128xf32>
    %c9_i32 = arith.constant 9 : i32
    %21 = tpu.dynamic_rotate %19 by %c9_i32 dim 0 : vector<128x128xf32>, i32 -> vector<128x128xf32>
    %c1_i32 = arith.constant 1 : i32
    %22 = vector.broadcast %c1_i32 : i32 to vector<128x128xi32>
    %23 = arith.cmpi sge, %6, %22 : vector<128x128xi32>
    %c1_i32_10 = arith.constant 1 : i32
    %24 = vector.broadcast %c1_i32_10 : i32 to vector<128x128xi32>
    %25 = arith.cmpi sge, %2, %24 : vector<128x128xi32>
    %26 = arith.andi %23, %25 : vector<128x128xi1>
    %cst_11 = arith.constant 0.000000e+00 : f32
    %27 = vector.broadcast %cst_11 : f32 to vector<128x128xf32>
    %28 = arith.select %26, %21, %27 : vector<128x128xi1>, vector<128x128xf32>
    %29 = arith.truncf %28 : vector<128x128xf32> to vector<128x128xbf16>
    %c0_12 = arith.constant 0 : index
    %c0_13 = arith.constant 0 : index
    %c0_14 = arith.constant 0 : index
    %30 = vector.load %arg4[%c0_12, %c0_13, %c0_14] : memref<9x128x128xbf16, #tpu.memory_space<vmem>>, vector<1x128x128xbf16>
    %31 = vector.shape_cast %30 : vector<1x128x128xbf16> to vector<128x128xbf16>
    %cst_15 = arith.constant dense<0.000000e+00> : vector<128x128xf32>
    %32 = tpu.matmul %29, %31, %cst_15 {dimension_numbers = #tpu.dot_dimension_numbers<[1], [0], [0], [1], [0, 0, 1, 1], [], []>} : vector<128x128xbf16>, vector<128x128xbf16>, vector<128x128xf32> -> vector<128x128xf32>
    %33 = arith.addf %20, %32 : vector<128x128xf32>
    %c8_i32 = arith.constant 8 : i32
    %34 = tpu.dynamic_rotate %19 by %c8_i32 dim 0 : vector<128x128xf32>, i32 -> vector<128x128xf32>
    %c1_i32_16 = arith.constant 1 : i32
    %35 = vector.broadcast %c1_i32_16 : i32 to vector<128x128xi32>
    %36 = arith.cmpi sge, %6, %35 : vector<128x128xi32>
    %cst_17 = arith.constant 0.000000e+00 : f32
    %37 = vector.broadcast %cst_17 : f32 to vector<128x128xf32>
    %38 = arith.select %36, %34, %37 : vector<128x128xi1>, vector<128x128xf32>
    %39 = arith.truncf %38 : vector<128x128xf32> to vector<128x128xbf16>
    %c1 = arith.constant 1 : index
    %c0_18 = arith.constant 0 : index
    %c0_19 = arith.constant 0 : index
    %40 = vector.load %arg4[%c1, %c0_18, %c0_19] : memref<9x128x128xbf16, #tpu.memory_space<vmem>>, vector<1x128x128xbf16>
    %41 = vector.shape_cast %40 : vector<1x128x128xbf16> to vector<128x128xbf16>
    %cst_20 = arith.constant dense<0.000000e+00> : vector<128x128xf32>
    %42 = tpu.matmul %39, %41, %cst_20 {dimension_numbers = #tpu.dot_dimension_numbers<[1], [0], [0], [1], [0, 0, 1, 1], [], []>} : vector<128x128xbf16>, vector<128x128xbf16>, vector<128x128xf32> -> vector<128x128xf32>
    %43 = arith.addf %33, %42 : vector<128x128xf32>
    %c7_i32_21 = arith.constant 7 : i32
    %44 = tpu.dynamic_rotate %19 by %c7_i32_21 dim 0 : vector<128x128xf32>, i32 -> vector<128x128xf32>
    %c1_i32_22 = arith.constant 1 : i32
    %45 = vector.broadcast %c1_i32_22 : i32 to vector<128x128xi32>
    %46 = arith.cmpi sge, %6, %45 : vector<128x128xi32>
    %c7_i32_23 = arith.constant 7 : i32
    %47 = vector.broadcast %c7_i32_23 : i32 to vector<128x128xi32>
    %48 = arith.cmpi slt, %2, %47 : vector<128x128xi32>
    %49 = arith.andi %46, %48 : vector<128x128xi1>
    %cst_24 = arith.constant 0.000000e+00 : f32
    %50 = vector.broadcast %cst_24 : f32 to vector<128x128xf32>
    %51 = arith.select %49, %44, %50 : vector<128x128xi1>, vector<128x128xf32>
    %52 = arith.truncf %51 : vector<128x128xf32> to vector<128x128xbf16>
    %c2 = arith.constant 2 : index
    %c0_25 = arith.constant 0 : index
    %c0_26 = arith.constant 0 : index
    %53 = vector.load %arg4[%c2, %c0_25, %c0_26] : memref<9x128x128xbf16, #tpu.memory_space<vmem>>, vector<1x128x128xbf16>
    %54 = vector.shape_cast %53 : vector<1x128x128xbf16> to vector<128x128xbf16>
    %cst_27 = arith.constant dense<0.000000e+00> : vector<128x128xf32>
    %55 = tpu.matmul %52, %54, %cst_27 {dimension_numbers = #tpu.dot_dimension_numbers<[1], [0], [0], [1], [0, 0, 1, 1], [], []>} : vector<128x128xbf16>, vector<128x128xbf16>, vector<128x128xf32> -> vector<128x128xf32>
    %56 = arith.addf %43, %55 : vector<128x128xf32>
    %c1_i32_28 = arith.constant 1 : i32
    %57 = tpu.dynamic_rotate %19 by %c1_i32_28 dim 0 : vector<128x128xf32>, i32 -> vector<128x128xf32>
    %c1_i32_29 = arith.constant 1 : i32
    %58 = vector.broadcast %c1_i32_29 : i32 to vector<128x128xi32>
    %59 = arith.cmpi sge, %2, %58 : vector<128x128xi32>
    %cst_30 = arith.constant 0.000000e+00 : f32
    %60 = vector.broadcast %cst_30 : f32 to vector<128x128xf32>
    %61 = arith.select %59, %57, %60 : vector<128x128xi1>, vector<128x128xf32>
    %62 = arith.truncf %61 : vector<128x128xf32> to vector<128x128xbf16>
    %c3 = arith.constant 3 : index
    %c0_31 = arith.constant 0 : index
    %c0_32 = arith.constant 0 : index
    %63 = vector.load %arg4[%c3, %c0_31, %c0_32] : memref<9x128x128xbf16, #tpu.memory_space<vmem>>, vector<1x128x128xbf16>
    %64 = vector.shape_cast %63 : vector<1x128x128xbf16> to vector<128x128xbf16>
    %cst_33 = arith.constant dense<0.000000e+00> : vector<128x128xf32>
    %65 = tpu.matmul %62, %64, %cst_33 {dimension_numbers = #tpu.dot_dimension_numbers<[1], [0], [0], [1], [0, 0, 1, 1], [], []>} : vector<128x128xbf16>, vector<128x128xbf16>, vector<128x128xf32> -> vector<128x128xf32>
    %66 = arith.addf %56, %65 : vector<128x128xf32>
    %67 = arith.truncf %19 : vector<128x128xf32> to vector<128x128xbf16>
    %c4 = arith.constant 4 : index
    %c0_34 = arith.constant 0 : index
    %c0_35 = arith.constant 0 : index
    %68 = vector.load %arg4[%c4, %c0_34, %c0_35] : memref<9x128x128xbf16, #tpu.memory_space<vmem>>, vector<1x128x128xbf16>
    %69 = vector.shape_cast %68 : vector<1x128x128xbf16> to vector<128x128xbf16>
    %cst_36 = arith.constant dense<0.000000e+00> : vector<128x128xf32>
    %70 = tpu.matmul %67, %69, %cst_36 {dimension_numbers = #tpu.dot_dimension_numbers<[1], [0], [0], [1], [0, 0, 1, 1], [], []>} : vector<128x128xbf16>, vector<128x128xbf16>, vector<128x128xf32> -> vector<128x128xf32>
    %71 = arith.addf %66, %70 : vector<128x128xf32>
    %c127_i32 = arith.constant 127 : i32
    %72 = tpu.dynamic_rotate %19 by %c127_i32 dim 0 : vector<128x128xf32>, i32 -> vector<128x128xf32>
    %c7_i32_37 = arith.constant 7 : i32
    %73 = vector.broadcast %c7_i32_37 : i32 to vector<128x128xi32>
    %74 = arith.cmpi slt, %2, %73 : vector<128x128xi32>
    %cst_38 = arith.constant 0.000000e+00 : f32
    %75 = vector.broadcast %cst_38 : f32 to vector<128x128xf32>
    %76 = arith.select %74, %72, %75 : vector<128x128xi1>, vector<128x128xf32>
    %77 = arith.truncf %76 : vector<128x128xf32> to vector<128x128xbf16>
    %c5 = arith.constant 5 : index
    %c0_39 = arith.constant 0 : index
    %c0_40 = arith.constant 0 : index
    %78 = vector.load %arg4[%c5, %c0_39, %c0_40] : memref<9x128x128xbf16, #tpu.memory_space<vmem>>, vector<1x128x128xbf16>
    %79 = vector.shape_cast %78 : vector<1x128x128xbf16> to vector<128x128xbf16>
    %cst_41 = arith.constant dense<0.000000e+00> : vector<128x128xf32>
    %80 = tpu.matmul %77, %79, %cst_41 {dimension_numbers = #tpu.dot_dimension_numbers<[1], [0], [0], [1], [0, 0, 1, 1], [], []>} : vector<128x128xbf16>, vector<128x128xbf16>, vector<128x128xf32> -> vector<128x128xf32>
    %81 = arith.addf %71, %80 : vector<128x128xf32>
    %c121_i32 = arith.constant 121 : i32
    %82 = tpu.dynamic_rotate %19 by %c121_i32 dim 0 : vector<128x128xf32>, i32 -> vector<128x128xf32>
    %c7_i32_42 = arith.constant 7 : i32
    %83 = vector.broadcast %c7_i32_42 : i32 to vector<128x128xi32>
    %84 = arith.cmpi slt, %6, %83 : vector<128x128xi32>
    %c1_i32_43 = arith.constant 1 : i32
    %85 = vector.broadcast %c1_i32_43 : i32 to vector<128x128xi32>
    %86 = arith.cmpi sge, %2, %85 : vector<128x128xi32>
    %87 = arith.andi %84, %86 : vector<128x128xi1>
    %cst_44 = arith.constant 0.000000e+00 : f32
    %88 = vector.broadcast %cst_44 : f32 to vector<128x128xf32>
    %89 = arith.select %87, %82, %88 : vector<128x128xi1>, vector<128x128xf32>
    %90 = arith.truncf %89 : vector<128x128xf32> to vector<128x128xbf16>
    %c6 = arith.constant 6 : index
    %c0_45 = arith.constant 0 : index
    %c0_46 = arith.constant 0 : index
    %91 = vector.load %arg4[%c6, %c0_45, %c0_46] : memref<9x128x128xbf16, #tpu.memory_space<vmem>>, vector<1x128x128xbf16>
    %92 = vector.shape_cast %91 : vector<1x128x128xbf16> to vector<128x128xbf16>
    %cst_47 = arith.constant dense<0.000000e+00> : vector<128x128xf32>
    %93 = tpu.matmul %90, %92, %cst_47 {dimension_numbers = #tpu.dot_dimension_numbers<[1], [0], [0], [1], [0, 0, 1, 1], [], []>} : vector<128x128xbf16>, vector<128x128xbf16>, vector<128x128xf32> -> vector<128x128xf32>
    %94 = arith.addf %81, %93 : vector<128x128xf32>
    %c120_i32 = arith.constant 120 : i32
    %95 = tpu.dynamic_rotate %19 by %c120_i32 dim 0 : vector<128x128xf32>, i32 -> vector<128x128xf32>
    %c7_i32_48 = arith.constant 7 : i32
    %96 = vector.broadcast %c7_i32_48 : i32 to vector<128x128xi32>
    %97 = arith.cmpi slt, %6, %96 : vector<128x128xi32>
    %cst_49 = arith.constant 0.000000e+00 : f32
    %98 = vector.broadcast %cst_49 : f32 to vector<128x128xf32>
    %99 = arith.select %97, %95, %98 : vector<128x128xi1>, vector<128x128xf32>
    %100 = arith.truncf %99 : vector<128x128xf32> to vector<128x128xbf16>
    %c7 = arith.constant 7 : index
    %c0_50 = arith.constant 0 : index
    %c0_51 = arith.constant 0 : index
    %101 = vector.load %arg4[%c7, %c0_50, %c0_51] : memref<9x128x128xbf16, #tpu.memory_space<vmem>>, vector<1x128x128xbf16>
    %102 = vector.shape_cast %101 : vector<1x128x128xbf16> to vector<128x128xbf16>
    %cst_52 = arith.constant dense<0.000000e+00> : vector<128x128xf32>
    %103 = tpu.matmul %100, %102, %cst_52 {dimension_numbers = #tpu.dot_dimension_numbers<[1], [0], [0], [1], [0, 0, 1, 1], [], []>} : vector<128x128xbf16>, vector<128x128xbf16>, vector<128x128xf32> -> vector<128x128xf32>
    %104 = arith.addf %94, %103 : vector<128x128xf32>
    %c119_i32 = arith.constant 119 : i32
    %105 = tpu.dynamic_rotate %19 by %c119_i32 dim 0 : vector<128x128xf32>, i32 -> vector<128x128xf32>
    %c7_i32_53 = arith.constant 7 : i32
    %106 = vector.broadcast %c7_i32_53 : i32 to vector<128x128xi32>
    %107 = arith.cmpi slt, %6, %106 : vector<128x128xi32>
    %c7_i32_54 = arith.constant 7 : i32
    %108 = vector.broadcast %c7_i32_54 : i32 to vector<128x128xi32>
    %109 = arith.cmpi slt, %2, %108 : vector<128x128xi32>
    %110 = arith.andi %107, %109 : vector<128x128xi1>
    %cst_55 = arith.constant 0.000000e+00 : f32
    %111 = vector.broadcast %cst_55 : f32 to vector<128x128xf32>
    %112 = arith.select %110, %105, %111 : vector<128x128xi1>, vector<128x128xf32>
    %113 = arith.truncf %112 : vector<128x128xf32> to vector<128x128xbf16>
    %c8 = arith.constant 8 : index
    %c0_56 = arith.constant 0 : index
    %c0_57 = arith.constant 0 : index
    %114 = vector.load %arg4[%c8, %c0_56, %c0_57] : memref<9x128x128xbf16, #tpu.memory_space<vmem>>, vector<1x128x128xbf16>
    %115 = vector.shape_cast %114 : vector<1x128x128xbf16> to vector<128x128xbf16>
    %cst_58 = arith.constant dense<0.000000e+00> : vector<128x128xf32>
    %116 = tpu.matmul %113, %115, %cst_58 {dimension_numbers = #tpu.dot_dimension_numbers<[1], [0], [0], [1], [0, 0, 1, 1], [], []>} : vector<128x128xbf16>, vector<128x128xbf16>, vector<128x128xf32> -> vector<128x128xf32>
    %117 = arith.addf %104, %116 : vector<128x128xf32>
    %c0_59 = arith.constant 0 : index
    %c0_60 = arith.constant 0 : index
    %118 = vector.load %arg5[%c0_59, %c0_60] : memref<1x128xf32, #tpu.memory_space<vmem>>, vector<1x128xf32>
    %119 = vector.broadcast %118 : vector<1x128xf32> to vector<128x128xf32>
    %120 = arith.addf %117, %119 : vector<128x128xf32>
    %cst_61 = arith.constant 0.000000e+00 : f32
    %121 = vector.broadcast %cst_61 : f32 to vector<128x128xf32>
    %122 = arith.cmpf oge, %120, %121 : vector<128x128xf32>
    %cst_62 = arith.constant 2.000000e-01 : f32
    %123 = vector.broadcast %cst_62 : f32 to vector<128x128xf32>
    %124 = arith.mulf %123, %120 : vector<128x128xf32>
    %125 = arith.select %122, %120, %124 : vector<128x128xi1>, vector<128x128xf32>
    %cst_63 = arith.constant 1.41421354 : f32
    %126 = vector.broadcast %cst_63 : f32 to vector<128x128xf32>
    %127 = arith.mulf %125, %126 : vector<128x128xf32>
    %cst_64 = arith.constant 0.000000e+00 : f32
    %128 = vector.broadcast %cst_64 : f32 to vector<128x32xf32>
    %c9_i32_65 = arith.constant 9 : i32
    %129 = tpu.dynamic_rotate %19 by %c9_i32_65 dim 0 : vector<128x128xf32>, i32 -> vector<128x128xf32>
    %c1_i32_66 = arith.constant 1 : i32
    %130 = vector.broadcast %c1_i32_66 : i32 to vector<128x128xi32>
    %131 = arith.cmpi sge, %6, %130 : vector<128x128xi32>
    %c1_i32_67 = arith.constant 1 : i32
    %132 = vector.broadcast %c1_i32_67 : i32 to vector<128x128xi32>
    %133 = arith.cmpi sge, %2, %132 : vector<128x128xi32>
    %134 = arith.andi %131, %133 : vector<128x128xi1>
    %cst_68 = arith.constant 0.000000e+00 : f32
    %135 = vector.broadcast %cst_68 : f32 to vector<128x128xf32>
    %136 = arith.select %134, %129, %135 : vector<128x128xi1>, vector<128x128xf32>
    %137 = arith.truncf %136 : vector<128x128xf32> to vector<128x128xbf16>
    %c0_69 = arith.constant 0 : index
    %c0_70 = arith.constant 0 : index
    %c0_71 = arith.constant 0 : index
    %138 = vector.load %arg6[%c0_69, %c0_70, %c0_71] : memref<9x128x32xbf16, #tpu.memory_space<vmem>>, vector<1x128x32xbf16>
    %139 = vector.shape_cast %138 : vector<1x128x32xbf16> to vector<128x32xbf16>
    %cst_72 = arith.constant dense<0.000000e+00> : vector<128x32xf32>
    %140 = tpu.matmul %137, %139, %cst_72 {dimension_numbers = #tpu.dot_dimension_numbers<[1], [0], [0], [1], [0, 0, 1, 1], [], []>} : vector<128x128xbf16>, vector<128x32xbf16>, vector<128x32xf32> -> vector<128x32xf32>
    %141 = arith.addf %128, %140 : vector<128x32xf32>
    %c8_i32_73 = arith.constant 8 : i32
    %142 = tpu.dynamic_rotate %19 by %c8_i32_73 dim 0 : vector<128x128xf32>, i32 -> vector<128x128xf32>
    %c1_i32_74 = arith.constant 1 : i32
    %143 = vector.broadcast %c1_i32_74 : i32 to vector<128x128xi32>
    %144 = arith.cmpi sge, %6, %143 : vector<128x128xi32>
    %cst_75 = arith.constant 0.000000e+00 : f32
    %145 = vector.broadcast %cst_75 : f32 to vector<128x128xf32>
    %146 = arith.select %144, %142, %145 : vector<128x128xi1>, vector<128x128xf32>
    %147 = arith.truncf %146 : vector<128x128xf32> to vector<128x128xbf16>
    %c1_76 = arith.constant 1 : index
    %c0_77 = arith.constant 0 : index
    %c0_78 = arith.constant 0 : index
    %148 = vector.load %arg6[%c1_76, %c0_77, %c0_78] : memref<9x128x32xbf16, #tpu.memory_space<vmem>>, vector<1x128x32xbf16>
    %149 = vector.shape_cast %148 : vector<1x128x32xbf16> to vector<128x32xbf16>
    %cst_79 = arith.constant dense<0.000000e+00> : vector<128x32xf32>
    %150 = tpu.matmul %147, %149, %cst_79 {dimension_numbers = #tpu.dot_dimension_numbers<[1], [0], [0], [1], [0, 0, 1, 1], [], []>} : vector<128x128xbf16>, vector<128x32xbf16>, vector<128x32xf32> -> vector<128x32xf32>
    %151 = arith.addf %141, %150 : vector<128x32xf32>
    %c7_i32_80 = arith.constant 7 : i32
    %152 = tpu.dynamic_rotate %19 by %c7_i32_80 dim 0 : vector<128x128xf32>, i32 -> vector<128x128xf32>
    %c1_i32_81 = arith.constant 1 : i32
    %153 = vector.broadcast %c1_i32_81 : i32 to vector<128x128xi32>
    %154 = arith.cmpi sge, %6, %153 : vector<128x128xi32>
    %c7_i32_82 = arith.constant 7 : i32
    %155 = vector.broadcast %c7_i32_82 : i32 to vector<128x128xi32>
    %156 = arith.cmpi slt, %2, %155 : vector<128x128xi32>
    %157 = arith.andi %154, %156 : vector<128x128xi1>
    %cst_83 = arith.constant 0.000000e+00 : f32
    %158 = vector.broadcast %cst_83 : f32 to vector<128x128xf32>
    %159 = arith.select %157, %152, %158 : vector<128x128xi1>, vector<128x128xf32>
    %160 = arith.truncf %159 : vector<128x128xf32> to vector<128x128xbf16>
    %c2_84 = arith.constant 2 : index
    %c0_85 = arith.constant 0 : index
    %c0_86 = arith.constant 0 : index
    %161 = vector.load %arg6[%c2_84, %c0_85, %c0_86] : memref<9x128x32xbf16, #tpu.memory_space<vmem>>, vector<1x128x32xbf16>
    %162 = vector.shape_cast %161 : vector<1x128x32xbf16> to vector<128x32xbf16>
    %cst_87 = arith.constant dense<0.000000e+00> : vector<128x32xf32>
    %163 = tpu.matmul %160, %162, %cst_87 {dimension_numbers = #tpu.dot_dimension_numbers<[1], [0], [0], [1], [0, 0, 1, 1], [], []>} : vector<128x128xbf16>, vector<128x32xbf16>, vector<128x32xf32> -> vector<128x32xf32>
    %164 = arith.addf %151, %163 : vector<128x32xf32>
    %c1_i32_88 = arith.constant 1 : i32
    %165 = tpu.dynamic_rotate %19 by %c1_i32_88 dim 0 : vector<128x128xf32>, i32 -> vector<128x128xf32>
    %c1_i32_89 = arith.constant 1 : i32
    %166 = vector.broadcast %c1_i32_89 : i32 to vector<128x128xi32>
    %167 = arith.cmpi sge, %2, %166 : vector<128x128xi32>
    %cst_90 = arith.constant 0.000000e+00 : f32
    %168 = vector.broadcast %cst_90 : f32 to vector<128x128xf32>
    %169 = arith.select %167, %165, %168 : vector<128x128xi1>, vector<128x128xf32>
    %170 = arith.truncf %169 : vector<128x128xf32> to vector<128x128xbf16>
    %c3_91 = arith.constant 3 : index
    %c0_92 = arith.constant 0 : index
    %c0_93 = arith.constant 0 : index
    %171 = vector.load %arg6[%c3_91, %c0_92, %c0_93] : memref<9x128x32xbf16, #tpu.memory_space<vmem>>, vector<1x128x32xbf16>
    %172 = vector.shape_cast %171 : vector<1x128x32xbf16> to vector<128x32xbf16>
    %cst_94 = arith.constant dense<0.000000e+00> : vector<128x32xf32>
    %173 = tpu.matmul %170, %172, %cst_94 {dimension_numbers = #tpu.dot_dimension_numbers<[1], [0], [0], [1], [0, 0, 1, 1], [], []>} : vector<128x128xbf16>, vector<128x32xbf16>, vector<128x32xf32> -> vector<128x32xf32>
    %174 = arith.addf %164, %173 : vector<128x32xf32>
    %175 = arith.truncf %19 : vector<128x128xf32> to vector<128x128xbf16>
    %c4_95 = arith.constant 4 : index
    %c0_96 = arith.constant 0 : index
    %c0_97 = arith.constant 0 : index
    %176 = vector.load %arg6[%c4_95, %c0_96, %c0_97] : memref<9x128x32xbf16, #tpu.memory_space<vmem>>, vector<1x128x32xbf16>
    %177 = vector.shape_cast %176 : vector<1x128x32xbf16> to vector<128x32xbf16>
    %cst_98 = arith.constant dense<0.000000e+00> : vector<128x32xf32>
    %178 = tpu.matmul %175, %177, %cst_98 {dimension_numbers = #tpu.dot_dimension_numbers<[1], [0], [0], [1], [0, 0, 1, 1], [], []>} : vector<128x128xbf16>, vector<128x32xbf16>, vector<128x32xf32> -> vector<128x32xf32>
    %179 = arith.addf %174, %178 : vector<128x32xf32>
    %c127_i32_99 = arith.constant 127 : i32
    %180 = tpu.dynamic_rotate %19 by %c127_i32_99 dim 0 : vector<128x128xf32>, i32 -> vector<128x128xf32>
    %c7_i32_100 = arith.constant 7 : i32
    %181 = vector.broadcast %c7_i32_100 : i32 to vector<128x128xi32>
    %182 = arith.cmpi slt, %2, %181 : vector<128x128xi32>
    %cst_101 = arith.constant 0.000000e+00 : f32
    %183 = vector.broadcast %cst_101 : f32 to vector<128x128xf32>
    %184 = arith.select %182, %180, %183 : vector<128x128xi1>, vector<128x128xf32>
    %185 = arith.truncf %184 : vector<128x128xf32> to vector<128x128xbf16>
    %c5_102 = arith.constant 5 : index
    %c0_103 = arith.constant 0 : index
    %c0_104 = arith.constant 0 : index
    %186 = vector.load %arg6[%c5_102, %c0_103, %c0_104] : memref<9x128x32xbf16, #tpu.memory_space<vmem>>, vector<1x128x32xbf16>
    %187 = vector.shape_cast %186 : vector<1x128x32xbf16> to vector<128x32xbf16>
    %cst_105 = arith.constant dense<0.000000e+00> : vector<128x32xf32>
    %188 = tpu.matmul %185, %187, %cst_105 {dimension_numbers = #tpu.dot_dimension_numbers<[1], [0], [0], [1], [0, 0, 1, 1], [], []>} : vector<128x128xbf16>, vector<128x32xbf16>, vector<128x32xf32> -> vector<128x32xf32>
    %189 = arith.addf %179, %188 : vector<128x32xf32>
    %c121_i32_106 = arith.constant 121 : i32
    %190 = tpu.dynamic_rotate %19 by %c121_i32_106 dim 0 : vector<128x128xf32>, i32 -> vector<128x128xf32>
    %c7_i32_107 = arith.constant 7 : i32
    %191 = vector.broadcast %c7_i32_107 : i32 to vector<128x128xi32>
    %192 = arith.cmpi slt, %6, %191 : vector<128x128xi32>
    %c1_i32_108 = arith.constant 1 : i32
    %193 = vector.broadcast %c1_i32_108 : i32 to vector<128x128xi32>
    %194 = arith.cmpi sge, %2, %193 : vector<128x128xi32>
    %195 = arith.andi %192, %194 : vector<128x128xi1>
    %cst_109 = arith.constant 0.000000e+00 : f32
    %196 = vector.broadcast %cst_109 : f32 to vector<128x128xf32>
    %197 = arith.select %195, %190, %196 : vector<128x128xi1>, vector<128x128xf32>
    %198 = arith.truncf %197 : vector<128x128xf32> to vector<128x128xbf16>
    %c6_110 = arith.constant 6 : index
    %c0_111 = arith.constant 0 : index
    %c0_112 = arith.constant 0 : index
    %199 = vector.load %arg6[%c6_110, %c0_111, %c0_112] : memref<9x128x32xbf16, #tpu.memory_space<vmem>>, vector<1x128x32xbf16>
    %200 = vector.shape_cast %199 : vector<1x128x32xbf16> to vector<128x32xbf16>
    %cst_113 = arith.constant dense<0.000000e+00> : vector<128x32xf32>
    %201 = tpu.matmul %198, %200, %cst_113 {dimension_numbers = #tpu.dot_dimension_numbers<[1], [0], [0], [1], [0, 0, 1, 1], [], []>} : vector<128x128xbf16>, vector<128x32xbf16>, vector<128x32xf32> -> vector<128x32xf32>
    %202 = arith.addf %189, %201 : vector<128x32xf32>
    %c120_i32_114 = arith.constant 120 : i32
    %203 = tpu.dynamic_rotate %19 by %c120_i32_114 dim 0 : vector<128x128xf32>, i32 -> vector<128x128xf32>
    %c7_i32_115 = arith.constant 7 : i32
    %204 = vector.broadcast %c7_i32_115 : i32 to vector<128x128xi32>
    %205 = arith.cmpi slt, %6, %204 : vector<128x128xi32>
    %cst_116 = arith.constant 0.000000e+00 : f32
    %206 = vector.broadcast %cst_116 : f32 to vector<128x128xf32>
    %207 = arith.select %205, %203, %206 : vector<128x128xi1>, vector<128x128xf32>
    %208 = arith.truncf %207 : vector<128x128xf32> to vector<128x128xbf16>
    %c7_117 = arith.constant 7 : index
    %c0_118 = arith.constant 0 : index
    %c0_119 = arith.constant 0 : index
    %209 = vector.load %arg6[%c7_117, %c0_118, %c0_119] : memref<9x128x32xbf16, #tpu.memory_space<vmem>>, vector<1x128x32xbf16>
    %210 = vector.shape_cast %209 : vector<1x128x32xbf16> to vector<128x32xbf16>
    %cst_120 = arith.constant dense<0.000000e+00> : vector<128x32xf32>
    %211 = tpu.matmul %208, %210, %cst_120 {dimension_numbers = #tpu.dot_dimension_numbers<[1], [0], [0], [1], [0, 0, 1, 1], [], []>} : vector<128x128xbf16>, vector<128x32xbf16>, vector<128x32xf32> -> vector<128x32xf32>
    %212 = arith.addf %202, %211 : vector<128x32xf32>
    %c119_i32_121 = arith.constant 119 : i32
    %213 = tpu.dynamic_rotate %19 by %c119_i32_121 dim 0 : vector<128x128xf32>, i32 -> vector<128x128xf32>
    %c7_i32_122 = arith.constant 7 : i32
    %214 = vector.broadcast %c7_i32_122 : i32 to vector<128x128xi32>
    %215 = arith.cmpi slt, %6, %214 : vector<128x128xi32>
    %c7_i32_123 = arith.constant 7 : i32
    %216 = vector.broadcast %c7_i32_123 : i32 to vector<128x128xi32>
    %217 = arith.cmpi slt, %2, %216 : vector<128x128xi32>
    %218 = arith.andi %215, %217 : vector<128x128xi1>
    %cst_124 = arith.constant 0.000000e+00 : f32
    %219 = vector.broadcast %cst_124 : f32 to vector<128x128xf32>
    %220 = arith.select %218, %213, %219 : vector<128x128xi1>, vector<128x128xf32>
    %221 = arith.truncf %220 : vector<128x128xf32> to vector<128x128xbf16>
    %c8_125 = arith.constant 8 : index
    %c0_126 = arith.constant 0 : index
    %c0_127 = arith.constant 0 : index
    %222 = vector.load %arg6[%c8_125, %c0_126, %c0_127] : memref<9x128x32xbf16, #tpu.memory_space<vmem>>, vector<1x128x32xbf16>
    %223 = vector.shape_cast %222 : vector<1x128x32xbf16> to vector<128x32xbf16>
    %cst_128 = arith.constant dense<0.000000e+00> : vector<128x32xf32>
    %224 = tpu.matmul %221, %223, %cst_128 {dimension_numbers = #tpu.dot_dimension_numbers<[1], [0], [0], [1], [0, 0, 1, 1], [], []>} : vector<128x128xbf16>, vector<128x32xbf16>, vector<128x32xf32> -> vector<128x32xf32>
    %225 = arith.addf %212, %224 : vector<128x32xf32>
    %cst_129 = arith.constant 0.000000e+00 : f32
    %226 = vector.broadcast %cst_129 : f32 to vector<128x32xf32>
    %c9_i32_130 = arith.constant 9 : i32
    %227 = tpu.dynamic_rotate %127 by %c9_i32_130 dim 0 : vector<128x128xf32>, i32 -> vector<128x128xf32>
    %c1_i32_131 = arith.constant 1 : i32
    %228 = vector.broadcast %c1_i32_131 : i32 to vector<128x128xi32>
    %229 = arith.cmpi sge, %6, %228 : vector<128x128xi32>
    %c1_i32_132 = arith.constant 1 : i32
    %230 = vector.broadcast %c1_i32_132 : i32 to vector<128x128xi32>
    %231 = arith.cmpi sge, %2, %230 : vector<128x128xi32>
    %232 = arith.andi %229, %231 : vector<128x128xi1>
    %cst_133 = arith.constant 0.000000e+00 : f32
    %233 = vector.broadcast %cst_133 : f32 to vector<128x128xf32>
    %234 = arith.select %232, %227, %233 : vector<128x128xi1>, vector<128x128xf32>
    %235 = arith.truncf %234 : vector<128x128xf32> to vector<128x128xbf16>
    %c0_134 = arith.constant 0 : index
    %c0_135 = arith.constant 0 : index
    %c0_136 = arith.constant 0 : index
    %236 = vector.load %arg7[%c0_134, %c0_135, %c0_136] : memref<9x128x32xbf16, #tpu.memory_space<vmem>>, vector<1x128x32xbf16>
    %237 = vector.shape_cast %236 : vector<1x128x32xbf16> to vector<128x32xbf16>
    %cst_137 = arith.constant dense<0.000000e+00> : vector<128x32xf32>
    %238 = tpu.matmul %235, %237, %cst_137 {dimension_numbers = #tpu.dot_dimension_numbers<[1], [0], [0], [1], [0, 0, 1, 1], [], []>} : vector<128x128xbf16>, vector<128x32xbf16>, vector<128x32xf32> -> vector<128x32xf32>
    %239 = arith.addf %226, %238 : vector<128x32xf32>
    %c8_i32_138 = arith.constant 8 : i32
    %240 = tpu.dynamic_rotate %127 by %c8_i32_138 dim 0 : vector<128x128xf32>, i32 -> vector<128x128xf32>
    %c1_i32_139 = arith.constant 1 : i32
    %241 = vector.broadcast %c1_i32_139 : i32 to vector<128x128xi32>
    %242 = arith.cmpi sge, %6, %241 : vector<128x128xi32>
    %cst_140 = arith.constant 0.000000e+00 : f32
    %243 = vector.broadcast %cst_140 : f32 to vector<128x128xf32>
    %244 = arith.select %242, %240, %243 : vector<128x128xi1>, vector<128x128xf32>
    %245 = arith.truncf %244 : vector<128x128xf32> to vector<128x128xbf16>
    %c1_141 = arith.constant 1 : index
    %c0_142 = arith.constant 0 : index
    %c0_143 = arith.constant 0 : index
    %246 = vector.load %arg7[%c1_141, %c0_142, %c0_143] : memref<9x128x32xbf16, #tpu.memory_space<vmem>>, vector<1x128x32xbf16>
    %247 = vector.shape_cast %246 : vector<1x128x32xbf16> to vector<128x32xbf16>
    %cst_144 = arith.constant dense<0.000000e+00> : vector<128x32xf32>
    %248 = tpu.matmul %245, %247, %cst_144 {dimension_numbers = #tpu.dot_dimension_numbers<[1], [0], [0], [1], [0, 0, 1, 1], [], []>} : vector<128x128xbf16>, vector<128x32xbf16>, vector<128x32xf32> -> vector<128x32xf32>
    %249 = arith.addf %239, %248 : vector<128x32xf32>
    %c7_i32_145 = arith.constant 7 : i32
    %250 = tpu.dynamic_rotate %127 by %c7_i32_145 dim 0 : vector<128x128xf32>, i32 -> vector<128x128xf32>
    %c1_i32_146 = arith.constant 1 : i32
    %251 = vector.broadcast %c1_i32_146 : i32 to vector<128x128xi32>
    %252 = arith.cmpi sge, %6, %251 : vector<128x128xi32>
    %c7_i32_147 = arith.constant 7 : i32
    %253 = vector.broadcast %c7_i32_147 : i32 to vector<128x128xi32>
    %254 = arith.cmpi slt, %2, %253 : vector<128x128xi32>
    %255 = arith.andi %252, %254 : vector<128x128xi1>
    %cst_148 = arith.constant 0.000000e+00 : f32
    %256 = vector.broadcast %cst_148 : f32 to vector<128x128xf32>
    %257 = arith.select %255, %250, %256 : vector<128x128xi1>, vector<128x128xf32>
    %258 = arith.truncf %257 : vector<128x128xf32> to vector<128x128xbf16>
    %c2_149 = arith.constant 2 : index
    %c0_150 = arith.constant 0 : index
    %c0_151 = arith.constant 0 : index
    %259 = vector.load %arg7[%c2_149, %c0_150, %c0_151] : memref<9x128x32xbf16, #tpu.memory_space<vmem>>, vector<1x128x32xbf16>
    %260 = vector.shape_cast %259 : vector<1x128x32xbf16> to vector<128x32xbf16>
    %cst_152 = arith.constant dense<0.000000e+00> : vector<128x32xf32>
    %261 = tpu.matmul %258, %260, %cst_152 {dimension_numbers = #tpu.dot_dimension_numbers<[1], [0], [0], [1], [0, 0, 1, 1], [], []>} : vector<128x128xbf16>, vector<128x32xbf16>, vector<128x32xf32> -> vector<128x32xf32>
    %262 = arith.addf %249, %261 : vector<128x32xf32>
    %c1_i32_153 = arith.constant 1 : i32
    %263 = tpu.dynamic_rotate %127 by %c1_i32_153 dim 0 : vector<128x128xf32>, i32 -> vector<128x128xf32>
    %c1_i32_154 = arith.constant 1 : i32
    %264 = vector.broadcast %c1_i32_154 : i32 to vector<128x128xi32>
    %265 = arith.cmpi sge, %2, %264 : vector<128x128xi32>
    %cst_155 = arith.constant 0.000000e+00 : f32
    %266 = vector.broadcast %cst_155 : f32 to vector<128x128xf32>
    %267 = arith.select %265, %263, %266 : vector<128x128xi1>, vector<128x128xf32>
    %268 = arith.truncf %267 : vector<128x128xf32> to vector<128x128xbf16>
    %c3_156 = arith.constant 3 : index
    %c0_157 = arith.constant 0 : index
    %c0_158 = arith.constant 0 : index
    %269 = vector.load %arg7[%c3_156, %c0_157, %c0_158] : memref<9x128x32xbf16, #tpu.memory_space<vmem>>, vector<1x128x32xbf16>
    %270 = vector.shape_cast %269 : vector<1x128x32xbf16> to vector<128x32xbf16>
    %cst_159 = arith.constant dense<0.000000e+00> : vector<128x32xf32>
    %271 = tpu.matmul %268, %270, %cst_159 {dimension_numbers = #tpu.dot_dimension_numbers<[1], [0], [0], [1], [0, 0, 1, 1], [], []>} : vector<128x128xbf16>, vector<128x32xbf16>, vector<128x32xf32> -> vector<128x32xf32>
    %272 = arith.addf %262, %271 : vector<128x32xf32>
    %273 = arith.truncf %127 : vector<128x128xf32> to vector<128x128xbf16>
    %c4_160 = arith.constant 4 : index
    %c0_161 = arith.constant 0 : index
    %c0_162 = arith.constant 0 : index
    %274 = vector.load %arg7[%c4_160, %c0_161, %c0_162] : memref<9x128x32xbf16, #tpu.memory_space<vmem>>, vector<1x128x32xbf16>
    %275 = vector.shape_cast %274 : vector<1x128x32xbf16> to vector<128x32xbf16>
    %cst_163 = arith.constant dense<0.000000e+00> : vector<128x32xf32>
    %276 = tpu.matmul %273, %275, %cst_163 {dimension_numbers = #tpu.dot_dimension_numbers<[1], [0], [0], [1], [0, 0, 1, 1], [], []>} : vector<128x128xbf16>, vector<128x32xbf16>, vector<128x32xf32> -> vector<128x32xf32>
    %277 = arith.addf %272, %276 : vector<128x32xf32>
    %c127_i32_164 = arith.constant 127 : i32
    %278 = tpu.dynamic_rotate %127 by %c127_i32_164 dim 0 : vector<128x128xf32>, i32 -> vector<128x128xf32>
    %c7_i32_165 = arith.constant 7 : i32
    %279 = vector.broadcast %c7_i32_165 : i32 to vector<128x128xi32>
    %280 = arith.cmpi slt, %2, %279 : vector<128x128xi32>
    %cst_166 = arith.constant 0.000000e+00 : f32
    %281 = vector.broadcast %cst_166 : f32 to vector<128x128xf32>
    %282 = arith.select %280, %278, %281 : vector<128x128xi1>, vector<128x128xf32>
    %283 = arith.truncf %282 : vector<128x128xf32> to vector<128x128xbf16>
    %c5_167 = arith.constant 5 : index
    %c0_168 = arith.constant 0 : index
    %c0_169 = arith.constant 0 : index
    %284 = vector.load %arg7[%c5_167, %c0_168, %c0_169] : memref<9x128x32xbf16, #tpu.memory_space<vmem>>, vector<1x128x32xbf16>
    %285 = vector.shape_cast %284 : vector<1x128x32xbf16> to vector<128x32xbf16>
    %cst_170 = arith.constant dense<0.000000e+00> : vector<128x32xf32>
    %286 = tpu.matmul %283, %285, %cst_170 {dimension_numbers = #tpu.dot_dimension_numbers<[1], [0], [0], [1], [0, 0, 1, 1], [], []>} : vector<128x128xbf16>, vector<128x32xbf16>, vector<128x32xf32> -> vector<128x32xf32>
    %287 = arith.addf %277, %286 : vector<128x32xf32>
    %c121_i32_171 = arith.constant 121 : i32
    %288 = tpu.dynamic_rotate %127 by %c121_i32_171 dim 0 : vector<128x128xf32>, i32 -> vector<128x128xf32>
    %c7_i32_172 = arith.constant 7 : i32
    %289 = vector.broadcast %c7_i32_172 : i32 to vector<128x128xi32>
    %290 = arith.cmpi slt, %6, %289 : vector<128x128xi32>
    %c1_i32_173 = arith.constant 1 : i32
    %291 = vector.broadcast %c1_i32_173 : i32 to vector<128x128xi32>
    %292 = arith.cmpi sge, %2, %291 : vector<128x128xi32>
    %293 = arith.andi %290, %292 : vector<128x128xi1>
    %cst_174 = arith.constant 0.000000e+00 : f32
    %294 = vector.broadcast %cst_174 : f32 to vector<128x128xf32>
    %295 = arith.select %293, %288, %294 : vector<128x128xi1>, vector<128x128xf32>
    %296 = arith.truncf %295 : vector<128x128xf32> to vector<128x128xbf16>
    %c6_175 = arith.constant 6 : index
    %c0_176 = arith.constant 0 : index
    %c0_177 = arith.constant 0 : index
    %297 = vector.load %arg7[%c6_175, %c0_176, %c0_177] : memref<9x128x32xbf16, #tpu.memory_space<vmem>>, vector<1x128x32xbf16>
    %298 = vector.shape_cast %297 : vector<1x128x32xbf16> to vector<128x32xbf16>
    %cst_178 = arith.constant dense<0.000000e+00> : vector<128x32xf32>
    %299 = tpu.matmul %296, %298, %cst_178 {dimension_numbers = #tpu.dot_dimension_numbers<[1], [0], [0], [1], [0, 0, 1, 1], [], []>} : vector<128x128xbf16>, vector<128x32xbf16>, vector<128x32xf32> -> vector<128x32xf32>
    %300 = arith.addf %287, %299 : vector<128x32xf32>
    %c120_i32_179 = arith.constant 120 : i32
    %301 = tpu.dynamic_rotate %127 by %c120_i32_179 dim 0 : vector<128x128xf32>, i32 -> vector<128x128xf32>
    %c7_i32_180 = arith.constant 7 : i32
    %302 = vector.broadcast %c7_i32_180 : i32 to vector<128x128xi32>
    %303 = arith.cmpi slt, %6, %302 : vector<128x128xi32>
    %cst_181 = arith.constant 0.000000e+00 : f32
    %304 = vector.broadcast %cst_181 : f32 to vector<128x128xf32>
    %305 = arith.select %303, %301, %304 : vector<128x128xi1>, vector<128x128xf32>
    %306 = arith.truncf %305 : vector<128x128xf32> to vector<128x128xbf16>
    %c7_182 = arith.constant 7 : index
    %c0_183 = arith.constant 0 : index
    %c0_184 = arith.constant 0 : index
    %307 = vector.load %arg7[%c7_182, %c0_183, %c0_184] : memref<9x128x32xbf16, #tpu.memory_space<vmem>>, vector<1x128x32xbf16>
    %308 = vector.shape_cast %307 : vector<1x128x32xbf16> to vector<128x32xbf16>
    %cst_185 = arith.constant dense<0.000000e+00> : vector<128x32xf32>
    %309 = tpu.matmul %306, %308, %cst_185 {dimension_numbers = #tpu.dot_dimension_numbers<[1], [0], [0], [1], [0, 0, 1, 1], [], []>} : vector<128x128xbf16>, vector<128x32xbf16>, vector<128x32xf32> -> vector<128x32xf32>
    %310 = arith.addf %300, %309 : vector<128x32xf32>
    %c119_i32_186 = arith.constant 119 : i32
    %311 = tpu.dynamic_rotate %127 by %c119_i32_186 dim 0 : vector<128x128xf32>, i32 -> vector<128x128xf32>
    %c7_i32_187 = arith.constant 7 : i32
    %312 = vector.broadcast %c7_i32_187 : i32 to vector<128x128xi32>
    %313 = arith.cmpi slt, %6, %312 : vector<128x128xi32>
    %c7_i32_188 = arith.constant 7 : i32
    %314 = vector.broadcast %c7_i32_188 : i32 to vector<128x128xi32>
    %315 = arith.cmpi slt, %2, %314 : vector<128x128xi32>
    %316 = arith.andi %313, %315 : vector<128x128xi1>
    %cst_189 = arith.constant 0.000000e+00 : f32
    %317 = vector.broadcast %cst_189 : f32 to vector<128x128xf32>
    %318 = arith.select %316, %311, %317 : vector<128x128xi1>, vector<128x128xf32>
    %319 = arith.truncf %318 : vector<128x128xf32> to vector<128x128xbf16>
    %c8_190 = arith.constant 8 : index
    %c0_191 = arith.constant 0 : index
    %c0_192 = arith.constant 0 : index
    %320 = vector.load %arg7[%c8_190, %c0_191, %c0_192] : memref<9x128x32xbf16, #tpu.memory_space<vmem>>, vector<1x128x32xbf16>
    %321 = vector.shape_cast %320 : vector<1x128x32xbf16> to vector<128x32xbf16>
    %cst_193 = arith.constant dense<0.000000e+00> : vector<128x32xf32>
    %322 = tpu.matmul %319, %321, %cst_193 {dimension_numbers = #tpu.dot_dimension_numbers<[1], [0], [0], [1], [0, 0, 1, 1], [], []>} : vector<128x128xbf16>, vector<128x32xbf16>, vector<128x32xf32> -> vector<128x32xf32>
    %323 = arith.addf %310, %322 : vector<128x32xf32>
    %c0_194 = arith.constant 0 : index
    %c0_195 = arith.constant 0 : index
    %324 = vector.load %arg8[%c0_194, %c0_195] : memref<1x32xf32, #tpu.memory_space<vmem>>, vector<1x32xf32>
    %325 = vector.broadcast %324 : vector<1x32xf32> to vector<128x32xf32>
    %326 = arith.addf %323, %325 : vector<128x32xf32>
    %cst_196 = arith.constant 0.000000e+00 : f32
    %327 = vector.broadcast %cst_196 : f32 to vector<128x32xf32>
    %328 = arith.cmpf oge, %326, %327 : vector<128x32xf32>
    %cst_197 = arith.constant 2.000000e-01 : f32
    %329 = vector.broadcast %cst_197 : f32 to vector<128x32xf32>
    %330 = arith.mulf %329, %326 : vector<128x32xf32>
    %331 = arith.select %328, %326, %330 : vector<128x32xi1>, vector<128x32xf32>
    %cst_198 = arith.constant 0.000000e+00 : f32
    %332 = vector.broadcast %cst_198 : f32 to vector<128x128xf32>
    %c0_199 = arith.constant 0 : index
    %c0_200 = arith.constant 0 : index
    %333 = vector.load %arg9[%c0_199, %c0_200] : memref<128x128xf32, #tpu.memory_space<vmem>>, vector<128x128xf32>
    tpu.vector_store %arg9[%c0_199, %c0_200], %332 {strides = array<i32>} : memref<128x128xf32, #tpu.memory_space<vmem>>, vector<128x128xf32>,
    %334 = arith.addf %225, %331 : vector<128x32xf32>
    %c0_201 = arith.constant 0 : index
    %c0_202 = arith.constant 0 : index
    %335 = vector.load %arg9[%c0_201, %c0_202] : memref<128x128xf32, #tpu.memory_space<vmem>>, vector<128x32xf32>
    tpu.vector_store %arg9[%c0_201, %c0_202], %334 {strides = array<i32>} : memref<128x128xf32, #tpu.memory_space<vmem>>, vector<128x32xf32>,
    return
  }
  func.func @transform_0(%arg0: i32) -> (i32, i32) {
    %c0_i32 = arith.constant 0 : i32
    %c0_i32_0 = arith.constant 0 : i32
    return %arg0, %c0_i32 : i32, i32
  }
  func.func @transform_1(%arg0: i32) -> (i32, i32) {
    %c0_i32 = arith.constant 0 : i32
    %c0_i32_0 = arith.constant 0 : i32
    %c0_i32_1 = arith.constant 0 : i32
    return %c0_i32, %c0_i32_0 : i32, i32
  }
  func.func @transform_2(%arg0: i32) -> (i32, i32) {
    %c0_i32 = arith.constant 0 : i32
    %c0_i32_0 = arith.constant 0 : i32
    %c0_i32_1 = arith.constant 0 : i32
    return %c0_i32, %c0_i32_0 : i32, i32
  }
  func.func @transform_3(%arg0: i32) -> (i32, i32, i32) {
    %c0_i32 = arith.constant 0 : i32
    %c0_i32_0 = arith.constant 0 : i32
    %c0_i32_1 = arith.constant 0 : i32
    %c0_i32_2 = arith.constant 0 : i32
    return %c0_i32, %c0_i32_0, %c0_i32_1 : i32, i32, i32
  }
  func.func @transform_4(%arg0: i32) -> (i32, i32) {
    %c0_i32 = arith.constant 0 : i32
    %c0_i32_0 = arith.constant 0 : i32
    %c0_i32_1 = arith.constant 0 : i32
    return %c0_i32, %c0_i32_0 : i32, i32
  }
  func.func @transform_5(%arg0: i32) -> (i32, i32, i32) {
    %c0_i32 = arith.constant 0 : i32
    %c0_i32_0 = arith.constant 0 : i32
    %c0_i32_1 = arith.constant 0 : i32
    %c0_i32_2 = arith.constant 0 : i32
    return %c0_i32, %c0_i32_0, %c0_i32_1 : i32, i32, i32
  }
  func.func @transform_6(%arg0: i32) -> (i32, i32, i32) {
    %c0_i32 = arith.constant 0 : i32
    %c0_i32_0 = arith.constant 0 : i32
    %c0_i32_1 = arith.constant 0 : i32
    %c0_i32_2 = arith.constant 0 : i32
    return %c0_i32, %c0_i32_0, %c0_i32_1 : i32, i32, i32
  }
  func.func @transform_7(%arg0: i32) -> (i32, i32) {
    %c0_i32 = arith.constant 0 : i32
    %c0_i32_0 = arith.constant 0 : i32
    %c0_i32_1 = arith.constant 0 : i32
    return %c0_i32, %c0_i32_0 : i32, i32
  }
  func.func @transform_8(%arg0: i32) -> (i32, i32) {
    %c0_i32 = arith.constant 0 : i32
    %c0_i32_0 = arith.constant 0 : i32
    return %arg0, %c0_i32 : i32, i32
  }
}

</mosaic_0001>

<llo_original>
// kernel: discriminator_block_forward.1
$region0: #{discriminator_block_forward.1}
  #allocation0 [shape = 'u32[]', space=smem, size = 0x4, offset = 0x4, fixed_abs, tag = 'smem constant byte address 0x4 - core index']
  #allocation1 [shape = 'u32[144,128]{1,0:T(1,128)}', space=vmem, size = 0x12000, scoped, tag = 'internal scratch']
  %s0 = inlined_call_operand.vmem [shape: bf16[128,128], index: 0, kind: input, shape index: {}]
  %s1 = inlined_call_operand.vmem [shape: bf16[128,128], index: 1, kind: input, shape index: {}]
  %s2 = inlined_call_operand.vmem [shape: f32[1,128], index: 2, kind: input, shape index: {}]
  %s3 = inlined_call_operand.vmem [shape: bf16[9,128,128], index: 3, kind: input, shape index: {}]
  %s4 = inlined_call_operand.vmem [shape: f32[1,128], index: 4, kind: input, shape index: {}]
  %s5 = inlined_call_operand.vmem [shape: bf16[9,128,32], index: 5, kind: input, shape index: {}]
  %s6 = inlined_call_operand.vmem [shape: bf16[9,128,32], index: 6, kind: input, shape index: {}]
  %s7 = inlined_call_operand.vmem [shape: f32[1,32], index: 7, kind: input, shape index: {}]
  %s8 = inlined_call_operand.hbm [shape: f32[128,128], index: 8, kind: output, shape index: {}]
  %s9 = sld [smem:[#allocation0]]
  $region42: #{discriminator_block_forward.1} parent=0
    _
  %s11 = ssub.s32 1, %s9
  %s12 = scalar_select 0, %s11, %s9
  $region1: #{discriminator_block_forward.1} parent=0
    #allocation2 [shape = 'u8[65536]{0}', space=vmem, size = 0x10000, scoped, tag = 'output window, operand 0, single buffered']
    #allocation3 [shape = 's32[1]{0}', space=sflag, size = 0x4, scoped, tag = 'scoped memory for discriminator_block_forward.1']
    %13 = vsyncpa [#allocation3], 0
    // Predicated region
    $region2: #{discriminator_block_forward.1} parent=1 // pred_check
      _
    $region3: #{discriminator_block_forward.1} parent=1 // pred_check_branch
      %15 = sbr.rel (0) target = $region5
    $region4: #{discriminator_block_forward.1} parent=1 // pred_region
      _
    $region5: #{discriminator_block_forward.1} parent=1 // pred_fallthru
      _
    // Predicated region
    $region6: #{discriminator_block_forward.1} parent=1 // pred_check
      _
    $region7: #{discriminator_block_forward.1} parent=1 // pred_check_branch
      %17 = sbr.rel (0) target = $region9
    $region8: #{discriminator_block_forward.1} parent=1 // pred_region
      _
    $region9: #{discriminator_block_forward.1} parent=1 // pred_fallthru
      _
    // Predicated region
    $region10: #{discriminator_block_forward.1} parent=1 // pred_check
      _
    $region11: #{discriminator_block_forward.1} parent=1 // pred_check_branch
      %19 = sbr.rel (0) target = $region13
    $region12: #{discriminator_block_forward.1} parent=1 // pred_region
      _
    $region13: #{discriminator_block_forward.1} parent=1 // pred_fallthru
      _
    // Predicated region
    $region14: #{discriminator_block_forward.1} parent=1 // pred_check
      _
    $region15: #{discriminator_block_forward.1} parent=1 // pred_check_branch
      %21 = sbr.rel (0) target = $region17
    $region16: #{discriminator_block_forward.1} parent=1 // pred_region
      _
    $region17: #{discriminator_block_forward.1} parent=1 // pred_fallthru
      _
    // Predicated region
    $region18: #{discriminator_block_forward.1} parent=1 // pred_check
      _
    $region19: #{discriminator_block_forward.1} parent=1 // pred_check_branch
      %23 = sbr.rel (0) target = $region21
    $region20: #{discriminator_block_forward.1} parent=1 // pred_region
      _
    $region21: #{discriminator_block_forward.1} parent=1 // pred_fallthru
      _
    // Predicated region
    $region22: #{discriminator_block_forward.1} parent=1 // pred_check
      _
    $region23: #{discriminator_block_forward.1} parent=1 // pred_check_branch
      %25 = sbr.rel (0) target = $region25
    $region24: #{discriminator_block_forward.1} parent=1 // pred_region
      _
    $region25: #{discriminator_block_forward.1} parent=1 // pred_fallthru
      _
    // Predicated region
    $region26: #{discriminator_block_forward.1} parent=1 // pred_check
      _
    $region27: #{discriminator_block_forward.1} parent=1 // pred_check_branch
      %27 = sbr.rel (0) target = $region29
    $region28: #{discriminator_block_forward.1} parent=1 // pred_region
      _
    $region29: #{discriminator_block_forward.1} parent=1 // pred_fallthru
      _
    // Predicated region
    $region30: #{discriminator_block_forward.1} parent=1 // pred_check
      _
    $region31: #{discriminator_block_forward.1} parent=1 // pred_check_branch
      %29 = sbr.rel (0) target = $region33
    $region32: #{discriminator_block_forward.1} parent=1 // pred_region
      _
    $region33: #{discriminator_block_forward.1} parent=1 // pred_fallthru
      _
    %v31 = vlaneseq
    %v32 = vshrl.u32 %v31, 7
    %v33 = vadd.s32 %v32, 8
    %v34 = vadd.s32 %v32, 16
    %v35 = vadd.s32 %v32, 24
    %v36 = vadd.s32 %v32, 32
    %v37 = vadd.s32 %v32, 40
    %v38 = vadd.s32 %v32, 48
    %v39 = vadd.s32 %v32, 56
    %v40 = vadd.s32 %v32, 64
    %v41 = vadd.s32 %v32, 72
    %v42 = vadd.s32 %v32, 80
    %v43 = vadd.s32 %v32, 88
    %v44 = vadd.s32 %v32, 96
    %v45 = vadd.s32 %v32, 104
    %v46 = vadd.s32 %v32, 112
    %v47 = vadd.s32 %v32, 120
    %v48 = vand.u32 %v32, 7
    %v49 = vand.u32 %v33, 7
    %v50 = vand.u32 %v34, 7
    %v51 = vand.u32 %v35, 7
    %v52 = vand.u32 %v36, 7
    %v53 = vand.u32 %v37, 7
    %v54 = vand.u32 %v38, 7
    %v55 = vand.u32 %v39, 7
    %v56 = vand.u32 %v40, 7
    %v57 = vand.u32 %v41, 7
    %v58 = vand.u32 %v42, 7
    %v59 = vand.u32 %v43, 7
    %v60 = vand.u32 %v44, 7
    %v61 = vand.u32 %v45, 7
    %v62 = vand.u32 %v46, 7
    %v63 = vand.u32 %v47, 7
    %v64 = vshra.s32 %v32, 3
    %v65 = vshra.s32 %v33, 3
    %v66 = vshra.s32 %v34, 3
    %v67 = vshra.s32 %v35, 3
    %v68 = vshra.s32 %v36, 3
    %v69 = vshra.s32 %v37, 3
    %v70 = vshra.s32 %v38, 3
    %v71 = vshra.s32 %v39, 3
    %v72 = vshra.s32 %v40, 3
    %v73 = vshra.s32 %v41, 3
    %v74 = vshra.s32 %v42, 3
    %v75 = vshra.s32 %v43, 3
    %v76 = vshra.s32 %v44, 3
    %v77 = vshra.s32 %v45, 3
    %v78 = vshra.s32 %v46, 3
    %v79 = vshra.s32 %v47, 3
    %v80 = vand.u32 %v64, 7
    %v81 = vand.u32 %v65, 7
    %v82 = vand.u32 %v66, 7
    %v83 = vand.u32 %v67, 7
    %v84 = vand.u32 %v68, 7
    %v85 = vand.u32 %v69, 7
    %v86 = vand.u32 %v70, 7
    %v87 = vand.u32 %v71, 7
    %v88 = vand.u32 %v72, 7
    %v89 = vand.u32 %v73, 7
    %v90 = vand.u32 %v74, 7
    %v91 = vand.u32 %v75, 7
    %v92 = vand.u32 %v76, 7
    %v93 = vand.u32 %v77, 7
    %v94 = vand.u32 %v78, 7
    %v95 = vand.u32 %v79, 7
    %v96 = vld [vmem:[%s0] sm:$0xf]
    %v97 = vld [vmem:[%s0 + $0x4] sm:$0xf]
    %v98 = vld [vmem:[%s0 + $0x8] sm:$0xf]
    %v99 = vld [vmem:[%s0 + $0xc] sm:$0xf]
    %v100 = vld [vmem:[%s0 + $0x10] sm:$0xf]
    %v101 = vld [vmem:[%s0 + $0x14] sm:$0xf]
    %v102 = vld [vmem:[%s0 + $0x18] sm:$0xf]
    %v103 = vld [vmem:[%s0 + $0x1c] sm:$0xf]
    %v104 = vld [vmem:[%s0 + $0x20] sm:$0xf]
    %v105 = vld [vmem:[%s0 + $0x24] sm:$0xf]
    %v106 = vld [vmem:[%s0 + $0x28] sm:$0xf]
    %v107 = vld [vmem:[%s0 + $0x2c] sm:$0xf]
    %v108 = vld [vmem:[%s0 + $0x30] sm:$0xf]
    %v109 = vld [vmem:[%s0 + $0x34] sm:$0xf]
    %v110 = vld [vmem:[%s0 + $0x38] sm:$0xf]
    %v111 = vld [vmem:[%s0 + $0x3c] sm:$0xf]
    %v112 = vld [vmem:[%s1] sm:$0xf]
    %v113 = vld [vmem:[%s1 + $0x4] sm:$0xf]
    %v114 = vld [vmem:[%s1 + $0x8] sm:$0xf]
    %v115 = vld [vmem:[%s1 + $0xc] sm:$0xf]
    %v116 = vld [vmem:[%s1 + $0x10] sm:$0xf]
    %v117 = vld [vmem:[%s1 + $0x14] sm:$0xf]
    %v118 = vld [vmem:[%s1 + $0x18] sm:$0xf]
    %v119 = vld [vmem:[%s1 + $0x1c] sm:$0xf]
    %v120 = vld [vmem:[%s1 + $0x20] sm:$0xf]
    %v121 = vld [vmem:[%s1 + $0x24] sm:$0xf]
    %v122 = vld [vmem:[%s1 + $0x28] sm:$0xf]
    %v123 = vld [vmem:[%s1 + $0x2c] sm:$0xf]
    %v124 = vld [vmem:[%s1 + $0x30] sm:$0xf]
    %v125 = vld [vmem:[%s1 + $0x34] sm:$0xf]
    %v126 = vld [vmem:[%s1 + $0x38] sm:$0xf]
    %v127 = vld [vmem:[%s1 + $0x3c] sm:$0xf]
    %v128 = vld [vmem:[%s2] sm:$0x1]
    %v130 = vlaneseq
    %v131 = vshrl.u32 %v130, 7
    %v132 = vsub.s32 0, %v131
    %v133 = vrot.slane %v128, %v132
    %v151 = vunpack.c.l.b16 %v96
    %v152 = vunpack.c.l.b16 %v97
    %v153 = vunpack.c.l.b16 %v98
    %v154 = vunpack.c.l.b16 %v99
    %v155 = vunpack.c.l.b16 %v100
    %v156 = vunpack.c.l.b16 %v101
    %v157 = vunpack.c.l.b16 %v102
    %v158 = vunpack.c.l.b16 %v103
    %v159 = vunpack.c.l.b16 %v104
    %v160 = vunpack.c.l.b16 %v105
    %v161 = vunpack.c.l.b16 %v106
    %v162 = vunpack.c.l.b16 %v107
    %v163 = vunpack.c.l.b16 %v108
    %v164 = vunpack.c.l.b16 %v109
    %v165 = vunpack.c.l.b16 %v110
    %v166 = vunpack.c.l.b16 %v111
    %v167 = vpack.c.b16 %v152, %v151
    %v168 = vpack.c.b16 %v154, %v153
    %v169 = vpack.c.b16 %v156, %v155
    %v170 = vpack.c.b16 %v158, %v157
    %v171 = vpack.c.b16 %v160, %v159
    %v172 = vpack.c.b16 %v162, %v161
    %v173 = vpack.c.b16 %v164, %v163
    %v174 = vpack.c.b16 %v166, %v165
    %v199 = vunpack.c.l.b16 %v112
    %v200 = vunpack.c.l.b16 %v113
    %v201 = vunpack.c.l.b16 %v114
    %v202 = vunpack.c.l.b16 %v115
    %v203 = vunpack.c.l.b16 %v116
    %v204 = vunpack.c.l.b16 %v117
    %v205 = vunpack.c.l.b16 %v118
    %v206 = vunpack.c.l.b16 %v119
    %v207 = vunpack.c.l.b16 %v120
    %v208 = vunpack.c.l.b16 %v121
    %v209 = vunpack.c.l.b16 %v122
    %v210 = vunpack.c.l.b16 %v123
    %v211 = vunpack.c.l.b16 %v124
    %v212 = vunpack.c.l.b16 %v125
    %v213 = vunpack.c.l.b16 %v126
    %v214 = vunpack.c.l.b16 %v127
    %v215 = vpack.c.b16 %v200, %v199
    %v216 = vpack.c.b16 %v202, %v201
    %v217 = vpack.c.b16 %v204, %v203
    %v218 = vpack.c.b16 %v206, %v205
    %v219 = vpack.c.b16 %v208, %v207
    %v220 = vpack.c.b16 %v210, %v209
    %v221 = vpack.c.b16 %v212, %v211
    %v222 = vpack.c.b16 %v214, %v213
    %231 = vmatprep.subr.bf16.mxu0 0
    %232 = vmatpush1.bf16.msra.mxu0 %v215
    %233 = vmatprep.subr.bf16.mxu0 0
    %234 = vmatpush1.bf16.msra.mxu0 %v216
    %235 = vmatprep.subr.bf16.mxu0 0
    %236 = vmatpush1.bf16.msra.mxu0 %v217
    %237 = vmatprep.subr.bf16.mxu0 0
    %238 = vmatpush1.bf16.msra.mxu0 %v218
    %239 = vmatprep.subr.bf16.mxu0 0
    %240 = vmatpush1.bf16.msra.mxu0 %v219
    %241 = vmatprep.subr.bf16.mxu0 0
    %242 = vmatpush1.bf16.msra.mxu0 %v220
    %243 = vmatprep.subr.bf16.mxu0 0
    %244 = vmatpush1.bf16.msra.mxu0 %v221
    %245 = vmatprep.subr.bf16.mxu0 0
    %246 = vmatpush1.bf16.msra.mxu0 %v222
    %247 = vmatprep.subr.bf16.mxu0 0
    %248 = vmatpush1.bf16.msra.mxu0 0
    %249 = vmatprep.subr.bf16.mxu0 0
    %250 = vmatpush1.bf16.msra.mxu0 0
    %251 = vmatprep.subr.bf16.mxu0 0
    %252 = vmatpush1.bf16.msra.mxu0 0
    %253 = vmatprep.subr.bf16.mxu0 0
    %254 = vmatpush1.bf16.msra.mxu0 0
    %255 = vmatprep.subr.bf16.mxu0 0
    %256 = vmatpush1.bf16.msra.mxu0 0
    %257 = vmatprep.subr.bf16.mxu0 0
    %258 = vmatpush1.bf16.msra.mxu0 0
    %259 = vmatprep.subr.bf16.mxu0 0
    %260 = vmatpush1.bf16.msra.mxu0 0
    %261 = vmatprep.subr.bf16.mxu0 0
    %262 = vmatpush1.bf16.msra.mxu0 0
    %263 = vmatprep.mubr.bf16.mxu0 0
    %264 = vmatmul.mubr.bf16.gmra.mrb[0].mxu0 %v167
    %v265 = vpop.f32.mrb[0].mxu0
    %v266 = vadd.f32 %v133, %v265
    %v267 = vpop.f32.mrb[0].mxu0
    %v268 = vpop.f32.mrb[0].mxu0
    %v269 = vadd.f32 %v133, %v268
    %v270 = vpop.f32.mrb[0].mxu0
    %271 = vmatprep.mubr.bf16.mxu0 0
    %272 = vmatmul.mubr.bf16.gmra.mrb[0].mxu0 %v168
    %v273 = vpop.f32.mrb[0].mxu0
    %v274 = vadd.f32 %v133, %v273
    %v275 = vpop.f32.mrb[0].mxu0
    %v276 = vpop.f32.mrb[0].mxu0
    %v277 = vadd.f32 %v133, %v276
    %v278 = vpop.f32.mrb[0].mxu0
    %279 = vmatprep.mubr.bf16.mxu0 0
    %280 = vmatmul.mubr.bf16.gmra.mrb[0].mxu0 %v169
    %v281 = vpop.f32.mrb[0].mxu0
    %v282 = vadd.f32 %v133, %v281
    %v283 = vpop.f32.mrb[0].mxu0
    %v284 = vpop.f32.mrb[0].mxu0
    %v285 = vadd.f32 %v133, %v284
    %v286 = vpop.f32.mrb[0].mxu0
    %287 = vmatprep.mubr.bf16.mxu0 0
    %288 = vmatmul.mubr.bf16.gmra.mrb[0].mxu0 %v170
    %v289 = vpop.f32.mrb[0].mxu0
    %v290 = vadd.f32 %v133, %v289
    %v291 = vpop.f32.mrb[0].mxu0
    %v292 = vpop.f32.mrb[0].mxu0
    %v293 = vadd.f32 %v133, %v292
    %v294 = vpop.f32.mrb[0].mxu0
    %295 = vmatprep.mubr.bf16.mxu0 0
    %296 = vmatmul.mubr.bf16.gmra.mrb[0].mxu0 %v171
    %v297 = vpop.f32.mrb[0].mxu0
    %v298 = vadd.f32 %v133, %v297
    %v299 = vpop.f32.mrb[0].mxu0
    %v300 = vpop.f32.mrb[0].mxu0
    %v301 = vadd.f32 %v133, %v300
    %v302 = vpop.f32.mrb[0].mxu0
    %303 = vmatprep.mubr.bf16.mxu0 0
    %304 = vmatmul.mubr.bf16.gmra.mrb[0].mxu0 %v172
    %v305 = vpop.f32.mrb[0].mxu0
    %v306 = vadd.f32 %v133, %v305
    %v307 = vpop.f32.mrb[0].mxu0
    %v308 = vpop.f32.mrb[0].mxu0
    %v309 = vadd.f32 %v133, %v308
    %v310 = vpop.f32.mrb[0].mxu0
    %311 = vmatprep.mubr.bf16.mxu0 0
    %312 = vmatmul.mubr.bf16.gmra.mrb[0].mxu0 %v173
    %v313 = vpop.f32.mrb[0].mxu0
    %v314 = vadd.f32 %v133, %v313
    %v315 = vpop.f32.mrb[0].mxu0
    %v316 = vpop.f32.mrb[0].mxu0
    %v317 = vadd.f32 %v133, %v316
    %v318 = vpop.f32.mrb[0].mxu0
    %319 = vmatprep.mubr.bf16.mxu0 0
    %320 = vmatmul.mubr.bf16.gmra.mrb[0].mxu0 %v174
    %v321 = vpop.f32.mrb[0].mxu0
    %v322 = vadd.f32 %v133, %v321
    %v323 = vpop.f32.mrb[0].mxu0
    %v324 = vpop.f32.mrb[0].mxu0
    %v325 = vadd.f32 %v133, %v324
    %v326 = vpop.f32.mrb[0].mxu0
    %327 = vdwg.mxu0
    %vm328 = vcmp.ge.f32.partialorder %v266, 0.0
    %vm329 = vcmp.ge.f32.partialorder %v269, 0.0
    %vm330 = vcmp.ge.f32.partialorder %v274, 0.0
    %vm331 = vcmp.ge.f32.partialorder %v277, 0.0
    %vm332 = vcmp.ge.f32.partialorder %v282, 0.0
    %vm333 = vcmp.ge.f32.partialorder %v285, 0.0
    %vm334 = vcmp.ge.f32.partialorder %v290, 0.0
    %vm335 = vcmp.ge.f32.partialorder %v293, 0.0
    %vm336 = vcmp.ge.f32.partialorder %v298, 0.0
    %vm337 = vcmp.ge.f32.partialorder %v301, 0.0
    %vm338 = vcmp.ge.f32.partialorder %v306, 0.0
    %vm339 = vcmp.ge.f32.partialorder %v309, 0.0
    %vm340 = vcmp.ge.f32.partialorder %v314, 0.0
    %vm341 = vcmp.ge.f32.partialorder %v317, 0.0
    %vm342 = vcmp.ge.f32.partialorder %v322, 0.0
    %vm343 = vcmp.ge.f32.partialorder %v325, 0.0
    %v344 = vmul.f32 %v266, 0.2
    %v345 = vmul.f32 %v269, 0.2
    %v346 = vmul.f32 %v274, 0.2
    %v347 = vmul.f32 %v277, 0.2
    %v348 = vmul.f32 %v282, 0.2
    %v349 = vmul.f32 %v285, 0.2
    %v350 = vmul.f32 %v290, 0.2
    %v351 = vmul.f32 %v293, 0.2
    %v352 = vmul.f32 %v298, 0.2
    %v353 = vmul.f32 %v301, 0.2
    %v354 = vmul.f32 %v306, 0.2
    %v355 = vmul.f32 %v309, 0.2
    %v356 = vmul.f32 %v314, 0.2
    %v357 = vmul.f32 %v317, 0.2
    %v358 = vmul.f32 %v322, 0.2
    %v359 = vmul.f32 %v325, 0.2
    %v360 = vsel %vm328, %v266, %v344
    %v361 = vsel %vm329, %v269, %v345
    %v362 = vsel %vm330, %v274, %v346
    %v363 = vsel %vm331, %v277, %v347
    %v364 = vsel %vm332, %v282, %v348
    %v365 = vsel %vm333, %v285, %v349
    %v366 = vsel %vm334, %v290, %v350
    %v367 = vsel %vm335, %v293, %v351
    %v368 = vsel %vm336, %v298, %v352
    %v369 = vsel %vm337, %v301, %v353
    %v370 = vsel %vm338, %v306, %v354
    %v371 = vsel %vm339, %v309, %v355
    %v372 = vsel %vm340, %v314, %v356
    %v373 = vsel %vm341, %v317, %v357
    %v374 = vsel %vm342, %v322, %v358
    %v375 = vsel %vm343, %v325, %v359
    %v376 = vmul.f32 %v360, 1.4142135
    %v377 = vmul.f32 %v361, 1.4142135
    %v378 = vmul.f32 %v362, 1.4142135
    %v379 = vmul.f32 %v363, 1.4142135
    %v380 = vmul.f32 %v364, 1.4142135
    %v381 = vmul.f32 %v365, 1.4142135
    %v382 = vmul.f32 %v366, 1.4142135
    %v383 = vmul.f32 %v367, 1.4142135
    %v384 = vmul.f32 %v368, 1.4142135
    %v385 = vmul.f32 %v369, 1.4142135
    %v386 = vmul.f32 %v370, 1.4142135
    %v387 = vmul.f32 %v371, 1.4142135
    %v388 = vmul.f32 %v372, 1.4142135
    %v389 = vmul.f32 %v373, 1.4142135
    %v390 = vmul.f32 %v374, 1.4142135
    %v391 = vmul.f32 %v375, 1.4142135
    %v392 = vrot.slane %v376, 7
    %v393 = vrot.slane %v377, 7
    %v394 = vrot.slane %v378, 7
    %v395 = vrot.slane %v379, 7
    %v396 = vrot.slane %v380, 7
    %v397 = vrot.slane %v381, 7
    %v398 = vrot.slane %v382, 7
    %v399 = vrot.slane %v383, 7
    %v400 = vrot.slane %v384, 7
    %v401 = vrot.slane %v385, 7
    %v402 = vrot.slane %v386, 7
    %v403 = vrot.slane %v387, 7
    %v404 = vrot.slane %v388, 7
    %v405 = vrot.slane %v389, 7
    %v406 = vrot.slane %v390, 7
    %v407 = vrot.slane %v391, 7
    %vm408 = vcmp.lt.s32.totalorder %v32, 1
    %v409 = vsel %vm408, %v406, %v407
    %v410 = vsel %vm408, %v405, %v406
    %v411 = vsel %vm408, %v404, %v405
    %v412 = vsel %vm408, %v403, %v404
    %v413 = vsel %vm408, %v402, %v403
    %v414 = vsel %vm408, %v401, %v402
    %v415 = vsel %vm408, %v400, %v401
    %v416 = vsel %vm408, %v399, %v400
    %v417 = vsel %vm408, %v398, %v399
    %v418 = vsel %vm408, %v397, %v398
    %v419 = vsel %vm408, %v396, %v397
    %v420 = vsel %vm408, %v395, %v396
    %v421 = vsel %vm408, %v394, %v395
    %v422 = vsel %vm408, %v393, %v394
    %v423 = vsel %vm408, %v392, %v393
    %v424 = vsel %vm408, %v407, %v392
    %vm425 = vcmp.ge.s32.totalorder %v80, 1
    %vm426 = vcmp.ge.s32.totalorder %v81, 1
    %vm427 = vcmp.ge.s32.totalorder %v82, 1
    %vm428 = vcmp.ge.s32.totalorder %v83, 1
    %vm429 = vcmp.ge.s32.totalorder %v84, 1
    %vm430 = vcmp.ge.s32.totalorder %v85, 1
    %vm431 = vcmp.ge.s32.totalorder %v86, 1
    %vm432 = vcmp.ge.s32.totalorder %v87, 1
    %vm433 = vcmp.ge.s32.totalorder %v88, 1
    %vm434 = vcmp.ge.s32.totalorder %v89, 1
    %vm435 = vcmp.ge.s32.totalorder %v90, 1
    %vm436 = vcmp.ge.s32.totalorder %v91, 1
    %vm437 = vcmp.ge.s32.totalorder %v92, 1
    %vm438 = vcmp.ge.s32.totalorder %v93, 1
    %vm439 = vcmp.ge.s32.totalorder %v94, 1
    %vm440 = vcmp.ge.s32.totalorder %v95, 1
    %vm441 = vcmp.ge.s32.totalorder %v48, 1
    %vm442 = vcmp.ge.s32.totalorder %v49, 1
    %vm443 = vcmp.ge.s32.totalorder %v50, 1
    %vm444 = vcmp.ge.s32.totalorder %v51, 1
    %vm445 = vcmp.ge.s32.totalorder %v52, 1
    %vm446 = vcmp.ge.s32.totalorder %v53, 1
    %vm447 = vcmp.ge.s32.totalorder %v54, 1
    %vm448 = vcmp.ge.s32.totalorder %v55, 1
    %vm449 = vcmp.ge.s32.totalorder %v56, 1
    %vm450 = vcmp.ge.s32.totalorder %v57, 1
    %vm451 = vcmp.ge.s32.totalorder %v58, 1
    %vm452 = vcmp.ge.s32.totalorder %v59, 1
    %vm453 = vcmp.ge.s32.totalorder %v60, 1
    %vm454 = vcmp.ge.s32.totalorder %v61, 1
    %vm455 = vcmp.ge.s32.totalorder %v62, 1
    %vm456 = vcmp.ge.s32.totalorder %v63, 1
    %vm457 = vmand %vm425, %vm441
    %vm458 = vmand %vm426, %vm442
    %vm459 = vmand %vm427, %vm443
    %vm460 = vmand %vm428, %vm444
    %vm461 = vmand %vm429, %vm445
    %vm462 = vmand %vm430, %vm446
    %vm463 = vmand %vm431, %vm447
    %vm464 = vmand %vm432, %vm448
    %vm465 = vmand %vm433, %vm449
    %vm466 = vmand %vm434, %vm450
    %vm467 = vmand %vm435, %vm451
    %vm468 = vmand %vm436, %vm452
    %vm469 = vmand %vm437, %vm453
    %vm470 = vmand %vm438, %vm454
    %vm471 = vmand %vm439, %vm455
    %vm472 = vmand %vm440, %vm456
    %v473 = vsel %vm457, %v409, 0.0
    %v474 = vsel %vm458, %v424, 0.0
    %v475 = vsel %vm459, %v423, 0.0
    %v476 = vsel %vm460, %v422, 0.0
    %v477 = vsel %vm461, %v421, 0.0
    %v478 = vsel %vm462, %v420, 0.0
    %v479 = vsel %vm463, %v419, 0.0
    %v480 = vsel %vm464, %v418, 0.0
    %v481 = vsel %vm465, %v417, 0.0
    %v482 = vsel %vm466, %v416, 0.0
    %v483 = vsel %vm467, %v415, 0.0
    %v484 = vsel %vm468, %v414, 0.0
    %v485 = vsel %vm469, %v413, 0.0
    %v486 = vsel %vm470, %v412, 0.0
    %v487 = vsel %vm471, %v411, 0.0
    %v488 = vsel %vm472, %v410, 0.0
    %v489 = vpack.c.bf16 %v474, %v473
    %v490 = vpack.c.bf16 %v476, %v475
    %v491 = vpack.c.bf16 %v478, %v477
    %v492 = vpack.c.bf16 %v480, %v479
    %v493 = vpack.c.bf16 %v482, %v481
    %v494 = vpack.c.bf16 %v484, %v483
    %v495 = vpack.c.bf16 %v486, %v485
    %v496 = vpack.c.bf16 %v488, %v487
    %v497 = vld [vmem:[%s3] sm:$0xf]
    %v498 = vld [vmem:[%s3 + $0x4] sm:$0xf]
    %v499 = vld [vmem:[%s3 + $0x8] sm:$0xf]
    %v500 = vld [vmem:[%s3 + $0xc] sm:$0xf]
    %v501 = vld [vmem:[%s3 + $0x10] sm:$0xf]
    %v502 = vld [vmem:[%s3 + $0x14] sm:$0xf]
    %v503 = vld [vmem:[%s3 + $0x18] sm:$0xf]
    %v504 = vld [vmem:[%s3 + $0x1c] sm:$0xf]
    %v505 = vld [vmem:[%s3 + $0x20] sm:$0xf]
    %v506 = vld [vmem:[%s3 + $0x24] sm:$0xf]
    %v507 = vld [vmem:[%s3 + $0x28] sm:$0xf]
    %v508 = vld [vmem:[%s3 + $0x2c] sm:$0xf]
    %v509 = vld [vmem:[%s3 + $0x30] sm:$0xf]
    %v510 = vld [vmem:[%s3 + $0x34] sm:$0xf]
    %v511 = vld [vmem:[%s3 + $0x38] sm:$0xf]
    %v512 = vld [vmem:[%s3 + $0x3c] sm:$0xf]
    %v513 = vsel %vm425, %v391, 0.0
    %v514 = vsel %vm426, %v376, 0.0
    %v515 = vsel %vm427, %v377, 0.0
    %v516 = vsel %vm428, %v378, 0.0
    %v517 = vsel %vm429, %v379, 0.0
    %v518 = vsel %vm430, %v380, 0.0
    %v519 = vsel %vm431, %v381, 0.0
    %v520 = vsel %vm432, %v382, 0.0
    %v521 = vsel %vm433, %v383, 0.0
    %v522 = vsel %vm434, %v384, 0.0
    %v523 = vsel %vm435, %v385, 0.0
    %v524 = vsel %vm436, %v386, 0.0
    %v525 = vsel %vm437, %v387, 0.0
    %v526 = vsel %vm438, %v388, 0.0
    %v527 = vsel %vm439, %v389, 0.0
    %v528 = vsel %vm440, %v390, 0.0
    %v529 = vpack.c.bf16 %v514, %v513
    %v530 = vpack.c.bf16 %v516, %v515
    %v531 = vpack.c.bf16 %v518, %v517
    %v532 = vpack.c.bf16 %v520, %v519
    %v533 = vpack.c.bf16 %v522, %v521
    %v534 = vpack.c.bf16 %v524, %v523
    %v535 = vpack.c.bf16 %v526, %v525
    %v536 = vpack.c.bf16 %v528, %v527
    %s537 = scalar_lea.vmem %s3, 64
    %v538 = vld [vmem:[%s537] sm:$0xf]
    %v539 = vld [vmem:[%s537 + $0x4] sm:$0xf]
    %v540 = vld [vmem:[%s537 + $0x8] sm:$0xf]
    %v541 = vld [vmem:[%s537 + $0xc] sm:$0xf]
    %v542 = vld [vmem:[%s537 + $0x10] sm:$0xf]
    %v543 = vld [vmem:[%s537 + $0x14] sm:$0xf]
    %v544 = vld [vmem:[%s537 + $0x18] sm:$0xf]
    %v545 = vld [vmem:[%s537 + $0x1c] sm:$0xf]
    %v546 = vld [vmem:[%s537 + $0x20] sm:$0xf]
    %v547 = vld [vmem:[%s537 + $0x24] sm:$0xf]
    %v548 = vld [vmem:[%s537 + $0x28] sm:$0xf]
    %v549 = vld [vmem:[%s537 + $0x2c] sm:$0xf]
    %v550 = vld [vmem:[%s537 + $0x30] sm:$0xf]
    %v551 = vld [vmem:[%s537 + $0x34] sm:$0xf]
    %v552 = vld [vmem:[%s537 + $0x38] sm:$0xf]
    %v553 = vld [vmem:[%s537 + $0x3c] sm:$0xf]
    %v570 = vunpack.c.l.b16 %v538
    %v571 = vunpack.c.l.b16 %v539
    %v572 = vunpack.c.l.b16 %v540
    %v573 = vunpack.c.l.b16 %v541
    %v574 = vunpack.c.l.b16 %v542
    %v575 = vunpack.c.l.b16 %v543
    %v576 = vunpack.c.l.b16 %v544
    %v577 = vunpack.c.l.b16 %v545
    %v578 = vunpack.c.l.b16 %v546
    %v579 = vunpack.c.l.b16 %v547
    %v580 = vunpack.c.l.b16 %v548
    %v581 = vunpack.c.l.b16 %v549
    %v582 = vunpack.c.l.b16 %v550
    %v583 = vunpack.c.l.b16 %v551
    %v584 = vunpack.c.l.b16 %v552
    %v585 = vunpack.c.l.b16 %v553
    %v586 = vpack.c.b16 %v571, %v570
    %v587 = vpack.c.b16 %v573, %v572
    %v588 = vpack.c.b16 %v575, %v574
    %v589 = vpack.c.b16 %v577, %v576
    %v590 = vpack.c.b16 %v579, %v578
    %v591 = vpack.c.b16 %v581, %v580
    %v592 = vpack.c.b16 %v583, %v582
    %v593 = vpack.c.b16 %v585, %v584
    %602 = vmatprep.subr.bf16.mxu0 0
    %603 = vmatpush1.bf16.msra.mxu0 %v586
    %604 = vmatprep.subr.bf16.mxu0 0
    %605 = vmatpush1.bf16.msra.mxu0 %v587
    %606 = vmatprep.subr.bf16.mxu0 0
    %607 = vmatpush1.bf16.msra.mxu0 %v588
    %608 = vmatprep.subr.bf16.mxu0 0
    %609 = vmatpush1.bf16.msra.mxu0 %v589
    %610 = vmatprep.subr.bf16.mxu0 0
    %611 = vmatpush1.bf16.msra.mxu0 %v590
    %612 = vmatprep.subr.bf16.mxu0 0
    %613 = vmatpush1.bf16.msra.mxu0 %v591
    %614 = vmatprep.subr.bf16.mxu0 0
    %615 = vmatpush1.bf16.msra.mxu0 %v592
    %616 = vmatprep.subr.bf16.mxu0 0
    %617 = vmatpush1.bf16.msra.mxu0 %v593
    %618 = vmatprep.subr.bf16.mxu0 0
    %619 = vmatpush1.bf16.msra.mxu0 0
    %620 = vmatprep.subr.bf16.mxu0 0
    %621 = vmatpush1.bf16.msra.mxu0 0
    %622 = vmatprep.subr.bf16.mxu0 0
    %623 = vmatpush1.bf16.msra.mxu0 0
    %624 = vmatprep.subr.bf16.mxu0 0
    %625 = vmatpush1.bf16.msra.mxu0 0
    %626 = vmatprep.subr.bf16.mxu0 0
    %627 = vmatpush1.bf16.msra.mxu0 0
    %628 = vmatprep.subr.bf16.mxu0 0
    %629 = vmatpush1.bf16.msra.mxu0 0
    %630 = vmatprep.subr.bf16.mxu0 0
    %631 = vmatpush1.bf16.msra.mxu0 0
    %632 = vmatprep.subr.bf16.mxu0 0
    %633 = vmatpush1.bf16.msra.mxu0 0
    %634 = vmatprep.mubr.bf16.mxu0 0
    %635 = vmatmul.mubr.bf16.gmra.mrb[0].mxu0 %v529
    %v636 = vpop.f32.mrb[0].mxu0
    %v637 = vadd.f32 0.0, %v636
    %v638 = vpop.f32.mrb[0].mxu0
    %v639 = vpop.f32.mrb[0].mxu0
    %v640 = vadd.f32 0.0, %v639
    %v641 = vpop.f32.mrb[0].mxu0
    %642 = vmatprep.mubr.bf16.mxu0 0
    %643 = vmatmul.mubr.bf16.gmra.mrb[0].mxu0 %v530
    %v644 = vpop.f32.mrb[0].mxu0
    %v645 = vadd.f32 0.0, %v644
    %v646 = vpop.f32.mrb[0].mxu0
    %v647 = vpop.f32.mrb[0].mxu0
    %v648 = vadd.f32 0.0, %v647
    %v649 = vpop.f32.mrb[0].mxu0
    %650 = vmatprep.mubr.bf16.mxu0 0
    %651 = vmatmul.mubr.bf16.gmra.mrb[0].mxu0 %v531
    %v652 = vpop.f32.mrb[0].mxu0
    %v653 = vadd.f32 0.0, %v652
    %v654 = vpop.f32.mrb[0].mxu0
    %v655 = vpop.f32.mrb[0].mxu0
    %v656 = vadd.f32 0.0, %v655
    %v657 = vpop.f32.mrb[0].mxu0
    %658 = vmatprep.mubr.bf16.mxu0 0
    %659 = vmatmul.mubr.bf16.gmra.mrb[0].mxu0 %v532
    %v660 = vpop.f32.mrb[0].mxu0
    %v661 = vadd.f32 0.0, %v660
    %v662 = vpop.f32.mrb[0].mxu0
    %v663 = vpop.f32.mrb[0].mxu0
    %v664 = vadd.f32 0.0, %v663
    %v665 = vpop.f32.mrb[0].mxu0
    %666 = vmatprep.mubr.bf16.mxu0 0
    %667 = vmatmul.mubr.bf16.gmra.mrb[0].mxu0 %v533
    %v668 = vpop.f32.mrb[0].mxu0
    %v669 = vadd.f32 0.0, %v668
    %v670 = vpop.f32.mrb[0].mxu0
    %v671 = vpop.f32.mrb[0].mxu0
    %v672 = vadd.f32 0.0, %v671
    %v673 = vpop.f32.mrb[0].mxu0
    %674 = vmatprep.mubr.bf16.mxu0 0
    %675 = vmatmul.mubr.bf16.gmra.mrb[0].mxu0 %v534
    %v676 = vpop.f32.mrb[0].mxu0
    %v677 = vadd.f32 0.0, %v676
    %v678 = vpop.f32.mrb[0].mxu0
    %v679 = vpop.f32.mrb[0].mxu0
    %v680 = vadd.f32 0.0, %v679
    %v681 = vpop.f32.mrb[0].mxu0
    %682 = vmatprep.mubr.bf16.mxu0 0
    %683 = vmatmul.mubr.bf16.gmra.mrb[0].mxu0 %v535
    %v684 = vpop.f32.mrb[0].mxu0
    %v685 = vadd.f32 0.0, %v684
    %v686 = vpop.f32.mrb[0].mxu0
    %v687 = vpop.f32.mrb[0].mxu0
    %v688 = vadd.f32 0.0, %v687
    %v689 = vpop.f32.mrb[0].mxu0
    %690 = vmatprep.mubr.bf16.mxu0 0
    %691 = vmatmul.mubr.bf16.gmra.mrb[0].mxu0 %v536
    %v692 = vpop.f32.mrb[0].mxu0
    %v693 = vadd.f32 0.0, %v692
    %v694 = vpop.f32.mrb[0].mxu0
    %v695 = vpop.f32.mrb[0].mxu0
    %v696 = vadd.f32 0.0, %v695
    %v697 = vpop.f32.mrb[0].mxu0
    %698 = vdwg.mxu0
    %v715 = vunpack.c.l.b16 %v497
    %v716 = vunpack.c.l.b16 %v498
    %v717 = vunpack.c.l.b16 %v499
    %v718 = vunpack.c.l.b16 %v500
    %v719 = vunpack.c.l.b16 %v501
    %v720 = vunpack.c.l.b16 %v502
    %v721 = vunpack.c.l.b16 %v503
    %v722 = vunpack.c.l.b16 %v504
    %v723 = vunpack.c.l.b16 %v505
    %v724 = vunpack.c.l.b16 %v506
    %v725 = vunpack.c.l.b16 %v507
    %v726 = vunpack.c.l.b16 %v508
    %v727 = vunpack.c.l.b16 %v509
    %v728 = vunpack.c.l.b16 %v510
    %v729 = vunpack.c.l.b16 %v511
    %v730 = vunpack.c.l.b16 %v512
    %v731 = vpack.c.b16 %v716, %v715
    %v732 = vpack.c.b16 %v718, %v717
    %v733 = vpack.c.b16 %v720, %v719
    %v734 = vpack.c.b16 %v722, %v721
    %v735 = vpack.c.b16 %v724, %v723
    %v736 = vpack.c.b16 %v726, %v725
    %v737 = vpack.c.b16 %v728, %v727
    %v738 = vpack.c.b16 %v730, %v729
    %747 = vmatprep.subr.bf16.mxu0 0
    %748 = vmatpush1.bf16.msra.mxu0 %v731
    %749 = vmatprep.subr.bf16.mxu0 0
    %750 = vmatpush1.bf16.msra.mxu0 %v732
    %751 = vmatprep.subr.bf16.mxu0 0
    %752 = vmatpush1.bf16.msra.mxu0 %v733
    %753 = vmatprep.subr.bf16.mxu0 0
    %754 = vmatpush1.bf16.msra.mxu0 %v734
    %755 = vmatprep.subr.bf16.mxu0 0
    %756 = vmatpush1.bf16.msra.mxu0 %v735
    %757 = vmatprep.subr.bf16.mxu0 0
    %758 = vmatpush1.bf16.msra.mxu0 %v736
    %759 = vmatprep.subr.bf16.mxu0 0
    %760 = vmatpush1.bf16.msra.mxu0 %v737
    %761 = vmatprep.subr.bf16.mxu0 0
    %762 = vmatpush1.bf16.msra.mxu0 %v738
    %763 = vmatprep.subr.bf16.mxu0 0
    %764 = vmatpush1.bf16.msra.mxu0 0
    %765 = vmatprep.subr.bf16.mxu0 0
    %766 = vmatpush1.bf16.msra.mxu0 0
    %767 = vmatprep.subr.bf16.mxu0 0
    %768 = vmatpush1.bf16.msra.mxu0 0
    %769 = vmatprep.subr.bf16.mxu0 0
    %770 = vmatpush1.bf16.msra.mxu0 0
    %771 = vmatprep.subr.bf16.mxu0 0
    %772 = vmatpush1.bf16.msra.mxu0 0
    %773 = vmatprep.subr.bf16.mxu0 0
    %774 = vmatpush1.bf16.msra.mxu0 0
    %775 = vmatprep.subr.bf16.mxu0 0
    %776 = vmatpush1.bf16.msra.mxu0 0
    %777 = vmatprep.subr.bf16.mxu0 0
    %778 = vmatpush1.bf16.msra.mxu0 0
    %779 = vmatprep.mubr.bf16.mxu0 0
    %780 = vmatmul.mubr.bf16.gmra.mrb[0].mxu0 %v489
    %v781 = vpop.f32.mrb[0].mxu0
    %v782 = vadd.f32 %v637, %v781
    %v783 = vpop.f32.mrb[0].mxu0
    %v784 = vpop.f32.mrb[0].mxu0
    %v785 = vadd.f32 %v640, %v784
    %v786 = vpop.f32.mrb[0].mxu0
    %787 = vmatprep.mubr.bf16.mxu0 0
    %788 = vmatmul.mubr.bf16.gmra.mrb[0].mxu0 %v490
    %v789 = vpop.f32.mrb[0].mxu0
    %v790 = vadd.f32 %v645, %v789
    %v791 = vpop.f32.mrb[0].mxu0
    %v792 = vpop.f32.mrb[0].mxu0
    %v793 = vadd.f32 %v648, %v792
    %v794 = vpop.f32.mrb[0].mxu0
    %795 = vmatprep.mubr.bf16.mxu0 0
    %796 = vmatmul.mubr.bf16.gmra.mrb[0].mxu0 %v491
    %v797 = vpop.f32.mrb[0].mxu0
    %v798 = vadd.f32 %v653, %v797
    %v799 = vpop.f32.mrb[0].mxu0
    %v800 = vpop.f32.mrb[0].mxu0
    %v801 = vadd.f32 %v656, %v800
    %v802 = vpop.f32.mrb[0].mxu0
    %803 = vmatprep.mubr.bf16.mxu0 0
    %804 = vmatmul.mubr.bf16.gmra.mrb[0].mxu0 %v492
    %v805 = vpop.f32.mrb[0].mxu0
    %v806 = vadd.f32 %v661, %v805
    %v807 = vpop.f32.mrb[0].mxu0
    %v808 = vpop.f32.mrb[0].mxu0
    %v809 = vadd.f32 %v664, %v808
    %v810 = vpop.f32.mrb[0].mxu0
    %811 = vmatprep.mubr.bf16.mxu0 0
    %812 = vmatmul.mubr.bf16.gmra.mrb[0].mxu0 %v493
    %v813 = vpop.f32.mrb[0].mxu0
    %v814 = vadd.f32 %v669, %v813
    %v815 = vpop.f32.mrb[0].mxu0
    %v816 = vpop.f32.mrb[0].mxu0
    %v817 = vadd.f32 %v672, %v816
    %v818 = vpop.f32.mrb[0].mxu0
    %819 = vmatprep.mubr.bf16.mxu0 0
    %820 = vmatmul.mubr.bf16.gmra.mrb[0].mxu0 %v494
    %v821 = vpop.f32.mrb[0].mxu0
    %v822 = vadd.f32 %v677, %v821
    %v823 = vpop.f32.mrb[0].mxu0
    %v824 = vpop.f32.mrb[0].mxu0
    %v825 = vadd.f32 %v680, %v824
    %v826 = vpop.f32.mrb[0].mxu0
    %827 = vmatprep.mubr.bf16.mxu0 0
    %828 = vmatmul.mubr.bf16.gmra.mrb[0].mxu0 %v495
    %v829 = vpop.f32.mrb[0].mxu0
    %v830 = vadd.f32 %v685, %v829
    %v831 = vpop.f32.mrb[0].mxu0
    %v832 = vpop.f32.mrb[0].mxu0
    %v833 = vadd.f32 %v688, %v832
    %v834 = vpop.f32.mrb[0].mxu0
    %835 = vmatprep.mubr.bf16.mxu0 0
    %836 = vmatmul.mubr.bf16.gmra.mrb[0].mxu0 %v496
    %v837 = vpop.f32.mrb[0].mxu0
    %v838 = vadd.f32 %v693, %v837
    %v839 = vpop.f32.mrb[0].mxu0
    %v840 = vpop.f32.mrb[0].mxu0
    %v841 = vadd.f32 %v696, %v840
    %v842 = vpop.f32.mrb[0].mxu0
    %843 = vdwg.mxu0
    %v844 = vrot.slane %v376, 1
    %v845 = vrot.slane %v377, 1
    %v846 = vrot.slane %v378, 1
    %v847 = vrot.slane %v379, 1
    %v848 = vrot.slane %v380, 1
    %v849 = vrot.slane %v381, 1
    %v850 = vrot.slane %v382, 1
    %v851 = vrot.slane %v383, 1
    %v852 = vrot.slane %v384, 1
    %v853 = vrot.slane %v385, 1
    %v854 = vrot.slane %v386, 1
    %v855 = vrot.slane %v387, 1
    %v856 = vrot.slane %v388, 1
    %v857 = vrot.slane %v389, 1
    %v858 = vrot.slane %v390, 1
    %v859 = vrot.slane %v391, 1
    %vm860 = vcmp.lt.s32.totalorder %v32, 7
    %v861 = vsel %vm860, %v858, %v859
    %v862 = vsel %vm860, %v857, %v858
    %v863 = vsel %vm860, %v856, %v857
    %v864 = vsel %vm860, %v855, %v856
    %v865 = vsel %vm860, %v854, %v855
    %v866 = vsel %vm860, %v853, %v854
    %v867 = vsel %vm860, %v852, %v853
    %v868 = vsel %vm860, %v851, %v852
    %v869 = vsel %vm860, %v850, %v851
    %v870 = vsel %vm860, %v849, %v850
    %v871 = vsel %vm860, %v848, %v849
    %v872 = vsel %vm860, %v847, %v848
    %v873 = vsel %vm860, %v846, %v847
    %v874 = vsel %vm860, %v845, %v846
    %v875 = vsel %vm860, %v844, %v845
    %v876 = vsel %vm860, %v859, %v844
    %vm877 = vcmp.lt.s32.totalorder %v48, 7
    %vm878 = vcmp.lt.s32.totalorder %v49, 7
    %vm879 = vcmp.lt.s32.totalorder %v50, 7
    %vm880 = vcmp.lt.s32.totalorder %v51, 7
    %vm881 = vcmp.lt.s32.totalorder %v52, 7
    %vm882 = vcmp.lt.s32.totalorder %v53, 7
    %vm883 = vcmp.lt.s32.totalorder %v54, 7
    %vm884 = vcmp.lt.s32.totalorder %v55, 7
    %vm885 = vcmp.lt.s32.totalorder %v56, 7
    %vm886 = vcmp.lt.s32.totalorder %v57, 7
    %vm887 = vcmp.lt.s32.totalorder %v58, 7
    %vm888 = vcmp.lt.s32.totalorder %v59, 7
    %vm889 = vcmp.lt.s32.totalorder %v60, 7
    %vm890 = vcmp.lt.s32.totalorder %v61, 7
    %vm891 = vcmp.lt.s32.totalorder %v62, 7
    %vm892 = vcmp.lt.s32.totalorder %v63, 7
    %vm893 = vmand %vm425, %vm877
    %vm894 = vmand %vm426, %vm878
    %vm895 = vmand %vm427, %vm879
    %vm896 = vmand %vm428, %vm880
    %vm897 = vmand %vm429, %vm881
    %vm898 = vmand %vm430, %vm882
    %vm899 = vmand %vm431, %vm883
    %vm900 = vmand %vm432, %vm884
    %vm901 = vmand %vm433, %vm885
    %vm902 = vmand %vm434, %vm886
    %vm903 = vmand %vm435, %vm887
    %vm904 = vmand %vm436, %vm888
    %vm905 = vmand %vm437, %vm889
    %vm906 = vmand %vm438, %vm890
    %vm907 = vmand %vm439, %vm891
    %vm908 = vmand %vm440, %vm892
    %v909 = vsel %vm893, %v876, 0.0
    %v910 = vsel %vm894, %v875, 0.0
    %v911 = vsel %vm895, %v874, 0.0
    %v912 = vsel %vm896, %v873, 0.0
    %v913 = vsel %vm897, %v872, 0.0
    %v914 = vsel %vm898, %v871, 0.0
    %v915 = vsel %vm899, %v870, 0.0
    %v916 = vsel %vm900, %v869, 0.0
    %v917 = vsel %vm901, %v868, 0.0
    %v918 = vsel %vm902, %v867, 0.0
    %v919 = vsel %vm903, %v866, 0.0
    %v920 = vsel %vm904, %v865, 0.0
    %v921 = vsel %vm905, %v864, 0.0
    %v922 = vsel %vm906, %v863, 0.0
    %v923 = vsel %vm907, %v862, 0.0
    %v924 = vsel %vm908, %v861, 0.0
    %v925 = vpack.c.bf16 %v910, %v909
    %v926 = vpack.c.bf16 %v912, %v911
    %v927 = vpack.c.bf16 %v914, %v913
    %v928 = vpack.c.bf16 %v916, %v915
    %v929 = vpack.c.bf16 %v918, %v917
    %v930 = vpack.c.bf16 %v920, %v919
    %v931 = vpack.c.bf16 %v922, %v921
    %v932 = vpack.c.bf16 %v924, %v923
    %s933 = scalar_lea.vmem %s3, 128
    %v934 = vld [vmem:[%s933] sm:$0xf]
    %v935 = vld [vmem:[%s933 + $0x4] sm:$0xf]
    %v936 = vld [vmem:[%s933 + $0x8] sm:$0xf]
    %v937 = vld [vmem:[%s933 + $0xc] sm:$0xf]
    %v938 = vld [vmem:[%s933 + $0x10] sm:$0xf]
    %v939 = vld [vmem:[%s933 + $0x14] sm:$0xf]
    %v940 = vld [vmem:[%s933 + $0x18] sm:$0xf]
    %v941 = vld [vmem:[%s933 + $0x1c] sm:$0xf]
    %v942 = vld [vmem:[%s933 + $0x20] sm:$0xf]
    %v943 = vld [vmem:[%s933 + $0x24] sm:$0xf]
    %v944 = vld [vmem:[%s933 + $0x28] sm:$0xf]
    %v945 = vld [vmem:[%s933 + $0x2c] sm:$0xf]
    %v946 = vld [vmem:[%s933 + $0x30] sm:$0xf]
    %v947 = vld [vmem:[%s933 + $0x34] sm:$0xf]
    %v948 = vld [vmem:[%s933 + $0x38] sm:$0xf]
    %v949 = vld [vmem:[%s933 + $0x3c] sm:$0xf]
    %v966 = vunpack.c.l.b16 %v934
    %v967 = vunpack.c.l.b16 %v935
    %v968 = vunpack.c.l.b16 %v936
    %v969 = vunpack.c.l.b16 %v937
    %v970 = vunpack.c.l.b16 %v938
    %v971 = vunpack.c.l.b16 %v939
    %v972 = vunpack.c.l.b16 %v940
    %v973 = vunpack.c.l.b16 %v941
    %v974 = vunpack.c.l.b16 %v942
    %v975 = vunpack.c.l.b16 %v943
    %v976 = vunpack.c.l.b16 %v944
    %v977 = vunpack.c.l.b16 %v945
    %v978 = vunpack.c.l.b16 %v946
    %v979 = vunpack.c.l.b16 %v947
    %v980 = vunpack.c.l.b16 %v948
    %v981 = vunpack.c.l.b16 %v949
    %v982 = vpack.c.b16 %v967, %v966
    %v983 = vpack.c.b16 %v969, %v968
    %v984 = vpack.c.b16 %v971, %v970
    %v985 = vpack.c.b16 %v973, %v972
    %v986 = vpack.c.b16 %v975, %v974
    %v987 = vpack.c.b16 %v977, %v976
    %v988 = vpack.c.b16 %v979, %v978
    %v989 = vpack.c.b16 %v981, %v980
    %998 = vmatprep.subr.bf16.mxu0 0
    %999 = vmatpush1.bf16.msra.mxu0 %v982
    %1000 = vmatprep.subr.bf16.mxu0 0
    %1001 = vmatpush1.bf16.msra.mxu0 %v983
    %1002 = vmatprep.subr.bf16.mxu0 0
    %1003 = vmatpush1.bf16.msra.mxu0 %v984
    %1004 = vmatprep.subr.bf16.mxu0 0
    %1005 = vmatpush1.bf16.msra.mxu0 %v985
    %1006 = vmatprep.subr.bf16.mxu0 0
    %1007 = vmatpush1.bf16.msra.mxu0 %v986
    %1008 = vmatprep.subr.bf16.mxu0 0
    %1009 = vmatpush1.bf16.msra.mxu0 %v987
    %1010 = vmatprep.subr.bf16.mxu0 0
    %1011 = vmatpush1.bf16.msra.mxu0 %v988
    %1012 = vmatprep.subr.bf16.mxu0 0
    %1013 = vmatpush1.bf16.msra.mxu0 %v989
    %1014 = vmatprep.subr.bf16.mxu0 0
    %1015 = vmatpush1.bf16.msra.mxu0 0
    %1016 = vmatprep.subr.bf16.mxu0 0
    %1017 = vmatpush1.bf16.msra.mxu0 0
    %1018 = vmatprep.subr.bf16.mxu0 0
    %1019 = vmatpush1.bf16.msra.mxu0 0
    %1020 = vmatprep.subr.bf16.mxu0 0
    %1021 = vmatpush1.bf16.msra.mxu0 0
    %1022 = vmatprep.subr.bf16.mxu0 0
    %1023 = vmatpush1.bf16.msra.mxu0 0
    %1024 = vmatprep.subr.bf16.mxu0 0
    %1025 = vmatpush1.bf16.msra.mxu0 0
    %1026 = vmatprep.subr.bf16.mxu0 0
    %1027 = vmatpush1.bf16.msra.mxu0 0
    %1028 = vmatprep.subr.bf16.mxu0 0
    %1029 = vmatpush1.bf16.msra.mxu0 0
    %1030 = vmatprep.mubr.bf16.mxu0 0
    %1031 = vmatmul.mubr.bf16.gmra.mrb[0].mxu0 %v925
    %v1032 = vpop.f32.mrb[0].mxu0
    %v1033 = vadd.f32 0.0, %v1032
    %v1034 = vpop.f32.mrb[0].mxu0
    %v1035 = vpop.f32.mrb[0].mxu0
    %v1036 = vadd.f32 0.0, %v1035
    %v1037 = vpop.f32.mrb[0].mxu0
    %1038 = vmatprep.mubr.bf16.mxu0 0
    %1039 = vmatmul.mubr.bf16.gmra.mrb[0].mxu0 %v926
    %v1040 = vpop.f32.mrb[0].mxu0
    %v1041 = vadd.f32 0.0, %v1040
    %v1042 = vpop.f32.mrb[0].mxu0
    %v1043 = vpop.f32.mrb[0].mxu0
    %v1044 = vadd.f32 0.0, %v1043
    %v1045 = vpop.f32.mrb[0].mxu0
    %1046 = vmatprep.mubr.bf16.mxu0 0
    %1047 = vmatmul.mubr.bf16.gmra.mrb[0].mxu0 %v927
    %v1048 = vpop.f32.mrb[0].mxu0
    %v1049 = vadd.f32 0.0, %v1048
    %v1050 = vpop.f32.mrb[0].mxu0
    %v1051 = vpop.f32.mrb[0].mxu0
    %v1052 = vadd.f32 0.0, %v1051
    %v1053 = vpop.f32.mrb[0].mxu0
    %1054 = vmatprep.mubr.bf16.mxu0 0
    %1055 = vmatmul.mubr.bf16.gmra.mrb[0].mxu0 %v928
    %v1056 = vpop.f32.mrb[0].mxu0
    %v1057 = vadd.f32 0.0, %v1056
    %v1058 = vpop.f32.mrb[0].mxu0
    %v1059 = vpop.f32.mrb[0].mxu0
    %v1060 = vadd.f32 0.0, %v1059
    %v1061 = vpop.f32.mrb[0].mxu0
    %1062 = vmatprep.mubr.bf16.mxu0 0
    %1063 = vmatmul.mubr.bf16.gmra.mrb[0].mxu0 %v929
    %v1064 = vpop.f32.mrb[0].mxu0
    %v1065 = vadd.f32 0.0, %v1064
    %v1066 = vpop.f32.mrb[0].mxu0
    %v1067 = vpop.f32.mrb[0].mxu0
    %v1068 = vadd.f32 0.0, %v1067
    %v1069 = vpop.f32.mrb[0].mxu0
    %1070 = vmatprep.mubr.bf16.mxu0 0
    %1071 = vmatmul.mubr.bf16.gmra.mrb[0].mxu0 %v930
    %v1072 = vpop.f32.mrb[0].mxu0
    %v1073 = vadd.f32 0.0, %v1072
    %v1074 = vpop.f32.mrb[0].mxu0
    %v1075 = vpop.f32.mrb[0].mxu0
    %v1076 = vadd.f32 0.0, %v1075
    %v1077 = vpop.f32.mrb[0].mxu0
    %1078 = vmatprep.mubr.bf16.mxu0 0
    %1079 = vmatmul.mubr.bf16.gmra.mrb[0].mxu0 %v931
    %v1080 = vpop.f32.mrb[0].mxu0
    %v1081 = vadd.f32 0.0, %v1080
    %v1082 = vpop.f32.mrb[0].mxu0
    %v1083 = vpop.f32.mrb[0].mxu0
    %v1084 = vadd.f32 0.0, %v1083
    %v1085 = vpop.f32.mrb[0].mxu0
    %1086 = vmatprep.mubr.bf16.mxu0 0
    %1087 = vmatmul.mubr.bf16.gmra.mrb[0].mxu0 %v932
    %v1088 = vpop.f32.mrb[0].mxu0
    %v1089 = vadd.f32 0.0, %v1088
    %v1090 = vpop.f32.mrb[0].mxu0
    %v1091 = vpop.f32.mrb[0].mxu0
    %v1092 = vadd.f32 0.0, %v1091
    %v1093 = vpop.f32.mrb[0].mxu0
    %1094 = vdwg.mxu0
    %v1095 = vadd.f32 %v782, %v1033
    %v1096 = vadd.f32 %v785, %v1036
    %v1097 = vadd.f32 %v790, %v1041
    %v1098 = vadd.f32 %v793, %v1044
    %v1099 = vadd.f32 %v798, %v1049
    %v1100 = vadd.f32 %v801, %v1052
    %v1101 = vadd.f32 %v806, %v1057
    %v1102 = vadd.f32 %v809, %v1060
    %v1103 = vadd.f32 %v814, %v1065
    %v1104 = vadd.f32 %v817, %v1068
    %v1105 = vadd.f32 %v822, %v1073
    %v1106 = vadd.f32 %v825, %v1076
    %v1107 = vadd.f32 %v830, %v1081
    %v1108 = vadd.f32 %v833, %v1084
    %v1109 = vadd.f32 %v838, %v1089
    %v1110 = vadd.f32 %v841, %v1092
    %v1111 = vsel %vm441, %v424, 0.0
    %v1112 = vsel %vm442, %v423, 0.0
    %v1113 = vsel %vm443, %v422, 0.0
    %v1114 = vsel %vm444, %v421, 0.0
    %v1115 = vsel %vm445, %v420, 0.0
    %v1116 = vsel %vm446, %v419, 0.0
    %v1117 = vsel %vm447, %v418, 0.0
    %v1118 = vsel %vm448, %v417, 0.0
    %v1119 = vsel %vm449, %v416, 0.0
    %v1120 = vsel %vm450, %v415, 0.0
    %v1121 = vsel %vm451, %v414, 0.0
    %v1122 = vsel %vm452, %v413, 0.0
    %v1123 = vsel %vm453, %v412, 0.0
    %v1124 = vsel %vm454, %v411, 0.0
    %v1125 = vsel %vm455, %v410, 0.0
    %v1126 = vsel %vm456, %v409, 0.0
    %v1127 = vpack.c.bf16 %v1112, %v1111
    %v1128 = vpack.c.bf16 %v1114, %v1113
    %v1129 = vpack.c.bf16 %v1116, %v1115
    %v1130 = vpack.c.bf16 %v1118, %v1117
    %v1131 = vpack.c.bf16 %v1120, %v1119
    %v1132 = vpack.c.bf16 %v1122, %v1121
    %v1133 = vpack.c.bf16 %v1124, %v1123
    %v1134 = vpack.c.bf16 %v1126, %v1125
    %s1135 = scalar_lea.vmem %s3, 192
    %v1136 = vld [vmem:[%s1135] sm:$0xf]
    %v1137 = vld [vmem:[%s1135 + $0x4] sm:$0xf]
    %v1138 = vld [vmem:[%s1135 + $0x8] sm:$0xf]
    %v1139 = vld [vmem:[%s1135 + $0xc] sm:$0xf]
    %v1140 = vld [vmem:[%s1135 + $0x10] sm:$0xf]
    %v1141 = vld [vmem:[%s1135 + $0x14] sm:$0xf]
    %v1142 = vld [vmem:[%s1135 + $0x18] sm:$0xf]
    %v1143 = vld [vmem:[%s1135 + $0x1c] sm:$0xf]
    %v1144 = vld [vmem:[%s1135 + $0x20] sm:$0xf]
    %v1145 = vld [vmem:[%s1135 + $0x24] sm:$0xf]
    %v1146 = vld [vmem:[%s1135 + $0x28] sm:$0xf]
    %v1147 = vld [vmem:[%s1135 + $0x2c] sm:$0xf]
    %v1148 = vld [vmem:[%s1135 + $0x30] sm:$0xf]
    %v1149 = vld [vmem:[%s1135 + $0x34] sm:$0xf]
    %v1150 = vld [vmem:[%s1135 + $0x38] sm:$0xf]
    %v1151 = vld [vmem:[%s1135 + $0x3c] sm:$0xf]
    %v1168 = vunpack.c.l.b16 %v1136
    %v1169 = vunpack.c.l.b16 %v1137
    %v1170 = vunpack.c.l.b16 %v1138
    %v1171 = vunpack.c.l.b16 %v1139
    %v1172 = vunpack.c.l.b16 %v1140
    %v1173 = vunpack.c.l.b16 %v1141
    %v1174 = vunpack.c.l.b16 %v1142
    %v1175 = vunpack.c.l.b16 %v1143
    %v1176 = vunpack.c.l.b16 %v1144
    %v1177 = vunpack.c.l.b16 %v1145
    %v1178 = vunpack.c.l.b16 %v1146
    %v1179 = vunpack.c.l.b16 %v1147
    %v1180 = vunpack.c.l.b16 %v1148
    %v1181 = vunpack.c.l.b16 %v1149
    %v1182 = vunpack.c.l.b16 %v1150
    %v1183 = vunpack.c.l.b16 %v1151
    %v1184 = vpack.c.b16 %v1169, %v1168
    %v1185 = vpack.c.b16 %v1171, %v1170
    %v1186 = vpack.c.b16 %v1173, %v1172
    %v1187 = vpack.c.b16 %v1175, %v1174
    %v1188 = vpack.c.b16 %v1177, %v1176
    %v1189 = vpack.c.b16 %v1179, %v1178
    %v1190 = vpack.c.b16 %v1181, %v1180
    %v1191 = vpack.c.b16 %v1183, %v1182
    %1200 = vmatprep.subr.bf16.mxu0 0
    %1201 = vmatpush1.bf16.msra.mxu0 %v1184
    %1202 = vmatprep.subr.bf16.mxu0 0
    %1203 = vmatpush1.bf16.msra.mxu0 %v1185
    %1204 = vmatprep.subr.bf16.mxu0 0
    %1205 = vmatpush1.bf16.msra.mxu0 %v1186
    %1206 = vmatprep.subr.bf16.mxu0 0
    %1207 = vmatpush1.bf16.msra.mxu0 %v1187
    %1208 = vmatprep.subr.bf16.mxu0 0
    %1209 = vmatpush1.bf16.msra.mxu0 %v1188
    %1210 = vmatprep.subr.bf16.mxu0 0
    %1211 = vmatpush1.bf16.msra.mxu0 %v1189
    %1212 = vmatprep.subr.bf16.mxu0 0
    %1213 = vmatpush1.bf16.msra.mxu0 %v1190
    %1214 = vmatprep.subr.bf16.mxu0 0
    %1215 = vmatpush1.bf16.msra.mxu0 %v1191
    %1216 = vmatprep.subr.bf16.mxu0 0
    %1217 = vmatpush1.bf16.msra.mxu0 0
    %1218 = vmatprep.subr.bf16.mxu0 0
    %1219 = vmatpush1.bf16.msra.mxu0 0
    %1220 = vmatprep.subr.bf16.mxu0 0
    %1221 = vmatpush1.bf16.msra.mxu0 0
    %1222 = vmatprep.subr.bf16.mxu0 0
    %1223 = vmatpush1.bf16.msra.mxu0 0
    %1224 = vmatprep.subr.bf16.mxu0 0
    %1225 = vmatpush1.bf16.msra.mxu0 0
    %1226 = vmatprep.subr.bf16.mxu0 0
    %1227 = vmatpush1.bf16.msra.mxu0 0
    %1228 = vmatprep.subr.bf16.mxu0 0
    %1229 = vmatpush1.bf16.msra.mxu0 0
    %1230 = vmatprep.subr.bf16.mxu0 0
    %1231 = vmatpush1.bf16.msra.mxu0 0
    %1232 = vmatprep.mubr.bf16.mxu0 0
    %1233 = vmatmul.mubr.bf16.gmra.mrb[0].mxu0 %v1127
    %v1234 = vpop.f32.mrb[0].mxu0
    %v1235 = vadd.f32 0.0, %v1234
    %v1236 = vpop.f32.mrb[0].mxu0
    %v1237 = vpop.f32.mrb[0].mxu0
    %v1238 = vadd.f32 0.0, %v1237
    %v1239 = vpop.f32.mrb[0].mxu0
    %1240 = vmatprep.mubr.bf16.mxu0 0
    %1241 = vmatmul.mubr.bf16.gmra.mrb[0].mxu0 %v1128
    %v1242 = vpop.f32.mrb[0].mxu0
    %v1243 = vadd.f32 0.0, %v1242
    %v1244 = vpop.f32.mrb[0].mxu0
    %v1245 = vpop.f32.mrb[0].mxu0
    %v1246 = vadd.f32 0.0, %v1245
    %v1247 = vpop.f32.mrb[0].mxu0
    %1248 = vmatprep.mubr.bf16.mxu0 0
    %1249 = vmatmul.mubr.bf16.gmra.mrb[0].mxu0 %v1129
    %v1250 = vpop.f32.mrb[0].mxu0
    %v1251 = vadd.f32 0.0, %v1250
    %v1252 = vpop.f32.mrb[0].mxu0
    %v1253 = vpop.f32.mrb[0].mxu0
    %v1254 = vadd.f32 0.0, %v1253
    %v1255 = vpop.f32.mrb[0].mxu0
    %1256 = vmatprep.mubr.bf16.mxu0 0
    %1257 = vmatmul.mubr.bf16.gmra.mrb[0].mxu0 %v1130
    %v1258 = vpop.f32.mrb[0].mxu0
    %v1259 = vadd.f32 0.0, %v1258
    %v1260 = vpop.f32.mrb[0].mxu0
    %v1261 = vpop.f32.mrb[0].mxu0
    %v1262 = vadd.f32 0.0, %v1261
    %v1263 = vpop.f32.mrb[0].mxu0
    %1264 = vmatprep.mubr.bf16.mxu0 0
    %1265 = vmatmul.mubr.bf16.gmra.mrb[0].mxu0 %v1131
    %v1266 = vpop.f32.mrb[0].mxu0
    %v1267 = vadd.f32 0.0, %v1266
    %v1268 = vpop.f32.mrb[0].mxu0
    %v1269 = vpop.f32.mrb[0].mxu0
    %v1270 = vadd.f32 0.0, %v1269
    %v1271 = vpop.f32.mrb[0].mxu0
    %1272 = vmatprep.mubr.bf16.mxu0 0
    %1273 = vmatmul.mubr.bf16.gmra.mrb[0].mxu0 %v1132
    %v1274 = vpop.f32.mrb[0].mxu0
    %v1275 = vadd.f32 0.0, %v1274
    %v1276 = vpop.f32.mrb[0].mxu0
    %v1277 = vpop.f32.mrb[0].mxu0
    %v1278 = vadd.f32 0.0, %v1277
    %v1279 = vpop.f32.mrb[0].mxu0
    %1280 = vmatprep.mubr.bf16.mxu0 0
    %1281 = vmatmul.mubr.bf16.gmra.mrb[0].mxu0 %v1133
    %v1282 = vpop.f32.mrb[0].mxu0
    %v1283 = vadd.f32 0.0, %v1282
    %v1284 = vpop.f32.mrb[0].mxu0
    %v1285 = vpop.f32.mrb[0].mxu0
    %v1286 = vadd.f32 0.0, %v1285
    %v1287 = vpop.f32.mrb[0].mxu0
    %1288 = vmatprep.mubr.bf16.mxu0 0
    %1289 = vmatmul.mubr.bf16.gmra.mrb[0].mxu0 %v1134
    %v1290 = vpop.f32.mrb[0].mxu0
    %v1291 = vadd.f32 0.0, %v1290
    %v1292 = vpop.f32.mrb[0].mxu0
    %v1293 = vpop.f32.mrb[0].mxu0
    %v1294 = vadd.f32 0.0, %v1293
    %v1295 = vpop.f32.mrb[0].mxu0
    %1296 = vdwg.mxu0
    %v1297 = vadd.f32 %v1095, %v1235
    %v1298 = vadd.f32 %v1096, %v1238
    %v1299 = vadd.f32 %v1097, %v1243
    %v1300 = vadd.f32 %v1098, %v1246
    %v1301 = vadd.f32 %v1099, %v1251
    %v1302 = vadd.f32 %v1100, %v1254
    %v1303 = vadd.f32 %v1101, %v1259
    %v1304 = vadd.f32 %v1102, %v1262
    %v1305 = vadd.f32 %v1103, %v1267
    %v1306 = vadd.f32 %v1104, %v1270
    %v1307 = vadd.f32 %v1105, %v1275
    %v1308 = vadd.f32 %v1106, %v1278
    %v1309 = vadd.f32 %v1107, %v1283
    %v1310 = vadd.f32 %v1108, %v1286
    %v1311 = vadd.f32 %v1109, %v1291
    %v1312 = vadd.f32 %v1110, %v1294
    %v1313 = vpack.c.bf16 %v377, %v376
    %v1314 = vpack.c.bf16 %v379, %v378
    %v1315 = vpack.c.bf16 %v381, %v380
    %v1316 = vpack.c.bf16 %v383, %v382
    %v1317 = vpack.c.bf16 %v385, %v384
    %v1318 = vpack.c.bf16 %v387, %v386
    %v1319 = vpack.c.bf16 %v389, %v388
    %v1320 = vpack.c.bf16 %v391, %v390
    %s1321 = scalar_lea.vmem %s3, 256
    %v1322 = vld [vmem:[%s1321] sm:$0xf]
    %v1323 = vld [vmem:[%s1321 + $0x4] sm:$0xf]
    %v1324 = vld [vmem:[%s1321 + $0x8] sm:$0xf]
    %v1325 = vld [vmem:[%s1321 + $0xc] sm:$0xf]
    %v1326 = vld [vmem:[%s1321 + $0x10] sm:$0xf]
    %v1327 = vld [vmem:[%s1321 + $0x14] sm:$0xf]
    %v1328 = vld [vmem:[%s1321 + $0x18] sm:$0xf]
    %v1329 = vld [vmem:[%s1321 + $0x1c] sm:$0xf]
    %v1330 = vld [vmem:[%s1321 + $0x20] sm:$0xf]
    %v1331 = vld [vmem:[%s1321 + $0x24] sm:$0xf]
    %v1332 = vld [vmem:[%s1321 + $0x28] sm:$0xf]
    %v1333 = vld [vmem:[%s1321 + $0x2c] sm:$0xf]
    %v1334 = vld [vmem:[%s1321 + $0x30] sm:$0xf]
    %v1335 = vld [vmem:[%s1321 + $0x34] sm:$0xf]
    %v1336 = vld [vmem:[%s1321 + $0x38] sm:$0xf]
    %v1337 = vld [vmem:[%s1321 + $0x3c] sm:$0xf]
    %v1354 = vunpack.c.l.b16 %v1322
    %v1355 = vunpack.c.l.b16 %v1323
    %v1356 = vunpack.c.l.b16 %v1324
    %v1357 = vunpack.c.l.b16 %v1325
    %v1358 = vunpack.c.l.b16 %v1326
    %v1359 = vunpack.c.l.b16 %v1327
    %v1360 = vunpack.c.l.b16 %v1328
    %v1361 = vunpack.c.l.b16 %v1329
    %v1362 = vunpack.c.l.b16 %v1330
    %v1363 = vunpack.c.l.b16 %v1331
    %v1364 = vunpack.c.l.b16 %v1332
    %v1365 = vunpack.c.l.b16 %v1333
    %v1366 = vunpack.c.l.b16 %v1334
    %v1367 = vunpack.c.l.b16 %v1335
    %v1368 = vunpack.c.l.b16 %v1336
    %v1369 = vunpack.c.l.b16 %v1337
    %v1370 = vpack.c.b16 %v1355, %v1354
    %v1371 = vpack.c.b16 %v1357, %v1356
    %v1372 = vpack.c.b16 %v1359, %v1358
    %v1373 = vpack.c.b16 %v1361, %v1360
    %v1374 = vpack.c.b16 %v1363, %v1362
    %v1375 = vpack.c.b16 %v1365, %v1364
    %v1376 = vpack.c.b16 %v1367, %v1366
    %v1377 = vpack.c.b16 %v1369, %v1368
    %1386 = vmatprep.subr.bf16.mxu0 0
    %1387 = vmatpush1.bf16.msra.mxu0 %v1370
    %1388 = vmatprep.subr.bf16.mxu0 0
    %1389 = vmatpush1.bf16.msra.mxu0 %v1371
    %1390 = vmatprep.subr.bf16.mxu0 0
    %1391 = vmatpush1.bf16.msra.mxu0 %v1372
    %1392 = vmatprep.subr.bf16.mxu0 0
    %1393 = vmatpush1.bf16.msra.mxu0 %v1373
    %1394 = vmatprep.subr.bf16.mxu0 0
    %1395 = vmatpush1.bf16.msra.mxu0 %v1374
    %1396 = vmatprep.subr.bf16.mxu0 0
    %1397 = vmatpush1.bf16.msra.mxu0 %v1375
    %1398 = vmatprep.subr.bf16.mxu0 0
    %1399 = vmatpush1.bf16.msra.mxu0 %v1376
    %1400 = vmatprep.subr.bf16.mxu0 0
    %1401 = vmatpush1.bf16.msra.mxu0 %v1377
    %1402 = vmatprep.subr.bf16.mxu0 0
    %1403 = vmatpush1.bf16.msra.mxu0 0
    %1404 = vmatprep.subr.bf16.mxu0 0
    %1405 = vmatpush1.bf16.msra.mxu0 0
    %1406 = vmatprep.subr.bf16.mxu0 0
    %1407 = vmatpush1.bf16.msra.mxu0 0
    %1408 = vmatprep.subr.bf16.mxu0 0
    %1409 = vmatpush1.bf16.msra.mxu0 0
    %1410 = vmatprep.subr.bf16.mxu0 0
    %1411 = vmatpush1.bf16.msra.mxu0 0
    %1412 = vmatprep.subr.bf16.mxu0 0
    %1413 = vmatpush1.bf16.msra.mxu0 0
    %1414 = vmatprep.subr.bf16.mxu0 0
    %1415 = vmatpush1.bf16.msra.mxu0 0
    %1416 = vmatprep.subr.bf16.mxu0 0
    %1417 = vmatpush1.bf16.msra.mxu0 0
    %1418 = vmatprep.mubr.bf16.mxu0 0
    %1419 = vmatmul.mubr.bf16.gmra.mrb[0].mxu0 %v1313
    %v1420 = vpop.f32.mrb[0].mxu0
    %v1421 = vadd.f32 0.0, %v1420
    %v1422 = vpop.f32.mrb[0].mxu0
    %v1423 = vpop.f32.mrb[0].mxu0
    %v1424 = vadd.f32 0.0, %v1423
    %v1425 = vpop.f32.mrb[0].mxu0
    %1426 = vmatprep.mubr.bf16.mxu0 0
    %1427 = vmatmul.mubr.bf16.gmra.mrb[0].mxu0 %v1314
    %v1428 = vpop.f32.mrb[0].mxu0
    %v1429 = vadd.f32 0.0, %v1428
    %v1430 = vpop.f32.mrb[0].mxu0
    %v1431 = vpop.f32.mrb[0].mxu0
    %v1432 = vadd.f32 0.0, %v1431
    %v1433 = vpop.f32.mrb[0].mxu0
    %1434 = vmatprep.mubr.bf16.mxu0 0
    %1435 = vmatmul.mubr.bf16.gmra.mrb[0].mxu0 %v1315
    %v1436 = vpop.f32.mrb[0].mxu0
    %v1437 = vadd.f32 0.0, %v1436
    %v1438 = vpop.f32.mrb[0].mxu0
    %v1439 = vpop.f32.mrb[0].mxu0
    %v1440 = vadd.f32 0.0, %v1439
    %v1441 = vpop.f32.mrb[0].mxu0
    %1442 = vmatprep.mubr.bf16.mxu0 0
    %1443 = vmatmul.mubr.bf16.gmra.mrb[0].mxu0 %v1316
    %v1444 = vpop.f32.mrb[0].mxu0
    %v1445 = vadd.f32 0.0, %v1444
    %v1446 = vpop.f32.mrb[0].mxu0
    %v1447 = vpop.f32.mrb[0].mxu0
    %v1448 = vadd.f32 0.0, %v1447
    %v1449 = vpop.f32.mrb[0].mxu0
    %1450 = vmatprep.mubr.bf16.mxu0 0
    %1451 = vmatmul.mubr.bf16.gmra.mrb[0].mxu0 %v1317
    %v1452 = vpop.f32.mrb[0].mxu0
    %v1453 = vadd.f32 0.0, %v1452
    %v1454 = vpop.f32.mrb[0].mxu0
    %v1455 = vpop.f32.mrb[0].mxu0
    %v1456 = vadd.f32 0.0, %v1455
    %v1457 = vpop.f32.mrb[0].mxu0
    %1458 = vmatprep.mubr.bf16.mxu0 0
    %1459 = vmatmul.mubr.bf16.gmra.mrb[0].mxu0 %v1318
    %v1460 = vpop.f32.mrb[0].mxu0
    %v1461 = vadd.f32 0.0, %v1460
    %v1462 = vpop.f32.mrb[0].mxu0
    %v1463 = vpop.f32.mrb[0].mxu0
    %v1464 = vadd.f32 0.0, %v1463
    %v1465 = vpop.f32.mrb[0].mxu0
    %1466 = vmatprep.mubr.bf16.mxu0 0
    %1467 = vmatmul.mubr.bf16.gmra.mrb[0].mxu0 %v1319
    %v1468 = vpop.f32.mrb[0].mxu0
    %v1469 = vadd.f32 0.0, %v1468
    %v1470 = vpop.f32.mrb[0].mxu0
    %v1471 = vpop.f32.mrb[0].mxu0
    %v1472 = vadd.f32 0.0, %v1471
    %v1473 = vpop.f32.mrb[0].mxu0
    %1474 = vmatprep.mubr.bf16.mxu0 0
    %1475 = vmatmul.mubr.bf16.gmra.mrb[0].mxu0 %v1320
    %v1476 = vpop.f32.mrb[0].mxu0
    %v1477 = vadd.f32 0.0, %v1476
    %v1478 = vpop.f32.mrb[0].mxu0
    %v1479 = vpop.f32.mrb[0].mxu0
    %v1480 = vadd.f32 0.0, %v1479
    %v1481 = vpop.f32.mrb[0].mxu0
    %1482 = vdwg.mxu0
    %v1483 = vadd.f32 %v1297, %v1421
    %v1484 = vadd.f32 %v1298, %v1424
    %v1485 = vadd.f32 %v1299, %v1429
    %v1486 = vadd.f32 %v1300, %v1432
    %v1487 = vadd.f32 %v1301, %v1437
    %v1488 = vadd.f32 %v1302, %v1440
    %v1489 = vadd.f32 %v1303, %v1445
    %v1490 = vadd.f32 %v1304, %v1448
    %v1491 = vadd.f32 %v1305, %v1453
    %v1492 = vadd.f32 %v1306, %v1456
    %v1493 = vadd.f32 %v1307, %v1461
    %v1494 = vadd.f32 %v1308, %v1464
    %v1495 = vadd.f32 %v1309, %v1469
    %v1496 = vadd.f32 %v1310, %v1472
    %v1497 = vadd.f32 %v1311, %v1477
    %v1498 = vadd.f32 %v1312, %v1480
    %v1499 = vsel %vm877, %v875, 0.0
    %v1500 = vsel %vm878, %v874, 0.0
    %v1501 = vsel %vm879, %v873, 0.0
    %v1502 = vsel %vm880, %v872, 0.0
    %v1503 = vsel %vm881, %v871, 0.0
    %v1504 = vsel %vm882, %v870, 0.0
    %v1505 = vsel %vm883, %v869, 0.0
    %v1506 = vsel %vm884, %v868, 0.0
    %v1507 = vsel %vm885, %v867, 0.0
    %v1508 = vsel %vm886, %v866, 0.0
    %v1509 = vsel %vm887, %v865, 0.0
    %v1510 = vsel %vm888, %v864, 0.0
    %v1511 = vsel %vm889, %v863, 0.0
    %v1512 = vsel %vm890, %v862, 0.0
    %v1513 = vsel %vm891, %v861, 0.0
    %v1514 = vsel %vm892, %v876, 0.0
    %v1515 = vpack.c.bf16 %v1500, %v1499
    %v1516 = vpack.c.bf16 %v1502, %v1501
    %v1517 = vpack.c.bf16 %v1504, %v1503
    %v1518 = vpack.c.bf16 %v1506, %v1505
    %v1519 = vpack.c.bf16 %v1508, %v1507
    %v1520 = vpack.c.bf16 %v1510, %v1509
    %v1521 = vpack.c.bf16 %v1512, %v1511
    %v1522 = vpack.c.bf16 %v1514, %v1513
    %s1523 = scalar_lea.vmem %s3, 320
    %v1524 = vld [vmem:[%s1523] sm:$0xf]
    %v1525 = vld [vmem:[%s1523 + $0x4] sm:$0xf]
    %v1526 = vld [vmem:[%s1523 + $0x8] sm:$0xf]
    %v1527 = vld [vmem:[%s1523 + $0xc] sm:$0xf]
    %v1528 = vld [vmem:[%s1523 + $0x10] sm:$0xf]
    %v1529 = vld [vmem:[%s1523 + $0x14] sm:$0xf]
    %v1530 = vld [vmem:[%s1523 + $0x18] sm:$0xf]
    %v1531 = vld [vmem:[%s1523 + $0x1c] sm:$0xf]
    %v1532 = vld [vmem:[%s1523 + $0x20] sm:$0xf]
    %v1533 = vld [vmem:[%s1523 + $0x24] sm:$0xf]
    %v1534 = vld [vmem:[%s1523 + $0x28] sm:$0xf]
    %v1535 = vld [vmem:[%s1523 + $0x2c] sm:$0xf]
    %v1536 = vld [vmem:[%s1523 + $0x30] sm:$0xf]
    %v1537 = vld [vmem:[%s1523 + $0x34] sm:$0xf]
    %v1538 = vld [vmem:[%s1523 + $0x38] sm:$0xf]
    %v1539 = vld [vmem:[%s1523 + $0x3c] sm:$0xf]
    %v1556 = vunpack.c.l.b16 %v1524
    %v1557 = vunpack.c.l.b16 %v1525
    %v1558 = vunpack.c.l.b16 %v1526
    %v1559 = vunpack.c.l.b16 %v1527
    %v1560 = vunpack.c.l.b16 %v1528
    %v1561 = vunpack.c.l.b16 %v1529
    %v1562 = vunpack.c.l.b16 %v1530
    %v1563 = vunpack.c.l.b16 %v1531
    %v1564 = vunpack.c.l.b16 %v1532
    %v1565 = vunpack.c.l.b16 %v1533
    %v1566 = vunpack.c.l.b16 %v1534
    %v1567 = vunpack.c.l.b16 %v1535
    %v1568 = vunpack.c.l.b16 %v1536
    %v1569 = vunpack.c.l.b16 %v1537
    %v1570 = vunpack.c.l.b16 %v1538
    %v1571 = vunpack.c.l.b16 %v1539
    %v1572 = vpack.c.b16 %v1557, %v1556
    %v1573 = vpack.c.b16 %v1559, %v1558
    %v1574 = vpack.c.b16 %v1561, %v1560
    %v1575 = vpack.c.b16 %v1563, %v1562
    %v1576 = vpack.c.b16 %v1565, %v1564
    %v1577 = vpack.c.b16 %v1567, %v1566
    %v1578 = vpack.c.b16 %v1569, %v1568
    %v1579 = vpack.c.b16 %v1571, %v1570
    %1588 = vmatprep.subr.bf16.mxu0 0
    %1589 = vmatpush1.bf16.msra.mxu0 %v1572
    %1590 = vmatprep.subr.bf16.mxu0 0
    %1591 = vmatpush1.bf16.msra.mxu0 %v1573
    %1592 = vmatprep.subr.bf16.mxu0 0
    %1593 = vmatpush1.bf16.msra.mxu0 %v1574
    %1594 = vmatprep.subr.bf16.mxu0 0
    %1595 = vmatpush1.bf16.msra.mxu0 %v1575
    %1596 = vmatprep.subr.bf16.mxu0 0
    %1597 = vmatpush1.bf16.msra.mxu0 %v1576
    %1598 = vmatprep.subr.bf16.mxu0 0
    %1599 = vmatpush1.bf16.msra.mxu0 %v1577
    %1600 = vmatprep.subr.bf16.mxu0 0
    %1601 = vmatpush1.bf16.msra.mxu0 %v1578
    %1602 = vmatprep.subr.bf16.mxu0 0
    %1603 = vmatpush1.bf16.msra.mxu0 %v1579
    %1604 = vmatprep.subr.bf16.mxu0 0
    %1605 = vmatpush1.bf16.msra.mxu0 0
    %1606 = vmatprep.subr.bf16.mxu0 0
    %1607 = vmatpush1.bf16.msra.mxu0 0
    %1608 = vmatprep.subr.bf16.mxu0 0
    %1609 = vmatpush1.bf16.msra.mxu0 0
    %1610 = vmatprep.subr.bf16.mxu0 0
    %1611 = vmatpush1.bf16.msra.mxu0 0
    %1612 = vmatprep.subr.bf16.mxu0 0
    %1613 = vmatpush1.bf16.msra.mxu0 0
    %1614 = vmatprep.subr.bf16.mxu0 0
    %1615 = vmatpush1.bf16.msra.mxu0 0
    %1616 = vmatprep.subr.bf16.mxu0 0
    %1617 = vmatpush1.bf16.msra.mxu0 0
    %1618 = vmatprep.subr.bf16.mxu0 0
    %1619 = vmatpush1.bf16.msra.mxu0 0
    %1620 = vmatprep.mubr.bf16.mxu0 0
    %1621 = vmatmul.mubr.bf16.gmra.mrb[0].mxu0 %v1515
    %v1622 = vpop.f32.mrb[0].mxu0
    %v1623 = vadd.f32 0.0, %v1622
    %v1624 = vpop.f32.mrb[0].mxu0
    %v1625 = vpop.f32.mrb[0].mxu0
    %v1626 = vadd.f32 0.0, %v1625
    %v1627 = vpop.f32.mrb[0].mxu0
    %1628 = vmatprep.mubr.bf16.mxu0 0
    %1629 = vmatmul.mubr.bf16.gmra.mrb[0].mxu0 %v1516
    %v1630 = vpop.f32.mrb[0].mxu0
    %v1631 = vadd.f32 0.0, %v1630
    %v1632 = vpop.f32.mrb[0].mxu0
    %v1633 = vpop.f32.mrb[0].mxu0
    %v1634 = vadd.f32 0.0, %v1633
    %v1635 = vpop.f32.mrb[0].mxu0
    %1636 = vmatprep.mubr.bf16.mxu0 0
    %1637 = vmatmul.mubr.bf16.gmra.mrb[0].mxu0 %v1517
    %v1638 = vpop.f32.mrb[0].mxu0
    %v1639 = vadd.f32 0.0, %v1638
    %v1640 = vpop.f32.mrb[0].mxu0
    %v1641 = vpop.f32.mrb[0].mxu0
    %v1642 = vadd.f32 0.0, %v1641
    %v1643 = vpop.f32.mrb[0].mxu0
    %1644 = vmatprep.mubr.bf16.mxu0 0
    %1645 = vmatmul.mubr.bf16.gmra.mrb[0].mxu0 %v1518
    %v1646 = vpop.f32.mrb[0].mxu0
    %v1647 = vadd.f32 0.0, %v1646
    %v1648 = vpop.f32.mrb[0].mxu0
    %v1649 = vpop.f32.mrb[0].mxu0
    %v1650 = vadd.f32 0.0, %v1649
    %v1651 = vpop.f32.mrb[0].mxu0
    %1652 = vmatprep.mubr.bf16.mxu0 0
    %1653 = vmatmul.mubr.bf16.gmra.mrb[0].mxu0 %v1519
    %v1654 = vpop.f32.mrb[0].mxu0
    %v1655 = vadd.f32 0.0, %v1654
    %v1656 = vpop.f32.mrb[0].mxu0
    %v1657 = vpop.f32.mrb[0].mxu0
    %v1658 = vadd.f32 0.0, %v1657
    %v1659 = vpop.f32.mrb[0].mxu0
    %1660 = vmatprep.mubr.bf16.mxu0 0
    %1661 = vmatmul.mubr.bf16.gmra.mrb[0].mxu0 %v1520
    %v1662 = vpop.f32.mrb[0].mxu0
    %v1663 = vadd.f32 0.0, %v1662
    %v1664 = vpop.f32.mrb[0].mxu0
    %v1665 = vpop.f32.mrb[0].mxu0
    %v1666 = vadd.f32 0.0, %v1665
    %v1667 = vpop.f32.mrb[0].mxu0
    %1668 = vmatprep.mubr.bf16.mxu0 0
    %1669 = vmatmul.mubr.bf16.gmra.mrb[0].mxu0 %v1521
    %v1670 = vpop.f32.mrb[0].mxu0
    %v1671 = vadd.f32 0.0, %v1670
    %v1672 = vpop.f32.mrb[0].mxu0
    %v1673 = vpop.f32.mrb[0].mxu0
    %v1674 = vadd.f32 0.0, %v1673
    %v1675 = vpop.f32.mrb[0].mxu0
    %1676 = vmatprep.mubr.bf16.mxu0 0
    %1677 = vmatmul.mubr.bf16.gmra.mrb[0].mxu0 %v1522
    %v1678 = vpop.f32.mrb[0].mxu0
    %v1679 = vadd.f32 0.0, %v1678
    %v1680 = vpop.f32.mrb[0].mxu0
    %v1681 = vpop.f32.mrb[0].mxu0
    %v1682 = vadd.f32 0.0, %v1681
    %v1683 = vpop.f32.mrb[0].mxu0
    %1684 = vdwg.mxu0
    %v1685 = vadd.f32 %v1483, %v1623
    %v1686 = vadd.f32 %v1484, %v1626
    %v1687 = vadd.f32 %v1485, %v1631
    %v1688 = vadd.f32 %v1486, %v1634
    %v1689 = vadd.f32 %v1487, %v1639
    %v1690 = vadd.f32 %v1488, %v1642
    %v1691 = vadd.f32 %v1489, %v1647
    %v1692 = vadd.f32 %v1490, %v1650
    %v1693 = vadd.f32 %v1491, %v1655
    %v1694 = vadd.f32 %v1492, %v1658
    %v1695 = vadd.f32 %v1493, %v1663
    %v1696 = vadd.f32 %v1494, %v1666
    %v1697 = vadd.f32 %v1495, %v1671
    %v1698 = vadd.f32 %v1496, %v1674
    %v1699 = vadd.f32 %v1497, %v1679
    %v1700 = vadd.f32 %v1498, %v1682
    %vm1701 = vcmp.lt.s32.totalorder %v80, 7
    %vm1702 = vcmp.lt.s32.totalorder %v81, 7
    %vm1703 = vcmp.lt.s32.totalorder %v82, 7
    %vm1704 = vcmp.lt.s32.totalorder %v83, 7
    %vm1705 = vcmp.lt.s32.totalorder %v84, 7
    %vm1706 = vcmp.lt.s32.totalorder %v85, 7
    %vm1707 = vcmp.lt.s32.totalorder %v86, 7
    %vm1708 = vcmp.lt.s32.totalorder %v87, 7
    %vm1709 = vcmp.lt.s32.totalorder %v88, 7
    %vm1710 = vcmp.lt.s32.totalorder %v89, 7
    %vm1711 = vcmp.lt.s32.totalorder %v90, 7
    %vm1712 = vcmp.lt.s32.totalorder %v91, 7
    %vm1713 = vcmp.lt.s32.totalorder %v92, 7
    %vm1714 = vcmp.lt.s32.totalorder %v93, 7
    %vm1715 = vcmp.lt.s32.totalorder %v94, 7
    %vm1716 = vcmp.lt.s32.totalorder %v95, 7
    %vm1717 = vmand %vm1701, %vm441
    %vm1718 = vmand %vm1702, %vm442
    %vm1719 = vmand %vm1703, %vm443
    %vm1720 = vmand %vm1704, %vm444
    %vm1721 = vmand %vm1705, %vm445
    %vm1722 = vmand %vm1706, %vm446
    %vm1723 = vmand %vm1707, %vm447
    %vm1724 = vmand %vm1708, %vm448
    %vm1725 = vmand %vm1709, %vm449
    %vm1726 = vmand %vm1710, %vm450
    %vm1727 = vmand %vm1711, %vm451
    %vm1728 = vmand %vm1712, %vm452
    %vm1729 = vmand %vm1713, %vm453
    %vm1730 = vmand %vm1714, %vm454
    %vm1731 = vmand %vm1715, %vm455
    %vm1732 = vmand %vm1716, %vm456
    %v1733 = vsel %vm1717, %v423, 0.0
    %v1734 = vsel %vm1718, %v422, 0.0
    %v1735 = vsel %vm1719, %v421, 0.0
    %v1736 = vsel %vm1720, %v420, 0.0
    %v1737 = vsel %vm1721, %v419, 0.0
    %v1738 = vsel %vm1722, %v418, 0.0
    %v1739 = vsel %vm1723, %v417, 0.0
    %v1740 = vsel %vm1724, %v416, 0.0
    %v1741 = vsel %vm1725, %v415, 0.0
    %v1742 = vsel %vm1726, %v414, 0.0
    %v1743 = vsel %vm1727, %v413, 0.0
    %v1744 = vsel %vm1728, %v412, 0.0
    %v1745 = vsel %vm1729, %v411, 0.0
    %v1746 = vsel %vm1730, %v410, 0.0
    %v1747 = vsel %vm1731, %v409, 0.0
    %v1748 = vsel %vm1732, %v424, 0.0
    %v1749 = vpack.c.bf16 %v1734, %v1733
    %v1750 = vpack.c.bf16 %v1736, %v1735
    %v1751 = vpack.c.bf16 %v1738, %v1737
    %v1752 = vpack.c.bf16 %v1740, %v1739
    %v1753 = vpack.c.bf16 %v1742, %v1741
    %v1754 = vpack.c.bf16 %v1744, %v1743
    %v1755 = vpack.c.bf16 %v1746, %v1745
    %v1756 = vpack.c.bf16 %v1748, %v1747
    %s1757 = scalar_lea.vmem %s3, 384
    %v1758 = vld [vmem:[%s1757] sm:$0xf]
    %v1759 = vld [vmem:[%s1757 + $0x4] sm:$0xf]
    %v1760 = vld [vmem:[%s1757 + $0x8] sm:$0xf]
    %v1761 = vld [vmem:[%s1757 + $0xc] sm:$0xf]
    %v1762 = vld [vmem:[%s1757 + $0x10] sm:$0xf]
    %v1763 = vld [vmem:[%s1757 + $0x14] sm:$0xf]
    %v1764 = vld [vmem:[%s1757 + $0x18] sm:$0xf]
    %v1765 = vld [vmem:[%s1757 + $0x1c] sm:$0xf]
    %v1766 = vld [vmem:[%s1757 + $0x20] sm:$0xf]
    %v1767 = vld [vmem:[%s1757 + $0x24] sm:$0xf]
    %v1768 = vld [vmem:[%s1757 + $0x28] sm:$0xf]
    %v1769 = vld [vmem:[%s1757 + $0x2c] sm:$0xf]
    %v1770 = vld [vmem:[%s1757 + $0x30] sm:$0xf]
    %v1771 = vld [vmem:[%s1757 + $0x34] sm:$0xf]
    %v1772 = vld [vmem:[%s1757 + $0x38] sm:$0xf]
    %v1773 = vld [vmem:[%s1757 + $0x3c] sm:$0xf]
    %v1790 = vunpack.c.l.b16 %v1758
    %v1791 = vunpack.c.l.b16 %v1759
    %v1792 = vunpack.c.l.b16 %v1760
    %v1793 = vunpack.c.l.b16 %v1761
    %v1794 = vunpack.c.l.b16 %v1762
    %v1795 = vunpack.c.l.b16 %v1763
    %v1796 = vunpack.c.l.b16 %v1764
    %v1797 = vunpack.c.l.b16 %v1765
    %v1798 = vunpack.c.l.b16 %v1766
    %v1799 = vunpack.c.l.b16 %v1767
    %v1800 = vunpack.c.l.b16 %v1768
    %v1801 = vunpack.c.l.b16 %v1769
    %v1802 = vunpack.c.l.b16 %v1770
    %v1803 = vunpack.c.l.b16 %v1771
    %v1804 = vunpack.c.l.b16 %v1772
    %v1805 = vunpack.c.l.b16 %v1773
    %v1806 = vpack.c.b16 %v1791, %v1790
    %v1807 = vpack.c.b16 %v1793, %v1792
    %v1808 = vpack.c.b16 %v1795, %v1794
    %v1809 = vpack.c.b16 %v1797, %v1796
    %v1810 = vpack.c.b16 %v1799, %v1798
    %v1811 = vpack.c.b16 %v1801, %v1800
    %v1812 = vpack.c.b16 %v1803, %v1802
    %v1813 = vpack.c.b16 %v1805, %v1804
    %1822 = vmatprep.subr.bf16.mxu0 0
    %1823 = vmatpush1.bf16.msra.mxu0 %v1806
    %1824 = vmatprep.subr.bf16.mxu0 0
    %1825 = vmatpush1.bf16.msra.mxu0 %v1807
    %1826 = vmatprep.subr.bf16.mxu0 0
    %1827 = vmatpush1.bf16.msra.mxu0 %v1808
    %1828 = vmatprep.subr.bf16.mxu0 0
    %1829 = vmatpush1.bf16.msra.mxu0 %v1809
    %1830 = vmatprep.subr.bf16.mxu0 0
    %1831 = vmatpush1.bf16.msra.mxu0 %v1810
    %1832 = vmatprep.subr.bf16.mxu0 0
    %1833 = vmatpush1.bf16.msra.mxu0 %v1811
    %1834 = vmatprep.subr.bf16.mxu0 0
    %1835 = vmatpush1.bf16.msra.mxu0 %v1812
    %1836 = vmatprep.subr.bf16.mxu0 0
    %1837 = vmatpush1.bf16.msra.mxu0 %v1813
    %1838 = vmatprep.subr.bf16.mxu0 0
    %1839 = vmatpush1.bf16.msra.mxu0 0
    %1840 = vmatprep.subr.bf16.mxu0 0
    %1841 = vmatpush1.bf16.msra.mxu0 0
    %1842 = vmatprep.subr.bf16.mxu0 0
    %1843 = vmatpush1.bf16.msra.mxu0 0
    %1844 = vmatprep.subr.bf16.mxu0 0
    %1845 = vmatpush1.bf16.msra.mxu0 0
    %1846 = vmatprep.subr.bf16.mxu0 0
    %1847 = vmatpush1.bf16.msra.mxu0 0
    %1848 = vmatprep.subr.bf16.mxu0 0
    %1849 = vmatpush1.bf16.msra.mxu0 0
    %1850 = vmatprep.subr.bf16.mxu0 0
    %1851 = vmatpush1.bf16.msra.mxu0 0
    %1852 = vmatprep.subr.bf16.mxu0 0
    %1853 = vmatpush1.bf16.msra.mxu0 0
    %1854 = vmatprep.mubr.bf16.mxu0 0
    %1855 = vmatmul.mubr.bf16.gmra.mrb[0].mxu0 %v1749
    %v1856 = vpop.f32.mrb[0].mxu0
    %v1857 = vadd.f32 0.0, %v1856
    %v1858 = vpop.f32.mrb[0].mxu0
    %v1859 = vpop.f32.mrb[0].mxu0
    %v1860 = vadd.f32 0.0, %v1859
    %v1861 = vpop.f32.mrb[0].mxu0
    %1862 = vmatprep.mubr.bf16.mxu0 0
    %1863 = vmatmul.mubr.bf16.gmra.mrb[0].mxu0 %v1750
    %v1864 = vpop.f32.mrb[0].mxu0
    %v1865 = vadd.f32 0.0, %v1864
    %v1866 = vpop.f32.mrb[0].mxu0
    %v1867 = vpop.f32.mrb[0].mxu0
    %v1868 = vadd.f32 0.0, %v1867
    %v1869 = vpop.f32.mrb[0].mxu0
    %1870 = vmatprep.mubr.bf16.mxu0 0
    %1871 = vmatmul.mubr.bf16.gmra.mrb[0].mxu0 %v1751
    %v1872 = vpop.f32.mrb[0].mxu0
    %v1873 = vadd.f32 0.0, %v1872
    %v1874 = vpop.f32.mrb[0].mxu0
    %v1875 = vpop.f32.mrb[0].mxu0
    %v1876 = vadd.f32 0.0, %v1875
    %v1877 = vpop.f32.mrb[0].mxu0
    %1878 = vmatprep.mubr.bf16.mxu0 0
    %1879 = vmatmul.mubr.bf16.gmra.mrb[0].mxu0 %v1752
    %v1880 = vpop.f32.mrb[0].mxu0
    %v1881 = vadd.f32 0.0, %v1880
    %v1882 = vpop.f32.mrb[0].mxu0
    %v1883 = vpop.f32.mrb[0].mxu0
    %v1884 = vadd.f32 0.0, %v1883
    %v1885 = vpop.f32.mrb[0].mxu0
    %1886 = vmatprep.mubr.bf16.mxu0 0
    %1887 = vmatmul.mubr.bf16.gmra.mrb[0].mxu0 %v1753
    %v1888 = vpop.f32.mrb[0].mxu0
    %v1889 = vadd.f32 0.0, %v1888
    %v1890 = vpop.f32.mrb[0].mxu0
    %v1891 = vpop.f32.mrb[0].mxu0
    %v1892 = vadd.f32 0.0, %v1891
    %v1893 = vpop.f32.mrb[0].mxu0
    %1894 = vmatprep.mubr.bf16.mxu0 0
    %1895 = vmatmul.mubr.bf16.gmra.mrb[0].mxu0 %v1754
    %v1896 = vpop.f32.mrb[0].mxu0
    %v1897 = vadd.f32 0.0, %v1896
    %v1898 = vpop.f32.mrb[0].mxu0
    %v1899 = vpop.f32.mrb[0].mxu0
    %v1900 = vadd.f32 0.0, %v1899
    %v1901 = vpop.f32.mrb[0].mxu0
    %1902 = vmatprep.mubr.bf16.mxu0 0
    %1903 = vmatmul.mubr.bf16.gmra.mrb[0].mxu0 %v1755
    %v1904 = vpop.f32.mrb[0].mxu0
    %v1905 = vadd.f32 0.0, %v1904
    %v1906 = vpop.f32.mrb[0].mxu0
    %v1907 = vpop.f32.mrb[0].mxu0
    %v1908 = vadd.f32 0.0, %v1907
    %v1909 = vpop.f32.mrb[0].mxu0
    %1910 = vmatprep.mubr.bf16.mxu0 0
    %1911 = vmatmul.mubr.bf16.gmra.mrb[0].mxu0 %v1756
    %v1912 = vpop.f32.mrb[0].mxu0
    %v1913 = vadd.f32 0.0, %v1912
    %v1914 = vpop.f32.mrb[0].mxu0
    %v1915 = vpop.f32.mrb[0].mxu0
    %v1916 = vadd.f32 0.0, %v1915
    %v1917 = vpop.f32.mrb[0].mxu0
    %1918 = vdwg.mxu0
    %v1919 = vadd.f32 %v1685, %v1857
    %v1920 = vadd.f32 %v1686, %v1860
    %v1921 = vadd.f32 %v1687, %v1865
    %v1922 = vadd.f32 %v1688, %v1868
    %v1923 = vadd.f32 %v1689, %v1873
    %v1924 = vadd.f32 %v1690, %v1876
    %v1925 = vadd.f32 %v1691, %v1881
    %v1926 = vadd.f32 %v1692, %v1884
    %v1927 = vadd.f32 %v1693, %v1889
    %v1928 = vadd.f32 %v1694, %v1892
    %v1929 = vadd.f32 %v1695, %v1897
    %v1930 = vadd.f32 %v1696, %v1900
    %v1931 = vadd.f32 %v1697, %v1905
    %v1932 = vadd.f32 %v1698, %v1908
    %v1933 = vadd.f32 %v1699, %v1913
    %v1934 = vadd.f32 %v1700, %v1916
    %v1935 = vsel %vm1701, %v377, 0.0
    %v1936 = vsel %vm1702, %v378, 0.0
    %v1937 = vsel %vm1703, %v379, 0.0
    %v1938 = vsel %vm1704, %v380, 0.0
    %v1939 = vsel %vm1705, %v381, 0.0
    %v1940 = vsel %vm1706, %v382, 0.0
    %v1941 = vsel %vm1707, %v383, 0.0
    %v1942 = vsel %vm1708, %v384, 0.0
    %v1943 = vsel %vm1709, %v385, 0.0
    %v1944 = vsel %vm1710, %v386, 0.0
    %v1945 = vsel %vm1711, %v387, 0.0
    %v1946 = vsel %vm1712, %v388, 0.0
    %v1947 = vsel %vm1713, %v389, 0.0
    %v1948 = vsel %vm1714, %v390, 0.0
    %v1949 = vsel %vm1715, %v391, 0.0
    %v1950 = vsel %vm1716, %v376, 0.0
    %v1951 = vpack.c.bf16 %v1936, %v1935
    %v1952 = vpack.c.bf16 %v1938, %v1937
    %v1953 = vpack.c.bf16 %v1940, %v1939
    %v1954 = vpack.c.bf16 %v1942, %v1941
    %v1955 = vpack.c.bf16 %v1944, %v1943
    %v1956 = vpack.c.bf16 %v1946, %v1945
    %v1957 = vpack.c.bf16 %v1948, %v1947
    %v1958 = vpack.c.bf16 %v1950, %v1949
    %s1959 = scalar_lea.vmem %s3, 448
    %v1960 = vld [vmem:[%s1959] sm:$0xf]
    %v1961 = vld [vmem:[%s1959 + $0x4] sm:$0xf]
    %v1962 = vld [vmem:[%s1959 + $0x8] sm:$0xf]
    %v1963 = vld [vmem:[%s1959 + $0xc] sm:$0xf]
    %v1964 = vld [vmem:[%s1959 + $0x10] sm:$0xf]
    %v1965 = vld [vmem:[%s1959 + $0x14] sm:$0xf]
    %v1966 = vld [vmem:[%s1959 + $0x18] sm:$0xf]
    %v1967 = vld [vmem:[%s1959 + $0x1c] sm:$0xf]
    %v1968 = vld [vmem:[%s1959 + $0x20] sm:$0xf]
    %v1969 = vld [vmem:[%s1959 + $0x24] sm:$0xf]
    %v1970 = vld [vmem:[%s1959 + $0x28] sm:$0xf]
    %v1971 = vld [vmem:[%s1959 + $0x2c] sm:$0xf]
    %v1972 = vld [vmem:[%s1959 + $0x30] sm:$0xf]
    %v1973 = vld [vmem:[%s1959 + $0x34] sm:$0xf]
    %v1974 = vld [vmem:[%s1959 + $0x38] sm:$0xf]
    %v1975 = vld [vmem:[%s1959 + $0x3c] sm:$0xf]
    %v1992 = vunpack.c.l.b16 %v1960
    %v1993 = vunpack.c.l.b16 %v1961
    %v1994 = vunpack.c.l.b16 %v1962
    %v1995 = vunpack.c.l.b16 %v1963
    %v1996 = vunpack.c.l.b16 %v1964
    %v1997 = vunpack.c.l.b16 %v1965
    %v1998 = vunpack.c.l.b16 %v1966
    %v1999 = vunpack.c.l.b16 %v1967
    %v2000 = vunpack.c.l.b16 %v1968
    %v2001 = vunpack.c.l.b16 %v1969
    %v2002 = vunpack.c.l.b16 %v1970
    %v2003 = vunpack.c.l.b16 %v1971
    %v2004 = vunpack.c.l.b16 %v1972
    %v2005 = vunpack.c.l.b16 %v1973
    %v2006 = vunpack.c.l.b16 %v1974
    %v2007 = vunpack.c.l.b16 %v1975
    %v2008 = vpack.c.b16 %v1993, %v1992
    %v2009 = vpack.c.b16 %v1995, %v1994
    %v2010 = vpack.c.b16 %v1997, %v1996
    %v2011 = vpack.c.b16 %v1999, %v1998
    %v2012 = vpack.c.b16 %v2001, %v2000
    %v2013 = vpack.c.b16 %v2003, %v2002
    %v2014 = vpack.c.b16 %v2005, %v2004
    %v2015 = vpack.c.b16 %v2007, %v2006
    %2024 = vmatprep.subr.bf16.mxu0 0
    %2025 = vmatpush1.bf16.msra.mxu0 %v2008
    %2026 = vmatprep.subr.bf16.mxu0 0
    %2027 = vmatpush1.bf16.msra.mxu0 %v2009
    %2028 = vmatprep.subr.bf16.mxu0 0
    %2029 = vmatpush1.bf16.msra.mxu0 %v2010
    %2030 = vmatprep.subr.bf16.mxu0 0
    %2031 = vmatpush1.bf16.msra.mxu0 %v2011
    %2032 = vmatprep.subr.bf16.mxu0 0
    %2033 = vmatpush1.bf16.msra.mxu0 %v2012
    %2034 = vmatprep.subr.bf16.mxu0 0
    %2035 = vmatpush1.bf16.msra.mxu0 %v2013
    %2036 = vmatprep.subr.bf16.mxu0 0
    %2037 = vmatpush1.bf16.msra.mxu0 %v2014
    %2038 = vmatprep.subr.bf16.mxu0 0
    %2039 = vmatpush1.bf16.msra.mxu0 %v2015
    %2040 = vmatprep.subr.bf16.mxu0 0
    %2041 = vmatpush1.bf16.msra.mxu0 0
    %2042 = vmatprep.subr.bf16.mxu0 0
    %2043 = vmatpush1.bf16.msra.mxu0 0
    %2044 = vmatprep.subr.bf16.mxu0 0
    %2045 = vmatpush1.bf16.msra.mxu0 0
    %2046 = vmatprep.subr.bf16.mxu0 0
    %2047 = vmatpush1.bf16.msra.mxu0 0
    %2048 = vmatprep.subr.bf16.mxu0 0
    %2049 = vmatpush1.bf16.msra.mxu0 0
    %2050 = vmatprep.subr.bf16.mxu0 0
    %2051 = vmatpush1.bf16.msra.mxu0 0
    %2052 = vmatprep.subr.bf16.mxu0 0
    %2053 = vmatpush1.bf16.msra.mxu0 0
    %2054 = vmatprep.subr.bf16.mxu0 0
    %2055 = vmatpush1.bf16.msra.mxu0 0
    %2056 = vmatprep.mubr.bf16.mxu0 0
    %2057 = vmatmul.mubr.bf16.gmra.mrb[0].mxu0 %v1951
    %v2058 = vpop.f32.mrb[0].mxu0
    %v2059 = vadd.f32 0.0, %v2058
    %v2060 = vpop.f32.mrb[0].mxu0
    %v2061 = vpop.f32.mrb[0].mxu0
    %v2062 = vadd.f32 0.0, %v2061
    %v2063 = vpop.f32.mrb[0].mxu0
    %2064 = vmatprep.mubr.bf16.mxu0 0
    %2065 = vmatmul.mubr.bf16.gmra.mrb[0].mxu0 %v1952
    %v2066 = vpop.f32.mrb[0].mxu0
    %v2067 = vadd.f32 0.0, %v2066
    %v2068 = vpop.f32.mrb[0].mxu0
    %v2069 = vpop.f32.mrb[0].mxu0
    %v2070 = vadd.f32 0.0, %v2069
    %v2071 = vpop.f32.mrb[0].mxu0
    %2072 = vmatprep.mubr.bf16.mxu0 0
    %2073 = vmatmul.mubr.bf16.gmra.mrb[0].mxu0 %v1953
    %v2074 = vpop.f32.mrb[0].mxu0
    %v2075 = vadd.f32 0.0, %v2074
    %v2076 = vpop.f32.mrb[0].mxu0
    %v2077 = vpop.f32.mrb[0].mxu0
    %v2078 = vadd.f32 0.0, %v2077
    %v2079 = vpop.f32.mrb[0].mxu0
    %2080 = vmatprep.mubr.bf16.mxu0 0
    %2081 = vmatmul.mubr.bf16.gmra.mrb[0].mxu0 %v1954
    %v2082 = vpop.f32.mrb[0].mxu0
    %v2083 = vadd.f32 0.0, %v2082
    %v2084 = vpop.f32.mrb[0].mxu0
    %v2085 = vpop.f32.mrb[0].mxu0
    %v2086 = vadd.f32 0.0, %v2085
    %v2087 = vpop.f32.mrb[0].mxu0
    %2088 = vmatprep.mubr.bf16.mxu0 0
    %2089 = vmatmul.mubr.bf16.gmra.mrb[0].mxu0 %v1955
    %v2090 = vpop.f32.mrb[0].mxu0
    %v2091 = vadd.f32 0.0, %v2090
    %v2092 = vpop.f32.mrb[0].mxu0
    %v2093 = vpop.f32.mrb[0].mxu0
    %v2094 = vadd.f32 0.0, %v2093
    %v2095 = vpop.f32.mrb[0].mxu0
    %2096 = vmatprep.mubr.bf16.mxu0 0
    %2097 = vmatmul.mubr.bf16.gmra.mrb[0].mxu0 %v1956
    %v2098 = vpop.f32.mrb[0].mxu0
    %v2099 = vadd.f32 0.0, %v2098
    %v2100 = vpop.f32.mrb[0].mxu0
    %v2101 = vpop.f32.mrb[0].mxu0
    %v2102 = vadd.f32 0.0, %v2101
    %v2103 = vpop.f32.mrb[0].mxu0
    %2104 = vmatprep.mubr.bf16.mxu0 0
    %2105 = vmatmul.mubr.bf16.gmra.mrb[0].mxu0 %v1957
    %v2106 = vpop.f32.mrb[0].mxu0
    %v2107 = vadd.f32 0.0, %v2106
    %v2108 = vpop.f32.mrb[0].mxu0
    %v2109 = vpop.f32.mrb[0].mxu0
    %v2110 = vadd.f32 0.0, %v2109
    %v2111 = vpop.f32.mrb[0].mxu0
    %2112 = vmatprep.mubr.bf16.mxu0 0
    %2113 = vmatmul.mubr.bf16.gmra.mrb[0].mxu0 %v1958
    %v2114 = vpop.f32.mrb[0].mxu0
    %v2115 = vadd.f32 0.0, %v2114
    %v2116 = vpop.f32.mrb[0].mxu0
    %v2117 = vpop.f32.mrb[0].mxu0
    %v2118 = vadd.f32 0.0, %v2117
    %v2119 = vpop.f32.mrb[0].mxu0
    %2120 = vdwg.mxu0
    %v2121 = vadd.f32 %v1919, %v2059
    %v2122 = vadd.f32 %v1920, %v2062
    %v2123 = vadd.f32 %v1921, %v2067
    %v2124 = vadd.f32 %v1922, %v2070
    %v2125 = vadd.f32 %v1923, %v2075
    %v2126 = vadd.f32 %v1924, %v2078
    %v2127 = vadd.f32 %v1925, %v2083
    %v2128 = vadd.f32 %v1926, %v2086
    %v2129 = vadd.f32 %v1927, %v2091
    %v2130 = vadd.f32 %v1928, %v2094
    %v2131 = vadd.f32 %v1929, %v2099
    %v2132 = vadd.f32 %v1930, %v2102
    %v2133 = vadd.f32 %v1931, %v2107
    %v2134 = vadd.f32 %v1932, %v2110
    %v2135 = vadd.f32 %v1933, %v2115
    %v2136 = vadd.f32 %v1934, %v2118
    %vm2137 = vmand %vm1701, %vm877
    %vm2138 = vmand %vm1702, %vm878
    %vm2139 = vmand %vm1703, %vm879
    %vm2140 = vmand %vm1704, %vm880
    %vm2141 = vmand %vm1705, %vm881
    %vm2142 = vmand %vm1706, %vm882
    %vm2143 = vmand %vm1707, %vm883
    %vm2144 = vmand %vm1708, %vm884
    %vm2145 = vmand %vm1709, %vm885
    %vm2146 = vmand %vm1710, %vm886
    %vm2147 = vmand %vm1711, %vm887
    %vm2148 = vmand %vm1712, %vm888
    %vm2149 = vmand %vm1713, %vm889
    %vm2150 = vmand %vm1714, %vm890
    %vm2151 = vmand %vm1715, %vm891
    %vm2152 = vmand %vm1716, %vm892
    %v2153 = vsel %vm2137, %v874, 0.0
    %v2154 = vsel %vm2138, %v873, 0.0
    %v2155 = vsel %vm2139, %v872, 0.0
    %v2156 = vsel %vm2140, %v871, 0.0
    %v2157 = vsel %vm2141, %v870, 0.0
    %v2158 = vsel %vm2142, %v869, 0.0
    %v2159 = vsel %vm2143, %v868, 0.0
    %v2160 = vsel %vm2144, %v867, 0.0
    %v2161 = vsel %vm2145, %v866, 0.0
    %v2162 = vsel %vm2146, %v865, 0.0
    %v2163 = vsel %vm2147, %v864, 0.0
    %v2164 = vsel %vm2148, %v863, 0.0
    %v2165 = vsel %vm2149, %v862, 0.0
    %v2166 = vsel %vm2150, %v861, 0.0
    %v2167 = vsel %vm2151, %v876, 0.0
    %v2168 = vsel %vm2152, %v875, 0.0
    %v2169 = vpack.c.bf16 %v2154, %v2153
    %v2170 = vpack.c.bf16 %v2156, %v2155
    %v2171 = vpack.c.bf16 %v2158, %v2157
    %v2172 = vpack.c.bf16 %v2160, %v2159
    %v2173 = vpack.c.bf16 %v2162, %v2161
    %v2174 = vpack.c.bf16 %v2164, %v2163
    %v2175 = vpack.c.bf16 %v2166, %v2165
    %v2176 = vpack.c.bf16 %v2168, %v2167
    %s2177 = scalar_lea.vmem %s3, 512
    %v2178 = vld [vmem:[%s2177] sm:$0xf]
    %v2179 = vld [vmem:[%s2177 + $0x4] sm:$0xf]
    %v2180 = vld [vmem:[%s2177 + $0x8] sm:$0xf]
    %v2181 = vld [vmem:[%s2177 + $0xc] sm:$0xf]
    %v2182 = vld [vmem:[%s2177 + $0x10] sm:$0xf]
    %v2183 = vld [vmem:[%s2177 + $0x14] sm:$0xf]
    %v2184 = vld [vmem:[%s2177 + $0x18] sm:$0xf]
    %v2185 = vld [vmem:[%s2177 + $0x1c] sm:$0xf]
    %v2186 = vld [vmem:[%s2177 + $0x20] sm:$0xf]
    %v2187 = vld [vmem:[%s2177 + $0x24] sm:$0xf]
    %v2188 = vld [vmem:[%s2177 + $0x28] sm:$0xf]
    %v2189 = vld [vmem:[%s2177 + $0x2c] sm:$0xf]
    %v2190 = vld [vmem:[%s2177 + $0x30] sm:$0xf]
    %v2191 = vld [vmem:[%s2177 + $0x34] sm:$0xf]
    %v2192 = vld [vmem:[%s2177 + $0x38] sm:$0xf]
    %v2193 = vld [vmem:[%s2177 + $0x3c] sm:$0xf]
    %v2210 = vunpack.c.l.b16 %v2178
    %v2211 = vunpack.c.l.b16 %v2179
    %v2212 = vunpack.c.l.b16 %v2180
    %v2213 = vunpack.c.l.b16 %v2181
    %v2214 = vunpack.c.l.b16 %v2182
    %v2215 = vunpack.c.l.b16 %v2183
    %v2216 = vunpack.c.l.b16 %v2184
    %v2217 = vunpack.c.l.b16 %v2185
    %v2218 = vunpack.c.l.b16 %v2186
    %v2219 = vunpack.c.l.b16 %v2187
    %v2220 = vunpack.c.l.b16 %v2188
    %v2221 = vunpack.c.l.b16 %v2189
    %v2222 = vunpack.c.l.b16 %v2190
    %v2223 = vunpack.c.l.b16 %v2191
    %v2224 = vunpack.c.l.b16 %v2192
    %v2225 = vunpack.c.l.b16 %v2193
    %v2226 = vpack.c.b16 %v2211, %v2210
    %v2227 = vpack.c.b16 %v2213, %v2212
    %v2228 = vpack.c.b16 %v2215, %v2214
    %v2229 = vpack.c.b16 %v2217, %v2216
    %v2230 = vpack.c.b16 %v2219, %v2218
    %v2231 = vpack.c.b16 %v2221, %v2220
    %v2232 = vpack.c.b16 %v2223, %v2222
    %v2233 = vpack.c.b16 %v2225, %v2224
    %2242 = vmatprep.subr.bf16.mxu0 0
    %2243 = vmatpush1.bf16.msra.mxu0 %v2226
    %2244 = vmatprep.subr.bf16.mxu0 0
    %2245 = vmatpush1.bf16.msra.mxu0 %v2227
    %2246 = vmatprep.subr.bf16.mxu0 0
    %2247 = vmatpush1.bf16.msra.mxu0 %v2228
    %2248 = vmatprep.subr.bf16.mxu0 0
    %2249 = vmatpush1.bf16.msra.mxu0 %v2229
    %2250 = vmatprep.subr.bf16.mxu0 0
    %2251 = vmatpush1.bf16.msra.mxu0 %v2230
    %2252 = vmatprep.subr.bf16.mxu0 0
    %2253 = vmatpush1.bf16.msra.mxu0 %v2231
    %2254 = vmatprep.subr.bf16.mxu0 0
    %2255 = vmatpush1.bf16.msra.mxu0 %v2232
    %2256 = vmatprep.subr.bf16.mxu0 0
    %2257 = vmatpush1.bf16.msra.mxu0 %v2233
    %2258 = vmatprep.subr.bf16.mxu0 0
    %2259 = vmatpush1.bf16.msra.mxu0 0
    %2260 = vmatprep.subr.bf16.mxu0 0
    %2261 = vmatpush1.bf16.msra.mxu0 0
    %2262 = vmatprep.subr.bf16.mxu0 0
    %2263 = vmatpush1.bf16.msra.mxu0 0
    %2264 = vmatprep.subr.bf16.mxu0 0
    %2265 = vmatpush1.bf16.msra.mxu0 0
    %2266 = vmatprep.subr.bf16.mxu0 0
    %2267 = vmatpush1.bf16.msra.mxu0 0
    %2268 = vmatprep.subr.bf16.mxu0 0
    %2269 = vmatpush1.bf16.msra.mxu0 0
    %2270 = vmatprep.subr.bf16.mxu0 0
    %2271 = vmatpush1.bf16.msra.mxu0 0
    %2272 = vmatprep.subr.bf16.mxu0 0
    %2273 = vmatpush1.bf16.msra.mxu0 0
    %2274 = vmatprep.mubr.bf16.mxu0 0
    %2275 = vmatmul.mubr.bf16.gmra.mrb[0].mxu0 %v2169
    %v2276 = vpop.f32.mrb[0].mxu0
    %v2277 = vadd.f32 0.0, %v2276
    %v2278 = vpop.f32.mrb[0].mxu0
    %v2279 = vpop.f32.mrb[0].mxu0
    %v2280 = vadd.f32 0.0, %v2279
    %v2281 = vpop.f32.mrb[0].mxu0
    %2282 = vmatprep.mubr.bf16.mxu0 0
    %2283 = vmatmul.mubr.bf16.gmra.mrb[0].mxu0 %v2170
    %v2284 = vpop.f32.mrb[0].mxu0
    %v2285 = vadd.f32 0.0, %v2284
    %v2286 = vpop.f32.mrb[0].mxu0
    %v2287 = vpop.f32.mrb[0].mxu0
    %v2288 = vadd.f32 0.0, %v2287
    %v2289 = vpop.f32.mrb[0].mxu0
    %2290 = vmatprep.mubr.bf16.mxu0 0
    %2291 = vmatmul.mubr.bf16.gmra.mrb[0].mxu0 %v2171
    %v2292 = vpop.f32.mrb[0].mxu0
    %v2293 = vadd.f32 0.0, %v2292
    %v2294 = vpop.f32.mrb[0].mxu0
    %v2295 = vpop.f32.mrb[0].mxu0
    %v2296 = vadd.f32 0.0, %v2295
    %v2297 = vpop.f32.mrb[0].mxu0
    %2298 = vmatprep.mubr.bf16.mxu0 0
    %2299 = vmatmul.mubr.bf16.gmra.mrb[0].mxu0 %v2172
    %v2300 = vpop.f32.mrb[0].mxu0
    %v2301 = vadd.f32 0.0, %v2300
    %v2302 = vpop.f32.mrb[0].mxu0
    %v2303 = vpop.f32.mrb[0].mxu0
    %v2304 = vadd.f32 0.0, %v2303
    %v2305 = vpop.f32.mrb[0].mxu0
    %2306 = vmatprep.mubr.bf16.mxu0 0
    %2307 = vmatmul.mubr.bf16.gmra.mrb[0].mxu0 %v2173
    %v2308 = vpop.f32.mrb[0].mxu0
    %v2309 = vadd.f32 0.0, %v2308
    %v2310 = vpop.f32.mrb[0].mxu0
    %v2311 = vpop.f32.mrb[0].mxu0
    %v2312 = vadd.f32 0.0, %v2311
    %v2313 = vpop.f32.mrb[0].mxu0
    %2314 = vmatprep.mubr.bf16.mxu0 0
    %2315 = vmatmul.mubr.bf16.gmra.mrb[0].mxu0 %v2174
    %v2316 = vpop.f32.mrb[0].mxu0
    %v2317 = vadd.f32 0.0, %v2316
    %v2318 = vpop.f32.mrb[0].mxu0
    %v2319 = vpop.f32.mrb[0].mxu0
    %v2320 = vadd.f32 0.0, %v2319
    %v2321 = vpop.f32.mrb[0].mxu0
    %2322 = vmatprep.mubr.bf16.mxu0 0
    %2323 = vmatmul.mubr.bf16.gmra.mrb[0].mxu0 %v2175
    %v2324 = vpop.f32.mrb[0].mxu0
    %v2325 = vadd.f32 0.0, %v2324
    %v2326 = vpop.f32.mrb[0].mxu0
    %v2327 = vpop.f32.mrb[0].mxu0
    %v2328 = vadd.f32 0.0, %v2327
    %v2329 = vpop.f32.mrb[0].mxu0
    %2330 = vmatprep.mubr.bf16.mxu0 0
    %2331 = vmatmul.mubr.bf16.gmra.mrb[0].mxu0 %v2176
    %v2332 = vpop.f32.mrb[0].mxu0
    %v2333 = vadd.f32 0.0, %v2332
    %v2334 = vpop.f32.mrb[0].mxu0
    %v2335 = vpop.f32.mrb[0].mxu0
    %v2336 = vadd.f32 0.0, %v2335
    %v2337 = vpop.f32.mrb[0].mxu0
    %2338 = vdwg.mxu0
    %v2339 = vadd.f32 %v2121, %v2277
    %v2340 = vadd.f32 %v2122, %v2280
    %v2341 = vadd.f32 %v2123, %v2285
    %v2342 = vadd.f32 %v2124, %v2288
    %v2343 = vadd.f32 %v2125, %v2293
    %v2344 = vadd.f32 %v2126, %v2296
    %v2345 = vadd.f32 %v2127, %v2301
    %v2346 = vadd.f32 %v2128, %v2304
    %v2347 = vadd.f32 %v2129, %v2309
    %v2348 = vadd.f32 %v2130, %v2312
    %v2349 = vadd.f32 %v2131, %v2317
    %v2350 = vadd.f32 %v2132, %v2320
    %v2351 = vadd.f32 %v2133, %v2325
    %v2352 = vadd.f32 %v2134, %v2328
    %v2353 = vadd.f32 %v2135, %v2333
    %v2354 = vadd.f32 %v2136, %v2336
    %v2355 = vld [vmem:[%s4] sm:$0x1]
    %v2357 = vlaneseq
    %v2358 = vshrl.u32 %v2357, 7
    %v2359 = vsub.s32 0, %v2358
    %v2360 = vrot.slane %v2355, %v2359
    %v2362 = vadd.f32 %v2339, %v2360
    %v2363 = vadd.f32 %v2340, %v2360
    %v2364 = vadd.f32 %v2341, %v2360
    %v2365 = vadd.f32 %v2342, %v2360
    %v2366 = vadd.f32 %v2343, %v2360
    %v2367 = vadd.f32 %v2344, %v2360
    %v2368 = vadd.f32 %v2345, %v2360
    %v2369 = vadd.f32 %v2346, %v2360
    %v2370 = vadd.f32 %v2347, %v2360
    %v2371 = vadd.f32 %v2348, %v2360
    %v2372 = vadd.f32 %v2349, %v2360
    %v2373 = vadd.f32 %v2350, %v2360
    %v2374 = vadd.f32 %v2351, %v2360
    %v2375 = vadd.f32 %v2352, %v2360
    %v2376 = vadd.f32 %v2353, %v2360
    %v2377 = vadd.f32 %v2354, %v2360
    %vm2378 = vcmp.ge.f32.partialorder %v2362, 0.0
    %vm2379 = vcmp.ge.f32.partialorder %v2363, 0.0
    %vm2380 = vcmp.ge.f32.partialorder %v2364, 0.0
    %vm2381 = vcmp.ge.f32.partialorder %v2365, 0.0
    %vm2382 = vcmp.ge.f32.partialorder %v2366, 0.0
    %vm2383 = vcmp.ge.f32.partialorder %v2367, 0.0
    %vm2384 = vcmp.ge.f32.partialorder %v2368, 0.0
    %vm2385 = vcmp.ge.f32.partialorder %v2369, 0.0
    %vm2386 = vcmp.ge.f32.partialorder %v2370, 0.0
    %vm2387 = vcmp.ge.f32.partialorder %v2371, 0.0
    %vm2388 = vcmp.ge.f32.partialorder %v2372, 0.0
    %vm2389 = vcmp.ge.f32.partialorder %v2373, 0.0
    %vm2390 = vcmp.ge.f32.partialorder %v2374, 0.0
    %vm2391 = vcmp.ge.f32.partialorder %v2375, 0.0
    %vm2392 = vcmp.ge.f32.partialorder %v2376, 0.0
    %vm2393 = vcmp.ge.f32.partialorder %v2377, 0.0
    %v2394 = vmul.f32 %v2362, 0.2
    %v2395 = vmul.f32 %v2363, 0.2
    %v2396 = vmul.f32 %v2364, 0.2
    %v2397 = vmul.f32 %v2365, 0.2
    %v2398 = vmul.f32 %v2366, 0.2
    %v2399 = vmul.f32 %v2367, 0.2
    %v2400 = vmul.f32 %v2368, 0.2
    %v2401 = vmul.f32 %v2369, 0.2
    %v2402 = vmul.f32 %v2370, 0.2
    %v2403 = vmul.f32 %v2371, 0.2
    %v2404 = vmul.f32 %v2372, 0.2
    %v2405 = vmul.f32 %v2373, 0.2
    %v2406 = vmul.f32 %v2374, 0.2
    %v2407 = vmul.f32 %v2375, 0.2
    %v2408 = vmul.f32 %v2376, 0.2
    %v2409 = vmul.f32 %v2377, 0.2
    %v2410 = vsel %vm2378, %v2362, %v2394
    %v2411 = vsel %vm2379, %v2363, %v2395
    %v2412 = vsel %vm2380, %v2364, %v2396
    %v2413 = vsel %vm2381, %v2365, %v2397
    %v2414 = vsel %vm2382, %v2366, %v2398
    %v2415 = vsel %vm2383, %v2367, %v2399
    %v2416 = vsel %vm2384, %v2368, %v2400
    %v2417 = vsel %vm2385, %v2369, %v2401
    %v2418 = vsel %vm2386, %v2370, %v2402
    %v2419 = vsel %vm2387, %v2371, %v2403
    %v2420 = vsel %vm2388, %v2372, %v2404
    %v2421 = vsel %vm2389, %v2373, %v2405
    %v2422 = vsel %vm2390, %v2374, %v2406
    %v2423 = vsel %vm2391, %v2375, %v2407
    %v2424 = vsel %vm2392, %v2376, %v2408
    %v2425 = vsel %vm2393, %v2377, %v2409
    %v2426 = vmul.f32 %v2410, 1.4142135
    %v2427 = vmul.f32 %v2411, 1.4142135
    %v2428 = vmul.f32 %v2412, 1.4142135
    %v2429 = vmul.f32 %v2413, 1.4142135
    %v2430 = vmul.f32 %v2414, 1.4142135
    %v2431 = vmul.f32 %v2415, 1.4142135
    %v2432 = vmul.f32 %v2416, 1.4142135
    %v2433 = vmul.f32 %v2417, 1.4142135
    %v2434 = vmul.f32 %v2418, 1.4142135
    %v2435 = vmul.f32 %v2419, 1.4142135
    %v2436 = vmul.f32 %v2420, 1.4142135
    %v2437 = vmul.f32 %v2421, 1.4142135
    %v2438 = vmul.f32 %v2422, 1.4142135
    %v2439 = vmul.f32 %v2423, 1.4142135
    %v2440 = vmul.f32 %v2424, 1.4142135
    %v2441 = vmul.f32 %v2425, 1.4142135
    %v2442 = vld [vmem:[%s5] sm:$0xf]
    %v2443 = vld [vmem:[%s5 + $0x4] sm:$0xf]
    %v2444 = vld [vmem:[%s5 + $0x8] sm:$0xf]
    %v2445 = vld [vmem:[%s5 + $0xc] sm:$0xf]
    %v2446 = vld [vmem:[%s5 + $0x10] sm:$0xf]
    %v2447 = vld [vmem:[%s5 + $0x14] sm:$0xf]
    %v2448 = vld [vmem:[%s5 + $0x18] sm:$0xf]
    %v2449 = vld [vmem:[%s5 + $0x1c] sm:$0xf]
    %v2450 = vld [vmem:[%s5 + $0x20] sm:$0xf]
    %v2451 = vld [vmem:[%s5 + $0x24] sm:$0xf]
    %v2452 = vld [vmem:[%s5 + $0x28] sm:$0xf]
    %v2453 = vld [vmem:[%s5 + $0x2c] sm:$0xf]
    %v2454 = vld [vmem:[%s5 + $0x30] sm:$0xf]
    %v2455 = vld [vmem:[%s5 + $0x34] sm:$0xf]
    %v2456 = vld [vmem:[%s5 + $0x38] sm:$0xf]
    %v2457 = vld [vmem:[%s5 + $0x3c] sm:$0xf]
    %s2458 = scalar_lea.vmem %s5, 64
    %v2459 = vld [vmem:[%s2458] sm:$0xf]
    %v2460 = vld [vmem:[%s2458 + $0x4] sm:$0xf]
    %v2461 = vld [vmem:[%s2458 + $0x8] sm:$0xf]
    %v2462 = vld [vmem:[%s2458 + $0xc] sm:$0xf]
    %v2463 = vld [vmem:[%s2458 + $0x10] sm:$0xf]
    %v2464 = vld [vmem:[%s2458 + $0x14] sm:$0xf]
    %v2465 = vld [vmem:[%s2458 + $0x18] sm:$0xf]
    %v2466 = vld [vmem:[%s2458 + $0x1c] sm:$0xf]
    %v2467 = vld [vmem:[%s2458 + $0x20] sm:$0xf]
    %v2468 = vld [vmem:[%s2458 + $0x24] sm:$0xf]
    %v2469 = vld [vmem:[%s2458 + $0x28] sm:$0xf]
    %v2470 = vld [vmem:[%s2458 + $0x2c] sm:$0xf]
    %v2471 = vld [vmem:[%s2458 + $0x30] sm:$0xf]
    %v2472 = vld [vmem:[%s2458 + $0x34] sm:$0xf]
    %v2473 = vld [vmem:[%s2458 + $0x38] sm:$0xf]
    %v2474 = vld [vmem:[%s2458 + $0x3c] sm:$0xf]
    %v2491 = vunpack.c.l.b16 %v2459
    %v2492 = vunpack.c.l.b16 %v2460
    %v2493 = vunpack.c.l.b16 %v2461
    %v2494 = vunpack.c.l.b16 %v2462
    %v2495 = vunpack.c.l.b16 %v2463
    %v2496 = vunpack.c.l.b16 %v2464
    %v2497 = vunpack.c.l.b16 %v2465
    %v2498 = vunpack.c.l.b16 %v2466
    %v2499 = vunpack.c.l.b16 %v2467
    %v2500 = vunpack.c.l.b16 %v2468
    %v2501 = vunpack.c.l.b16 %v2469
    %v2502 = vunpack.c.l.b16 %v2470
    %v2503 = vunpack.c.l.b16 %v2471
    %v2504 = vunpack.c.l.b16 %v2472
    %v2505 = vunpack.c.l.b16 %v2473
    %v2506 = vunpack.c.l.b16 %v2474
    %v2507 = vpack.c.b16 %v2492, %v2491
    %v2508 = vpack.c.b16 %v2494, %v2493
    %v2509 = vpack.c.b16 %v2496, %v2495
    %v2510 = vpack.c.b16 %v2498, %v2497
    %v2511 = vpack.c.b16 %v2500, %v2499
    %v2512 = vpack.c.b16 %v2502, %v2501
    %v2513 = vpack.c.b16 %v2504, %v2503
    %v2514 = vpack.c.b16 %v2506, %v2505
    %2523 = vmatprep.subr.bf16.mxu0 0
    %2524 = vmatpush1.bf16.msra.mxu0 %v2507
    %2525 = vmatprep.subr.bf16.mxu0 0
    %2526 = vmatpush1.bf16.msra.mxu0 %v2508
    %2527 = vmatprep.subr.bf16.mxu0 0
    %2528 = vmatpush1.bf16.msra.mxu0 %v2509
    %2529 = vmatprep.subr.bf16.mxu0 0
    %2530 = vmatpush1.bf16.msra.mxu0 %v2510
    %2531 = vmatprep.subr.bf16.mxu0 0
    %2532 = vmatpush1.bf16.msra.mxu0 %v2511
    %2533 = vmatprep.subr.bf16.mxu0 0
    %2534 = vmatpush1.bf16.msra.mxu0 %v2512
    %2535 = vmatprep.subr.bf16.mxu0 0
    %2536 = vmatpush1.bf16.msra.mxu0 %v2513
    %2537 = vmatprep.subr.bf16.mxu0 0
    %2538 = vmatpush1.bf16.msra.mxu0 %v2514
    %2539 = vmatprep.subr.bf16.mxu0 0
    %2540 = vmatpush1.bf16.msra.mxu0 0
    %2541 = vmatprep.subr.bf16.mxu0 0
    %2542 = vmatpush1.bf16.msra.mxu0 0
    %2543 = vmatprep.subr.bf16.mxu0 0
    %2544 = vmatpush1.bf16.msra.mxu0 0
    %2545 = vmatprep.subr.bf16.mxu0 0
    %2546 = vmatpush1.bf16.msra.mxu0 0
    %2547 = vmatprep.subr.bf16.mxu0 0
    %2548 = vmatpush1.bf16.msra.mxu0 0
    %2549 = vmatprep.subr.bf16.mxu0 0
    %2550 = vmatpush1.bf16.msra.mxu0 0
    %2551 = vmatprep.subr.bf16.mxu0 0
    %2552 = vmatpush1.bf16.msra.mxu0 0
    %2553 = vmatprep.subr.bf16.mxu0 0
    %2554 = vmatpush1.bf16.msra.mxu0 0
    %2555 = vmatprep.mubr.bf16.mxu0 0
    %2556 = vmatmul.mubr.bf16.gmra.mrb[0].mxu0 %v529
    %v2557 = vpop.f32.mrb[0].mxu0
    %v2558 = vadd.f32 0.0, %v2557
    %v2559 = vpop.f32.mrb[0].mxu0
    %v2560 = vpop.f32.mrb[0].mxu0
    %v2561 = vadd.f32 0.0, %v2560
    %v2562 = vpop.f32.mrb[0].mxu0
    %2563 = vmatprep.mubr.bf16.mxu0 0
    %2564 = vmatmul.mubr.bf16.gmra.mrb[0].mxu0 %v530
    %v2565 = vpop.f32.mrb[0].mxu0
    %v2566 = vadd.f32 0.0, %v2565
    %v2567 = vpop.f32.mrb[0].mxu0
    %v2568 = vpop.f32.mrb[0].mxu0
    %v2569 = vadd.f32 0.0, %v2568
    %v2570 = vpop.f32.mrb[0].mxu0
    %2571 = vmatprep.mubr.bf16.mxu0 0
    %2572 = vmatmul.mubr.bf16.gmra.mrb[0].mxu0 %v531
    %v2573 = vpop.f32.mrb[0].mxu0
    %v2574 = vadd.f32 0.0, %v2573
    %v2575 = vpop.f32.mrb[0].mxu0
    %v2576 = vpop.f32.mrb[0].mxu0
    %v2577 = vadd.f32 0.0, %v2576
    %v2578 = vpop.f32.mrb[0].mxu0
    %2579 = vmatprep.mubr.bf16.mxu0 0
    %2580 = vmatmul.mubr.bf16.gmra.mrb[0].mxu0 %v532
    %v2581 = vpop.f32.mrb[0].mxu0
    %v2582 = vadd.f32 0.0, %v2581
    %v2583 = vpop.f32.mrb[0].mxu0
    %v2584 = vpop.f32.mrb[0].mxu0
    %v2585 = vadd.f32 0.0, %v2584
    %v2586 = vpop.f32.mrb[0].mxu0
    %2587 = vmatprep.mubr.bf16.mxu0 0
    %2588 = vmatmul.mubr.bf16.gmra.mrb[0].mxu0 %v533
    %v2589 = vpop.f32.mrb[0].mxu0
    %v2590 = vadd.f32 0.0, %v2589
    %v2591 = vpop.f32.mrb[0].mxu0
    %v2592 = vpop.f32.mrb[0].mxu0
    %v2593 = vadd.f32 0.0, %v2592
    %v2594 = vpop.f32.mrb[0].mxu0
    %2595 = vmatprep.mubr.bf16.mxu0 0
    %2596 = vmatmul.mubr.bf16.gmra.mrb[0].mxu0 %v534
    %v2597 = vpop.f32.mrb[0].mxu0
    %v2598 = vadd.f32 0.0, %v2597
    %v2599 = vpop.f32.mrb[0].mxu0
    %v2600 = vpop.f32.mrb[0].mxu0
    %v2601 = vadd.f32 0.0, %v2600
    %v2602 = vpop.f32.mrb[0].mxu0
    %2603 = vmatprep.mubr.bf16.mxu0 0
    %2604 = vmatmul.mubr.bf16.gmra.mrb[0].mxu0 %v535
    %v2605 = vpop.f32.mrb[0].mxu0
    %v2606 = vadd.f32 0.0, %v2605
    %v2607 = vpop.f32.mrb[0].mxu0
    %v2608 = vpop.f32.mrb[0].mxu0
    %v2609 = vadd.f32 0.0, %v2608
    %v2610 = vpop.f32.mrb[0].mxu0
    %2611 = vmatprep.mubr.bf16.mxu0 0
    %2612 = vmatmul.mubr.bf16.gmra.mrb[0].mxu0 %v536
    %v2613 = vpop.f32.mrb[0].mxu0
    %v2614 = vadd.f32 0.0, %v2613
    %v2615 = vpop.f32.mrb[0].mxu0
    %v2616 = vpop.f32.mrb[0].mxu0
    %v2617 = vadd.f32 0.0, %v2616
    %v2618 = vpop.f32.mrb[0].mxu0
    %2619 = vdwg.mxu0
    %v2636 = vunpack.c.l.b16 %v2442
    %v2637 = vunpack.c.l.b16 %v2443
    %v2638 = vunpack.c.l.b16 %v2444
    %v2639 = vunpack.c.l.b16 %v2445
    %v2640 = vunpack.c.l.b16 %v2446
    %v2641 = vunpack.c.l.b16 %v2447
    %v2642 = vunpack.c.l.b16 %v2448
    %v2643 = vunpack.c.l.b16 %v2449
    %v2644 = vunpack.c.l.b16 %v2450
    %v2645 = vunpack.c.l.b16 %v2451
    %v2646 = vunpack.c.l.b16 %v2452
    %v2647 = vunpack.c.l.b16 %v2453
    %v2648 = vunpack.c.l.b16 %v2454
    %v2649 = vunpack.c.l.b16 %v2455
    %v2650 = vunpack.c.l.b16 %v2456
    %v2651 = vunpack.c.l.b16 %v2457
    %v2652 = vpack.c.b16 %v2637, %v2636
    %v2653 = vpack.c.b16 %v2639, %v2638
    %v2654 = vpack.c.b16 %v2641, %v2640
    %v2655 = vpack.c.b16 %v2643, %v2642
    %v2656 = vpack.c.b16 %v2645, %v2644
    %v2657 = vpack.c.b16 %v2647, %v2646
    %v2658 = vpack.c.b16 %v2649, %v2648
    %v2659 = vpack.c.b16 %v2651, %v2650
    %2668 = vmatprep.subr.bf16.mxu0 0
    %2669 = vmatpush1.bf16.msra.mxu0 %v2652
    %2670 = vmatprep.subr.bf16.mxu0 0
    %2671 = vmatpush1.bf16.msra.mxu0 %v2653
    %2672 = vmatprep.subr.bf16.mxu0 0
    %2673 = vmatpush1.bf16.msra.mxu0 %v2654
    %2674 = vmatprep.subr.bf16.mxu0 0
    %2675 = vmatpush1.bf16.msra.mxu0 %v2655
    %2676 = vmatprep.subr.bf16.mxu0 0
    %2677 = vmatpush1.bf16.msra.mxu0 %v2656
    %2678 = vmatprep.subr.bf16.mxu0 0
    %2679 = vmatpush1.bf16.msra.mxu0 %v2657
    %2680 = vmatprep.subr.bf16.mxu0 0
    %2681 = vmatpush1.bf16.msra.mxu0 %v2658
    %2682 = vmatprep.subr.bf16.mxu0 0
    %2683 = vmatpush1.bf16.msra.mxu0 %v2659
    %2684 = vmatprep.subr.bf16.mxu0 0
    %2685 = vmatpush1.bf16.msra.mxu0 0
    %2686 = vmatprep.subr.bf16.mxu0 0
    %2687 = vmatpush1.bf16.msra.mxu0 0
    %2688 = vmatprep.subr.bf16.mxu0 0
    %2689 = vmatpush1.bf16.msra.mxu0 0
    %2690 = vmatprep.subr.bf16.mxu0 0
    %2691 = vmatpush1.bf16.msra.mxu0 0
    %2692 = vmatprep.subr.bf16.mxu0 0
    %2693 = vmatpush1.bf16.msra.mxu0 0
    %2694 = vmatprep.subr.bf16.mxu0 0
    %2695 = vmatpush1.bf16.msra.mxu0 0
    %2696 = vmatprep.subr.bf16.mxu0 0
    %2697 = vmatpush1.bf16.msra.mxu0 0
    %2698 = vmatprep.subr.bf16.mxu0 0
    %2699 = vmatpush1.bf16.msra.mxu0 0
    %2700 = vmatprep.mubr.bf16.mxu0 0
    %2701 = vmatmul.mubr.bf16.gmra.mrb[0].mxu0 %v489
    %v2702 = vpop.f32.mrb[0].mxu0
    %v2703 = vadd.f32 %v2558, %v2702
    %v2704 = vpop.f32.mrb[0].mxu0
    %v2705 = vpop.f32.mrb[0].mxu0
    %v2706 = vadd.f32 %v2561, %v2705
    %v2707 = vpop.f32.mrb[0].mxu0
    %2708 = vmatprep.mubr.bf16.mxu0 0
    %2709 = vmatmul.mubr.bf16.gmra.mrb[0].mxu0 %v490
    %v2710 = vpop.f32.mrb[0].mxu0
    %v2711 = vadd.f32 %v2566, %v2710
    %v2712 = vpop.f32.mrb[0].mxu0
    %v2713 = vpop.f32.mrb[0].mxu0
    %v2714 = vadd.f32 %v2569, %v2713
    %v2715 = vpop.f32.mrb[0].mxu0
    %2716 = vmatprep.mubr.bf16.mxu0 0
    %2717 = vmatmul.mubr.bf16.gmra.mrb[0].mxu0 %v491
    %v2718 = vpop.f32.mrb[0].mxu0
    %v2719 = vadd.f32 %v2574, %v2718
    %v2720 = vpop.f32.mrb[0].mxu0
    %v2721 = vpop.f32.mrb[0].mxu0
    %v2722 = vadd.f32 %v2577, %v2721
    %v2723 = vpop.f32.mrb[0].mxu0
    %2724 = vmatprep.mubr.bf16.mxu0 0
    %2725 = vmatmul.mubr.bf16.gmra.mrb[0].mxu0 %v492
    %v2726 = vpop.f32.mrb[0].mxu0
    %v2727 = vadd.f32 %v2582, %v2726
    %v2728 = vpop.f32.mrb[0].mxu0
    %v2729 = vpop.f32.mrb[0].mxu0
    %v2730 = vadd.f32 %v2585, %v2729
    %v2731 = vpop.f32.mrb[0].mxu0
    %2732 = vmatprep.mubr.bf16.mxu0 0
    %2733 = vmatmul.mubr.bf16.gmra.mrb[0].mxu0 %v493
    %v2734 = vpop.f32.mrb[0].mxu0
    %v2735 = vadd.f32 %v2590, %v2734
    %v2736 = vpop.f32.mrb[0].mxu0
    %v2737 = vpop.f32.mrb[0].mxu0
    %v2738 = vadd.f32 %v2593, %v2737
    %v2739 = vpop.f32.mrb[0].mxu0
    %2740 = vmatprep.mubr.bf16.mxu0 0
    %2741 = vmatmul.mubr.bf16.gmra.mrb[0].mxu0 %v494
    %v2742 = vpop.f32.mrb[0].mxu0
    %v2743 = vadd.f32 %v2598, %v2742
    %v2744 = vpop.f32.mrb[0].mxu0
    %v2745 = vpop.f32.mrb[0].mxu0
    %v2746 = vadd.f32 %v2601, %v2745
    %v2747 = vpop.f32.mrb[0].mxu0
    %2748 = vmatprep.mubr.bf16.mxu0 0
    %2749 = vmatmul.mubr.bf16.gmra.mrb[0].mxu0 %v495
    %v2750 = vpop.f32.mrb[0].mxu0
    %v2751 = vadd.f32 %v2606, %v2750
    %v2752 = vpop.f32.mrb[0].mxu0
    %v2753 = vpop.f32.mrb[0].mxu0
    %v2754 = vadd.f32 %v2609, %v2753
    %v2755 = vpop.f32.mrb[0].mxu0
    %2756 = vmatprep.mubr.bf16.mxu0 0
    %2757 = vmatmul.mubr.bf16.gmra.mrb[0].mxu0 %v496
    %v2758 = vpop.f32.mrb[0].mxu0
    %v2759 = vadd.f32 %v2614, %v2758
    %v2760 = vpop.f32.mrb[0].mxu0
    %v2761 = vpop.f32.mrb[0].mxu0
    %v2762 = vadd.f32 %v2617, %v2761
    %v2763 = vpop.f32.mrb[0].mxu0
    %2764 = vdwg.mxu0
    %s2765 = scalar_lea.vmem %s5, 128
    %v2766 = vld [vmem:[%s2765] sm:$0xf]
    %v2767 = vld [vmem:[%s2765 + $0x4] sm:$0xf]
    %v2768 = vld [vmem:[%s2765 + $0x8] sm:$0xf]
    %v2769 = vld [vmem:[%s2765 + $0xc] sm:$0xf]
    %v2770 = vld [vmem:[%s2765 + $0x10] sm:$0xf]
    %v2771 = vld [vmem:[%s2765 + $0x14] sm:$0xf]
    %v2772 = vld [vmem:[%s2765 + $0x18] sm:$0xf]
    %v2773 = vld [vmem:[%s2765 + $0x1c] sm:$0xf]
    %v2774 = vld [vmem:[%s2765 + $0x20] sm:$0xf]
    %v2775 = vld [vmem:[%s2765 + $0x24] sm:$0xf]
    %v2776 = vld [vmem:[%s2765 + $0x28] sm:$0xf]
    %v2777 = vld [vmem:[%s2765 + $0x2c] sm:$0xf]
    %v2778 = vld [vmem:[%s2765 + $0x30] sm:$0xf]
    %v2779 = vld [vmem:[%s2765 + $0x34] sm:$0xf]
    %v2780 = vld [vmem:[%s2765 + $0x38] sm:$0xf]
    %v2781 = vld [vmem:[%s2765 + $0x3c] sm:$0xf]
    %v2798 = vunpack.c.l.b16 %v2766
    %v2799 = vunpack.c.l.b16 %v2767
    %v2800 = vunpack.c.l.b16 %v2768
    %v2801 = vunpack.c.l.b16 %v2769
    %v2802 = vunpack.c.l.b16 %v2770
    %v2803 = vunpack.c.l.b16 %v2771
    %v2804 = vunpack.c.l.b16 %v2772
    %v2805 = vunpack.c.l.b16 %v2773
    %v2806 = vunpack.c.l.b16 %v2774
    %v2807 = vunpack.c.l.b16 %v2775
    %v2808 = vunpack.c.l.b16 %v2776
    %v2809 = vunpack.c.l.b16 %v2777
    %v2810 = vunpack.c.l.b16 %v2778
    %v2811 = vunpack.c.l.b16 %v2779
    %v2812 = vunpack.c.l.b16 %v2780
    %v2813 = vunpack.c.l.b16 %v2781
    %v2814 = vpack.c.b16 %v2799, %v2798
    %v2815 = vpack.c.b16 %v2801, %v2800
    %v2816 = vpack.c.b16 %v2803, %v2802
    %v2817 = vpack.c.b16 %v2805, %v2804
    %v2818 = vpack.c.b16 %v2807, %v2806
    %v2819 = vpack.c.b16 %v2809, %v2808
    %v2820 = vpack.c.b16 %v2811, %v2810
    %v2821 = vpack.c.b16 %v2813, %v2812
    %2830 = vmatprep.subr.bf16.mxu0 0
    %2831 = vmatpush1.bf16.msra.mxu0 %v2814
    %2832 = vmatprep.subr.bf16.mxu0 0
    %2833 = vmatpush1.bf16.msra.mxu0 %v2815
    %2834 = vmatprep.subr.bf16.mxu0 0
    %2835 = vmatpush1.bf16.msra.mxu0 %v2816
    %2836 = vmatprep.subr.bf16.mxu0 0
    %2837 = vmatpush1.bf16.msra.mxu0 %v2817
    %2838 = vmatprep.subr.bf16.mxu0 0
    %2839 = vmatpush1.bf16.msra.mxu0 %v2818
    %2840 = vmatprep.subr.bf16.mxu0 0
    %2841 = vmatpush1.bf16.msra.mxu0 %v2819
    %2842 = vmatprep.subr.bf16.mxu0 0
    %2843 = vmatpush1.bf16.msra.mxu0 %v2820
    %2844 = vmatprep.subr.bf16.mxu0 0
    %2845 = vmatpush1.bf16.msra.mxu0 %v2821
    %2846 = vmatprep.subr.bf16.mxu0 0
    %2847 = vmatpush1.bf16.msra.mxu0 0
    %2848 = vmatprep.subr.bf16.mxu0 0
    %2849 = vmatpush1.bf16.msra.mxu0 0
    %2850 = vmatprep.subr.bf16.mxu0 0
    %2851 = vmatpush1.bf16.msra.mxu0 0
    %2852 = vmatprep.subr.bf16.mxu0 0
    %2853 = vmatpush1.bf16.msra.mxu0 0
    %2854 = vmatprep.subr.bf16.mxu0 0
    %2855 = vmatpush1.bf16.msra.mxu0 0
    %2856 = vmatprep.subr.bf16.mxu0 0
    %2857 = vmatpush1.bf16.msra.mxu0 0
    %2858 = vmatprep.subr.bf16.mxu0 0
    %2859 = vmatpush1.bf16.msra.mxu0 0
    %2860 = vmatprep.subr.bf16.mxu0 0
    %2861 = vmatpush1.bf16.msra.mxu0 0
    %2862 = vmatprep.mubr.bf16.mxu0 0
    %2863 = vmatmul.mubr.bf16.gmra.mrb[0].mxu0 %v925
    %v2864 = vpop.f32.mrb[0].mxu0
    %v2865 = vadd.f32 0.0, %v2864
    %v2866 = vpop.f32.mrb[0].mxu0
    %v2867 = vpop.f32.mrb[0].mxu0
    %v2868 = vadd.f32 0.0, %v2867
    %v2869 = vpop.f32.mrb[0].mxu0
    %2870 = vmatprep.mubr.bf16.mxu0 0
    %2871 = vmatmul.mubr.bf16.gmra.mrb[0].mxu0 %v926
    %v2872 = vpop.f32.mrb[0].mxu0
    %v2873 = vadd.f32 0.0, %v2872
    %v2874 = vpop.f32.mrb[0].mxu0
    %v2875 = vpop.f32.mrb[0].mxu0
    %v2876 = vadd.f32 0.0, %v2875
    %v2877 = vpop.f32.mrb[0].mxu0
    %2878 = vmatprep.mubr.bf16.mxu0 0
    %2879 = vmatmul.mubr.bf16.gmra.mrb[0].mxu0 %v927
    %v2880 = vpop.f32.mrb[0].mxu0
    %v2881 = vadd.f32 0.0, %v2880
    %v2882 = vpop.f32.mrb[0].mxu0
    %v2883 = vpop.f32.mrb[0].mxu0
    %v2884 = vadd.f32 0.0, %v2883
    %v2885 = vpop.f32.mrb[0].mxu0
    %2886 = vmatprep.mubr.bf16.mxu0 0
    %2887 = vmatmul.mubr.bf16.gmra.mrb[0].mxu0 %v928
    %v2888 = vpop.f32.mrb[0].mxu0
    %v2889 = vadd.f32 0.0, %v2888
    %v2890 = vpop.f32.mrb[0].mxu0
    %v2891 = vpop.f32.mrb[0].mxu0
    %v2892 = vadd.f32 0.0, %v2891
    %v2893 = vpop.f32.mrb[0].mxu0
    %2894 = vmatprep.mubr.bf16.mxu0 0
    %2895 = vmatmul.mubr.bf16.gmra.mrb[0].mxu0 %v929
    %v2896 = vpop.f32.mrb[0].mxu0
    %v2897 = vadd.f32 0.0, %v2896
    %v2898 = vpop.f32.mrb[0].mxu0
    %v2899 = vpop.f32.mrb[0].mxu0
    %v2900 = vadd.f32 0.0, %v2899
    %v2901 = vpop.f32.mrb[0].mxu0
    %2902 = vmatprep.mubr.bf16.mxu0 0
    %2903 = vmatmul.mubr.bf16.gmra.mrb[0].mxu0 %v930
    %v2904 = vpop.f32.mrb[0].mxu0
    %v2905 = vadd.f32 0.0, %v2904
    %v2906 = vpop.f32.mrb[0].mxu0
    %v2907 = vpop.f32.mrb[0].mxu0
    %v2908 = vadd.f32 0.0, %v2907
    %v2909 = vpop.f32.mrb[0].mxu0
    %2910 = vmatprep.mubr.bf16.mxu0 0
    %2911 = vmatmul.mubr.bf16.gmra.mrb[0].mxu0 %v931
    %v2912 = vpop.f32.mrb[0].mxu0
    %v2913 = vadd.f32 0.0, %v2912
    %v2914 = vpop.f32.mrb[0].mxu0
    %v2915 = vpop.f32.mrb[0].mxu0
    %v2916 = vadd.f32 0.0, %v2915
    %v2917 = vpop.f32.mrb[0].mxu0
    %2918 = vmatprep.mubr.bf16.mxu0 0
    %2919 = vmatmul.mubr.bf16.gmra.mrb[0].mxu0 %v932
    %v2920 = vpop.f32.mrb[0].mxu0
    %v2921 = vadd.f32 0.0, %v2920
    %v2922 = vpop.f32.mrb[0].mxu0
    %v2923 = vpop.f32.mrb[0].mxu0
    %v2924 = vadd.f32 0.0, %v2923
    %v2925 = vpop.f32.mrb[0].mxu0
    %2926 = vdwg.mxu0
    %v2927 = vadd.f32 %v2703, %v2865
    %v2928 = vadd.f32 %v2706, %v2868
    %v2929 = vadd.f32 %v2711, %v2873
    %v2930 = vadd.f32 %v2714, %v2876
    %v2931 = vadd.f32 %v2719, %v2881
    %v2932 = vadd.f32 %v2722, %v2884
    %v2933 = vadd.f32 %v2727, %v2889
    %v2934 = vadd.f32 %v2730, %v2892
    %v2935 = vadd.f32 %v2735, %v2897
    %v2936 = vadd.f32 %v2738, %v2900
    %v2937 = vadd.f32 %v2743, %v2905
    %v2938 = vadd.f32 %v2746, %v2908
    %v2939 = vadd.f32 %v2751, %v2913
    %v2940 = vadd.f32 %v2754, %v2916
    %v2941 = vadd.f32 %v2759, %v2921
    %v2942 = vadd.f32 %v2762, %v2924
    %s2943 = scalar_lea.vmem %s5, 192
    %v2944 = vld [vmem:[%s2943] sm:$0xf]
    %v2945 = vld [vmem:[%s2943 + $0x4] sm:$0xf]
    %v2946 = vld [vmem:[%s2943 + $0x8] sm:$0xf]
    %v2947 = vld [vmem:[%s2943 + $0xc] sm:$0xf]
    %v2948 = vld [vmem:[%s2943 + $0x10] sm:$0xf]
    %v2949 = vld [vmem:[%s2943 + $0x14] sm:$0xf]
    %v2950 = vld [vmem:[%s2943 + $0x18] sm:$0xf]
    %v2951 = vld [vmem:[%s2943 + $0x1c] sm:$0xf]
    %v2952 = vld [vmem:[%s2943 + $0x20] sm:$0xf]
    %v2953 = vld [vmem:[%s2943 + $0x24] sm:$0xf]
    %v2954 = vld [vmem:[%s2943 + $0x28] sm:$0xf]
    %v2955 = vld [vmem:[%s2943 + $0x2c] sm:$0xf]
    %v2956 = vld [vmem:[%s2943 + $0x30] sm:$0xf]
    %v2957 = vld [vmem:[%s2943 + $0x34] sm:$0xf]
    %v2958 = vld [vmem:[%s2943 + $0x38] sm:$0xf]
    %v2959 = vld [vmem:[%s2943 + $0x3c] sm:$0xf]
    %v2976 = vunpack.c.l.b16 %v2944
    %v2977 = vunpack.c.l.b16 %v2945
    %v2978 = vunpack.c.l.b16 %v2946
    %v2979 = vunpack.c.l.b16 %v2947
    %v2980 = vunpack.c.l.b16 %v2948
    %v2981 = vunpack.c.l.b16 %v2949
    %v2982 = vunpack.c.l.b16 %v2950
    %v2983 = vunpack.c.l.b16 %v2951
    %v2984 = vunpack.c.l.b16 %v2952
    %v2985 = vunpack.c.l.b16 %v2953
    %v2986 = vunpack.c.l.b16 %v2954
    %v2987 = vunpack.c.l.b16 %v2955
    %v2988 = vunpack.c.l.b16 %v2956
    %v2989 = vunpack.c.l.b16 %v2957
    %v2990 = vunpack.c.l.b16 %v2958
    %v2991 = vunpack.c.l.b16 %v2959
    %v2992 = vpack.c.b16 %v2977, %v2976
    %v2993 = vpack.c.b16 %v2979, %v2978
    %v2994 = vpack.c.b16 %v2981, %v2980
    %v2995 = vpack.c.b16 %v2983, %v2982
    %v2996 = vpack.c.b16 %v2985, %v2984
    %v2997 = vpack.c.b16 %v2987, %v2986
    %v2998 = vpack.c.b16 %v2989, %v2988
    %v2999 = vpack.c.b16 %v2991, %v2990
    %3008 = vmatprep.subr.bf16.mxu0 0
    %3009 = vmatpush1.bf16.msra.mxu0 %v2992
    %3010 = vmatprep.subr.bf16.mxu0 0
    %3011 = vmatpush1.bf16.msra.mxu0 %v2993
    %3012 = vmatprep.subr.bf16.mxu0 0
    %3013 = vmatpush1.bf16.msra.mxu0 %v2994
    %3014 = vmatprep.subr.bf16.mxu0 0
    %3015 = vmatpush1.bf16.msra.mxu0 %v2995
    %3016 = vmatprep.subr.bf16.mxu0 0
    %3017 = vmatpush1.bf16.msra.mxu0 %v2996
    %3018 = vmatprep.subr.bf16.mxu0 0
    %3019 = vmatpush1.bf16.msra.mxu0 %v2997
    %3020 = vmatprep.subr.bf16.mxu0 0
    %3021 = vmatpush1.bf16.msra.mxu0 %v2998
    %3022 = vmatprep.subr.bf16.mxu0 0
    %3023 = vmatpush1.bf16.msra.mxu0 %v2999
    %3024 = vmatprep.subr.bf16.mxu0 0
    %3025 = vmatpush1.bf16.msra.mxu0 0
    %3026 = vmatprep.subr.bf16.mxu0 0
    %3027 = vmatpush1.bf16.msra.mxu0 0
    %3028 = vmatprep.subr.bf16.mxu0 0
    %3029 = vmatpush1.bf16.msra.mxu0 0
    %3030 = vmatprep.subr.bf16.mxu0 0
    %3031 = vmatpush1.bf16.msra.mxu0 0
    %3032 = vmatprep.subr.bf16.mxu0 0
    %3033 = vmatpush1.bf16.msra.mxu0 0
    %3034 = vmatprep.subr.bf16.mxu0 0
    %3035 = vmatpush1.bf16.msra.mxu0 0
    %3036 = vmatprep.subr.bf16.mxu0 0
    %3037 = vmatpush1.bf16.msra.mxu0 0
    %3038 = vmatprep.subr.bf16.mxu0 0
    %3039 = vmatpush1.bf16.msra.mxu0 0
    %3040 = vmatprep.mubr.bf16.mxu0 0
    %3041 = vmatmul.mubr.bf16.gmra.mrb[0].mxu0 %v1127
    %v3042 = vpop.f32.mrb[0].mxu0
    %v3043 = vadd.f32 0.0, %v3042
    %v3044 = vpop.f32.mrb[0].mxu0
    %v3045 = vpop.f32.mrb[0].mxu0
    %v3046 = vadd.f32 0.0, %v3045
    %v3047 = vpop.f32.mrb[0].mxu0
    %3048 = vmatprep.mubr.bf16.mxu0 0
    %3049 = vmatmul.mubr.bf16.gmra.mrb[0].mxu0 %v1128
    %v3050 = vpop.f32.mrb[0].mxu0
    %v3051 = vadd.f32 0.0, %v3050
    %v3052 = vpop.f32.mrb[0].mxu0
    %v3053 = vpop.f32.mrb[0].mxu0
    %v3054 = vadd.f32 0.0, %v3053
    %v3055 = vpop.f32.mrb[0].mxu0
    %3056 = vmatprep.mubr.bf16.mxu0 0
    %3057 = vmatmul.mubr.bf16.gmra.mrb[0].mxu0 %v1129
    %v3058 = vpop.f32.mrb[0].mxu0
    %v3059 = vadd.f32 0.0, %v3058
    %v3060 = vpop.f32.mrb[0].mxu0
    %v3061 = vpop.f32.mrb[0].mxu0
    %v3062 = vadd.f32 0.0, %v3061
    %v3063 = vpop.f32.mrb[0].mxu0
    %3064 = vmatprep.mubr.bf16.mxu0 0
    %3065 = vmatmul.mubr.bf16.gmra.mrb[0].mxu0 %v1130
    %v3066 = vpop.f32.mrb[0].mxu0
    %v3067 = vadd.f32 0.0, %v3066
    %v3068 = vpop.f32.mrb[0].mxu0
    %v3069 = vpop.f32.mrb[0].mxu0
    %v3070 = vadd.f32 0.0, %v3069
    %v3071 = vpop.f32.mrb[0].mxu0
    %3072 = vmatprep.mubr.bf16.mxu0 0
    %3073 = vmatmul.mubr.bf16.gmra.mrb[0].mxu0 %v1131
    %v3074 = vpop.f32.mrb[0].mxu0
    %v3075 = vadd.f32 0.0, %v3074
    %v3076 = vpop.f32.mrb[0].mxu0
    %v3077 = vpop.f32.mrb[0].mxu0
    %v3078 = vadd.f32 0.0, %v3077
    %v3079 = vpop.f32.mrb[0].mxu0
    %3080 = vmatprep.mubr.bf16.mxu0 0
    %3081 = vmatmul.mubr.bf16.gmra.mrb[0].mxu0 %v1132
    %v3082 = vpop.f32.mrb[0].mxu0
    %v3083 = vadd.f32 0.0, %v3082
    %v3084 = vpop.f32.mrb[0].mxu0
    %v3085 = vpop.f32.mrb[0].mxu0
    %v3086 = vadd.f32 0.0, %v3085
    %v3087 = vpop.f32.mrb[0].mxu0
    %3088 = vmatprep.mubr.bf16.mxu0 0
    %3089 = vmatmul.mubr.bf16.gmra.mrb[0].mxu0 %v1133
    %v3090 = vpop.f32.mrb[0].mxu0
    %v3091 = vadd.f32 0.0, %v3090
    %v3092 = vpop.f32.mrb[0].mxu0
    %v3093 = vpop.f32.mrb[0].mxu0
    %v3094 = vadd.f32 0.0, %v3093
    %v3095 = vpop.f32.mrb[0].mxu0
    %3096 = vmatprep.mubr.bf16.mxu0 0
    %3097 = vmatmul.mubr.bf16.gmra.mrb[0].mxu0 %v1134
    %v3098 = vpop.f32.mrb[0].mxu0
    %v3099 = vadd.f32 0.0, %v3098
    %v3100 = vpop.f32.mrb[0].mxu0
    %v3101 = vpop.f32.mrb[0].mxu0
    %v3102 = vadd.f32 0.0, %v3101
    %v3103 = vpop.f32.mrb[0].mxu0
    %3104 = vdwg.mxu0
    %v3105 = vadd.f32 %v2927, %v3043
    %v3106 = vadd.f32 %v2928, %v3046
    %v3107 = vadd.f32 %v2929, %v3051
    %v3108 = vadd.f32 %v2930, %v3054
    %v3109 = vadd.f32 %v2931, %v3059
    %v3110 = vadd.f32 %v2932, %v3062
    %v3111 = vadd.f32 %v2933, %v3067
    %v3112 = vadd.f32 %v2934, %v3070
    %v3113 = vadd.f32 %v2935, %v3075
    %v3114 = vadd.f32 %v2936, %v3078
    %v3115 = vadd.f32 %v2937, %v3083
    %v3116 = vadd.f32 %v2938, %v3086
    %v3117 = vadd.f32 %v2939, %v3091
    %v3118 = vadd.f32 %v2940, %v3094
    %v3119 = vadd.f32 %v2941, %v3099
    %v3120 = vadd.f32 %v2942, %v3102
    %s3121 = scalar_lea.vmem %s5, 256
    %v3122 = vld [vmem:[%s3121] sm:$0xf]
    %v3123 = vld [vmem:[%s3121 + $0x4] sm:$0xf]
    %v3124 = vld [vmem:[%s3121 + $0x8] sm:$0xf]
    %v3125 = vld [vmem:[%s3121 + $0xc] sm:$0xf]
    %v3126 = vld [vmem:[%s3121 + $0x10] sm:$0xf]
    %v3127 = vld [vmem:[%s3121 + $0x14] sm:$0xf]
    %v3128 = vld [vmem:[%s3121 + $0x18] sm:$0xf]
    %v3129 = vld [vmem:[%s3121 + $0x1c] sm:$0xf]
    %v3130 = vld [vmem:[%s3121 + $0x20] sm:$0xf]
    %v3131 = vld [vmem:[%s3121 + $0x24] sm:$0xf]
    %v3132 = vld [vmem:[%s3121 + $0x28] sm:$0xf]
    %v3133 = vld [vmem:[%s3121 + $0x2c] sm:$0xf]
    %v3134 = vld [vmem:[%s3121 + $0x30] sm:$0xf]
    %v3135 = vld [vmem:[%s3121 + $0x34] sm:$0xf]
    %v3136 = vld [vmem:[%s3121 + $0x38] sm:$0xf]
    %v3137 = vld [vmem:[%s3121 + $0x3c] sm:$0xf]
    %v3154 = vunpack.c.l.b16 %v3122
    %v3155 = vunpack.c.l.b16 %v3123
    %v3156 = vunpack.c.l.b16 %v3124
    %v3157 = vunpack.c.l.b16 %v3125
    %v3158 = vunpack.c.l.b16 %v3126
    %v3159 = vunpack.c.l.b16 %v3127
    %v3160 = vunpack.c.l.b16 %v3128
    %v3161 = vunpack.c.l.b16 %v3129
    %v3162 = vunpack.c.l.b16 %v3130
    %v3163 = vunpack.c.l.b16 %v3131
    %v3164 = vunpack.c.l.b16 %v3132
    %v3165 = vunpack.c.l.b16 %v3133
    %v3166 = vunpack.c.l.b16 %v3134
    %v3167 = vunpack.c.l.b16 %v3135
    %v3168 = vunpack.c.l.b16 %v3136
    %v3169 = vunpack.c.l.b16 %v3137
    %v3170 = vpack.c.b16 %v3155, %v3154
    %v3171 = vpack.c.b16 %v3157, %v3156
    %v3172 = vpack.c.b16 %v3159, %v3158
    %v3173 = vpack.c.b16 %v3161, %v3160
    %v3174 = vpack.c.b16 %v3163, %v3162
    %v3175 = vpack.c.b16 %v3165, %v3164
    %v3176 = vpack.c.b16 %v3167, %v3166
    %v3177 = vpack.c.b16 %v3169, %v3168
    %3186 = vmatprep.subr.bf16.mxu0 0
    %3187 = vmatpush1.bf16.msra.mxu0 %v3170
    %3188 = vmatprep.subr.bf16.mxu0 0
    %3189 = vmatpush1.bf16.msra.mxu0 %v3171
    %3190 = vmatprep.subr.bf16.mxu0 0
    %3191 = vmatpush1.bf16.msra.mxu0 %v3172
    %3192 = vmatprep.subr.bf16.mxu0 0
    %3193 = vmatpush1.bf16.msra.mxu0 %v3173
    %3194 = vmatprep.subr.bf16.mxu0 0
    %3195 = vmatpush1.bf16.msra.mxu0 %v3174
    %3196 = vmatprep.subr.bf16.mxu0 0
    %3197 = vmatpush1.bf16.msra.mxu0 %v3175
    %3198 = vmatprep.subr.bf16.mxu0 0
    %3199 = vmatpush1.bf16.msra.mxu0 %v3176
    %3200 = vmatprep.subr.bf16.mxu0 0
    %3201 = vmatpush1.bf16.msra.mxu0 %v3177
    %3202 = vmatprep.subr.bf16.mxu0 0
    %3203 = vmatpush1.bf16.msra.mxu0 0
    %3204 = vmatprep.subr.bf16.mxu0 0
    %3205 = vmatpush1.bf16.msra.mxu0 0
    %3206 = vmatprep.subr.bf16.mxu0 0
    %3207 = vmatpush1.bf16.msra.mxu0 0
    %3208 = vmatprep.subr.bf16.mxu0 0
    %3209 = vmatpush1.bf16.msra.mxu0 0
    %3210 = vmatprep.subr.bf16.mxu0 0
    %3211 = vmatpush1.bf16.msra.mxu0 0
    %3212 = vmatprep.subr.bf16.mxu0 0
    %3213 = vmatpush1.bf16.msra.mxu0 0
    %3214 = vmatprep.subr.bf16.mxu0 0
    %3215 = vmatpush1.bf16.msra.mxu0 0
    %3216 = vmatprep.subr.bf16.mxu0 0
    %3217 = vmatpush1.bf16.msra.mxu0 0
    %3218 = vmatprep.mubr.bf16.mxu0 0
    %3219 = vmatmul.mubr.bf16.gmra.mrb[0].mxu0 %v1313
    %v3220 = vpop.f32.mrb[0].mxu0
    %v3221 = vadd.f32 0.0, %v3220
    %v3222 = vpop.f32.mrb[0].mxu0
    %v3223 = vpop.f32.mrb[0].mxu0
    %v3224 = vadd.f32 0.0, %v3223
    %v3225 = vpop.f32.mrb[0].mxu0
    %3226 = vmatprep.mubr.bf16.mxu0 0
    %3227 = vmatmul.mubr.bf16.gmra.mrb[0].mxu0 %v1314
    %v3228 = vpop.f32.mrb[0].mxu0
    %v3229 = vadd.f32 0.0, %v3228
    %v3230 = vpop.f32.mrb[0].mxu0
    %v3231 = vpop.f32.mrb[0].mxu0
    %v3232 = vadd.f32 0.0, %v3231
    %v3233 = vpop.f32.mrb[0].mxu0
    %3234 = vmatprep.mubr.bf16.mxu0 0
    %3235 = vmatmul.mubr.bf16.gmra.mrb[0].mxu0 %v1315
    %v3236 = vpop.f32.mrb[0].mxu0
    %v3237 = vadd.f32 0.0, %v3236
    %v3238 = vpop.f32.mrb[0].mxu0
    %v3239 = vpop.f32.mrb[0].mxu0
    %v3240 = vadd.f32 0.0, %v3239
    %v3241 = vpop.f32.mrb[0].mxu0
    %3242 = vmatprep.mubr.bf16.mxu0 0
    %3243 = vmatmul.mubr.bf16.gmra.mrb[0].mxu0 %v1316
    %v3244 = vpop.f32.mrb[0].mxu0
    %v3245 = vadd.f32 0.0, %v3244
    %v3246 = vpop.f32.mrb[0].mxu0
    %v3247 = vpop.f32.mrb[0].mxu0
    %v3248 = vadd.f32 0.0, %v3247
    %v3249 = vpop.f32.mrb[0].mxu0
    %3250 = vmatprep.mubr.bf16.mxu0 0
    %3251 = vmatmul.mubr.bf16.gmra.mrb[0].mxu0 %v1317
    %v3252 = vpop.f32.mrb[0].mxu0
    %v3253 = vadd.f32 0.0, %v3252
    %v3254 = vpop.f32.mrb[0].mxu0
    %v3255 = vpop.f32.mrb[0].mxu0
    %v3256 = vadd.f32 0.0, %v3255
    %v3257 = vpop.f32.mrb[0].mxu0
    %3258 = vmatprep.mubr.bf16.mxu0 0
    %3259 = vmatmul.mubr.bf16.gmra.mrb[0].mxu0 %v1318
    %v3260 = vpop.f32.mrb[0].mxu0
    %v3261 = vadd.f32 0.0, %v3260
    %v3262 = vpop.f32.mrb[0].mxu0
    %v3263 = vpop.f32.mrb[0].mxu0
    %v3264 = vadd.f32 0.0, %v3263
    %v3265 = vpop.f32.mrb[0].mxu0
    %3266 = vmatprep.mubr.bf16.mxu0 0
    %3267 = vmatmul.mubr.bf16.gmra.mrb[0].mxu0 %v1319
    %v3268 = vpop.f32.mrb[0].mxu0
    %v3269 = vadd.f32 0.0, %v3268
    %v3270 = vpop.f32.mrb[0].mxu0
    %v3271 = vpop.f32.mrb[0].mxu0
    %v3272 = vadd.f32 0.0, %v3271
    %v3273 = vpop.f32.mrb[0].mxu0
    %3274 = vmatprep.mubr.bf16.mxu0 0
    %3275 = vmatmul.mubr.bf16.gmra.mrb[0].mxu0 %v1320
    %v3276 = vpop.f32.mrb[0].mxu0
    %v3277 = vadd.f32 0.0, %v3276
    %v3278 = vpop.f32.mrb[0].mxu0
    %v3279 = vpop.f32.mrb[0].mxu0
    %v3280 = vadd.f32 0.0, %v3279
    %v3281 = vpop.f32.mrb[0].mxu0
    %3282 = vdwg.mxu0
    %v3283 = vadd.f32 %v3105, %v3221
    %v3284 = vadd.f32 %v3106, %v3224
    %v3285 = vadd.f32 %v3107, %v3229
    %v3286 = vadd.f32 %v3108, %v3232
    %v3287 = vadd.f32 %v3109, %v3237
    %v3288 = vadd.f32 %v3110, %v3240
    %v3289 = vadd.f32 %v3111, %v3245
    %v3290 = vadd.f32 %v3112, %v3248
    %v3291 = vadd.f32 %v3113, %v3253
    %v3292 = vadd.f32 %v3114, %v3256
    %v3293 = vadd.f32 %v3115, %v3261
    %v3294 = vadd.f32 %v3116, %v3264
    %v3295 = vadd.f32 %v3117, %v3269
    %v3296 = vadd.f32 %v3118, %v3272
    %v3297 = vadd.f32 %v3119, %v3277
    %v3298 = vadd.f32 %v3120, %v3280
    %s3299 = scalar_lea.vmem %s5, 320
    %v3300 = vld [vmem:[%s3299] sm:$0xf]
    %v3301 = vld [vmem:[%s3299 + $0x4] sm:$0xf]
    %v3302 = vld [vmem:[%s3299 + $0x8] sm:$0xf]
    %v3303 = vld [vmem:[%s3299 + $0xc] sm:$0xf]
    %v3304 = vld [vmem:[%s3299 + $0x10] sm:$0xf]
    %v3305 = vld [vmem:[%s3299 + $0x14] sm:$0xf]
    %v3306 = vld [vmem:[%s3299 + $0x18] sm:$0xf]
    %v3307 = vld [vmem:[%s3299 + $0x1c] sm:$0xf]
    %v3308 = vld [vmem:[%s3299 + $0x20] sm:$0xf]
    %v3309 = vld [vmem:[%s3299 + $0x24] sm:$0xf]
    %v3310 = vld [vmem:[%s3299 + $0x28] sm:$0xf]
    %v3311 = vld [vmem:[%s3299 + $0x2c] sm:$0xf]
    %v3312 = vld [vmem:[%s3299 + $0x30] sm:$0xf]
    %v3313 = vld [vmem:[%s3299 + $0x34] sm:$0xf]
    %v3314 = vld [vmem:[%s3299 + $0x38] sm:$0xf]
    %v3315 = vld [vmem:[%s3299 + $0x3c] sm:$0xf]
    %v3332 = vunpack.c.l.b16 %v3300
    %v3333 = vunpack.c.l.b16 %v3301
    %v3334 = vunpack.c.l.b16 %v3302
    %v3335 = vunpack.c.l.b16 %v3303
    %v3336 = vunpack.c.l.b16 %v3304
    %v3337 = vunpack.c.l.b16 %v3305
    %v3338 = vunpack.c.l.b16 %v3306
    %v3339 = vunpack.c.l.b16 %v3307
    %v3340 = vunpack.c.l.b16 %v3308
    %v3341 = vunpack.c.l.b16 %v3309
    %v3342 = vunpack.c.l.b16 %v3310
    %v3343 = vunpack.c.l.b16 %v3311
    %v3344 = vunpack.c.l.b16 %v3312
    %v3345 = vunpack.c.l.b16 %v3313
    %v3346 = vunpack.c.l.b16 %v3314
    %v3347 = vunpack.c.l.b16 %v3315
    %v3348 = vpack.c.b16 %v3333, %v3332
    %v3349 = vpack.c.b16 %v3335, %v3334
    %v3350 = vpack.c.b16 %v3337, %v3336
    %v3351 = vpack.c.b16 %v3339, %v3338
    %v3352 = vpack.c.b16 %v3341, %v3340
    %v3353 = vpack.c.b16 %v3343, %v3342
    %v3354 = vpack.c.b16 %v3345, %v3344
    %v3355 = vpack.c.b16 %v3347, %v3346
    %3364 = vmatprep.subr.bf16.mxu0 0
    %3365 = vmatpush1.bf16.msra.mxu0 %v3348
    %3366 = vmatprep.subr.bf16.mxu0 0
    %3367 = vmatpush1.bf16.msra.mxu0 %v3349
    %3368 = vmatprep.subr.bf16.mxu0 0
    %3369 = vmatpush1.bf16.msra.mxu0 %v3350
    %3370 = vmatprep.subr.bf16.mxu0 0
    %3371 = vmatpush1.bf16.msra.mxu0 %v3351
    %3372 = vmatprep.subr.bf16.mxu0 0
    %3373 = vmatpush1.bf16.msra.mxu0 %v3352
    %3374 = vmatprep.subr.bf16.mxu0 0
    %3375 = vmatpush1.bf16.msra.mxu0 %v3353
    %3376 = vmatprep.subr.bf16.mxu0 0
    %3377 = vmatpush1.bf16.msra.mxu0 %v3354
    %3378 = vmatprep.subr.bf16.mxu0 0
    %3379 = vmatpush1.bf16.msra.mxu0 %v3355
    %3380 = vmatprep.subr.bf16.mxu0 0
    %3381 = vmatpush1.bf16.msra.mxu0 0
    %3382 = vmatprep.subr.bf16.mxu0 0
    %3383 = vmatpush1.bf16.msra.mxu0 0
    %3384 = vmatprep.subr.bf16.mxu0 0
    %3385 = vmatpush1.bf16.msra.mxu0 0
    %3386 = vmatprep.subr.bf16.mxu0 0
    %3387 = vmatpush1.bf16.msra.mxu0 0
    %3388 = vmatprep.subr.bf16.mxu0 0
    %3389 = vmatpush1.bf16.msra.mxu0 0
    %3390 = vmatprep.subr.bf16.mxu0 0
    %3391 = vmatpush1.bf16.msra.mxu0 0
    %3392 = vmatprep.subr.bf16.mxu0 0
    %3393 = vmatpush1.bf16.msra.mxu0 0
    %3394 = vmatprep.subr.bf16.mxu0 0
    %3395 = vmatpush1.bf16.msra.mxu0 0
    %3396 = vmatprep.mubr.bf16.mxu0 0
    %3397 = vmatmul.mubr.bf16.gmra.mrb[0].mxu0 %v1515
    %v3398 = vpop.f32.mrb[0].mxu0
    %v3399 = vadd.f32 0.0, %v3398
    %v3400 = vpop.f32.mrb[0].mxu0
    %v3401 = vpop.f32.mrb[0].mxu0
    %v3402 = vadd.f32 0.0, %v3401
    %v3403 = vpop.f32.mrb[0].mxu0
    %3404 = vmatprep.mubr.bf16.mxu0 0
    %3405 = vmatmul.mubr.bf16.gmra.mrb[0].mxu0 %v1516
    %v3406 = vpop.f32.mrb[0].mxu0
    %v3407 = vadd.f32 0.0, %v3406
    %v3408 = vpop.f32.mrb[0].mxu0
    %v3409 = vpop.f32.mrb[0].mxu0
    %v3410 = vadd.f32 0.0, %v3409
    %v3411 = vpop.f32.mrb[0].mxu0
    %3412 = vmatprep.mubr.bf16.mxu0 0
    %3413 = vmatmul.mubr.bf16.gmra.mrb[0].mxu0 %v1517
    %v3414 = vpop.f32.mrb[0].mxu0
    %v3415 = vadd.f32 0.0, %v3414
    %v3416 = vpop.f32.mrb[0].mxu0
    %v3417 = vpop.f32.mrb[0].mxu0
    %v3418 = vadd.f32 0.0, %v3417
    %v3419 = vpop.f32.mrb[0].mxu0
    %3420 = vmatprep.mubr.bf16.mxu0 0
    %3421 = vmatmul.mubr.bf16.gmra.mrb[0].mxu0 %v1518
    %v3422 = vpop.f32.mrb[0].mxu0
    %v3423 = vadd.f32 0.0, %v3422
    %v3424 = vpop.f32.mrb[0].mxu0
    %v3425 = vpop.f32.mrb[0].mxu0
    %v3426 = vadd.f32 0.0, %v3425
    %v3427 = vpop.f32.mrb[0].mxu0
    %3428 = vmatprep.mubr.bf16.mxu0 0
    %3429 = vmatmul.mubr.bf16.gmra.mrb[0].mxu0 %v1519
    %v3430 = vpop.f32.mrb[0].mxu0
    %v3431 = vadd.f32 0.0, %v3430
    %v3432 = vpop.f32.mrb[0].mxu0
    %v3433 = vpop.f32.mrb[0].mxu0
    %v3434 = vadd.f32 0.0, %v3433
    %v3435 = vpop.f32.mrb[0].mxu0
    %3436 = vmatprep.mubr.bf16.mxu0 0
    %3437 = vmatmul.mubr.bf16.gmra.mrb[0].mxu0 %v1520
    %v3438 = vpop.f32.mrb[0].mxu0
    %v3439 = vadd.f32 0.0, %v3438
    %v3440 = vpop.f32.mrb[0].mxu0
    %v3441 = vpop.f32.mrb[0].mxu0
    %v3442 = vadd.f32 0.0, %v3441
    %v3443 = vpop.f32.mrb[0].mxu0
    %3444 = vmatprep.mubr.bf16.mxu0 0
    %3445 = vmatmul.mubr.bf16.gmra.mrb[0].mxu0 %v1521
    %v3446 = vpop.f32.mrb[0].mxu0
    %v3447 = vadd.f32 0.0, %v3446
    %v3448 = vpop.f32.mrb[0].mxu0
    %v3449 = vpop.f32.mrb[0].mxu0
    %v3450 = vadd.f32 0.0, %v3449
    %v3451 = vpop.f32.mrb[0].mxu0
    %3452 = vmatprep.mubr.bf16.mxu0 0
    %3453 = vmatmul.mubr.bf16.gmra.mrb[0].mxu0 %v1522
    %v3454 = vpop.f32.mrb[0].mxu0
    %v3455 = vadd.f32 0.0, %v3454
    %v3456 = vpop.f32.mrb[0].mxu0
    %v3457 = vpop.f32.mrb[0].mxu0
    %v3458 = vadd.f32 0.0, %v3457
    %v3459 = vpop.f32.mrb[0].mxu0
    %3460 = vdwg.mxu0
    %v3461 = vadd.f32 %v3283, %v3399
    %v3462 = vadd.f32 %v3284, %v3402
    %v3463 = vadd.f32 %v3285, %v3407
    %v3464 = vadd.f32 %v3286, %v3410
    %v3465 = vadd.f32 %v3287, %v3415
    %v3466 = vadd.f32 %v3288, %v3418
    %v3467 = vadd.f32 %v3289, %v3423
    %v3468 = vadd.f32 %v3290, %v3426
    %v3469 = vadd.f32 %v3291, %v3431
    %v3470 = vadd.f32 %v3292, %v3434
    %v3471 = vadd.f32 %v3293, %v3439
    %v3472 = vadd.f32 %v3294, %v3442
    %v3473 = vadd.f32 %v3295, %v3447
    %v3474 = vadd.f32 %v3296, %v3450
    %v3475 = vadd.f32 %v3297, %v3455
    %v3476 = vadd.f32 %v3298, %v3458
    %s3477 = scalar_lea.vmem %s5, 384
    %v3478 = vld [vmem:[%s3477] sm:$0xf]
    %v3479 = vld [vmem:[%s3477 + $0x4] sm:$0xf]
    %v3480 = vld [vmem:[%s3477 + $0x8] sm:$0xf]
    %v3481 = vld [vmem:[%s3477 + $0xc] sm:$0xf]
    %v3482 = vld [vmem:[%s3477 + $0x10] sm:$0xf]
    %v3483 = vld [vmem:[%s3477 + $0x14] sm:$0xf]
    %v3484 = vld [vmem:[%s3477 + $0x18] sm:$0xf]
    %v3485 = vld [vmem:[%s3477 + $0x1c] sm:$0xf]
    %v3486 = vld [vmem:[%s3477 + $0x20] sm:$0xf]
    %v3487 = vld [vmem:[%s3477 + $0x24] sm:$0xf]
    %v3488 = vld [vmem:[%s3477 + $0x28] sm:$0xf]
    %v3489 = vld [vmem:[%s3477 + $0x2c] sm:$0xf]
    %v3490 = vld [vmem:[%s3477 + $0x30] sm:$0xf]
    %v3491 = vld [vmem:[%s3477 + $0x34] sm:$0xf]
    %v3492 = vld [vmem:[%s3477 + $0x38] sm:$0xf]
    %v3493 = vld [vmem:[%s3477 + $0x3c] sm:$0xf]
    %v3510 = vunpack.c.l.b16 %v3478
    %v3511 = vunpack.c.l.b16 %v3479
    %v3512 = vunpack.c.l.b16 %v3480
    %v3513 = vunpack.c.l.b16 %v3481
    %v3514 = vunpack.c.l.b16 %v3482
    %v3515 = vunpack.c.l.b16 %v3483
    %v3516 = vunpack.c.l.b16 %v3484
    %v3517 = vunpack.c.l.b16 %v3485
    %v3518 = vunpack.c.l.b16 %v3486
    %v3519 = vunpack.c.l.b16 %v3487
    %v3520 = vunpack.c.l.b16 %v3488
    %v3521 = vunpack.c.l.b16 %v3489
    %v3522 = vunpack.c.l.b16 %v3490
    %v3523 = vunpack.c.l.b16 %v3491
    %v3524 = vunpack.c.l.b16 %v3492
    %v3525 = vunpack.c.l.b16 %v3493
    %v3526 = vpack.c.b16 %v3511, %v3510
    %v3527 = vpack.c.b16 %v3513, %v3512
    %v3528 = vpack.c.b16 %v3515, %v3514
    %v3529 = vpack.c.b16 %v3517, %v3516
    %v3530 = vpack.c.b16 %v3519, %v3518
    %v3531 = vpack.c.b16 %v3521, %v3520
    %v3532 = vpack.c.b16 %v3523, %v3522
    %v3533 = vpack.c.b16 %v3525, %v3524
    %3542 = vmatprep.subr.bf16.mxu0 0
    %3543 = vmatpush1.bf16.msra.mxu0 %v3526
    %3544 = vmatprep.subr.bf16.mxu0 0
    %3545 = vmatpush1.bf16.msra.mxu0 %v3527
    %3546 = vmatprep.subr.bf16.mxu0 0
    %3547 = vmatpush1.bf16.msra.mxu0 %v3528
    %3548 = vmatprep.subr.bf16.mxu0 0
    %3549 = vmatpush1.bf16.msra.mxu0 %v3529
    %3550 = vmatprep.subr.bf16.mxu0 0
    %3551 = vmatpush1.bf16.msra.mxu0 %v3530
    %3552 = vmatprep.subr.bf16.mxu0 0
    %3553 = vmatpush1.bf16.msra.mxu0 %v3531
    %3554 = vmatprep.subr.bf16.mxu0 0
    %3555 = vmatpush1.bf16.msra.mxu0 %v3532
    %3556 = vmatprep.subr.bf16.mxu0 0
    %3557 = vmatpush1.bf16.msra.mxu0 %v3533
    %3558 = vmatprep.subr.bf16.mxu0 0
    %3559 = vmatpush1.bf16.msra.mxu0 0
    %3560 = vmatprep.subr.bf16.mxu0 0
    %3561 = vmatpush1.bf16.msra.mxu0 0
    %3562 = vmatprep.subr.bf16.mxu0 0
    %3563 = vmatpush1.bf16.msra.mxu0 0
    %3564 = vmatprep.subr.bf16.mxu0 0
    %3565 = vmatpush1.bf16.msra.mxu0 0
    %3566 = vmatprep.subr.bf16.mxu0 0
    %3567 = vmatpush1.bf16.msra.mxu0 0
    %3568 = vmatprep.subr.bf16.mxu0 0
    %3569 = vmatpush1.bf16.msra.mxu0 0
    %3570 = vmatprep.subr.bf16.mxu0 0
    %3571 = vmatpush1.bf16.msra.mxu0 0
    %3572 = vmatprep.subr.bf16.mxu0 0
    %3573 = vmatpush1.bf16.msra.mxu0 0
    %3574 = vmatprep.mubr.bf16.mxu0 0
    %3575 = vmatmul.mubr.bf16.gmra.mrb[0].mxu0 %v1749
    %v3576 = vpop.f32.mrb[0].mxu0
    %v3577 = vadd.f32 0.0, %v3576
    %v3578 = vpop.f32.mrb[0].mxu0
    %v3579 = vpop.f32.mrb[0].mxu0
    %v3580 = vadd.f32 0.0, %v3579
    %v3581 = vpop.f32.mrb[0].mxu0
    %3582 = vmatprep.mubr.bf16.mxu0 0
    %3583 = vmatmul.mubr.bf16.gmra.mrb[0].mxu0 %v1750
    %v3584 = vpop.f32.mrb[0].mxu0
    %v3585 = vadd.f32 0.0, %v3584
    %v3586 = vpop.f32.mrb[0].mxu0
    %v3587 = vpop.f32.mrb[0].mxu0
    %v3588 = vadd.f32 0.0, %v3587
    %v3589 = vpop.f32.mrb[0].mxu0
    %3590 = vmatprep.mubr.bf16.mxu0 0
    %3591 = vmatmul.mubr.bf16.gmra.mrb[0].mxu0 %v1751
    %v3592 = vpop.f32.mrb[0].mxu0
    %v3593 = vadd.f32 0.0, %v3592
    %v3594 = vpop.f32.mrb[0].mxu0
    %v3595 = vpop.f32.mrb[0].mxu0
    %v3596 = vadd.f32 0.0, %v3595
    %v3597 = vpop.f32.mrb[0].mxu0
    %3598 = vmatprep.mubr.bf16.mxu0 0
    %3599 = vmatmul.mubr.bf16.gmra.mrb[0].mxu0 %v1752
    %v3600 = vpop.f32.mrb[0].mxu0
    %v3601 = vadd.f32 0.0, %v3600
    %v3602 = vpop.f32.mrb[0].mxu0
    %v3603 = vpop.f32.mrb[0].mxu0
    %v3604 = vadd.f32 0.0, %v3603
    %v3605 = vpop.f32.mrb[0].mxu0
    %3606 = vmatprep.mubr.bf16.mxu0 0
    %3607 = vmatmul.mubr.bf16.gmra.mrb[0].mxu0 %v1753
    %v3608 = vpop.f32.mrb[0].mxu0
    %v3609 = vadd.f32 0.0, %v3608
    %v3610 = vpop.f32.mrb[0].mxu0
    %v3611 = vpop.f32.mrb[0].mxu0
    %v3612 = vadd.f32 0.0, %v3611
    %v3613 = vpop.f32.mrb[0].mxu0
    %3614 = vmatprep.mubr.bf16.mxu0 0
    %3615 = vmatmul.mubr.bf16.gmra.mrb[0].mxu0 %v1754
    %v3616 = vpop.f32.mrb[0].mxu0
    %v3617 = vadd.f32 0.0, %v3616
    %v3618 = vpop.f32.mrb[0].mxu0
    %v3619 = vpop.f32.mrb[0].mxu0
    %v3620 = vadd.f32 0.0, %v3619
    %v3621 = vpop.f32.mrb[0].mxu0
    %3622 = vmatprep.mubr.bf16.mxu0 0
    %3623 = vmatmul.mubr.bf16.gmra.mrb[0].mxu0 %v1755
    %v3624 = vpop.f32.mrb[0].mxu0
    %v3625 = vadd.f32 0.0, %v3624
    %v3626 = vpop.f32.mrb[0].mxu0
    %v3627 = vpop.f32.mrb[0].mxu0
    %v3628 = vadd.f32 0.0, %v3627
    %v3629 = vpop.f32.mrb[0].mxu0
    %3630 = vmatprep.mubr.bf16.mxu0 0
    %3631 = vmatmul.mubr.bf16.gmra.mrb[0].mxu0 %v1756
    %v3632 = vpop.f32.mrb[0].mxu0
    %v3633 = vadd.f32 0.0, %v3632
    %v3634 = vpop.f32.mrb[0].mxu0
    %v3635 = vpop.f32.mrb[0].mxu0
    %v3636 = vadd.f32 0.0, %v3635
    %v3637 = vpop.f32.mrb[0].mxu0
    %3638 = vdwg.mxu0
    %v3639 = vadd.f32 %v3461, %v3577
    %v3640 = vadd.f32 %v3462, %v3580
    %v3641 = vadd.f32 %v3463, %v3585
    %v3642 = vadd.f32 %v3464, %v3588
    %v3643 = vadd.f32 %v3465, %v3593
    %v3644 = vadd.f32 %v3466, %v3596
    %v3645 = vadd.f32 %v3467, %v3601
    %v3646 = vadd.f32 %v3468, %v3604
    %v3647 = vadd.f32 %v3469, %v3609
    %v3648 = vadd.f32 %v3470, %v3612
    %v3649 = vadd.f32 %v3471, %v3617
    %v3650 = vadd.f32 %v3472, %v3620
    %v3651 = vadd.f32 %v3473, %v3625
    %v3652 = vadd.f32 %v3474, %v3628
    %v3653 = vadd.f32 %v3475, %v3633
    %v3654 = vadd.f32 %v3476, %v3636
    %s3655 = scalar_lea.vmem %s5, 448
    %v3656 = vld [vmem:[%s3655] sm:$0xf]
    %v3657 = vld [vmem:[%s3655 + $0x4] sm:$0xf]
    %v3658 = vld [vmem:[%s3655 + $0x8] sm:$0xf]
    %v3659 = vld [vmem:[%s3655 + $0xc] sm:$0xf]
    %v3660 = vld [vmem:[%s3655 + $0x10] sm:$0xf]
    %v3661 = vld [vmem:[%s3655 + $0x14] sm:$0xf]
    %v3662 = vld [vmem:[%s3655 + $0x18] sm:$0xf]
    %v3663 = vld [vmem:[%s3655 + $0x1c] sm:$0xf]
    %v3664 = vld [vmem:[%s3655 + $0x20] sm:$0xf]
    %v3665 = vld [vmem:[%s3655 + $0x24] sm:$0xf]
    %v3666 = vld [vmem:[%s3655 + $0x28] sm:$0xf]
    %v3667 = vld [vmem:[%s3655 + $0x2c] sm:$0xf]
    %v3668 = vld [vmem:[%s3655 + $0x30] sm:$0xf]
    %v3669 = vld [vmem:[%s3655 + $0x34] sm:$0xf]
    %v3670 = vld [vmem:[%s3655 + $0x38] sm:$0xf]
    %v3671 = vld [vmem:[%s3655 + $0x3c] sm:$0xf]
    %v3688 = vunpack.c.l.b16 %v3656
    %v3689 = vunpack.c.l.b16 %v3657
    %v3690 = vunpack.c.l.b16 %v3658
    %v3691 = vunpack.c.l.b16 %v3659
    %v3692 = vunpack.c.l.b16 %v3660
    %v3693 = vunpack.c.l.b16 %v3661
    %v3694 = vunpack.c.l.b16 %v3662
    %v3695 = vunpack.c.l.b16 %v3663
    %v3696 = vunpack.c.l.b16 %v3664
    %v3697 = vunpack.c.l.b16 %v3665
    %v3698 = vunpack.c.l.b16 %v3666
    %v3699 = vunpack.c.l.b16 %v3667
    %v3700 = vunpack.c.l.b16 %v3668
    %v3701 = vunpack.c.l.b16 %v3669
    %v3702 = vunpack.c.l.b16 %v3670
    %v3703 = vunpack.c.l.b16 %v3671
    %v3704 = vpack.c.b16 %v3689, %v3688
    %v3705 = vpack.c.b16 %v3691, %v3690
    %v3706 = vpack.c.b16 %v3693, %v3692
    %v3707 = vpack.c.b16 %v3695, %v3694
    %v3708 = vpack.c.b16 %v3697, %v3696
    %v3709 = vpack.c.b16 %v3699, %v3698
    %v3710 = vpack.c.b16 %v3701, %v3700
    %v3711 = vpack.c.b16 %v3703, %v3702
    %3720 = vmatprep.subr.bf16.mxu0 0
    %3721 = vmatpush1.bf16.msra.mxu0 %v3704
    %3722 = vmatprep.subr.bf16.mxu0 0
    %3723 = vmatpush1.bf16.msra.mxu0 %v3705
    %3724 = vmatprep.subr.bf16.mxu0 0
    %3725 = vmatpush1.bf16.msra.mxu0 %v3706
    %3726 = vmatprep.subr.bf16.mxu0 0
    %3727 = vmatpush1.bf16.msra.mxu0 %v3707
    %3728 = vmatprep.subr.bf16.mxu0 0
    %3729 = vmatpush1.bf16.msra.mxu0 %v3708
    %3730 = vmatprep.subr.bf16.mxu0 0
    %3731 = vmatpush1.bf16.msra.mxu0 %v3709
    %3732 = vmatprep.subr.bf16.mxu0 0
    %3733 = vmatpush1.bf16.msra.mxu0 %v3710
    %3734 = vmatprep.subr.bf16.mxu0 0
    %3735 = vmatpush1.bf16.msra.mxu0 %v3711
    %3736 = vmatprep.subr.bf16.mxu0 0
    %3737 = vmatpush1.bf16.msra.mxu0 0
    %3738 = vmatprep.subr.bf16.mxu0 0
    %3739 = vmatpush1.bf16.msra.mxu0 0
    %3740 = vmatprep.subr.bf16.mxu0 0
    %3741 = vmatpush1.bf16.msra.mxu0 0
    %3742 = vmatprep.subr.bf16.mxu0 0
    %3743 = vmatpush1.bf16.msra.mxu0 0
    %3744 = vmatprep.subr.bf16.mxu0 0
    %3745 = vmatpush1.bf16.msra.mxu0 0
    %3746 = vmatprep.subr.bf16.mxu0 0
    %3747 = vmatpush1.bf16.msra.mxu0 0
    %3748 = vmatprep.subr.bf16.mxu0 0
    %3749 = vmatpush1.bf16.msra.mxu0 0
    %3750 = vmatprep.subr.bf16.mxu0 0
    %3751 = vmatpush1.bf16.msra.mxu0 0
    %3752 = vmatprep.mubr.bf16.mxu0 0
    %3753 = vmatmul.mubr.bf16.gmra.mrb[0].mxu0 %v1951
    %v3754 = vpop.f32.mrb[0].mxu0
    %v3755 = vadd.f32 0.0, %v3754
    %v3756 = vpop.f32.mrb[0].mxu0
    %v3757 = vpop.f32.mrb[0].mxu0
    %v3758 = vadd.f32 0.0, %v3757
    %v3759 = vpop.f32.mrb[0].mxu0
    %3760 = vmatprep.mubr.bf16.mxu0 0
    %3761 = vmatmul.mubr.bf16.gmra.mrb[0].mxu0 %v1952
    %v3762 = vpop.f32.mrb[0].mxu0
    %v3763 = vadd.f32 0.0, %v3762
    %v3764 = vpop.f32.mrb[0].mxu0
    %v3765 = vpop.f32.mrb[0].mxu0
    %v3766 = vadd.f32 0.0, %v3765
    %v3767 = vpop.f32.mrb[0].mxu0
    %3768 = vmatprep.mubr.bf16.mxu0 0
    %3769 = vmatmul.mubr.bf16.gmra.mrb[0].mxu0 %v1953
    %v3770 = vpop.f32.mrb[0].mxu0
    %v3771 = vadd.f32 0.0, %v3770
    %v3772 = vpop.f32.mrb[0].mxu0
    %v3773 = vpop.f32.mrb[0].mxu0
    %v3774 = vadd.f32 0.0, %v3773
    %v3775 = vpop.f32.mrb[0].mxu0
    %3776 = vmatprep.mubr.bf16.mxu0 0
    %3777 = vmatmul.mubr.bf16.gmra.mrb[0].mxu0 %v1954
    %v3778 = vpop.f32.mrb[0].mxu0
    %v3779 = vadd.f32 0.0, %v3778
    %v3780 = vpop.f32.mrb[0].mxu0
    %v3781 = vpop.f32.mrb[0].mxu0
    %v3782 = vadd.f32 0.0, %v3781
    %v3783 = vpop.f32.mrb[0].mxu0
    %3784 = vmatprep.mubr.bf16.mxu0 0
    %3785 = vmatmul.mubr.bf16.gmra.mrb[0].mxu0 %v1955
    %v3786 = vpop.f32.mrb[0].mxu0
    %v3787 = vadd.f32 0.0, %v3786
    %v3788 = vpop.f32.mrb[0].mxu0
    %v3789 = vpop.f32.mrb[0].mxu0
    %v3790 = vadd.f32 0.0, %v3789
    %v3791 = vpop.f32.mrb[0].mxu0
    %3792 = vmatprep.mubr.bf16.mxu0 0
    %3793 = vmatmul.mubr.bf16.gmra.mrb[0].mxu0 %v1956
    %v3794 = vpop.f32.mrb[0].mxu0
    %v3795 = vadd.f32 0.0, %v3794
    %v3796 = vpop.f32.mrb[0].mxu0
    %v3797 = vpop.f32.mrb[0].mxu0
    %v3798 = vadd.f32 0.0, %v3797
    %v3799 = vpop.f32.mrb[0].mxu0
    %3800 = vmatprep.mubr.bf16.mxu0 0
    %3801 = vmatmul.mubr.bf16.gmra.mrb[0].mxu0 %v1957
    %v3802 = vpop.f32.mrb[0].mxu0
    %v3803 = vadd.f32 0.0, %v3802
    %v3804 = vpop.f32.mrb[0].mxu0
    %v3805 = vpop.f32.mrb[0].mxu0
    %v3806 = vadd.f32 0.0, %v3805
    %v3807 = vpop.f32.mrb[0].mxu0
    %3808 = vmatprep.mubr.bf16.mxu0 0
    %3809 = vmatmul.mubr.bf16.gmra.mrb[0].mxu0 %v1958
    %v3810 = vpop.f32.mrb[0].mxu0
    %v3811 = vadd.f32 0.0, %v3810
    %v3812 = vpop.f32.mrb[0].mxu0
    %v3813 = vpop.f32.mrb[0].mxu0
    %v3814 = vadd.f32 0.0, %v3813
    %v3815 = vpop.f32.mrb[0].mxu0
    %3816 = vdwg.mxu0
    %v3817 = vadd.f32 %v3639, %v3755
    %v3818 = vadd.f32 %v3640, %v3758
    %v3819 = vadd.f32 %v3641, %v3763
    %v3820 = vadd.f32 %v3642, %v3766
    %v3821 = vadd.f32 %v3643, %v3771
    %v3822 = vadd.f32 %v3644, %v3774
    %v3823 = vadd.f32 %v3645, %v3779
    %v3824 = vadd.f32 %v3646, %v3782
    %v3825 = vadd.f32 %v3647, %v3787
    %v3826 = vadd.f32 %v3648, %v3790
    %v3827 = vadd.f32 %v3649, %v3795
    %v3828 = vadd.f32 %v3650, %v3798
    %v3829 = vadd.f32 %v3651, %v3803
    %v3830 = vadd.f32 %v3652, %v3806
    %v3831 = vadd.f32 %v3653, %v3811
    %v3832 = vadd.f32 %v3654, %v3814
    %s3833 = scalar_lea.vmem %s5, 512
    %v3834 = vld [vmem:[%s3833] sm:$0xf]
    %v3835 = vld [vmem:[%s3833 + $0x4] sm:$0xf]
    %v3836 = vld [vmem:[%s3833 + $0x8] sm:$0xf]
    %v3837 = vld [vmem:[%s3833 + $0xc] sm:$0xf]
    %v3838 = vld [vmem:[%s3833 + $0x10] sm:$0xf]
    %v3839 = vld [vmem:[%s3833 + $0x14] sm:$0xf]
    %v3840 = vld [vmem:[%s3833 + $0x18] sm:$0xf]
    %v3841 = vld [vmem:[%s3833 + $0x1c] sm:$0xf]
    %v3842 = vld [vmem:[%s3833 + $0x20] sm:$0xf]
    %v3843 = vld [vmem:[%s3833 + $0x24] sm:$0xf]
    %v3844 = vld [vmem:[%s3833 + $0x28] sm:$0xf]
    %v3845 = vld [vmem:[%s3833 + $0x2c] sm:$0xf]
    %v3846 = vld [vmem:[%s3833 + $0x30] sm:$0xf]
    %v3847 = vld [vmem:[%s3833 + $0x34] sm:$0xf]
    %v3848 = vld [vmem:[%s3833 + $0x38] sm:$0xf]
    %v3849 = vld [vmem:[%s3833 + $0x3c] sm:$0xf]
    %v3866 = vunpack.c.l.b16 %v3834
    %v3867 = vunpack.c.l.b16 %v3835
    %v3868 = vunpack.c.l.b16 %v3836
    %v3869 = vunpack.c.l.b16 %v3837
    %v3870 = vunpack.c.l.b16 %v3838
    %v3871 = vunpack.c.l.b16 %v3839
    %v3872 = vunpack.c.l.b16 %v3840
    %v3873 = vunpack.c.l.b16 %v3841
    %v3874 = vunpack.c.l.b16 %v3842
    %v3875 = vunpack.c.l.b16 %v3843
    %v3876 = vunpack.c.l.b16 %v3844
    %v3877 = vunpack.c.l.b16 %v3845
    %v3878 = vunpack.c.l.b16 %v3846
    %v3879 = vunpack.c.l.b16 %v3847
    %v3880 = vunpack.c.l.b16 %v3848
    %v3881 = vunpack.c.l.b16 %v3849
    %v3882 = vpack.c.b16 %v3867, %v3866
    %v3883 = vpack.c.b16 %v3869, %v3868
    %v3884 = vpack.c.b16 %v3871, %v3870
    %v3885 = vpack.c.b16 %v3873, %v3872
    %v3886 = vpack.c.b16 %v3875, %v3874
    %v3887 = vpack.c.b16 %v3877, %v3876
    %v3888 = vpack.c.b16 %v3879, %v3878
    %v3889 = vpack.c.b16 %v3881, %v3880
    %3898 = vmatprep.subr.bf16.mxu0 0
    %3899 = vmatpush1.bf16.msra.mxu0 %v3882
    %3900 = vmatprep.subr.bf16.mxu0 0
    %3901 = vmatpush1.bf16.msra.mxu0 %v3883
    %3902 = vmatprep.subr.bf16.mxu0 0
    %3903 = vmatpush1.bf16.msra.mxu0 %v3884
    %3904 = vmatprep.subr.bf16.mxu0 0
    %3905 = vmatpush1.bf16.msra.mxu0 %v3885
    %3906 = vmatprep.subr.bf16.mxu0 0
    %3907 = vmatpush1.bf16.msra.mxu0 %v3886
    %3908 = vmatprep.subr.bf16.mxu0 0
    %3909 = vmatpush1.bf16.msra.mxu0 %v3887
    %3910 = vmatprep.subr.bf16.mxu0 0
    %3911 = vmatpush1.bf16.msra.mxu0 %v3888
    %3912 = vmatprep.subr.bf16.mxu0 0
    %3913 = vmatpush1.bf16.msra.mxu0 %v3889
    %3914 = vmatprep.subr.bf16.mxu0 0
    %3915 = vmatpush1.bf16.msra.mxu0 0
    %3916 = vmatprep.subr.bf16.mxu0 0
    %3917 = vmatpush1.bf16.msra.mxu0 0
    %3918 = vmatprep.subr.bf16.mxu0 0
    %3919 = vmatpush1.bf16.msra.mxu0 0
    %3920 = vmatprep.subr.bf16.mxu0 0
    %3921 = vmatpush1.bf16.msra.mxu0 0
    %3922 = vmatprep.subr.bf16.mxu0 0
    %3923 = vmatpush1.bf16.msra.mxu0 0
    %3924 = vmatprep.subr.bf16.mxu0 0
    %3925 = vmatpush1.bf16.msra.mxu0 0
    %3926 = vmatprep.subr.bf16.mxu0 0
    %3927 = vmatpush1.bf16.msra.mxu0 0
    %3928 = vmatprep.subr.bf16.mxu0 0
    %3929 = vmatpush1.bf16.msra.mxu0 0
    %3930 = vmatprep.mubr.bf16.mxu0 0
    %3931 = vmatmul.mubr.bf16.gmra.mrb[0].mxu0 %v2169
    %v3932 = vpop.f32.mrb[0].mxu0
    %v3933 = vadd.f32 0.0, %v3932
    %v3934 = vpop.f32.mrb[0].mxu0
    %v3935 = vpop.f32.mrb[0].mxu0
    %v3936 = vadd.f32 0.0, %v3935
    %v3937 = vpop.f32.mrb[0].mxu0
    %3938 = vmatprep.mubr.bf16.mxu0 0
    %3939 = vmatmul.mubr.bf16.gmra.mrb[0].mxu0 %v2170
    %v3940 = vpop.f32.mrb[0].mxu0
    %v3941 = vadd.f32 0.0, %v3940
    %v3942 = vpop.f32.mrb[0].mxu0
    %v3943 = vpop.f32.mrb[0].mxu0
    %v3944 = vadd.f32 0.0, %v3943
    %v3945 = vpop.f32.mrb[0].mxu0
    %3946 = vmatprep.mubr.bf16.mxu0 0
    %3947 = vmatmul.mubr.bf16.gmra.mrb[0].mxu0 %v2171
    %v3948 = vpop.f32.mrb[0].mxu0
    %v3949 = vadd.f32 0.0, %v3948
    %v3950 = vpop.f32.mrb[0].mxu0
    %v3951 = vpop.f32.mrb[0].mxu0
    %v3952 = vadd.f32 0.0, %v3951
    %v3953 = vpop.f32.mrb[0].mxu0
    %3954 = vmatprep.mubr.bf16.mxu0 0
    %3955 = vmatmul.mubr.bf16.gmra.mrb[0].mxu0 %v2172
    %v3956 = vpop.f32.mrb[0].mxu0
    %v3957 = vadd.f32 0.0, %v3956
    %v3958 = vpop.f32.mrb[0].mxu0
    %v3959 = vpop.f32.mrb[0].mxu0
    %v3960 = vadd.f32 0.0, %v3959
    %v3961 = vpop.f32.mrb[0].mxu0
    %3962 = vmatprep.mubr.bf16.mxu0 0
    %3963 = vmatmul.mubr.bf16.gmra.mrb[0].mxu0 %v2173
    %v3964 = vpop.f32.mrb[0].mxu0
    %v3965 = vadd.f32 0.0, %v3964
    %v3966 = vpop.f32.mrb[0].mxu0
    %v3967 = vpop.f32.mrb[0].mxu0
    %v3968 = vadd.f32 0.0, %v3967
    %v3969 = vpop.f32.mrb[0].mxu0
    %3970 = vmatprep.mubr.bf16.mxu0 0
    %3971 = vmatmul.mubr.bf16.gmra.mrb[0].mxu0 %v2174
    %v3972 = vpop.f32.mrb[0].mxu0
    %v3973 = vadd.f32 0.0, %v3972
    %v3974 = vpop.f32.mrb[0].mxu0
    %v3975 = vpop.f32.mrb[0].mxu0
    %v3976 = vadd.f32 0.0, %v3975
    %v3977 = vpop.f32.mrb[0].mxu0
    %3978 = vmatprep.mubr.bf16.mxu0 0
    %3979 = vmatmul.mubr.bf16.gmra.mrb[0].mxu0 %v2175
    %v3980 = vpop.f32.mrb[0].mxu0
    %v3981 = vadd.f32 0.0, %v3980
    %v3982 = vpop.f32.mrb[0].mxu0
    %v3983 = vpop.f32.mrb[0].mxu0
    %v3984 = vadd.f32 0.0, %v3983
    %v3985 = vpop.f32.mrb[0].mxu0
    %3986 = vmatprep.mubr.bf16.mxu0 0
    %3987 = vmatmul.mubr.bf16.gmra.mrb[0].mxu0 %v2176
    %v3988 = vpop.f32.mrb[0].mxu0
    %v3989 = vadd.f32 0.0, %v3988
    %v3990 = vpop.f32.mrb[0].mxu0
    %v3991 = vpop.f32.mrb[0].mxu0
    %v3992 = vadd.f32 0.0, %v3991
    %v3993 = vpop.f32.mrb[0].mxu0
    %3994 = vdwg.mxu0
    %v3995 = vadd.f32 %v3817, %v3933
    %v3996 = vadd.f32 %v3818, %v3936
    %v3997 = vadd.f32 %v3819, %v3941
    %v3998 = vadd.f32 %v3820, %v3944
    %v3999 = vadd.f32 %v3821, %v3949
    %v4000 = vadd.f32 %v3822, %v3952
    %v4001 = vadd.f32 %v3823, %v3957
    %v4002 = vadd.f32 %v3824, %v3960
    %v4003 = vadd.f32 %v3825, %v3965
    %v4004 = vadd.f32 %v3826, %v3968
    %v4005 = vadd.f32 %v3827, %v3973
    %v4006 = vadd.f32 %v3828, %v3976
    %v4007 = vadd.f32 %v3829, %v3981
    %v4008 = vadd.f32 %v3830, %v3984
    %v4009 = vadd.f32 %v3831, %v3989
    %v4010 = vadd.f32 %v3832, %v3992
    %v4011 = vrot.slane %v2426, 7
    %v4012 = vrot.slane %v2427, 7
    %v4013 = vrot.slane %v2428, 7
    %v4014 = vrot.slane %v2429, 7
    %v4015 = vrot.slane %v2430, 7
    %v4016 = vrot.slane %v2431, 7
    %v4017 = vrot.slane %v2432, 7
    %v4018 = vrot.slane %v2433, 7
    %v4019 = vrot.slane %v2434, 7
    %v4020 = vrot.slane %v2435, 7
    %v4021 = vrot.slane %v2436, 7
    %v4022 = vrot.slane %v2437, 7
    %v4023 = vrot.slane %v2438, 7
    %v4024 = vrot.slane %v2439, 7
    %v4025 = vrot.slane %v2440, 7
    %v4026 = vrot.slane %v2441, 7
    %v4027 = vsel %vm408, %v4025, %v4026
    %v4028 = vsel %vm408, %v4024, %v4025
    %v4029 = vsel %vm408, %v4023, %v4024
    %v4030 = vsel %vm408, %v4022, %v4023
    %v4031 = vsel %vm408, %v4021, %v4022
    %v4032 = vsel %vm408, %v4020, %v4021
    %v4033 = vsel %vm408, %v4019, %v4020
    %v4034 = vsel %vm408, %v4018, %v4019
    %v4035 = vsel %vm408, %v4017, %v4018
    %v4036 = vsel %vm408, %v4016, %v4017
    %v4037 = vsel %vm408, %v4015, %v4016
    %v4038 = vsel %vm408, %v4014, %v4015
    %v4039 = vsel %vm408, %v4013, %v4014
    %v4040 = vsel %vm408, %v4012, %v4013
    %v4041 = vsel %vm408, %v4011, %v4012
    %v4042 = vsel %vm408, %v4026, %v4011
    %v4043 = vsel %vm457, %v4027, 0.0
    %v4044 = vsel %vm458, %v4042, 0.0
    %v4045 = vsel %vm459, %v4041, 0.0
    %v4046 = vsel %vm460, %v4040, 0.0
    %v4047 = vsel %vm461, %v4039, 0.0
    %v4048 = vsel %vm462, %v4038, 0.0
    %v4049 = vsel %vm463, %v4037, 0.0
    %v4050 = vsel %vm464, %v4036, 0.0
    %v4051 = vsel %vm465, %v4035, 0.0
    %v4052 = vsel %vm466, %v4034, 0.0
    %v4053 = vsel %vm467, %v4033, 0.0
    %v4054 = vsel %vm468, %v4032, 0.0
    %v4055 = vsel %vm469, %v4031, 0.0
    %v4056 = vsel %vm470, %v4030, 0.0
    %v4057 = vsel %vm471, %v4029, 0.0
    %v4058 = vsel %vm472, %v4028, 0.0
    %v4059 = vpack.c.bf16 %v4044, %v4043
    %v4060 = vpack.c.bf16 %v4046, %v4045
    %v4061 = vpack.c.bf16 %v4048, %v4047
    %v4062 = vpack.c.bf16 %v4050, %v4049
    %v4063 = vpack.c.bf16 %v4052, %v4051
    %v4064 = vpack.c.bf16 %v4054, %v4053
    %v4065 = vpack.c.bf16 %v4056, %v4055
    %v4066 = vpack.c.bf16 %v4058, %v4057
    %v4067 = vld [vmem:[%s6] sm:$0xf]
    %v4068 = vld [vmem:[%s6 + $0x4] sm:$0xf]
    %v4069 = vld [vmem:[%s6 + $0x8] sm:$0xf]
    %v4070 = vld [vmem:[%s6 + $0xc] sm:$0xf]
    %v4071 = vld [vmem:[%s6 + $0x10] sm:$0xf]
    %v4072 = vld [vmem:[%s6 + $0x14] sm:$0xf]
    %v4073 = vld [vmem:[%s6 + $0x18] sm:$0xf]
    %v4074 = vld [vmem:[%s6 + $0x1c] sm:$0xf]
    %v4075 = vld [vmem:[%s6 + $0x20] sm:$0xf]
    %v4076 = vld [vmem:[%s6 + $0x24] sm:$0xf]
    %v4077 = vld [vmem:[%s6 + $0x28] sm:$0xf]
    %v4078 = vld [vmem:[%s6 + $0x2c] sm:$0xf]
    %v4079 = vld [vmem:[%s6 + $0x30] sm:$0xf]
    %v4080 = vld [vmem:[%s6 + $0x34] sm:$0xf]
    %v4081 = vld [vmem:[%s6 + $0x38] sm:$0xf]
    %v4082 = vld [vmem:[%s6 + $0x3c] sm:$0xf]
    %v4083 = vsel %vm425, %v2441, 0.0
    %v4084 = vsel %vm426, %v2426, 0.0
    %v4085 = vsel %vm427, %v2427, 0.0
    %v4086 = vsel %vm428, %v2428, 0.0
    %v4087 = vsel %vm429, %v2429, 0.0
    %v4088 = vsel %vm430, %v2430, 0.0
    %v4089 = vsel %vm431, %v2431, 0.0
    %v4090 = vsel %vm432, %v2432, 0.0
    %v4091 = vsel %vm433, %v2433, 0.0
    %v4092 = vsel %vm434, %v2434, 0.0
    %v4093 = vsel %vm435, %v2435, 0.0
    %v4094 = vsel %vm436, %v2436, 0.0
    %v4095 = vsel %vm437, %v2437, 0.0
    %v4096 = vsel %vm438, %v2438, 0.0
    %v4097 = vsel %vm439, %v2439, 0.0
    %v4098 = vsel %vm440, %v2440, 0.0
    %v4099 = vpack.c.bf16 %v4084, %v4083
    %v4100 = vpack.c.bf16 %v4086, %v4085
    %v4101 = vpack.c.bf16 %v4088, %v4087
    %v4102 = vpack.c.bf16 %v4090, %v4089
    %v4103 = vpack.c.bf16 %v4092, %v4091
    %v4104 = vpack.c.bf16 %v4094, %v4093
    %v4105 = vpack.c.bf16 %v4096, %v4095
    %v4106 = vpack.c.bf16 %v4098, %v4097
    %s4107 = scalar_lea.vmem %s6, 64
    %v4108 = vld [vmem:[%s4107] sm:$0xf]
    %v4109 = vld [vmem:[%s4107 + $0x4] sm:$0xf]
    %v4110 = vld [vmem:[%s4107 + $0x8] sm:$0xf]
    %v4111 = vld [vmem:[%s4107 + $0xc] sm:$0xf]
    %v4112 = vld [vmem:[%s4107 + $0x10] sm:$0xf]
    %v4113 = vld [vmem:[%s4107 + $0x14] sm:$0xf]
    %v4114 = vld [vmem:[%s4107 + $0x18] sm:$0xf]
    %v4115 = vld [vmem:[%s4107 + $0x1c] sm:$0xf]
    %v4116 = vld [vmem:[%s4107 + $0x20] sm:$0xf]
    %v4117 = vld [vmem:[%s4107 + $0x24] sm:$0xf]
    %v4118 = vld [vmem:[%s4107 + $0x28] sm:$0xf]
    %v4119 = vld [vmem:[%s4107 + $0x2c] sm:$0xf]
    %v4120 = vld [vmem:[%s4107 + $0x30] sm:$0xf]
    %v4121 = vld [vmem:[%s4107 + $0x34] sm:$0xf]
    %v4122 = vld [vmem:[%s4107 + $0x38] sm:$0xf]
    %v4123 = vld [vmem:[%s4107 + $0x3c] sm:$0xf]
    %v4140 = vunpack.c.l.b16 %v4108
    %v4141 = vunpack.c.l.b16 %v4109
    %v4142 = vunpack.c.l.b16 %v4110
    %v4143 = vunpack.c.l.b16 %v4111
    %v4144 = vunpack.c.l.b16 %v4112
    %v4145 = vunpack.c.l.b16 %v4113
    %v4146 = vunpack.c.l.b16 %v4114
    %v4147 = vunpack.c.l.b16 %v4115
    %v4148 = vunpack.c.l.b16 %v4116
    %v4149 = vunpack.c.l.b16 %v4117
    %v4150 = vunpack.c.l.b16 %v4118
    %v4151 = vunpack.c.l.b16 %v4119
    %v4152 = vunpack.c.l.b16 %v4120
    %v4153 = vunpack.c.l.b16 %v4121
    %v4154 = vunpack.c.l.b16 %v4122
    %v4155 = vunpack.c.l.b16 %v4123
    %v4156 = vpack.c.b16 %v4141, %v4140
    %v4157 = vpack.c.b16 %v4143, %v4142
    %v4158 = vpack.c.b16 %v4145, %v4144
    %v4159 = vpack.c.b16 %v4147, %v4146
    %v4160 = vpack.c.b16 %v4149, %v4148
    %v4161 = vpack.c.b16 %v4151, %v4150
    %v4162 = vpack.c.b16 %v4153, %v4152
    %v4163 = vpack.c.b16 %v4155, %v4154
    %4172 = vmatprep.subr.bf16.mxu0 0
    %4173 = vmatpush1.bf16.msra.mxu0 %v4156
    %4174 = vmatprep.subr.bf16.mxu0 0
    %4175 = vmatpush1.bf16.msra.mxu0 %v4157
    %4176 = vmatprep.subr.bf16.mxu0 0
    %4177 = vmatpush1.bf16.msra.mxu0 %v4158
    %4178 = vmatprep.subr.bf16.mxu0 0
    %4179 = vmatpush1.bf16.msra.mxu0 %v4159
    %4180 = vmatprep.subr.bf16.mxu0 0
    %4181 = vmatpush1.bf16.msra.mxu0 %v4160
    %4182 = vmatprep.subr.bf16.mxu0 0
    %4183 = vmatpush1.bf16.msra.mxu0 %v4161
    %4184 = vmatprep.subr.bf16.mxu0 0
    %4185 = vmatpush1.bf16.msra.mxu0 %v4162
    %4186 = vmatprep.subr.bf16.mxu0 0
    %4187 = vmatpush1.bf16.msra.mxu0 %v4163
    %4188 = vmatprep.subr.bf16.mxu0 0
    %4189 = vmatpush1.bf16.msra.mxu0 0
    %4190 = vmatprep.subr.bf16.mxu0 0
    %4191 = vmatpush1.bf16.msra.mxu0 0
    %4192 = vmatprep.subr.bf16.mxu0 0
    %4193 = vmatpush1.bf16.msra.mxu0 0
    %4194 = vmatprep.subr.bf16.mxu0 0
    %4195 = vmatpush1.bf16.msra.mxu0 0
    %4196 = vmatprep.subr.bf16.mxu0 0
    %4197 = vmatpush1.bf16.msra.mxu0 0
    %4198 = vmatprep.subr.bf16.mxu0 0
    %4199 = vmatpush1.bf16.msra.mxu0 0
    %4200 = vmatprep.subr.bf16.mxu0 0
    %4201 = vmatpush1.bf16.msra.mxu0 0
    %4202 = vmatprep.subr.bf16.mxu0 0
    %4203 = vmatpush1.bf16.msra.mxu0 0
    %4204 = vmatprep.mubr.bf16.mxu0 0
    %4205 = vmatmul.mubr.bf16.gmra.mrb[0].mxu0 %v4099
    %v4206 = vpop.f32.mrb[0].mxu0
    %v4207 = vadd.f32 0.0, %v4206
    %v4208 = vpop.f32.mrb[0].mxu0
    %v4209 = vpop.f32.mrb[0].mxu0
    %v4210 = vadd.f32 0.0, %v4209
    %v4211 = vpop.f32.mrb[0].mxu0
    %4212 = vmatprep.mubr.bf16.mxu0 0
    %4213 = vmatmul.mubr.bf16.gmra.mrb[0].mxu0 %v4100
    %v4214 = vpop.f32.mrb[0].mxu0
    %v4215 = vadd.f32 0.0, %v4214
    %v4216 = vpop.f32.mrb[0].mxu0
    %v4217 = vpop.f32.mrb[0].mxu0
    %v4218 = vadd.f32 0.0, %v4217
    %v4219 = vpop.f32.mrb[0].mxu0
    %4220 = vmatprep.mubr.bf16.mxu0 0
    %4221 = vmatmul.mubr.bf16.gmra.mrb[0].mxu0 %v4101
    %v4222 = vpop.f32.mrb[0].mxu0
    %v4223 = vadd.f32 0.0, %v4222
    %v4224 = vpop.f32.mrb[0].mxu0
    %v4225 = vpop.f32.mrb[0].mxu0
    %v4226 = vadd.f32 0.0, %v4225
    %v4227 = vpop.f32.mrb[0].mxu0
    %4228 = vmatprep.mubr.bf16.mxu0 0
    %4229 = vmatmul.mubr.bf16.gmra.mrb[0].mxu0 %v4102
    %v4230 = vpop.f32.mrb[0].mxu0
    %v4231 = vadd.f32 0.0, %v4230
    %v4232 = vpop.f32.mrb[0].mxu0
    %v4233 = vpop.f32.mrb[0].mxu0
    %v4234 = vadd.f32 0.0, %v4233
    %v4235 = vpop.f32.mrb[0].mxu0
    %4236 = vmatprep.mubr.bf16.mxu0 0
    %4237 = vmatmul.mubr.bf16.gmra.mrb[0].mxu0 %v4103
    %v4238 = vpop.f32.mrb[0].mxu0
    %v4239 = vadd.f32 0.0, %v4238
    %v4240 = vpop.f32.mrb[0].mxu0
    %v4241 = vpop.f32.mrb[0].mxu0
    %v4242 = vadd.f32 0.0, %v4241
    %v4243 = vpop.f32.mrb[0].mxu0
    %4244 = vmatprep.mubr.bf16.mxu0 0
    %4245 = vmatmul.mubr.bf16.gmra.mrb[0].mxu0 %v4104
    %v4246 = vpop.f32.mrb[0].mxu0
    %v4247 = vadd.f32 0.0, %v4246
    %v4248 = vpop.f32.mrb[0].mxu0
    %v4249 = vpop.f32.mrb[0].mxu0
    %v4250 = vadd.f32 0.0, %v4249
    %v4251 = vpop.f32.mrb[0].mxu0
    %4252 = vmatprep.mubr.bf16.mxu0 0
    %4253 = vmatmul.mubr.bf16.gmra.mrb[0].mxu0 %v4105
    %v4254 = vpop.f32.mrb[0].mxu0
    %v4255 = vadd.f32 0.0, %v4254
    %v4256 = vpop.f32.mrb[0].mxu0
    %v4257 = vpop.f32.mrb[0].mxu0
    %v4258 = vadd.f32 0.0, %v4257
    %v4259 = vpop.f32.mrb[0].mxu0
    %4260 = vmatprep.mubr.bf16.mxu0 0
    %4261 = vmatmul.mubr.bf16.gmra.mrb[0].mxu0 %v4106
    %v4262 = vpop.f32.mrb[0].mxu0
    %v4263 = vadd.f32 0.0, %v4262
    %v4264 = vpop.f32.mrb[0].mxu0
    %v4265 = vpop.f32.mrb[0].mxu0
    %v4266 = vadd.f32 0.0, %v4265
    %v4267 = vpop.f32.mrb[0].mxu0
    %4268 = vdwg.mxu0
    %v4285 = vunpack.c.l.b16 %v4067
    %v4286 = vunpack.c.l.b16 %v4068
    %v4287 = vunpack.c.l.b16 %v4069
    %v4288 = vunpack.c.l.b16 %v4070
    %v4289 = vunpack.c.l.b16 %v4071
    %v4290 = vunpack.c.l.b16 %v4072
    %v4291 = vunpack.c.l.b16 %v4073
    %v4292 = vunpack.c.l.b16 %v4074
    %v4293 = vunpack.c.l.b16 %v4075
    %v4294 = vunpack.c.l.b16 %v4076
    %v4295 = vunpack.c.l.b16 %v4077
    %v4296 = vunpack.c.l.b16 %v4078
    %v4297 = vunpack.c.l.b16 %v4079
    %v4298 = vunpack.c.l.b16 %v4080
    %v4299 = vunpack.c.l.b16 %v4081
    %v4300 = vunpack.c.l.b16 %v4082
    %v4301 = vpack.c.b16 %v4286, %v4285
    %v4302 = vpack.c.b16 %v4288, %v4287
    %v4303 = vpack.c.b16 %v4290, %v4289
    %v4304 = vpack.c.b16 %v4292, %v4291
    %v4305 = vpack.c.b16 %v4294, %v4293
    %v4306 = vpack.c.b16 %v4296, %v4295
    %v4307 = vpack.c.b16 %v4298, %v4297
    %v4308 = vpack.c.b16 %v4300, %v4299
    %4317 = vmatprep.subr.bf16.mxu0 0
    %4318 = vmatpush1.bf16.msra.mxu0 %v4301
    %4319 = vmatprep.subr.bf16.mxu0 0
    %4320 = vmatpush1.bf16.msra.mxu0 %v4302
    %4321 = vmatprep.subr.bf16.mxu0 0
    %4322 = vmatpush1.bf16.msra.mxu0 %v4303
    %4323 = vmatprep.subr.bf16.mxu0 0
    %4324 = vmatpush1.bf16.msra.mxu0 %v4304
    %4325 = vmatprep.subr.bf16.mxu0 0
    %4326 = vmatpush1.bf16.msra.mxu0 %v4305
    %4327 = vmatprep.subr.bf16.mxu0 0
    %4328 = vmatpush1.bf16.msra.mxu0 %v4306
    %4329 = vmatprep.subr.bf16.mxu0 0
    %4330 = vmatpush1.bf16.msra.mxu0 %v4307
    %4331 = vmatprep.subr.bf16.mxu0 0
    %4332 = vmatpush1.bf16.msra.mxu0 %v4308
    %4333 = vmatprep.subr.bf16.mxu0 0
    %4334 = vmatpush1.bf16.msra.mxu0 0
    %4335 = vmatprep.subr.bf16.mxu0 0
    %4336 = vmatpush1.bf16.msra.mxu0 0
    %4337 = vmatprep.subr.bf16.mxu0 0
    %4338 = vmatpush1.bf16.msra.mxu0 0
    %4339 = vmatprep.subr.bf16.mxu0 0
    %4340 = vmatpush1.bf16.msra.mxu0 0
    %4341 = vmatprep.subr.bf16.mxu0 0
    %4342 = vmatpush1.bf16.msra.mxu0 0
    %4343 = vmatprep.subr.bf16.mxu0 0
    %4344 = vmatpush1.bf16.msra.mxu0 0
    %4345 = vmatprep.subr.bf16.mxu0 0
    %4346 = vmatpush1.bf16.msra.mxu0 0
    %4347 = vmatprep.subr.bf16.mxu0 0
    %4348 = vmatpush1.bf16.msra.mxu0 0
    %4349 = vmatprep.mubr.bf16.mxu0 0
    %4350 = vmatmul.mubr.bf16.gmra.mrb[0].mxu0 %v4059
    %v4351 = vpop.f32.mrb[0].mxu0
    %v4352 = vadd.f32 %v4207, %v4351
    %v4353 = vpop.f32.mrb[0].mxu0
    %v4354 = vpop.f32.mrb[0].mxu0
    %v4355 = vadd.f32 %v4210, %v4354
    %v4356 = vpop.f32.mrb[0].mxu0
    %4357 = vmatprep.mubr.bf16.mxu0 0
    %4358 = vmatmul.mubr.bf16.gmra.mrb[0].mxu0 %v4060
    %v4359 = vpop.f32.mrb[0].mxu0
    %v4360 = vadd.f32 %v4215, %v4359
    %v4361 = vpop.f32.mrb[0].mxu0
    %v4362 = vpop.f32.mrb[0].mxu0
    %v4363 = vadd.f32 %v4218, %v4362
    %v4364 = vpop.f32.mrb[0].mxu0
    %4365 = vmatprep.mubr.bf16.mxu0 0
    %4366 = vmatmul.mubr.bf16.gmra.mrb[0].mxu0 %v4061
    %v4367 = vpop.f32.mrb[0].mxu0
    %v4368 = vadd.f32 %v4223, %v4367
    %v4369 = vpop.f32.mrb[0].mxu0
    %v4370 = vpop.f32.mrb[0].mxu0
    %v4371 = vadd.f32 %v4226, %v4370
    %v4372 = vpop.f32.mrb[0].mxu0
    %4373 = vmatprep.mubr.bf16.mxu0 0
    %4374 = vmatmul.mubr.bf16.gmra.mrb[0].mxu0 %v4062
    %v4375 = vpop.f32.mrb[0].mxu0
    %v4376 = vadd.f32 %v4231, %v4375
    %v4377 = vpop.f32.mrb[0].mxu0
    %v4378 = vpop.f32.mrb[0].mxu0
    %v4379 = vadd.f32 %v4234, %v4378
    %v4380 = vpop.f32.mrb[0].mxu0
    %4381 = vmatprep.mubr.bf16.mxu0 0
    %4382 = vmatmul.mubr.bf16.gmra.mrb[0].mxu0 %v4063
    %v4383 = vpop.f32.mrb[0].mxu0
    %v4384 = vadd.f32 %v4239, %v4383
    %v4385 = vpop.f32.mrb[0].mxu0
    %v4386 = vpop.f32.mrb[0].mxu0
    %v4387 = vadd.f32 %v4242, %v4386
    %v4388 = vpop.f32.mrb[0].mxu0
    %4389 = vmatprep.mubr.bf16.mxu0 0
    %4390 = vmatmul.mubr.bf16.gmra.mrb[0].mxu0 %v4064
    %v4391 = vpop.f32.mrb[0].mxu0
    %v4392 = vadd.f32 %v4247, %v4391
    %v4393 = vpop.f32.mrb[0].mxu0
    %v4394 = vpop.f32.mrb[0].mxu0
    %v4395 = vadd.f32 %v4250, %v4394
    %v4396 = vpop.f32.mrb[0].mxu0
    %4397 = vmatprep.mubr.bf16.mxu0 0
    %4398 = vmatmul.mubr.bf16.gmra.mrb[0].mxu0 %v4065
    %v4399 = vpop.f32.mrb[0].mxu0
    %v4400 = vadd.f32 %v4255, %v4399
    %v4401 = vpop.f32.mrb[0].mxu0
    %v4402 = vpop.f32.mrb[0].mxu0
    %v4403 = vadd.f32 %v4258, %v4402
    %v4404 = vpop.f32.mrb[0].mxu0
    %4405 = vmatprep.mubr.bf16.mxu0 0
    %4406 = vmatmul.mubr.bf16.gmra.mrb[0].mxu0 %v4066
    %v4407 = vpop.f32.mrb[0].mxu0
    %v4408 = vadd.f32 %v4263, %v4407
    %v4409 = vpop.f32.mrb[0].mxu0
    %v4410 = vpop.f32.mrb[0].mxu0
    %v4411 = vadd.f32 %v4266, %v4410
    %v4412 = vpop.f32.mrb[0].mxu0
    %4413 = vdwg.mxu0
    %v4414 = vrot.slane %v2426, 1
    %v4415 = vrot.slane %v2427, 1
    %v4416 = vrot.slane %v2428, 1
    %v4417 = vrot.slane %v2429, 1
    %v4418 = vrot.slane %v2430, 1
    %v4419 = vrot.slane %v2431, 1
    %v4420 = vrot.slane %v2432, 1
    %v4421 = vrot.slane %v2433, 1
    %v4422 = vrot.slane %v2434, 1
    %v4423 = vrot.slane %v2435, 1
    %v4424 = vrot.slane %v2436, 1
    %v4425 = vrot.slane %v2437, 1
    %v4426 = vrot.slane %v2438, 1
    %v4427 = vrot.slane %v2439, 1
    %v4428 = vrot.slane %v2440, 1
    %v4429 = vrot.slane %v2441, 1
    %v4430 = vsel %vm860, %v4428, %v4429
    %v4431 = vsel %vm860, %v4427, %v4428
    %v4432 = vsel %vm860, %v4426, %v4427
    %v4433 = vsel %vm860, %v4425, %v4426
    %v4434 = vsel %vm860, %v4424, %v4425
    %v4435 = vsel %vm860, %v4423, %v4424
    %v4436 = vsel %vm860, %v4422, %v4423
    %v4437 = vsel %vm860, %v4421, %v4422
    %v4438 = vsel %vm860, %v4420, %v4421
    %v4439 = vsel %vm860, %v4419, %v4420
    %v4440 = vsel %vm860, %v4418, %v4419
    %v4441 = vsel %vm860, %v4417, %v4418
    %v4442 = vsel %vm860, %v4416, %v4417
    %v4443 = vsel %vm860, %v4415, %v4416
    %v4444 = vsel %vm860, %v4414, %v4415
    %v4445 = vsel %vm860, %v4429, %v4414
    %v4446 = vsel %vm893, %v4445, 0.0
    %v4447 = vsel %vm894, %v4444, 0.0
    %v4448 = vsel %vm895, %v4443, 0.0
    %v4449 = vsel %vm896, %v4442, 0.0
    %v4450 = vsel %vm897, %v4441, 0.0
    %v4451 = vsel %vm898, %v4440, 0.0
    %v4452 = vsel %vm899, %v4439, 0.0
    %v4453 = vsel %vm900, %v4438, 0.0
    %v4454 = vsel %vm901, %v4437, 0.0
    %v4455 = vsel %vm902, %v4436, 0.0
    %v4456 = vsel %vm903, %v4435, 0.0
    %v4457 = vsel %vm904, %v4434, 0.0
    %v4458 = vsel %vm905, %v4433, 0.0
    %v4459 = vsel %vm906, %v4432, 0.0
    %v4460 = vsel %vm907, %v4431, 0.0
    %v4461 = vsel %vm908, %v4430, 0.0
    %v4462 = vpack.c.bf16 %v4447, %v4446
    %v4463 = vpack.c.bf16 %v4449, %v4448
    %v4464 = vpack.c.bf16 %v4451, %v4450
    %v4465 = vpack.c.bf16 %v4453, %v4452
    %v4466 = vpack.c.bf16 %v4455, %v4454
    %v4467 = vpack.c.bf16 %v4457, %v4456
    %v4468 = vpack.c.bf16 %v4459, %v4458
    %v4469 = vpack.c.bf16 %v4461, %v4460
    %s4470 = scalar_lea.vmem %s6, 128
    %v4471 = vld [vmem:[%s4470] sm:$0xf]
    %v4472 = vld [vmem:[%s4470 + $0x4] sm:$0xf]
    %v4473 = vld [vmem:[%s4470 + $0x8] sm:$0xf]
    %v4474 = vld [vmem:[%s4470 + $0xc] sm:$0xf]
    %v4475 = vld [vmem:[%s4470 + $0x10] sm:$0xf]
    %v4476 = vld [vmem:[%s4470 + $0x14] sm:$0xf]
    %v4477 = vld [vmem:[%s4470 + $0x18] sm:$0xf]
    %v4478 = vld [vmem:[%s4470 + $0x1c] sm:$0xf]
    %v4479 = vld [vmem:[%s4470 + $0x20] sm:$0xf]
    %v4480 = vld [vmem:[%s4470 + $0x24] sm:$0xf]
    %v4481 = vld [vmem:[%s4470 + $0x28] sm:$0xf]
    %v4482 = vld [vmem:[%s4470 + $0x2c] sm:$0xf]
    %v4483 = vld [vmem:[%s4470 + $0x30] sm:$0xf]
    %v4484 = vld [vmem:[%s4470 + $0x34] sm:$0xf]
    %v4485 = vld [vmem:[%s4470 + $0x38] sm:$0xf]
    %v4486 = vld [vmem:[%s4470 + $0x3c] sm:$0xf]
    %v4503 = vunpack.c.l.b16 %v4471
    %v4504 = vunpack.c.l.b16 %v4472
    %v4505 = vunpack.c.l.b16 %v4473
    %v4506 = vunpack.c.l.b16 %v4474
    %v4507 = vunpack.c.l.b16 %v4475
    %v4508 = vunpack.c.l.b16 %v4476
    %v4509 = vunpack.c.l.b16 %v4477
    %v4510 = vunpack.c.l.b16 %v4478
    %v4511 = vunpack.c.l.b16 %v4479
    %v4512 = vunpack.c.l.b16 %v4480
    %v4513 = vunpack.c.l.b16 %v4481
    %v4514 = vunpack.c.l.b16 %v4482
    %v4515 = vunpack.c.l.b16 %v4483
    %v4516 = vunpack.c.l.b16 %v4484
    %v4517 = vunpack.c.l.b16 %v4485
    %v4518 = vunpack.c.l.b16 %v4486
    %v4519 = vpack.c.b16 %v4504, %v4503
    %v4520 = vpack.c.b16 %v4506, %v4505
    %v4521 = vpack.c.b16 %v4508, %v4507
    %v4522 = vpack.c.b16 %v4510, %v4509
    %v4523 = vpack.c.b16 %v4512, %v4511
    %v4524 = vpack.c.b16 %v4514, %v4513
    %v4525 = vpack.c.b16 %v4516, %v4515
    %v4526 = vpack.c.b16 %v4518, %v4517
    %4535 = vmatprep.subr.bf16.mxu0 0
    %4536 = vmatpush1.bf16.msra.mxu0 %v4519
    %4537 = vmatprep.subr.bf16.mxu0 0
    %4538 = vmatpush1.bf16.msra.mxu0 %v4520
    %4539 = vmatprep.subr.bf16.mxu0 0
    %4540 = vmatpush1.bf16.msra.mxu0 %v4521
    %4541 = vmatprep.subr.bf16.mxu0 0
    %4542 = vmatpush1.bf16.msra.mxu0 %v4522
    %4543 = vmatprep.subr.bf16.mxu0 0
    %4544 = vmatpush1.bf16.msra.mxu0 %v4523
    %4545 = vmatprep.subr.bf16.mxu0 0
    %4546 = vmatpush1.bf16.msra.mxu0 %v4524
    %4547 = vmatprep.subr.bf16.mxu0 0
    %4548 = vmatpush1.bf16.msra.mxu0 %v4525
    %4549 = vmatprep.subr.bf16.mxu0 0
    %4550 = vmatpush1.bf16.msra.mxu0 %v4526
    %4551 = vmatprep.subr.bf16.mxu0 0
    %4552 = vmatpush1.bf16.msra.mxu0 0
    %4553 = vmatprep.subr.bf16.mxu0 0
    %4554 = vmatpush1.bf16.msra.mxu0 0
    %4555 = vmatprep.subr.bf16.mxu0 0
    %4556 = vmatpush1.bf16.msra.mxu0 0
    %4557 = vmatprep.subr.bf16.mxu0 0
    %4558 = vmatpush1.bf16.msra.mxu0 0
    %4559 = vmatprep.subr.bf16.mxu0 0
    %4560 = vmatpush1.bf16.msra.mxu0 0
    %4561 = vmatprep.subr.bf16.mxu0 0
    %4562 = vmatpush1.bf16.msra.mxu0 0
    %4563 = vmatprep.subr.bf16.mxu0 0
    %4564 = vmatpush1.bf16.msra.mxu0 0
    %4565 = vmatprep.subr.bf16.mxu0 0
    %4566 = vmatpush1.bf16.msra.mxu0 0
    %4567 = vmatprep.mubr.bf16.mxu0 0
    %4568 = vmatmul.mubr.bf16.gmra.mrb[0].mxu0 %v4462
    %v4569 = vpop.f32.mrb[0].mxu0
    %v4570 = vadd.f32 0.0, %v4569
    %v4571 = vpop.f32.mrb[0].mxu0
    %v4572 = vpop.f32.mrb[0].mxu0
    %v4573 = vadd.f32 0.0, %v4572
    %v4574 = vpop.f32.mrb[0].mxu0
    %4575 = vmatprep.mubr.bf16.mxu0 0
    %4576 = vmatmul.mubr.bf16.gmra.mrb[0].mxu0 %v4463
    %v4577 = vpop.f32.mrb[0].mxu0
    %v4578 = vadd.f32 0.0, %v4577
    %v4579 = vpop.f32.mrb[0].mxu0
    %v4580 = vpop.f32.mrb[0].mxu0
    %v4581 = vadd.f32 0.0, %v4580
    %v4582 = vpop.f32.mrb[0].mxu0
    %4583 = vmatprep.mubr.bf16.mxu0 0
    %4584 = vmatmul.mubr.bf16.gmra.mrb[0].mxu0 %v4464
    %v4585 = vpop.f32.mrb[0].mxu0
    %v4586 = vadd.f32 0.0, %v4585
    %v4587 = vpop.f32.mrb[0].mxu0
    %v4588 = vpop.f32.mrb[0].mxu0
    %v4589 = vadd.f32 0.0, %v4588
    %v4590 = vpop.f32.mrb[0].mxu0
    %4591 = vmatprep.mubr.bf16.mxu0 0
    %4592 = vmatmul.mubr.bf16.gmra.mrb[0].mxu0 %v4465
    %v4593 = vpop.f32.mrb[0].mxu0
    %v4594 = vadd.f32 0.0, %v4593
    %v4595 = vpop.f32.mrb[0].mxu0
    %v4596 = vpop.f32.mrb[0].mxu0
    %v4597 = vadd.f32 0.0, %v4596
    %v4598 = vpop.f32.mrb[0].mxu0
    %4599 = vmatprep.mubr.bf16.mxu0 0
    %4600 = vmatmul.mubr.bf16.gmra.mrb[0].mxu0 %v4466
    %v4601 = vpop.f32.mrb[0].mxu0
    %v4602 = vadd.f32 0.0, %v4601
    %v4603 = vpop.f32.mrb[0].mxu0
    %v4604 = vpop.f32.mrb[0].mxu0
    %v4605 = vadd.f32 0.0, %v4604
    %v4606 = vpop.f32.mrb[0].mxu0
    %4607 = vmatprep.mubr.bf16.mxu0 0
    %4608 = vmatmul.mubr.bf16.gmra.mrb[0].mxu0 %v4467
    %v4609 = vpop.f32.mrb[0].mxu0
    %v4610 = vadd.f32 0.0, %v4609
    %v4611 = vpop.f32.mrb[0].mxu0
    %v4612 = vpop.f32.mrb[0].mxu0
    %v4613 = vadd.f32 0.0, %v4612
    %v4614 = vpop.f32.mrb[0].mxu0
    %4615 = vmatprep.mubr.bf16.mxu0 0
    %4616 = vmatmul.mubr.bf16.gmra.mrb[0].mxu0 %v4468
    %v4617 = vpop.f32.mrb[0].mxu0
    %v4618 = vadd.f32 0.0, %v4617
    %v4619 = vpop.f32.mrb[0].mxu0
    %v4620 = vpop.f32.mrb[0].mxu0
    %v4621 = vadd.f32 0.0, %v4620
    %v4622 = vpop.f32.mrb[0].mxu0
    %4623 = vmatprep.mubr.bf16.mxu0 0
    %4624 = vmatmul.mubr.bf16.gmra.mrb[0].mxu0 %v4469
    %v4625 = vpop.f32.mrb[0].mxu0
    %v4626 = vadd.f32 0.0, %v4625
    %v4627 = vpop.f32.mrb[0].mxu0
    %v4628 = vpop.f32.mrb[0].mxu0
    %v4629 = vadd.f32 0.0, %v4628
    %v4630 = vpop.f32.mrb[0].mxu0
    %4631 = vdwg.mxu0
    %v4632 = vadd.f32 %v4352, %v4570
    %v4633 = vadd.f32 %v4355, %v4573
    %v4634 = vadd.f32 %v4360, %v4578
    %v4635 = vadd.f32 %v4363, %v4581
    %v4636 = vadd.f32 %v4368, %v4586
    %v4637 = vadd.f32 %v4371, %v4589
    %v4638 = vadd.f32 %v4376, %v4594
    %v4639 = vadd.f32 %v4379, %v4597
    %v4640 = vadd.f32 %v4384, %v4602
    %v4641 = vadd.f32 %v4387, %v4605
    %v4642 = vadd.f32 %v4392, %v4610
    %v4643 = vadd.f32 %v4395, %v4613
    %v4644 = vadd.f32 %v4400, %v4618
    %v4645 = vadd.f32 %v4403, %v4621
    %v4646 = vadd.f32 %v4408, %v4626
    %v4647 = vadd.f32 %v4411, %v4629
    %v4648 = vsel %vm441, %v4042, 0.0
    %v4649 = vsel %vm442, %v4041, 0.0
    %v4650 = vsel %vm443, %v4040, 0.0
    %v4651 = vsel %vm444, %v4039, 0.0
    %v4652 = vsel %vm445, %v4038, 0.0
    %v4653 = vsel %vm446, %v4037, 0.0
    %v4654 = vsel %vm447, %v4036, 0.0
    %v4655 = vsel %vm448, %v4035, 0.0
    %v4656 = vsel %vm449, %v4034, 0.0
    %v4657 = vsel %vm450, %v4033, 0.0
    %v4658 = vsel %vm451, %v4032, 0.0
    %v4659 = vsel %vm452, %v4031, 0.0
    %v4660 = vsel %vm453, %v4030, 0.0
    %v4661 = vsel %vm454, %v4029, 0.0
    %v4662 = vsel %vm455, %v4028, 0.0
    %v4663 = vsel %vm456, %v4027, 0.0
    %v4664 = vpack.c.bf16 %v4649, %v4648
    %v4665 = vpack.c.bf16 %v4651, %v4650
    %v4666 = vpack.c.bf16 %v4653, %v4652
    %v4667 = vpack.c.bf16 %v4655, %v4654
    %v4668 = vpack.c.bf16 %v4657, %v4656
    %v4669 = vpack.c.bf16 %v4659, %v4658
    %v4670 = vpack.c.bf16 %v4661, %v4660
    %v4671 = vpack.c.bf16 %v4663, %v4662
    %s4672 = scalar_lea.vmem %s6, 192
    %v4673 = vld [vmem:[%s4672] sm:$0xf]
    %v4674 = vld [vmem:[%s4672 + $0x4] sm:$0xf]
    %v4675 = vld [vmem:[%s4672 + $0x8] sm:$0xf]
    %v4676 = vld [vmem:[%s4672 + $0xc] sm:$0xf]
    %v4677 = vld [vmem:[%s4672 + $0x10] sm:$0xf]
    %v4678 = vld [vmem:[%s4672 + $0x14] sm:$0xf]
    %v4679 = vld [vmem:[%s4672 + $0x18] sm:$0xf]
    %v4680 = vld [vmem:[%s4672 + $0x1c] sm:$0xf]
    %v4681 = vld [vmem:[%s4672 + $0x20] sm:$0xf]
    %v4682 = vld [vmem:[%s4672 + $0x24] sm:$0xf]
    %v4683 = vld [vmem:[%s4672 + $0x28] sm:$0xf]
    %v4684 = vld [vmem:[%s4672 + $0x2c] sm:$0xf]
    %v4685 = vld [vmem:[%s4672 + $0x30] sm:$0xf]
    %v4686 = vld [vmem:[%s4672 + $0x34] sm:$0xf]
    %v4687 = vld [vmem:[%s4672 + $0x38] sm:$0xf]
    %v4688 = vld [vmem:[%s4672 + $0x3c] sm:$0xf]
    %v4705 = vunpack.c.l.b16 %v4673
    %v4706 = vunpack.c.l.b16 %v4674
    %v4707 = vunpack.c.l.b16 %v4675
    %v4708 = vunpack.c.l.b16 %v4676
    %v4709 = vunpack.c.l.b16 %v4677
    %v4710 = vunpack.c.l.b16 %v4678
    %v4711 = vunpack.c.l.b16 %v4679
    %v4712 = vunpack.c.l.b16 %v4680
    %v4713 = vunpack.c.l.b16 %v4681
    %v4714 = vunpack.c.l.b16 %v4682
    %v4715 = vunpack.c.l.b16 %v4683
    %v4716 = vunpack.c.l.b16 %v4684
    %v4717 = vunpack.c.l.b16 %v4685
    %v4718 = vunpack.c.l.b16 %v4686
    %v4719 = vunpack.c.l.b16 %v4687
    %v4720 = vunpack.c.l.b16 %v4688
    %v4721 = vpack.c.b16 %v4706, %v4705
    %v4722 = vpack.c.b16 %v4708, %v4707
    %v4723 = vpack.c.b16 %v4710, %v4709
    %v4724 = vpack.c.b16 %v4712, %v4711
    %v4725 = vpack.c.b16 %v4714, %v4713
    %v4726 = vpack.c.b16 %v4716, %v4715
    %v4727 = vpack.c.b16 %v4718, %v4717
    %v4728 = vpack.c.b16 %v4720, %v4719
    %4737 = vmatprep.subr.bf16.mxu0 0
    %4738 = vmatpush1.bf16.msra.mxu0 %v4721
    %4739 = vmatprep.subr.bf16.mxu0 0
    %4740 = vmatpush1.bf16.msra.mxu0 %v4722
    %4741 = vmatprep.subr.bf16.mxu0 0
    %4742 = vmatpush1.bf16.msra.mxu0 %v4723
    %4743 = vmatprep.subr.bf16.mxu0 0
    %4744 = vmatpush1.bf16.msra.mxu0 %v4724
    %4745 = vmatprep.subr.bf16.mxu0 0
    %4746 = vmatpush1.bf16.msra.mxu0 %v4725
    %4747 = vmatprep.subr.bf16.mxu0 0
    %4748 = vmatpush1.bf16.msra.mxu0 %v4726
    %4749 = vmatprep.subr.bf16.mxu0 0
    %4750 = vmatpush1.bf16.msra.mxu0 %v4727
    %4751 = vmatprep.subr.bf16.mxu0 0
    %4752 = vmatpush1.bf16.msra.mxu0 %v4728
    %4753 = vmatprep.subr.bf16.mxu0 0
    %4754 = vmatpush1.bf16.msra.mxu0 0
    %4755 = vmatprep.subr.bf16.mxu0 0
    %4756 = vmatpush1.bf16.msra.mxu0 0
    %4757 = vmatprep.subr.bf16.mxu0 0
    %4758 = vmatpush1.bf16.msra.mxu0 0
    %4759 = vmatprep.subr.bf16.mxu0 0
    %4760 = vmatpush1.bf16.msra.mxu0 0
    %4761 = vmatprep.subr.bf16.mxu0 0
    %4762 = vmatpush1.bf16.msra.mxu0 0
    %4763 = vmatprep.subr.bf16.mxu0 0
    %4764 = vmatpush1.bf16.msra.mxu0 0
    %4765 = vmatprep.subr.bf16.mxu0 0
    %4766 = vmatpush1.bf16.msra.mxu0 0
    %4767 = vmatprep.subr.bf16.mxu0 0
    %4768 = vmatpush1.bf16.msra.mxu0 0
    %4769 = vmatprep.mubr.bf16.mxu0 0
    %4770 = vmatmul.mubr.bf16.gmra.mrb[0].mxu0 %v4664
    %v4771 = vpop.f32.mrb[0].mxu0
    %v4772 = vadd.f32 0.0, %v4771
    %v4773 = vpop.f32.mrb[0].mxu0
    %v4774 = vpop.f32.mrb[0].mxu0
    %v4775 = vadd.f32 0.0, %v4774
    %v4776 = vpop.f32.mrb[0].mxu0
    %4777 = vmatprep.mubr.bf16.mxu0 0
    %4778 = vmatmul.mubr.bf16.gmra.mrb[0].mxu0 %v4665
    %v4779 = vpop.f32.mrb[0].mxu0
    %v4780 = vadd.f32 0.0, %v4779
    %v4781 = vpop.f32.mrb[0].mxu0
    %v4782 = vpop.f32.mrb[0].mxu0
    %v4783 = vadd.f32 0.0, %v4782
    %v4784 = vpop.f32.mrb[0].mxu0
    %4785 = vmatprep.mubr.bf16.mxu0 0
    %4786 = vmatmul.mubr.bf16.gmra.mrb[0].mxu0 %v4666
    %v4787 = vpop.f32.mrb[0].mxu0
    %v4788 = vadd.f32 0.0, %v4787
    %v4789 = vpop.f32.mrb[0].mxu0
    %v4790 = vpop.f32.mrb[0].mxu0
    %v4791 = vadd.f32 0.0, %v4790
    %v4792 = vpop.f32.mrb[0].mxu0
    %4793 = vmatprep.mubr.bf16.mxu0 0
    %4794 = vmatmul.mubr.bf16.gmra.mrb[0].mxu0 %v4667
    %v4795 = vpop.f32.mrb[0].mxu0
    %v4796 = vadd.f32 0.0, %v4795
    %v4797 = vpop.f32.mrb[0].mxu0
    %v4798 = vpop.f32.mrb[0].mxu0
    %v4799 = vadd.f32 0.0, %v4798
    %v4800 = vpop.f32.mrb[0].mxu0
    %4801 = vmatprep.mubr.bf16.mxu0 0
    %4802 = vmatmul.mubr.bf16.gmra.mrb[0].mxu0 %v4668
    %v4803 = vpop.f32.mrb[0].mxu0
    %v4804 = vadd.f32 0.0, %v4803
    %v4805 = vpop.f32.mrb[0].mxu0
    %v4806 = vpop.f32.mrb[0].mxu0
    %v4807 = vadd.f32 0.0, %v4806
    %v4808 = vpop.f32.mrb[0].mxu0
    %4809 = vmatprep.mubr.bf16.mxu0 0
    %4810 = vmatmul.mubr.bf16.gmra.mrb[0].mxu0 %v4669
    %v4811 = vpop.f32.mrb[0].mxu0
    %v4812 = vadd.f32 0.0, %v4811
    %v4813 = vpop.f32.mrb[0].mxu0
    %v4814 = vpop.f32.mrb[0].mxu0
    %v4815 = vadd.f32 0.0, %v4814
    %v4816 = vpop.f32.mrb[0].mxu0
    %4817 = vmatprep.mubr.bf16.mxu0 0
    %4818 = vmatmul.mubr.bf16.gmra.mrb[0].mxu0 %v4670
    %v4819 = vpop.f32.mrb[0].mxu0
    %v4820 = vadd.f32 0.0, %v4819
    %v4821 = vpop.f32.mrb[0].mxu0
    %v4822 = vpop.f32.mrb[0].mxu0
    %v4823 = vadd.f32 0.0, %v4822
    %v4824 = vpop.f32.mrb[0].mxu0
    %4825 = vmatprep.mubr.bf16.mxu0 0
    %4826 = vmatmul.mubr.bf16.gmra.mrb[0].mxu0 %v4671
    %v4827 = vpop.f32.mrb[0].mxu0
    %v4828 = vadd.f32 0.0, %v4827
    %v4829 = vpop.f32.mrb[0].mxu0
    %v4830 = vpop.f32.mrb[0].mxu0
    %v4831 = vadd.f32 0.0, %v4830
    %v4832 = vpop.f32.mrb[0].mxu0
    %4833 = vdwg.mxu0
    %v4834 = vadd.f32 %v4632, %v4772
    %v4835 = vadd.f32 %v4633, %v4775
    %v4836 = vadd.f32 %v4634, %v4780
    %v4837 = vadd.f32 %v4635, %v4783
    %v4838 = vadd.f32 %v4636, %v4788
    %v4839 = vadd.f32 %v4637, %v4791
    %v4840 = vadd.f32 %v4638, %v4796
    %v4841 = vadd.f32 %v4639, %v4799
    %v4842 = vadd.f32 %v4640, %v4804
    %v4843 = vadd.f32 %v4641, %v4807
    %v4844 = vadd.f32 %v4642, %v4812
    %v4845 = vadd.f32 %v4643, %v4815
    %v4846 = vadd.f32 %v4644, %v4820
    %v4847 = vadd.f32 %v4645, %v4823
    %v4848 = vadd.f32 %v4646, %v4828
    %v4849 = vadd.f32 %v4647, %v4831
    %v4850 = vpack.c.bf16 %v2427, %v2426
    %v4851 = vpack.c.bf16 %v2429, %v2428
    %v4852 = vpack.c.bf16 %v2431, %v2430
    %v4853 = vpack.c.bf16 %v2433, %v2432
    %v4854 = vpack.c.bf16 %v2435, %v2434
    %v4855 = vpack.c.bf16 %v2437, %v2436
    %v4856 = vpack.c.bf16 %v2439, %v2438
    %v4857 = vpack.c.bf16 %v2441, %v2440
    %s4858 = scalar_lea.vmem %s6, 256
    %v4859 = vld [vmem:[%s4858] sm:$0xf]
    %v4860 = vld [vmem:[%s4858 + $0x4] sm:$0xf]
    %v4861 = vld [vmem:[%s4858 + $0x8] sm:$0xf]
    %v4862 = vld [vmem:[%s4858 + $0xc] sm:$0xf]
    %v4863 = vld [vmem:[%s4858 + $0x10] sm:$0xf]
    %v4864 = vld [vmem:[%s4858 + $0x14] sm:$0xf]
    %v4865 = vld [vmem:[%s4858 + $0x18] sm:$0xf]
    %v4866 = vld [vmem:[%s4858 + $0x1c] sm:$0xf]
    %v4867 = vld [vmem:[%s4858 + $0x20] sm:$0xf]
    %v4868 = vld [vmem:[%s4858 + $0x24] sm:$0xf]
    %v4869 = vld [vmem:[%s4858 + $0x28] sm:$0xf]
    %v4870 = vld [vmem:[%s4858 + $0x2c] sm:$0xf]
    %v4871 = vld [vmem:[%s4858 + $0x30] sm:$0xf]
    %v4872 = vld [vmem:[%s4858 + $0x34] sm:$0xf]
    %v4873 = vld [vmem:[%s4858 + $0x38] sm:$0xf]
    %v4874 = vld [vmem:[%s4858 + $0x3c] sm:$0xf]
    %v4891 = vunpack.c.l.b16 %v4859
    %v4892 = vunpack.c.l.b16 %v4860
    %v4893 = vunpack.c.l.b16 %v4861
    %v4894 = vunpack.c.l.b16 %v4862
    %v4895 = vunpack.c.l.b16 %v4863
    %v4896 = vunpack.c.l.b16 %v4864
    %v4897 = vunpack.c.l.b16 %v4865
    %v4898 = vunpack.c.l.b16 %v4866
    %v4899 = vunpack.c.l.b16 %v4867
    %v4900 = vunpack.c.l.b16 %v4868
    %v4901 = vunpack.c.l.b16 %v4869
    %v4902 = vunpack.c.l.b16 %v4870
    %v4903 = vunpack.c.l.b16 %v4871
    %v4904 = vunpack.c.l.b16 %v4872
    %v4905 = vunpack.c.l.b16 %v4873
    %v4906 = vunpack.c.l.b16 %v4874
    %v4907 = vpack.c.b16 %v4892, %v4891
    %v4908 = vpack.c.b16 %v4894, %v4893
    %v4909 = vpack.c.b16 %v4896, %v4895
    %v4910 = vpack.c.b16 %v4898, %v4897
    %v4911 = vpack.c.b16 %v4900, %v4899
    %v4912 = vpack.c.b16 %v4902, %v4901
    %v4913 = vpack.c.b16 %v4904, %v4903
    %v4914 = vpack.c.b16 %v4906, %v4905
    %4923 = vmatprep.subr.bf16.mxu0 0
    %4924 = vmatpush1.bf16.msra.mxu0 %v4907
    %4925 = vmatprep.subr.bf16.mxu0 0
    %4926 = vmatpush1.bf16.msra.mxu0 %v4908
    %4927 = vmatprep.subr.bf16.mxu0 0
    %4928 = vmatpush1.bf16.msra.mxu0 %v4909
    %4929 = vmatprep.subr.bf16.mxu0 0
    %4930 = vmatpush1.bf16.msra.mxu0 %v4910
    %4931 = vmatprep.subr.bf16.mxu0 0
    %4932 = vmatpush1.bf16.msra.mxu0 %v4911
    %4933 = vmatprep.subr.bf16.mxu0 0
    %4934 = vmatpush1.bf16.msra.mxu0 %v4912
    %4935 = vmatprep.subr.bf16.mxu0 0
    %4936 = vmatpush1.bf16.msra.mxu0 %v4913
    %4937 = vmatprep.subr.bf16.mxu0 0
    %4938 = vmatpush1.bf16.msra.mxu0 %v4914
    %4939 = vmatprep.subr.bf16.mxu0 0
    %4940 = vmatpush1.bf16.msra.mxu0 0
    %4941 = vmatprep.subr.bf16.mxu0 0
    %4942 = vmatpush1.bf16.msra.mxu0 0
    %4943 = vmatprep.subr.bf16.mxu0 0
    %4944 = vmatpush1.bf16.msra.mxu0 0
    %4945 = vmatprep.subr.bf16.mxu0 0
    %4946 = vmatpush1.bf16.msra.mxu0 0
    %4947 = vmatprep.subr.bf16.mxu0 0
    %4948 = vmatpush1.bf16.msra.mxu0 0
    %4949 = vmatprep.subr.bf16.mxu0 0
    %4950 = vmatpush1.bf16.msra.mxu0 0
    %4951 = vmatprep.subr.bf16.mxu0 0
    %4952 = vmatpush1.bf16.msra.mxu0 0
    %4953 = vmatprep.subr.bf16.mxu0 0
    %4954 = vmatpush1.bf16.msra.mxu0 0
    %4955 = vmatprep.mubr.bf16.mxu0 0
    %4956 = vmatmul.mubr.bf16.gmra.mrb[0].mxu0 %v4850
    %v4957 = vpop.f32.mrb[0].mxu0
    %v4958 = vadd.f32 0.0, %v4957
    %v4959 = vpop.f32.mrb[0].mxu0
    %v4960 = vpop.f32.mrb[0].mxu0
    %v4961 = vadd.f32 0.0, %v4960
    %v4962 = vpop.f32.mrb[0].mxu0
    %4963 = vmatprep.mubr.bf16.mxu0 0
    %4964 = vmatmul.mubr.bf16.gmra.mrb[0].mxu0 %v4851
    %v4965 = vpop.f32.mrb[0].mxu0
    %v4966 = vadd.f32 0.0, %v4965
    %v4967 = vpop.f32.mrb[0].mxu0
    %v4968 = vpop.f32.mrb[0].mxu0
    %v4969 = vadd.f32 0.0, %v4968
    %v4970 = vpop.f32.mrb[0].mxu0
    %4971 = vmatprep.mubr.bf16.mxu0 0
    %4972 = vmatmul.mubr.bf16.gmra.mrb[0].mxu0 %v4852
    %v4973 = vpop.f32.mrb[0].mxu0
    %v4974 = vadd.f32 0.0, %v4973
    %v4975 = vpop.f32.mrb[0].mxu0
    %v4976 = vpop.f32.mrb[0].mxu0
    %v4977 = vadd.f32 0.0, %v4976
    %v4978 = vpop.f32.mrb[0].mxu0
    %4979 = vmatprep.mubr.bf16.mxu0 0
    %4980 = vmatmul.mubr.bf16.gmra.mrb[0].mxu0 %v4853
    %v4981 = vpop.f32.mrb[0].mxu0
    %v4982 = vadd.f32 0.0, %v4981
    %v4983 = vpop.f32.mrb[0].mxu0
    %v4984 = vpop.f32.mrb[0].mxu0
    %v4985 = vadd.f32 0.0, %v4984
    %v4986 = vpop.f32.mrb[0].mxu0
    %4987 = vmatprep.mubr.bf16.mxu0 0
    %4988 = vmatmul.mubr.bf16.gmra.mrb[0].mxu0 %v4854
    %v4989 = vpop.f32.mrb[0].mxu0
    %v4990 = vadd.f32 0.0, %v4989
    %v4991 = vpop.f32.mrb[0].mxu0
    %v4992 = vpop.f32.mrb[0].mxu0
    %v4993 = vadd.f32 0.0, %v4992
    %v4994 = vpop.f32.mrb[0].mxu0
    %4995 = vmatprep.mubr.bf16.mxu0 0
    %4996 = vmatmul.mubr.bf16.gmra.mrb[0].mxu0 %v4855
    %v4997 = vpop.f32.mrb[0].mxu0
    %v4998 = vadd.f32 0.0, %v4997
    %v4999 = vpop.f32.mrb[0].mxu0
    %v5000 = vpop.f32.mrb[0].mxu0
    %v5001 = vadd.f32 0.0, %v5000
    %v5002 = vpop.f32.mrb[0].mxu0
    %5003 = vmatprep.mubr.bf16.mxu0 0
    %5004 = vmatmul.mubr.bf16.gmra.mrb[0].mxu0 %v4856
    %v5005 = vpop.f32.mrb[0].mxu0
    %v5006 = vadd.f32 0.0, %v5005
    %v5007 = vpop.f32.mrb[0].mxu0
    %v5008 = vpop.f32.mrb[0].mxu0
    %v5009 = vadd.f32 0.0, %v5008
    %v5010 = vpop.f32.mrb[0].mxu0
    %5011 = vmatprep.mubr.bf16.mxu0 0
    %5012 = vmatmul.mubr.bf16.gmra.mrb[0].mxu0 %v4857
    %v5013 = vpop.f32.mrb[0].mxu0
    %v5014 = vadd.f32 0.0, %v5013
    %v5015 = vpop.f32.mrb[0].mxu0
    %v5016 = vpop.f32.mrb[0].mxu0
    %v5017 = vadd.f32 0.0, %v5016
    %v5018 = vpop.f32.mrb[0].mxu0
    %5019 = vdwg.mxu0
    %v5020 = vadd.f32 %v4834, %v4958
    %v5021 = vadd.f32 %v4835, %v4961
    %v5022 = vadd.f32 %v4836, %v4966
    %v5023 = vadd.f32 %v4837, %v4969
    %v5024 = vadd.f32 %v4838, %v4974
    %v5025 = vadd.f32 %v4839, %v4977
    %v5026 = vadd.f32 %v4840, %v4982
    %v5027 = vadd.f32 %v4841, %v4985
    %v5028 = vadd.f32 %v4842, %v4990
    %v5029 = vadd.f32 %v4843, %v4993
    %v5030 = vadd.f32 %v4844, %v4998
    %v5031 = vadd.f32 %v4845, %v5001
    %v5032 = vadd.f32 %v4846, %v5006
    %v5033 = vadd.f32 %v4847, %v5009
    %v5034 = vadd.f32 %v4848, %v5014
    %v5035 = vadd.f32 %v4849, %v5017
    %v5036 = vsel %vm877, %v4444, 0.0
    %v5037 = vsel %vm878, %v4443, 0.0
    %v5038 = vsel %vm879, %v4442, 0.0
    %v5039 = vsel %vm880, %v4441, 0.0
    %v5040 = vsel %vm881, %v4440, 0.0
    %v5041 = vsel %vm882, %v4439, 0.0
    %v5042 = vsel %vm883, %v4438, 0.0
    %v5043 = vsel %vm884, %v4437, 0.0
    %v5044 = vsel %vm885, %v4436, 0.0
    %v5045 = vsel %vm886, %v4435, 0.0
    %v5046 = vsel %vm887, %v4434, 0.0
    %v5047 = vsel %vm888, %v4433, 0.0
    %v5048 = vsel %vm889, %v4432, 0.0
    %v5049 = vsel %vm890, %v4431, 0.0
    %v5050 = vsel %vm891, %v4430, 0.0
    %v5051 = vsel %vm892, %v4445, 0.0
    %v5052 = vpack.c.bf16 %v5037, %v5036
    %v5053 = vpack.c.bf16 %v5039, %v5038
    %v5054 = vpack.c.bf16 %v5041, %v5040
    %v5055 = vpack.c.bf16 %v5043, %v5042
    %v5056 = vpack.c.bf16 %v5045, %v5044
    %v5057 = vpack.c.bf16 %v5047, %v5046
    %v5058 = vpack.c.bf16 %v5049, %v5048
    %v5059 = vpack.c.bf16 %v5051, %v5050
    %s5060 = scalar_lea.vmem %s6, 320
    %v5061 = vld [vmem:[%s5060] sm:$0xf]
    %v5062 = vld [vmem:[%s5060 + $0x4] sm:$0xf]
    %v5063 = vld [vmem:[%s5060 + $0x8] sm:$0xf]
    %v5064 = vld [vmem:[%s5060 + $0xc] sm:$0xf]
    %v5065 = vld [vmem:[%s5060 + $0x10] sm:$0xf]
    %v5066 = vld [vmem:[%s5060 + $0x14] sm:$0xf]
    %v5067 = vld [vmem:[%s5060 + $0x18] sm:$0xf]
    %v5068 = vld [vmem:[%s5060 + $0x1c] sm:$0xf]
    %v5069 = vld [vmem:[%s5060 + $0x20] sm:$0xf]
    %v5070 = vld [vmem:[%s5060 + $0x24] sm:$0xf]
    %v5071 = vld [vmem:[%s5060 + $0x28] sm:$0xf]
    %v5072 = vld [vmem:[%s5060 + $0x2c] sm:$0xf]
    %v5073 = vld [vmem:[%s5060 + $0x30] sm:$0xf]
    %v5074 = vld [vmem:[%s5060 + $0x34] sm:$0xf]
    %v5075 = vld [vmem:[%s5060 + $0x38] sm:$0xf]
    %v5076 = vld [vmem:[%s5060 + $0x3c] sm:$0xf]
    %v5093 = vunpack.c.l.b16 %v5061
    %v5094 = vunpack.c.l.b16 %v5062
    %v5095 = vunpack.c.l.b16 %v5063
    %v5096 = vunpack.c.l.b16 %v5064
    %v5097 = vunpack.c.l.b16 %v5065
    %v5098 = vunpack.c.l.b16 %v5066
    %v5099 = vunpack.c.l.b16 %v5067
    %v5100 = vunpack.c.l.b16 %v5068
    %v5101 = vunpack.c.l.b16 %v5069
    %v5102 = vunpack.c.l.b16 %v5070
    %v5103 = vunpack.c.l.b16 %v5071
    %v5104 = vunpack.c.l.b16 %v5072
    %v5105 = vunpack.c.l.b16 %v5073
    %v5106 = vunpack.c.l.b16 %v5074
    %v5107 = vunpack.c.l.b16 %v5075
    %v5108 = vunpack.c.l.b16 %v5076
    %v5109 = vpack.c.b16 %v5094, %v5093
    %v5110 = vpack.c.b16 %v5096, %v5095
    %v5111 = vpack.c.b16 %v5098, %v5097
    %v5112 = vpack.c.b16 %v5100, %v5099
    %v5113 = vpack.c.b16 %v5102, %v5101
    %v5114 = vpack.c.b16 %v5104, %v5103
    %v5115 = vpack.c.b16 %v5106, %v5105
    %v5116 = vpack.c.b16 %v5108, %v5107
    %5125 = vmatprep.subr.bf16.mxu0 0
    %5126 = vmatpush1.bf16.msra.mxu0 %v5109
    %5127 = vmatprep.subr.bf16.mxu0 0
    %5128 = vmatpush1.bf16.msra.mxu0 %v5110
    %5129 = vmatprep.subr.bf16.mxu0 0
    %5130 = vmatpush1.bf16.msra.mxu0 %v5111
    %5131 = vmatprep.subr.bf16.mxu0 0
    %5132 = vmatpush1.bf16.msra.mxu0 %v5112
    %5133 = vmatprep.subr.bf16.mxu0 0
    %5134 = vmatpush1.bf16.msra.mxu0 %v5113
    %5135 = vmatprep.subr.bf16.mxu0 0
    %5136 = vmatpush1.bf16.msra.mxu0 %v5114
    %5137 = vmatprep.subr.bf16.mxu0 0
    %5138 = vmatpush1.bf16.msra.mxu0 %v5115
    %5139 = vmatprep.subr.bf16.mxu0 0
    %5140 = vmatpush1.bf16.msra.mxu0 %v5116
    %5141 = vmatprep.subr.bf16.mxu0 0
    %5142 = vmatpush1.bf16.msra.mxu0 0
    %5143 = vmatprep.subr.bf16.mxu0 0
    %5144 = vmatpush1.bf16.msra.mxu0 0
    %5145 = vmatprep.subr.bf16.mxu0 0
    %5146 = vmatpush1.bf16.msra.mxu0 0
    %5147 = vmatprep.subr.bf16.mxu0 0
    %5148 = vmatpush1.bf16.msra.mxu0 0
    %5149 = vmatprep.subr.bf16.mxu0 0
    %5150 = vmatpush1.bf16.msra.mxu0 0
    %5151 = vmatprep.subr.bf16.mxu0 0
    %5152 = vmatpush1.bf16.msra.mxu0 0
    %5153 = vmatprep.subr.bf16.mxu0 0
    %5154 = vmatpush1.bf16.msra.mxu0 0
    %5155 = vmatprep.subr.bf16.mxu0 0
    %5156 = vmatpush1.bf16.msra.mxu0 0
    %5157 = vmatprep.mubr.bf16.mxu0 0
    %5158 = vmatmul.mubr.bf16.gmra.mrb[0].mxu0 %v5052
    %v5159 = vpop.f32.mrb[0].mxu0
    %v5160 = vadd.f32 0.0, %v5159
    %v5161 = vpop.f32.mrb[0].mxu0
    %v5162 = vpop.f32.mrb[0].mxu0
    %v5163 = vadd.f32 0.0, %v5162
    %v5164 = vpop.f32.mrb[0].mxu0
    %5165 = vmatprep.mubr.bf16.mxu0 0
    %5166 = vmatmul.mubr.bf16.gmra.mrb[0].mxu0 %v5053
    %v5167 = vpop.f32.mrb[0].mxu0
    %v5168 = vadd.f32 0.0, %v5167
    %v5169 = vpop.f32.mrb[0].mxu0
    %v5170 = vpop.f32.mrb[0].mxu0
    %v5171 = vadd.f32 0.0, %v5170
    %v5172 = vpop.f32.mrb[0].mxu0
    %5173 = vmatprep.mubr.bf16.mxu0 0
    %5174 = vmatmul.mubr.bf16.gmra.mrb[0].mxu0 %v5054
    %v5175 = vpop.f32.mrb[0].mxu0
    %v5176 = vadd.f32 0.0, %v5175
    %v5177 = vpop.f32.mrb[0].mxu0
    %v5178 = vpop.f32.mrb[0].mxu0
    %v5179 = vadd.f32 0.0, %v5178
    %v5180 = vpop.f32.mrb[0].mxu0
    %5181 = vmatprep.mubr.bf16.mxu0 0
    %5182 = vmatmul.mubr.bf16.gmra.mrb[0].mxu0 %v5055
    %v5183 = vpop.f32.mrb[0].mxu0
    %v5184 = vadd.f32 0.0, %v5183
    %v5185 = vpop.f32.mrb[0].mxu0
    %v5186 = vpop.f32.mrb[0].mxu0
    %v5187 = vadd.f32 0.0, %v5186
    %v5188 = vpop.f32.mrb[0].mxu0
    %5189 = vmatprep.mubr.bf16.mxu0 0
    %5190 = vmatmul.mubr.bf16.gmra.mrb[0].mxu0 %v5056
    %v5191 = vpop.f32.mrb[0].mxu0
    %v5192 = vadd.f32 0.0, %v5191
    %v5193 = vpop.f32.mrb[0].mxu0
    %v5194 = vpop.f32.mrb[0].mxu0
    %v5195 = vadd.f32 0.0, %v5194
    %v5196 = vpop.f32.mrb[0].mxu0
    %5197 = vmatprep.mubr.bf16.mxu0 0
    %5198 = vmatmul.mubr.bf16.gmra.mrb[0].mxu0 %v5057
    %v5199 = vpop.f32.mrb[0].mxu0
    %v5200 = vadd.f32 0.0, %v5199
    %v5201 = vpop.f32.mrb[0].mxu0
    %v5202 = vpop.f32.mrb[0].mxu0
    %v5203 = vadd.f32 0.0, %v5202
    %v5204 = vpop.f32.mrb[0].mxu0
    %5205 = vmatprep.mubr.bf16.mxu0 0
    %5206 = vmatmul.mubr.bf16.gmra.mrb[0].mxu0 %v5058
    %v5207 = vpop.f32.mrb[0].mxu0
    %v5208 = vadd.f32 0.0, %v5207
    %v5209 = vpop.f32.mrb[0].mxu0
    %v5210 = vpop.f32.mrb[0].mxu0
    %v5211 = vadd.f32 0.0, %v5210
    %v5212 = vpop.f32.mrb[0].mxu0
    %5213 = vmatprep.mubr.bf16.mxu0 0
    %5214 = vmatmul.mubr.bf16.gmra.mrb[0].mxu0 %v5059
    %v5215 = vpop.f32.mrb[0].mxu0
    %v5216 = vadd.f32 0.0, %v5215
    %v5217 = vpop.f32.mrb[0].mxu0
    %v5218 = vpop.f32.mrb[0].mxu0
    %v5219 = vadd.f32 0.0, %v5218
    %v5220 = vpop.f32.mrb[0].mxu0
    %5221 = vdwg.mxu0
    %v5222 = vadd.f32 %v5020, %v5160
    %v5223 = vadd.f32 %v5021, %v5163
    %v5224 = vadd.f32 %v5022, %v5168
    %v5225 = vadd.f32 %v5023, %v5171
    %v5226 = vadd.f32 %v5024, %v5176
    %v5227 = vadd.f32 %v5025, %v5179
    %v5228 = vadd.f32 %v5026, %v5184
    %v5229 = vadd.f32 %v5027, %v5187
    %v5230 = vadd.f32 %v5028, %v5192
    %v5231 = vadd.f32 %v5029, %v5195
    %v5232 = vadd.f32 %v5030, %v5200
    %v5233 = vadd.f32 %v5031, %v5203
    %v5234 = vadd.f32 %v5032, %v5208
    %v5235 = vadd.f32 %v5033, %v5211
    %v5236 = vadd.f32 %v5034, %v5216
    %v5237 = vadd.f32 %v5035, %v5219
    %v5238 = vsel %vm1717, %v4041, 0.0
    %v5239 = vsel %vm1718, %v4040, 0.0
    %v5240 = vsel %vm1719, %v4039, 0.0
    %v5241 = vsel %vm1720, %v4038, 0.0
    %v5242 = vsel %vm1721, %v4037, 0.0
    %v5243 = vsel %vm1722, %v4036, 0.0
    %v5244 = vsel %vm1723, %v4035, 0.0
    %v5245 = vsel %vm1724, %v4034, 0.0
    %v5246 = vsel %vm1725, %v4033, 0.0
    %v5247 = vsel %vm1726, %v4032, 0.0
    %v5248 = vsel %vm1727, %v4031, 0.0
    %v5249 = vsel %vm1728, %v4030, 0.0
    %v5250 = vsel %vm1729, %v4029, 0.0
    %v5251 = vsel %vm1730, %v4028, 0.0
    %v5252 = vsel %vm1731, %v4027, 0.0
    %v5253 = vsel %vm1732, %v4042, 0.0
    %v5254 = vpack.c.bf16 %v5239, %v5238
    %v5255 = vpack.c.bf16 %v5241, %v5240
    %v5256 = vpack.c.bf16 %v5243, %v5242
    %v5257 = vpack.c.bf16 %v5245, %v5244
    %v5258 = vpack.c.bf16 %v5247, %v5246
    %v5259 = vpack.c.bf16 %v5249, %v5248
    %v5260 = vpack.c.bf16 %v5251, %v5250
    %v5261 = vpack.c.bf16 %v5253, %v5252
    %s5262 = scalar_lea.vmem %s6, 384
    %v5263 = vld [vmem:[%s5262] sm:$0xf]
    %v5264 = vld [vmem:[%s5262 + $0x4] sm:$0xf]
    %v5265 = vld [vmem:[%s5262 + $0x8] sm:$0xf]
    %v5266 = vld [vmem:[%s5262 + $0xc] sm:$0xf]
    %v5267 = vld [vmem:[%s5262 + $0x10] sm:$0xf]
    %v5268 = vld [vmem:[%s5262 + $0x14] sm:$0xf]
    %v5269 = vld [vmem:[%s5262 + $0x18] sm:$0xf]
    %v5270 = vld [vmem:[%s5262 + $0x1c] sm:$0xf]
    %v5271 = vld [vmem:[%s5262 + $0x20] sm:$0xf]
    %v5272 = vld [vmem:[%s5262 + $0x24] sm:$0xf]
    %v5273 = vld [vmem:[%s5262 + $0x28] sm:$0xf]
    %v5274 = vld [vmem:[%s5262 + $0x2c] sm:$0xf]
    %v5275 = vld [vmem:[%s5262 + $0x30] sm:$0xf]
    %v5276 = vld [vmem:[%s5262 + $0x34] sm:$0xf]
    %v5277 = vld [vmem:[%s5262 + $0x38] sm:$0xf]
    %v5278 = vld [vmem:[%s5262 + $0x3c] sm:$0xf]
    %v5295 = vunpack.c.l.b16 %v5263
    %v5296 = vunpack.c.l.b16 %v5264
    %v5297 = vunpack.c.l.b16 %v5265
    %v5298 = vunpack.c.l.b16 %v5266
    %v5299 = vunpack.c.l.b16 %v5267
    %v5300 = vunpack.c.l.b16 %v5268
    %v5301 = vunpack.c.l.b16 %v5269
    %v5302 = vunpack.c.l.b16 %v5270
    %v5303 = vunpack.c.l.b16 %v5271
    %v5304 = vunpack.c.l.b16 %v5272
    %v5305 = vunpack.c.l.b16 %v5273
    %v5306 = vunpack.c.l.b16 %v5274
    %v5307 = vunpack.c.l.b16 %v5275
    %v5308 = vunpack.c.l.b16 %v5276
    %v5309 = vunpack.c.l.b16 %v5277
    %v5310 = vunpack.c.l.b16 %v5278
    %v5311 = vpack.c.b16 %v5296, %v5295
    %v5312 = vpack.c.b16 %v5298, %v5297
    %v5313 = vpack.c.b16 %v5300, %v5299
    %v5314 = vpack.c.b16 %v5302, %v5301
    %v5315 = vpack.c.b16 %v5304, %v5303
    %v5316 = vpack.c.b16 %v5306, %v5305
    %v5317 = vpack.c.b16 %v5308, %v5307
    %v5318 = vpack.c.b16 %v5310, %v5309
    %5327 = vmatprep.subr.bf16.mxu0 0
    %5328 = vmatpush1.bf16.msra.mxu0 %v5311
    %5329 = vmatprep.subr.bf16.mxu0 0
    %5330 = vmatpush1.bf16.msra.mxu0 %v5312
    %5331 = vmatprep.subr.bf16.mxu0 0
    %5332 = vmatpush1.bf16.msra.mxu0 %v5313
    %5333 = vmatprep.subr.bf16.mxu0 0
    %5334 = vmatpush1.bf16.msra.mxu0 %v5314
    %5335 = vmatprep.subr.bf16.mxu0 0
    %5336 = vmatpush1.bf16.msra.mxu0 %v5315
    %5337 = vmatprep.subr.bf16.mxu0 0
    %5338 = vmatpush1.bf16.msra.mxu0 %v5316
    %5339 = vmatprep.subr.bf16.mxu0 0
    %5340 = vmatpush1.bf16.msra.mxu0 %v5317
    %5341 = vmatprep.subr.bf16.mxu0 0
    %5342 = vmatpush1.bf16.msra.mxu0 %v5318
    %5343 = vmatprep.subr.bf16.mxu0 0
    %5344 = vmatpush1.bf16.msra.mxu0 0
    %5345 = vmatprep.subr.bf16.mxu0 0
    %5346 = vmatpush1.bf16.msra.mxu0 0
    %5347 = vmatprep.subr.bf16.mxu0 0
    %5348 = vmatpush1.bf16.msra.mxu0 0
    %5349 = vmatprep.subr.bf16.mxu0 0
    %5350 = vmatpush1.bf16.msra.mxu0 0
    %5351 = vmatprep.subr.bf16.mxu0 0
    %5352 = vmatpush1.bf16.msra.mxu0 0
    %5353 = vmatprep.subr.bf16.mxu0 0
    %5354 = vmatpush1.bf16.msra.mxu0 0
    %5355 = vmatprep.subr.bf16.mxu0 0
    %5356 = vmatpush1.bf16.msra.mxu0 0
    %5357 = vmatprep.subr.bf16.mxu0 0
    %5358 = vmatpush1.bf16.msra.mxu0 0
    %5359 = vmatprep.mubr.bf16.mxu0 0
    %5360 = vmatmul.mubr.bf16.gmra.mrb[0].mxu0 %v5254
    %v5361 = vpop.f32.mrb[0].mxu0
    %v5362 = vadd.f32 0.0, %v5361
    %v5363 = vpop.f32.mrb[0].mxu0
    %v5364 = vpop.f32.mrb[0].mxu0
    %v5365 = vadd.f32 0.0, %v5364
    %v5366 = vpop.f32.mrb[0].mxu0
    %5367 = vmatprep.mubr.bf16.mxu0 0
    %5368 = vmatmul.mubr.bf16.gmra.mrb[0].mxu0 %v5255
    %v5369 = vpop.f32.mrb[0].mxu0
    %v5370 = vadd.f32 0.0, %v5369
    %v5371 = vpop.f32.mrb[0].mxu0
    %v5372 = vpop.f32.mrb[0].mxu0
    %v5373 = vadd.f32 0.0, %v5372
    %v5374 = vpop.f32.mrb[0].mxu0
    %5375 = vmatprep.mubr.bf16.mxu0 0
    %5376 = vmatmul.mubr.bf16.gmra.mrb[0].mxu0 %v5256
    %v5377 = vpop.f32.mrb[0].mxu0
    %v5378 = vadd.f32 0.0, %v5377
    %v5379 = vpop.f32.mrb[0].mxu0
    %v5380 = vpop.f32.mrb[0].mxu0
    %v5381 = vadd.f32 0.0, %v5380
    %v5382 = vpop.f32.mrb[0].mxu0
    %5383 = vmatprep.mubr.bf16.mxu0 0
    %5384 = vmatmul.mubr.bf16.gmra.mrb[0].mxu0 %v5257
    %v5385 = vpop.f32.mrb[0].mxu0
    %v5386 = vadd.f32 0.0, %v5385
    %v5387 = vpop.f32.mrb[0].mxu0
    %v5388 = vpop.f32.mrb[0].mxu0
    %v5389 = vadd.f32 0.0, %v5388
    %v5390 = vpop.f32.mrb[0].mxu0
    %5391 = vmatprep.mubr.bf16.mxu0 0
    %5392 = vmatmul.mubr.bf16.gmra.mrb[0].mxu0 %v5258
    %v5393 = vpop.f32.mrb[0].mxu0
    %v5394 = vadd.f32 0.0, %v5393
    %v5395 = vpop.f32.mrb[0].mxu0
    %v5396 = vpop.f32.mrb[0].mxu0
    %v5397 = vadd.f32 0.0, %v5396
    %v5398 = vpop.f32.mrb[0].mxu0
    %5399 = vmatprep.mubr.bf16.mxu0 0
    %5400 = vmatmul.mubr.bf16.gmra.mrb[0].mxu0 %v5259
    %v5401 = vpop.f32.mrb[0].mxu0
    %v5402 = vadd.f32 0.0, %v5401
    %v5403 = vpop.f32.mrb[0].mxu0
    %v5404 = vpop.f32.mrb[0].mxu0
    %v5405 = vadd.f32 0.0, %v5404
    %v5406 = vpop.f32.mrb[0].mxu0
    %5407 = vmatprep.mubr.bf16.mxu0 0
    %5408 = vmatmul.mubr.bf16.gmra.mrb[0].mxu0 %v5260
    %v5409 = vpop.f32.mrb[0].mxu0
    %v5410 = vadd.f32 0.0, %v5409
    %v5411 = vpop.f32.mrb[0].mxu0
    %v5412 = vpop.f32.mrb[0].mxu0
    %v5413 = vadd.f32 0.0, %v5412
    %v5414 = vpop.f32.mrb[0].mxu0
    %5415 = vmatprep.mubr.bf16.mxu0 0
    %5416 = vmatmul.mubr.bf16.gmra.mrb[0].mxu0 %v5261
    %v5417 = vpop.f32.mrb[0].mxu0
    %v5418 = vadd.f32 0.0, %v5417
    %v5419 = vpop.f32.mrb[0].mxu0
    %v5420 = vpop.f32.mrb[0].mxu0
    %v5421 = vadd.f32 0.0, %v5420
    %v5422 = vpop.f32.mrb[0].mxu0
    %5423 = vdwg.mxu0
    %v5424 = vadd.f32 %v5222, %v5362
    %v5425 = vadd.f32 %v5223, %v5365
    %v5426 = vadd.f32 %v5224, %v5370
    %v5427 = vadd.f32 %v5225, %v5373
    %v5428 = vadd.f32 %v5226, %v5378
    %v5429 = vadd.f32 %v5227, %v5381
    %v5430 = vadd.f32 %v5228, %v5386
    %v5431 = vadd.f32 %v5229, %v5389
    %v5432 = vadd.f32 %v5230, %v5394
    %v5433 = vadd.f32 %v5231, %v5397
    %v5434 = vadd.f32 %v5232, %v5402
    %v5435 = vadd.f32 %v5233, %v5405
    %v5436 = vadd.f32 %v5234, %v5410
    %v5437 = vadd.f32 %v5235, %v5413
    %v5438 = vadd.f32 %v5236, %v5418
    %v5439 = vadd.f32 %v5237, %v5421
    %v5440 = vsel %vm1701, %v2427, 0.0
    %v5441 = vsel %vm1702, %v2428, 0.0
    %v5442 = vsel %vm1703, %v2429, 0.0
    %v5443 = vsel %vm1704, %v2430, 0.0
    %v5444 = vsel %vm1705, %v2431, 0.0
    %v5445 = vsel %vm1706, %v2432, 0.0
    %v5446 = vsel %vm1707, %v2433, 0.0
    %v5447 = vsel %vm1708, %v2434, 0.0
    %v5448 = vsel %vm1709, %v2435, 0.0
    %v5449 = vsel %vm1710, %v2436, 0.0
    %v5450 = vsel %vm1711, %v2437, 0.0
    %v5451 = vsel %vm1712, %v2438, 0.0
    %v5452 = vsel %vm1713, %v2439, 0.0
    %v5453 = vsel %vm1714, %v2440, 0.0
    %v5454 = vsel %vm1715, %v2441, 0.0
    %v5455 = vsel %vm1716, %v2426, 0.0
    %v5456 = vpack.c.bf16 %v5441, %v5440
    %v5457 = vpack.c.bf16 %v5443, %v5442
    %v5458 = vpack.c.bf16 %v5445, %v5444
    %v5459 = vpack.c.bf16 %v5447, %v5446
    %v5460 = vpack.c.bf16 %v5449, %v5448
    %v5461 = vpack.c.bf16 %v5451, %v5450
    %v5462 = vpack.c.bf16 %v5453, %v5452
    %v5463 = vpack.c.bf16 %v5455, %v5454
    %s5464 = scalar_lea.vmem %s6, 448
    %v5465 = vld [vmem:[%s5464] sm:$0xf]
    %v5466 = vld [vmem:[%s5464 + $0x4] sm:$0xf]
    %v5467 = vld [vmem:[%s5464 + $0x8] sm:$0xf]
    %v5468 = vld [vmem:[%s5464 + $0xc] sm:$0xf]
    %v5469 = vld [vmem:[%s5464 + $0x10] sm:$0xf]
    %v5470 = vld [vmem:[%s5464 + $0x14] sm:$0xf]
    %v5471 = vld [vmem:[%s5464 + $0x18] sm:$0xf]
    %v5472 = vld [vmem:[%s5464 + $0x1c] sm:$0xf]
    %v5473 = vld [vmem:[%s5464 + $0x20] sm:$0xf]
    %v5474 = vld [vmem:[%s5464 + $0x24] sm:$0xf]
    %v5475 = vld [vmem:[%s5464 + $0x28] sm:$0xf]
    %v5476 = vld [vmem:[%s5464 + $0x2c] sm:$0xf]
    %v5477 = vld [vmem:[%s5464 + $0x30] sm:$0xf]
    %v5478 = vld [vmem:[%s5464 + $0x34] sm:$0xf]
    %v5479 = vld [vmem:[%s5464 + $0x38] sm:$0xf]
    %v5480 = vld [vmem:[%s5464 + $0x3c] sm:$0xf]
    %v5497 = vunpack.c.l.b16 %v5465
    %v5498 = vunpack.c.l.b16 %v5466
    %v5499 = vunpack.c.l.b16 %v5467
    %v5500 = vunpack.c.l.b16 %v5468
    %v5501 = vunpack.c.l.b16 %v5469
    %v5502 = vunpack.c.l.b16 %v5470
    %v5503 = vunpack.c.l.b16 %v5471
    %v5504 = vunpack.c.l.b16 %v5472
    %v5505 = vunpack.c.l.b16 %v5473
    %v5506 = vunpack.c.l.b16 %v5474
    %v5507 = vunpack.c.l.b16 %v5475
    %v5508 = vunpack.c.l.b16 %v5476
    %v5509 = vunpack.c.l.b16 %v5477
    %v5510 = vunpack.c.l.b16 %v5478
    %v5511 = vunpack.c.l.b16 %v5479
    %v5512 = vunpack.c.l.b16 %v5480
    %v5513 = vpack.c.b16 %v5498, %v5497
    %v5514 = vpack.c.b16 %v5500, %v5499
    %v5515 = vpack.c.b16 %v5502, %v5501
    %v5516 = vpack.c.b16 %v5504, %v5503
    %v5517 = vpack.c.b16 %v5506, %v5505
    %v5518 = vpack.c.b16 %v5508, %v5507
    %v5519 = vpack.c.b16 %v5510, %v5509
    %v5520 = vpack.c.b16 %v5512, %v5511
    %5529 = vmatprep.subr.bf16.mxu0 0
    %5530 = vmatpush1.bf16.msra.mxu0 %v5513
    %5531 = vmatprep.subr.bf16.mxu0 0
    %5532 = vmatpush1.bf16.msra.mxu0 %v5514
    %5533 = vmatprep.subr.bf16.mxu0 0
    %5534 = vmatpush1.bf16.msra.mxu0 %v5515
    %5535 = vmatprep.subr.bf16.mxu0 0
    %5536 = vmatpush1.bf16.msra.mxu0 %v5516
    %5537 = vmatprep.subr.bf16.mxu0 0
    %5538 = vmatpush1.bf16.msra.mxu0 %v5517
    %5539 = vmatprep.subr.bf16.mxu0 0
    %5540 = vmatpush1.bf16.msra.mxu0 %v5518
    %5541 = vmatprep.subr.bf16.mxu0 0
    %5542 = vmatpush1.bf16.msra.mxu0 %v5519
    %5543 = vmatprep.subr.bf16.mxu0 0
    %5544 = vmatpush1.bf16.msra.mxu0 %v5520
    %5545 = vmatprep.subr.bf16.mxu0 0
    %5546 = vmatpush1.bf16.msra.mxu0 0
    %5547 = vmatprep.subr.bf16.mxu0 0
    %5548 = vmatpush1.bf16.msra.mxu0 0
    %5549 = vmatprep.subr.bf16.mxu0 0
    %5550 = vmatpush1.bf16.msra.mxu0 0
    %5551 = vmatprep.subr.bf16.mxu0 0
    %5552 = vmatpush1.bf16.msra.mxu0 0
    %5553 = vmatprep.subr.bf16.mxu0 0
    %5554 = vmatpush1.bf16.msra.mxu0 0
    %5555 = vmatprep.subr.bf16.mxu0 0
    %5556 = vmatpush1.bf16.msra.mxu0 0
    %5557 = vmatprep.subr.bf16.mxu0 0
    %5558 = vmatpush1.bf16.msra.mxu0 0
    %5559 = vmatprep.subr.bf16.mxu0 0
    %5560 = vmatpush1.bf16.msra.mxu0 0
    %5561 = vmatprep.mubr.bf16.mxu0 0
    %5562 = vmatmul.mubr.bf16.gmra.mrb[0].mxu0 %v5456
    %v5563 = vpop.f32.mrb[0].mxu0
    %v5564 = vadd.f32 0.0, %v5563
    %v5565 = vpop.f32.mrb[0].mxu0
    %v5566 = vpop.f32.mrb[0].mxu0
    %v5567 = vadd.f32 0.0, %v5566
    %v5568 = vpop.f32.mrb[0].mxu0
    %5569 = vmatprep.mubr.bf16.mxu0 0
    %5570 = vmatmul.mubr.bf16.gmra.mrb[0].mxu0 %v5457
    %v5571 = vpop.f32.mrb[0].mxu0
    %v5572 = vadd.f32 0.0, %v5571
    %v5573 = vpop.f32.mrb[0].mxu0
    %v5574 = vpop.f32.mrb[0].mxu0
    %v5575 = vadd.f32 0.0, %v5574
    %v5576 = vpop.f32.mrb[0].mxu0
    %5577 = vmatprep.mubr.bf16.mxu0 0
    %5578 = vmatmul.mubr.bf16.gmra.mrb[0].mxu0 %v5458
    %v5579 = vpop.f32.mrb[0].mxu0
    %v5580 = vadd.f32 0.0, %v5579
    %v5581 = vpop.f32.mrb[0].mxu0
    %v5582 = vpop.f32.mrb[0].mxu0
    %v5583 = vadd.f32 0.0, %v5582
    %v5584 = vpop.f32.mrb[0].mxu0
    %5585 = vmatprep.mubr.bf16.mxu0 0
    %5586 = vmatmul.mubr.bf16.gmra.mrb[0].mxu0 %v5459
    %v5587 = vpop.f32.mrb[0].mxu0
    %v5588 = vadd.f32 0.0, %v5587
    %v5589 = vpop.f32.mrb[0].mxu0
    %v5590 = vpop.f32.mrb[0].mxu0
    %v5591 = vadd.f32 0.0, %v5590
    %v5592 = vpop.f32.mrb[0].mxu0
    %5593 = vmatprep.mubr.bf16.mxu0 0
    %5594 = vmatmul.mubr.bf16.gmra.mrb[0].mxu0 %v5460
    %v5595 = vpop.f32.mrb[0].mxu0
    %v5596 = vadd.f32 0.0, %v5595
    %v5597 = vpop.f32.mrb[0].mxu0
    %v5598 = vpop.f32.mrb[0].mxu0
    %v5599 = vadd.f32 0.0, %v5598
    %v5600 = vpop.f32.mrb[0].mxu0
    %5601 = vmatprep.mubr.bf16.mxu0 0
    %5602 = vmatmul.mubr.bf16.gmra.mrb[0].mxu0 %v5461
    %v5603 = vpop.f32.mrb[0].mxu0
    %v5604 = vadd.f32 0.0, %v5603
    %v5605 = vpop.f32.mrb[0].mxu0
    %v5606 = vpop.f32.mrb[0].mxu0
    %v5607 = vadd.f32 0.0, %v5606
    %v5608 = vpop.f32.mrb[0].mxu0
    %5609 = vmatprep.mubr.bf16.mxu0 0
    %5610 = vmatmul.mubr.bf16.gmra.mrb[0].mxu0 %v5462
    %v5611 = vpop.f32.mrb[0].mxu0
    %v5612 = vadd.f32 0.0, %v5611
    %v5613 = vpop.f32.mrb[0].mxu0
    %v5614 = vpop.f32.mrb[0].mxu0
    %v5615 = vadd.f32 0.0, %v5614
    %v5616 = vpop.f32.mrb[0].mxu0
    %5617 = vmatprep.mubr.bf16.mxu0 0
    %5618 = vmatmul.mubr.bf16.gmra.mrb[0].mxu0 %v5463
    %v5619 = vpop.f32.mrb[0].mxu0
    %v5620 = vadd.f32 0.0, %v5619
    %v5621 = vpop.f32.mrb[0].mxu0
    %v5622 = vpop.f32.mrb[0].mxu0
    %v5623 = vadd.f32 0.0, %v5622
    %v5624 = vpop.f32.mrb[0].mxu0
    %5625 = vdwg.mxu0
    %v5626 = vadd.f32 %v5424, %v5564
    %v5627 = vadd.f32 %v5425, %v5567
    %v5628 = vadd.f32 %v5426, %v5572
    %v5629 = vadd.f32 %v5427, %v5575
    %v5630 = vadd.f32 %v5428, %v5580
    %v5631 = vadd.f32 %v5429, %v5583
    %v5632 = vadd.f32 %v5430, %v5588
    %v5633 = vadd.f32 %v5431, %v5591
    %v5634 = vadd.f32 %v5432, %v5596
    %v5635 = vadd.f32 %v5433, %v5599
    %v5636 = vadd.f32 %v5434, %v5604
    %v5637 = vadd.f32 %v5435, %v5607
    %v5638 = vadd.f32 %v5436, %v5612
    %v5639 = vadd.f32 %v5437, %v5615
    %v5640 = vadd.f32 %v5438, %v5620
    %v5641 = vadd.f32 %v5439, %v5623
    %v5642 = vsel %vm2137, %v4443, 0.0
    %v5643 = vsel %vm2138, %v4442, 0.0
    %v5644 = vsel %vm2139, %v4441, 0.0
    %v5645 = vsel %vm2140, %v4440, 0.0
    %v5646 = vsel %vm2141, %v4439, 0.0
    %v5647 = vsel %vm2142, %v4438, 0.0
    %v5648 = vsel %vm2143, %v4437, 0.0
    %v5649 = vsel %vm2144, %v4436, 0.0
    %v5650 = vsel %vm2145, %v4435, 0.0
    %v5651 = vsel %vm2146, %v4434, 0.0
    %v5652 = vsel %vm2147, %v4433, 0.0
    %v5653 = vsel %vm2148, %v4432, 0.0
    %v5654 = vsel %vm2149, %v4431, 0.0
    %v5655 = vsel %vm2150, %v4430, 0.0
    %v5656 = vsel %vm2151, %v4445, 0.0
    %v5657 = vsel %vm2152, %v4444, 0.0
    %v5658 = vpack.c.bf16 %v5643, %v5642
    %v5659 = vpack.c.bf16 %v5645, %v5644
    %v5660 = vpack.c.bf16 %v5647, %v5646
    %v5661 = vpack.c.bf16 %v5649, %v5648
    %v5662 = vpack.c.bf16 %v5651, %v5650
    %v5663 = vpack.c.bf16 %v5653, %v5652
    %v5664 = vpack.c.bf16 %v5655, %v5654
    %v5665 = vpack.c.bf16 %v5657, %v5656
    %s5666 = scalar_lea.vmem %s6, 512
    %v5667 = vld [vmem:[%s5666] sm:$0xf]
    %v5668 = vld [vmem:[%s5666 + $0x4] sm:$0xf]
    %v5669 = vld [vmem:[%s5666 + $0x8] sm:$0xf]
    %v5670 = vld [vmem:[%s5666 + $0xc] sm:$0xf]
    %v5671 = vld [vmem:[%s5666 + $0x10] sm:$0xf]
    %v5672 = vld [vmem:[%s5666 + $0x14] sm:$0xf]
    %v5673 = vld [vmem:[%s5666 + $0x18] sm:$0xf]
    %v5674 = vld [vmem:[%s5666 + $0x1c] sm:$0xf]
    %v5675 = vld [vmem:[%s5666 + $0x20] sm:$0xf]
    %v5676 = vld [vmem:[%s5666 + $0x24] sm:$0xf]
    %v5677 = vld [vmem:[%s5666 + $0x28] sm:$0xf]
    %v5678 = vld [vmem:[%s5666 + $0x2c] sm:$0xf]
    %v5679 = vld [vmem:[%s5666 + $0x30] sm:$0xf]
    %v5680 = vld [vmem:[%s5666 + $0x34] sm:$0xf]
    %v5681 = vld [vmem:[%s5666 + $0x38] sm:$0xf]
    %v5682 = vld [vmem:[%s5666 + $0x3c] sm:$0xf]
    %v5699 = vunpack.c.l.b16 %v5667
    %v5700 = vunpack.c.l.b16 %v5668
    %v5701 = vunpack.c.l.b16 %v5669
    %v5702 = vunpack.c.l.b16 %v5670
    %v5703 = vunpack.c.l.b16 %v5671
    %v5704 = vunpack.c.l.b16 %v5672
    %v5705 = vunpack.c.l.b16 %v5673
    %v5706 = vunpack.c.l.b16 %v5674
    %v5707 = vunpack.c.l.b16 %v5675
    %v5708 = vunpack.c.l.b16 %v5676
    %v5709 = vunpack.c.l.b16 %v5677
    %v5710 = vunpack.c.l.b16 %v5678
    %v5711 = vunpack.c.l.b16 %v5679
    %v5712 = vunpack.c.l.b16 %v5680
    %v5713 = vunpack.c.l.b16 %v5681
    %v5714 = vunpack.c.l.b16 %v5682
    %v5715 = vpack.c.b16 %v5700, %v5699
    %v5716 = vpack.c.b16 %v5702, %v5701
    %v5717 = vpack.c.b16 %v5704, %v5703
    %v5718 = vpack.c.b16 %v5706, %v5705
    %v5719 = vpack.c.b16 %v5708, %v5707
    %v5720 = vpack.c.b16 %v5710, %v5709
    %v5721 = vpack.c.b16 %v5712, %v5711
    %v5722 = vpack.c.b16 %v5714, %v5713
    %5731 = vmatprep.subr.bf16.mxu0 0
    %5732 = vmatpush1.bf16.msra.mxu0 %v5715
    %5733 = vmatprep.subr.bf16.mxu0 0
    %5734 = vmatpush1.bf16.msra.mxu0 %v5716
    %5735 = vmatprep.subr.bf16.mxu0 0
    %5736 = vmatpush1.bf16.msra.mxu0 %v5717
    %5737 = vmatprep.subr.bf16.mxu0 0
    %5738 = vmatpush1.bf16.msra.mxu0 %v5718
    %5739 = vmatprep.subr.bf16.mxu0 0
    %5740 = vmatpush1.bf16.msra.mxu0 %v5719
    %5741 = vmatprep.subr.bf16.mxu0 0
    %5742 = vmatpush1.bf16.msra.mxu0 %v5720
    %5743 = vmatprep.subr.bf16.mxu0 0
    %5744 = vmatpush1.bf16.msra.mxu0 %v5721
    %5745 = vmatprep.subr.bf16.mxu0 0
    %5746 = vmatpush1.bf16.msra.mxu0 %v5722
    %5747 = vmatprep.subr.bf16.mxu0 0
    %5748 = vmatpush1.bf16.msra.mxu0 0
    %5749 = vmatprep.subr.bf16.mxu0 0
    %5750 = vmatpush1.bf16.msra.mxu0 0
    %5751 = vmatprep.subr.bf16.mxu0 0
    %5752 = vmatpush1.bf16.msra.mxu0 0
    %5753 = vmatprep.subr.bf16.mxu0 0
    %5754 = vmatpush1.bf16.msra.mxu0 0
    %5755 = vmatprep.subr.bf16.mxu0 0
    %5756 = vmatpush1.bf16.msra.mxu0 0
    %5757 = vmatprep.subr.bf16.mxu0 0
    %5758 = vmatpush1.bf16.msra.mxu0 0
    %5759 = vmatprep.subr.bf16.mxu0 0
    %5760 = vmatpush1.bf16.msra.mxu0 0
    %5761 = vmatprep.subr.bf16.mxu0 0
    %5762 = vmatpush1.bf16.msra.mxu0 0
    %5763 = vmatprep.mubr.bf16.mxu0 0
    %5764 = vmatmul.mubr.bf16.gmra.mrb[0].mxu0 %v5658
    %v5765 = vpop.f32.mrb[0].mxu0
    %v5766 = vadd.f32 0.0, %v5765
    %v5767 = vpop.f32.mrb[0].mxu0
    %v5768 = vpop.f32.mrb[0].mxu0
    %v5769 = vadd.f32 0.0, %v5768
    %v5770 = vpop.f32.mrb[0].mxu0
    %5771 = vmatprep.mubr.bf16.mxu0 0
    %5772 = vmatmul.mubr.bf16.gmra.mrb[0].mxu0 %v5659
    %v5773 = vpop.f32.mrb[0].mxu0
    %v5774 = vadd.f32 0.0, %v5773
    %v5775 = vpop.f32.mrb[0].mxu0
    %v5776 = vpop.f32.mrb[0].mxu0
    %v5777 = vadd.f32 0.0, %v5776
    %v5778 = vpop.f32.mrb[0].mxu0
    %5779 = vmatprep.mubr.bf16.mxu0 0
    %5780 = vmatmul.mubr.bf16.gmra.mrb[0].mxu0 %v5660
    %v5781 = vpop.f32.mrb[0].mxu0
    %v5782 = vadd.f32 0.0, %v5781
    %v5783 = vpop.f32.mrb[0].mxu0
    %v5784 = vpop.f32.mrb[0].mxu0
    %v5785 = vadd.f32 0.0, %v5784
    %v5786 = vpop.f32.mrb[0].mxu0
    %5787 = vmatprep.mubr.bf16.mxu0 0
    %5788 = vmatmul.mubr.bf16.gmra.mrb[0].mxu0 %v5661
    %v5789 = vpop.f32.mrb[0].mxu0
    %v5790 = vadd.f32 0.0, %v5789
    %v5791 = vpop.f32.mrb[0].mxu0
    %v5792 = vpop.f32.mrb[0].mxu0
    %v5793 = vadd.f32 0.0, %v5792
    %v5794 = vpop.f32.mrb[0].mxu0
    %5795 = vmatprep.mubr.bf16.mxu0 0
    %5796 = vmatmul.mubr.bf16.gmra.mrb[0].mxu0 %v5662
    %v5797 = vpop.f32.mrb[0].mxu0
    %v5798 = vadd.f32 0.0, %v5797
    %v5799 = vpop.f32.mrb[0].mxu0
    %v5800 = vpop.f32.mrb[0].mxu0
    %v5801 = vadd.f32 0.0, %v5800
    %v5802 = vpop.f32.mrb[0].mxu0
    %5803 = vmatprep.mubr.bf16.mxu0 0
    %5804 = vmatmul.mubr.bf16.gmra.mrb[0].mxu0 %v5663
    %v5805 = vpop.f32.mrb[0].mxu0
    %v5806 = vadd.f32 0.0, %v5805
    %v5807 = vpop.f32.mrb[0].mxu0
    %v5808 = vpop.f32.mrb[0].mxu0
    %v5809 = vadd.f32 0.0, %v5808
    %v5810 = vpop.f32.mrb[0].mxu0
    %5811 = vmatprep.mubr.bf16.mxu0 0
    %5812 = vmatmul.mubr.bf16.gmra.mrb[0].mxu0 %v5664
    %v5813 = vpop.f32.mrb[0].mxu0
    %v5814 = vadd.f32 0.0, %v5813
    %v5815 = vpop.f32.mrb[0].mxu0
    %v5816 = vpop.f32.mrb[0].mxu0
    %v5817 = vadd.f32 0.0, %v5816
    %v5818 = vpop.f32.mrb[0].mxu0
    %5819 = vmatprep.mubr.bf16.mxu0 0
    %5820 = vmatmul.mubr.bf16.gmra.mrb[0].mxu0 %v5665
    %v5821 = vpop.f32.mrb[0].mxu0
    %v5822 = vadd.f32 0.0, %v5821
    %v5823 = vpop.f32.mrb[0].mxu0
    %v5824 = vpop.f32.mrb[0].mxu0
    %v5825 = vadd.f32 0.0, %v5824
    %v5826 = vpop.f32.mrb[0].mxu0
    %5827 = vdwg.mxu0
    %v5828 = vadd.f32 %v5626, %v5766
    %v5829 = vadd.f32 %v5627, %v5769
    %v5830 = vadd.f32 %v5628, %v5774
    %v5831 = vadd.f32 %v5629, %v5777
    %v5832 = vadd.f32 %v5630, %v5782
    %v5833 = vadd.f32 %v5631, %v5785
    %v5834 = vadd.f32 %v5632, %v5790
    %v5835 = vadd.f32 %v5633, %v5793
    %v5836 = vadd.f32 %v5634, %v5798
    %v5837 = vadd.f32 %v5635, %v5801
    %v5838 = vadd.f32 %v5636, %v5806
    %v5839 = vadd.f32 %v5637, %v5809
    %v5840 = vadd.f32 %v5638, %v5814
    %v5841 = vadd.f32 %v5639, %v5817
    %v5842 = vadd.f32 %v5640, %v5822
    %v5843 = vadd.f32 %v5641, %v5825
    %v5844 = vld [vmem:[%s7] sm:$0x1]
    %v5846 = vlaneseq
    %v5847 = vshrl.u32 %v5846, 7
    %v5848 = vsub.s32 0, %v5847
    %v5849 = vrot.slane %v5844, %v5848
    %v5851 = vadd.f32 %v5828, %v5849
    %v5852 = vadd.f32 %v5829, %v5849
    %v5853 = vadd.f32 %v5830, %v5849
    %v5854 = vadd.f32 %v5831, %v5849
    %v5855 = vadd.f32 %v5832, %v5849
    %v5856 = vadd.f32 %v5833, %v5849
    %v5857 = vadd.f32 %v5834, %v5849
    %v5858 = vadd.f32 %v5835, %v5849
    %v5859 = vadd.f32 %v5836, %v5849
    %v5860 = vadd.f32 %v5837, %v5849
    %v5861 = vadd.f32 %v5838, %v5849
    %v5862 = vadd.f32 %v5839, %v5849
    %v5863 = vadd.f32 %v5840, %v5849
    %v5864 = vadd.f32 %v5841, %v5849
    %v5865 = vadd.f32 %v5842, %v5849
    %v5866 = vadd.f32 %v5843, %v5849
    %vm5867 = vcmp.ge.f32.partialorder %v5851, 0.0
    %vm5868 = vcmp.ge.f32.partialorder %v5852, 0.0
    %vm5869 = vcmp.ge.f32.partialorder %v5853, 0.0
    %vm5870 = vcmp.ge.f32.partialorder %v5854, 0.0
    %vm5871 = vcmp.ge.f32.partialorder %v5855, 0.0
    %vm5872 = vcmp.ge.f32.partialorder %v5856, 0.0
    %vm5873 = vcmp.ge.f32.partialorder %v5857, 0.0
    %vm5874 = vcmp.ge.f32.partialorder %v5858, 0.0
    %vm5875 = vcmp.ge.f32.partialorder %v5859, 0.0
    %vm5876 = vcmp.ge.f32.partialorder %v5860, 0.0
    %vm5877 = vcmp.ge.f32.partialorder %v5861, 0.0
    %vm5878 = vcmp.ge.f32.partialorder %v5862, 0.0
    %vm5879 = vcmp.ge.f32.partialorder %v5863, 0.0
    %vm5880 = vcmp.ge.f32.partialorder %v5864, 0.0
    %vm5881 = vcmp.ge.f32.partialorder %v5865, 0.0
    %vm5882 = vcmp.ge.f32.partialorder %v5866, 0.0
    %v5883 = vmul.f32 %v5851, 0.2
    %v5884 = vmul.f32 %v5852, 0.2
    %v5885 = vmul.f32 %v5853, 0.2
    %v5886 = vmul.f32 %v5854, 0.2
    %v5887 = vmul.f32 %v5855, 0.2
    %v5888 = vmul.f32 %v5856, 0.2
    %v5889 = vmul.f32 %v5857, 0.2
    %v5890 = vmul.f32 %v5858, 0.2
    %v5891 = vmul.f32 %v5859, 0.2
    %v5892 = vmul.f32 %v5860, 0.2
    %v5893 = vmul.f32 %v5861, 0.2
    %v5894 = vmul.f32 %v5862, 0.2
    %v5895 = vmul.f32 %v5863, 0.2
    %v5896 = vmul.f32 %v5864, 0.2
    %v5897 = vmul.f32 %v5865, 0.2
    %v5898 = vmul.f32 %v5866, 0.2
    %v5899 = vsel %vm5867, %v5851, %v5883
    %v5900 = vsel %vm5868, %v5852, %v5884
    %v5901 = vsel %vm5869, %v5853, %v5885
    %v5902 = vsel %vm5870, %v5854, %v5886
    %v5903 = vsel %vm5871, %v5855, %v5887
    %v5904 = vsel %vm5872, %v5856, %v5888
    %v5905 = vsel %vm5873, %v5857, %v5889
    %v5906 = vsel %vm5874, %v5858, %v5890
    %v5907 = vsel %vm5875, %v5859, %v5891
    %v5908 = vsel %vm5876, %v5860, %v5892
    %v5909 = vsel %vm5877, %v5861, %v5893
    %v5910 = vsel %vm5878, %v5862, %v5894
    %v5911 = vsel %vm5879, %v5863, %v5895
    %v5912 = vsel %vm5880, %v5864, %v5896
    %v5913 = vsel %vm5881, %v5865, %v5897
    %v5914 = vsel %vm5882, %v5866, %v5898
    %5915 = vst [vmem:[#allocation2] sm:$0xff] 0.0
    %5916 = vst [vmem:[#allocation2 + $0x8] sm:$0xff] 0.0
    %5917 = vst [vmem:[#allocation2 + $0x10] sm:$0xff] 0.0
    %5918 = vst [vmem:[#allocation2 + $0x18] sm:$0xff] 0.0
    %5919 = vst [vmem:[#allocation2 + $0x20] sm:$0xff] 0.0
    %5920 = vst [vmem:[#allocation2 + $0x28] sm:$0xff] 0.0
    %5921 = vst [vmem:[#allocation2 + $0x30] sm:$0xff] 0.0
    %5922 = vst [vmem:[#allocation2 + $0x38] sm:$0xff] 0.0
    %5923 = vst [vmem:[#allocation2 + $0x40] sm:$0xff] 0.0
    %5924 = vst [vmem:[#allocation2 + $0x48] sm:$0xff] 0.0
    %5925 = vst [vmem:[#allocation2 + $0x50] sm:$0xff] 0.0
    %5926 = vst [vmem:[#allocation2 + $0x58] sm:$0xff] 0.0
    %5927 = vst [vmem:[#allocation2 + $0x60] sm:$0xff] 0.0
    %5928 = vst [vmem:[#allocation2 + $0x68] sm:$0xff] 0.0
    %5929 = vst [vmem:[#allocation2 + $0x70] sm:$0xff] 0.0
    %5930 = vst [vmem:[#allocation2 + $0x78] sm:$0xff] 0.0
    %v5931 = vadd.f32 %v3995, %v5899
    %v5932 = vadd.f32 %v3996, %v5900
    %v5933 = vadd.f32 %v3997, %v5901
    %v5934 = vadd.f32 %v3998, %v5902
    %v5935 = vadd.f32 %v3999, %v5903
    %v5936 = vadd.f32 %v4000, %v5904
    %v5937 = vadd.f32 %v4001, %v5905
    %v5938 = vadd.f32 %v4002, %v5906
    %v5939 = vadd.f32 %v4003, %v5907
    %v5940 = vadd.f32 %v4004, %v5908
    %v5941 = vadd.f32 %v4005, %v5909
    %v5942 = vadd.f32 %v4006, %v5910
    %v5943 = vadd.f32 %v4007, %v5911
    %v5944 = vadd.f32 %v4008, %v5912
    %v5945 = vadd.f32 %v4009, %v5913
    %v5946 = vadd.f32 %v4010, %v5914
    %vm5947 = vcmask 261120
    %5948 = vst.msk [vmem:[#allocation2] sm:$0xff] %vm5947, %v5931
    %5949 = vst.msk [vmem:[#allocation2 + $0x8] sm:$0xff] %vm5947, %v5932
    %5950 = vst.msk [vmem:[#allocation2 + $0x10] sm:$0xff] %vm5947, %v5933
    %5951 = vst.msk [vmem:[#allocation2 + $0x18] sm:$0xff] %vm5947, %v5934
    %5952 = vst.msk [vmem:[#allocation2 + $0x20] sm:$0xff] %vm5947, %v5935
    %5953 = vst.msk [vmem:[#allocation2 + $0x28] sm:$0xff] %vm5947, %v5936
    %5954 = vst.msk [vmem:[#allocation2 + $0x30] sm:$0xff] %vm5947, %v5937
    %5955 = vst.msk [vmem:[#allocation2 + $0x38] sm:$0xff] %vm5947, %v5938
    %5956 = vst.msk [vmem:[#allocation2 + $0x40] sm:$0xff] %vm5947, %v5939
    %5957 = vst.msk [vmem:[#allocation2 + $0x48] sm:$0xff] %vm5947, %v5940
    %5958 = vst.msk [vmem:[#allocation2 + $0x50] sm:$0xff] %vm5947, %v5941
    %5959 = vst.msk [vmem:[#allocation2 + $0x58] sm:$0xff] %vm5947, %v5942
    %5960 = vst.msk [vmem:[#allocation2 + $0x60] sm:$0xff] %vm5947, %v5943
    %5961 = vst.msk [vmem:[#allocation2 + $0x68] sm:$0xff] %vm5947, %v5944
    %5962 = vst.msk [vmem:[#allocation2 + $0x70] sm:$0xff] %vm5947, %v5945
    %5963 = vst.msk [vmem:[#allocation2 + $0x78] sm:$0xff] %vm5947, %v5946
    // Predicated region
    $region34: #{discriminator_block_forward.1} parent=1 // pred_check
      _
    $region35: #{discriminator_block_forward.1} parent=1 // pred_check_branch
      %5965 = sbr.rel (0) target = $region37
    $region36: #{discriminator_block_forward.1} parent=1 // pred_region
      %s5967 = ssub.s32 2048, 2048
      %5968 = vsyncadd [#allocation3], %s5967
      %s5969 = sshll.u32 [#allocation2], 4
      %s5970 = int_to_ptr.vmem [resolvable:$true] %s5969
      %5975 = dma.vmem_to_hbm [thread:$0]  %s5970, 2048, %s8, [#allocation3], 128, 128, 8
    $region37: #{discriminator_block_forward.1} parent=1 // pred_fallthru
      _
    // Predicated region
    $region38: #{discriminator_block_forward.1} parent=1 // pred_check
      _
    $region39: #{discriminator_block_forward.1} parent=1 // pred_check_branch
      %5977 = sbr.rel (0) target = $region41
    $region40: #{discriminator_block_forward.1} parent=1 // pred_region
      %5978 = dma.done [#allocation3], 2048
    $region41: #{discriminator_block_forward.1} parent=1 // pred_fallthru
      _
    %5979 = vsyncpa [#allocation3], 1

</llo_original>
